<compile_context>
chip_gen: v6e
topology: v6e:2x2x1
jax: 0.10.0
libtpu: 0.0.40
codegen_flags: <defaults>
</compile_context>

<pallas_src>
import jax
import jax.numpy as jnp
from jax.experimental import pallas as pl
from jax.experimental.pallas import tpu as pltpu

# ----------------------------- toy configuration ---------------------------
IMG = 32          # input spatial size (real model: 224)
IN_CH = 3
STEM_CH = 32      # stem conv output channels (same as real model)
LAST_CH = 128     # last 1x1 conv channels (real model: 1280)
BN_EPS = 1e-5     # nn.BatchNorm2d default used by torchvision MobileNetV2
# (expand_ratio t, out_channels c, stride s) — toy subset of the real table.
BLOCK_CFG = (
    (1, 16, 1),   # mirrors the real first block (t=1, no expansion)
    (6, 32, 2),   # one stride-2 stage
    (6, 32, 1),   # stride-1, cin == cout  -> residual connection
)


# ------------------------------ parameter setup ----------------------------

def _fold_bn(w, gamma, beta, mean, var):
    """Conv (no bias) followed by eval-mode BatchNorm -> folded (weight, bias).

    `w` has its output-channel axis LAST (matmul layout), so the per-channel BN
    scale broadcasts over the last dim.
    """
    scale = gamma / jnp.sqrt(var + BN_EPS)
    return w * scale, beta - mean * scale


def init_params(key):
    """Random frozen weights; every Conv+BN pair is pre-folded (eval mode)."""
    keys = iter(jax.random.split(key, 64))

    def conv_bn(kin, kout):
        w = 0.1 * jax.random.normal(next(keys), (kin, kout), jnp.float32)
        gamma = 1.0 + 0.1 * jax.random.normal(next(keys), (kout,), jnp.float32)
        beta = 0.1 * jax.random.normal(next(keys), (kout,), jnp.float32)
        mean = 0.1 * jax.random.normal(next(keys), (kout,), jnp.float32)
        var = jnp.abs(1.0 + 0.1 * jax.random.normal(next(keys), (kout,), jnp.float32))
        return _fold_bn(w, gamma, beta, mean, var)

    params = {}
    # Stem Conv2d(3, 32, k=3, s=2, p=1, bias=False)+BN+ReLU6 as an im2col matmul.
    # A real torchvision checkpoint maps via w.reshape(Cout, Cin*9).T (Cin-major,
    # tap index = 3*di + dj), matching the patch extraction below.
    params["stem_w"], params["stem_b"] = conv_bn(IN_CH * 9, STEM_CH)

    blocks = []
    cin = STEM_CH
    for t, cout, _stride in BLOCK_CFG:
        cexp = cin * t
        blk = {}
        if t != 1:
            blk["ew"], blk["eb"] = conv_bn(cin, cexp)     # expand 1x1 + BN
        blk["dw"], blk["db"] = conv_bn(9, cexp)           # depthwise 3x3 + BN
        blk["pw"], blk["pb"] = conv_bn(cexp, cout)        # project 1x1 + BN (linear)
        blocks.append(blk)
        cin = cout
    params["blocks"] = blocks

    params["last_w"], params["last_b"] = conv_bn(cin, LAST_CH)
    # classifier: Dropout(0.2) is identity in eval; new Linear(LAST_CH, 1) head.
    params["head_w"] = 0.1 * jax.random.normal(next(keys), (LAST_CH, 1), jnp.float32)
    params["head_b"] = jnp.zeros((1,), jnp.float32)
    return params


# ------------------------------- Pallas kernels ----------------------------

def _stem_kernel(p_ref, w_ref, b_ref, o_ref):
    """Fused: im2col patches @ folded conv weight + BN bias + ReLU6."""
    p = p_ref[...].astype(jnp.bfloat16)
    w = w_ref[...].astype(jnp.bfloat16)
    acc = jnp.dot(p, w, preferred_element_type=jnp.float32) + b_ref[...]
    o_ref[...] = jnp.clip(acc, 0.0, 6.0).astype(o_ref.dtype)


def stem_conv(patches, w, b):
    M, K = patches.shape
    N = w.shape[1]
    tile_m = 128 if M % 128 == 0 else M
    return pl.pallas_call(
        _stem_kernel,
        out_shape=jax.ShapeDtypeStruct((M, N), jnp.float32),
        grid=(M // tile_m,),
        in_specs=[pl.BlockSpec((tile_m, K), lambda i: (i, 0)),
                  pl.BlockSpec((K, N), lambda i: (0, 0)),
                  pl.BlockSpec((1, N), lambda i: (0, 0))],
        out_specs=pl.BlockSpec((tile_m, N), lambda i: (i, 0)),
        compiler_params=pltpu.CompilerParams(dimension_semantics=("parallel",)),
    )(patches, w, b.reshape(1, N))


def _make_block_kernel(H, W, cexp, has_expand, residual):
    """One fused inverted-residual block for a single batch element."""
    woff = 8  # sublane-aligned offset of the real data inside the padded scratch

    def kernel(*refs):
        if has_expand:
            x_ref, ew_ref, eb_ref, dw_ref, db_ref, pw_ref, pb_ref, o_ref, pad_ref = refs
        else:
            x_ref, dw_ref, db_ref, pw_ref, pb_ref, o_ref, pad_ref = refs

        x = x_ref[0].astype(jnp.float32)                       # (H, W, Cin)
        cin = x.shape[-1]

        # ---- expand 1x1 conv (+ folded BN) + ReLU6 ----
        if has_expand:
            t = jnp.dot(x.reshape(H * W, cin).astype(jnp.bfloat16),
                        ew_ref[...].astype(jnp.bfloat16),
                        preferred_element_type=jnp.float32) + eb_ref[...]
            t = jnp.clip(t, 0.0, 6.0).reshape(H, W, cexp)
        else:
            t = x                                              # t == 1: no expansion

        # ---- depthwise 3x3, stride 1, pad 1 (+ folded BN) + ReLU6 ----
        # Zero-padded copy in VMEM scratch; interior stored at a sublane-aligned
        # offset, the 9 taps are cheap (unaligned) reads of data already on chip.
        pad_ref[...] = jnp.zeros(pad_ref.shape, pad_ref.dtype)
        pad_ref[1:H + 1, woff:woff + W, :] = t
        dw = dw_ref[...]                                       # (9, cexp)
        acc = None
        for k in range(9):
            di, dj = divmod(k, 3)
            c0 = woff - 1 + dj
            tap = pad_ref[di:di + H, c0:c0 + W, :]
            term = tap * dw[k].reshape(1, 1, cexp)
            acc = term if acc is None else acc + term
        acc = jnp.clip(acc + db_ref[...].reshape(1, 1, cexp), 0.0, 6.0)

        # ---- project 1x1 conv (+ folded BN), linear ----
        y = jnp.dot(acc.reshape(H * W, cexp).astype(jnp.bfloat16),
                    pw_ref[...].astype(jnp.bfloat16),
                    preferred_element_type=jnp.float32) + pb_ref[...]
        cout = y.shape[-1]
        y = y.reshape(H, W, cout)
        if residual:
            y = y + x
        o_ref[0] = y.astype(o_ref.dtype)

    return kernel


def inverted_residual(x_nhwc, blk, *, stride):
    """One MobileNetV2 inverted-residual block as a single fused pallas_call."""
    B, H, W, cin = x_nhwc.shape
    cexp = blk["dw"].shape[1]
    cout = blk["pw"].shape[1]
    has_expand = "ew" in blk
    residual = (stride == 1 and cin == cout)

    kernel = _make_block_kernel(H, W, cexp, has_expand, residual)

    in_specs = [pl.BlockSpec((1, H, W, cin), lambda b: (b, 0, 0, 0))]
    args = [x_nhwc]
    if has_expand:
        in_specs += [pl.BlockSpec((cin, cexp), lambda b: (0, 0)),
                     pl.BlockSpec((1, cexp), lambda b: (0, 0))]
        args += [blk["ew"], blk["eb"].reshape(1, cexp)]
    in_specs += [pl.BlockSpec((9, cexp), lambda b: (0, 0)),
                 pl.BlockSpec((1, cexp), lambda b: (0, 0)),
                 pl.BlockSpec((cexp, cout), lambda b: (0, 0)),
                 pl.BlockSpec((1, cout), lambda b: (0, 0))]
    args += [blk["dw"], blk["db"].reshape(1, cexp),
             blk["pw"], blk["pb"].reshape(1, cout)]

    y = pl.pallas_call(
        kernel,
        out_shape=jax.ShapeDtypeStruct((B, H, W, cout), jnp.float32),
        grid=(B,),
        in_specs=in_specs,
        out_specs=pl.BlockSpec((1, H, W, cout), lambda b: (b, 0, 0, 0)),
        scratch_shapes=[pltpu.VMEM((H + 2, W + 16, cexp), jnp.float32)],
        compiler_params=pltpu.CompilerParams(dimension_semantics=("parallel",)),
    )(*args)

    if stride == 2:
        # Stride-2 depthwise (k=3, p=1) == stride-1 output sampled at even
        # positions, and the 1x1 convs commute with spatial subsampling, so the
        # fused block is computed at stride 1 and subsampled here (exact).
        # TODO(synk): at real sizes move the subsampling into the kernel.
        y = y[:, ::2, ::2, :]
    return y


def _last_conv_pool_kernel(x_ref, w_ref, b_ref, o_ref):
    """Fused: last 1x1 conv + folded BN + ReLU6 + global average pool."""
    x = x_ref[0]                                               # (H, W, C)
    H, W, C = x.shape
    y = jnp.dot(x.reshape(H * W, C).astype(jnp.bfloat16),
                w_ref[...].astype(jnp.bfloat16),
                preferred_element_type=jnp.float32) + b_ref[...]
    y = jnp.clip(y, 0.0, 6.0)
    o_ref[0] = jnp.mean(y, axis=0, keepdims=True)              # (1, LAST_CH)


def last_conv_pool(x_nhwc, w, b):
    B, H, W, C = x_nhwc.shape
    N = w.shape[1]
    out = pl.pallas_call(
        _last_conv_pool_kernel,
        out_shape=jax.ShapeDtypeStruct((B, 1, N), jnp.float32),
        grid=(B,),
        in_specs=[pl.BlockSpec((1, H, W, C), lambda b: (b, 0, 0, 0)),
                  pl.BlockSpec((C, N), lambda b: (0, 0)),
                  pl.BlockSpec((1, N), lambda b: (0, 0))],
        out_specs=pl.BlockSpec((1, 1, N), lambda b: (b, 0, 0)),
        compiler_params=pltpu.CompilerParams(dimension_semantics=("parallel",)),
    )(x_nhwc, w, b.reshape(1, N))
    return out.reshape(B, N)


# --------------------------------- forward ---------------------------------

def mobilenet_v2_forward(x, params):
    """x: (B, 3, H, W) NCHW float32 -> (B, 1) logits (frozen eval mode)."""
    B = x.shape[0]
    Ho = x.shape[2] // 2

    # Stem: Conv 3x3 s2 p1 + BN + ReLU6, as wrapper-side im2col + fused matmul.
    xp = jnp.pad(x, ((0, 0), (0, 0), (1, 1), (1, 1)))
    taps = []
    for di in range(3):
        for dj in range(3):
            taps.append(xp[:, :, di:di + 2 * Ho:2, dj:dj + 2 * Ho:2])  # (B,3,Ho,Wo)
    pat = jnp.stack(taps, axis=2)                              # (B, Cin, 9, Ho, Wo)
    pat = pat.transpose(0, 3, 4, 1, 2).reshape(B * Ho * Ho, IN_CH * 9)
    h = stem_conv(pat, params["stem_w"], params["stem_b"])
    h = h.reshape(B, Ho, Ho, STEM_CH)                          # NHWC on-chip layout

    # Inverted-residual blocks: one fused Pallas kernel per block.
    for blk, (_t, _c, stride) in zip(params["blocks"], BLOCK_CFG):
        h = inverted_residual(h, blk, stride=stride)

    # Last 1x1 conv + BN + ReLU6 fused with adaptive_avg_pool2d((1,1)).
    feat = last_conv_pool(h, params["last_w"], params["last_b"])   # (B, LAST_CH)

    # Classifier: Dropout(0.2) is identity in eval; Linear(LAST_CH, 1) head.
    # Kept in plain JAX (1-wide output) per the lane-density review.
    return feat @ params["head_w"] + params["head_b"]


if __name__ == "__main__":
    key = jax.random.PRNGKey(0)
    pkey, xkey = jax.random.split(key)
    params = init_params(pkey)
    x = jax.random.normal(xkey, (2, IN_CH, IMG, IMG), jnp.float32)

    out = jax.jit(mobilenet_v2_forward)(x, params)
    out = jax.block_until_ready(out)
    assert out.shape == (2, 1) and out.dtype == jnp.float32
    print("KERNEL_OK")
</pallas_src>

<mosaic_0001>
module attributes {stable_mosaic.version = 11 : i64} {
  func.func @_stem_kernel(%arg0: i32, %arg1: memref<128x27xf32, #tpu.memory_space<vmem>>, %arg2: memref<27x32xf32, #tpu.memory_space<vmem>>, %arg3: memref<1x32xf32, #tpu.memory_space<vmem>>, %arg4: memref<128x32xf32, #tpu.memory_space<vmem>>) attributes {dimension_semantics = [#tpu.dimension_semantics<parallel>], iteration_bounds = array<i64: 4>, scalar_prefetch = 0 : i64, scratch_operands = 0 : i64, tpu.core_type = #tpu.core_type<tc>, window_params = [{transform_indices = @transform_0, window_bounds = array<i64: 128, 27>}, {pipeline_mode = #tpu.pipeline_mode<synchronous>, transform_indices = @transform_1, window_bounds = array<i64: 27, 32>}, {pipeline_mode = #tpu.pipeline_mode<synchronous>, transform_indices = @transform_2, window_bounds = array<i64: 1, 32>}, {transform_indices = @transform_3, window_bounds = array<i64: 128, 32>}]} {
    %c0 = arith.constant 0 : index
    %c0_0 = arith.constant 0 : index
    %0 = vector.load %arg1[%c0, %c0_0] : memref<128x27xf32, #tpu.memory_space<vmem>>, vector<128x27xf32>
    %1 = arith.truncf %0 : vector<128x27xf32> to vector<128x27xbf16>
    %c0_1 = arith.constant 0 : index
    %c0_2 = arith.constant 0 : index
    %2 = vector.load %arg2[%c0_1, %c0_2] : memref<27x32xf32, #tpu.memory_space<vmem>>, vector<27x32xf32>
    %3 = arith.truncf %2 : vector<27x32xf32> to vector<27x32xbf16>
    %cst = arith.constant dense<0.000000e+00> : vector<128x32xf32>
    %4 = tpu.matmul %1, %3, %cst {dimension_numbers = #tpu.dot_dimension_numbers<[1], [0], [0], [1], [0, 0, 1, 1], [], []>} : vector<128x27xbf16>, vector<27x32xbf16>, vector<128x32xf32> -> vector<128x32xf32>
    %c0_3 = arith.constant 0 : index
    %c0_4 = arith.constant 0 : index
    %5 = vector.load %arg3[%c0_3, %c0_4] : memref<1x32xf32, #tpu.memory_space<vmem>>, vector<1x32xf32>
    %6 = vector.broadcast %5 : vector<1x32xf32> to vector<128x32xf32>
    %7 = arith.addf %4, %6 : vector<128x32xf32>
    %cst_5 = arith.constant 0.000000e+00 : f32
    %cst_6 = arith.constant 6.000000e+00 : f32
    %8 = vector.broadcast %cst_5 : f32 to vector<128x32xf32>
    %9 = arith.maximumf %8, %7 : vector<128x32xf32>
    %10 = vector.broadcast %cst_6 : f32 to vector<128x32xf32>
    %11 = arith.minimumf %10, %9 : vector<128x32xf32>
    %c0_7 = arith.constant 0 : index
    %c0_8 = arith.constant 0 : index
    %12 = vector.load %arg4[%c0_7, %c0_8] : memref<128x32xf32, #tpu.memory_space<vmem>>, vector<128x32xf32>
    tpu.vector_store %arg4[%c0_7, %c0_8], %11 {strides = array<i32>} : memref<128x32xf32, #tpu.memory_space<vmem>>, vector<128x32xf32>,
    return
  }
  func.func @transform_0(%arg0: i32) -> (i32, i32) {
    %c0_i32 = arith.constant 0 : i32
    %c0_i32_0 = arith.constant 0 : i32
    return %arg0, %c0_i32 : i32, i32
  }
  func.func @transform_1(%arg0: i32) -> (i32, i32) {
    %c0_i32 = arith.constant 0 : i32
    %c0_i32_0 = arith.constant 0 : i32
    %c0_i32_1 = arith.constant 0 : i32
    return %c0_i32, %c0_i32_0 : i32, i32
  }
  func.func @transform_2(%arg0: i32) -> (i32, i32) {
    %c0_i32 = arith.constant 0 : i32
    %c0_i32_0 = arith.constant 0 : i32
    %c0_i32_1 = arith.constant 0 : i32
    return %c0_i32, %c0_i32_0 : i32, i32
  }
  func.func @transform_3(%arg0: i32) -> (i32, i32) {
    %c0_i32 = arith.constant 0 : i32
    %c0_i32_0 = arith.constant 0 : i32
    return %arg0, %c0_i32 : i32, i32
  }
}

module attributes {stable_mosaic.version = 11 : i64} {
  func.func @kernel(%arg0: i32, %arg1: memref<1x16x16x32xf32, #tpu.memory_space<vmem>>, %arg2: memref<9x32xf32, #tpu.memory_space<vmem>>, %arg3: memref<1x32xf32, #tpu.memory_space<vmem>>, %arg4: memref<32x16xf32, #tpu.memory_space<vmem>>, %arg5: memref<1x16xf32, #tpu.memory_space<vmem>>, %arg6: memref<1x16x16x16xf32, #tpu.memory_space<vmem>>, %arg7: memref<18x32x32xf32, #tpu.memory_space<vmem>>) attributes {dimension_semantics = [#tpu.dimension_semantics<parallel>], iteration_bounds = array<i64: 2>, scalar_prefetch = 0 : i64, scratch_operands = 1 : i64, tpu.core_type = #tpu.core_type<tc>, window_params = [{transform_indices = @transform_0, window_bounds = array<i64: 1, 16, 16, 32>}, {pipeline_mode = #tpu.pipeline_mode<synchronous>, transform_indices = @transform_1, window_bounds = array<i64: 9, 32>}, {pipeline_mode = #tpu.pipeline_mode<synchronous>, transform_indices = @transform_2, window_bounds = array<i64: 1, 32>}, {pipeline_mode = #tpu.pipeline_mode<synchronous>, transform_indices = @transform_3, window_bounds = array<i64: 32, 16>}, {pipeline_mode = #tpu.pipeline_mode<synchronous>, transform_indices = @transform_4, window_bounds = array<i64: 1, 16>}, {transform_indices = @transform_5, window_bounds = array<i64: 1, 16, 16, 16>}]} {
    %c0 = arith.constant 0 : index
    %c0_0 = arith.constant 0 : index
    %c0_1 = arith.constant 0 : index
    %c0_2 = arith.constant 0 : index
    %0 = vector.load %arg1[%c0, %c0_0, %c0_1, %c0_2] : memref<1x16x16x32xf32, #tpu.memory_space<vmem>>, vector<1x16x16x32xf32>
    %1 = vector.shape_cast %0 : vector<1x16x16x32xf32> to vector<16x16x32xf32>
    %cst = arith.constant 0.000000e+00 : f32
    %2 = vector.broadcast %cst : f32 to vector<18x32x32xf32>
    %c0_3 = arith.constant 0 : index
    %c0_4 = arith.constant 0 : index
    %c0_5 = arith.constant 0 : index
    %3 = vector.load %arg7[%c0_3, %c0_4, %c0_5] : memref<18x32x32xf32, #tpu.memory_space<vmem>>, vector<18x32x32xf32>
    tpu.vector_store %arg7[%c0_3, %c0_4, %c0_5], %2 {strides = array<i32>} : memref<18x32x32xf32, #tpu.memory_space<vmem>>, vector<18x32x32xf32>,
    %c1 = arith.constant 1 : index
    %c8 = arith.constant 8 : index
    %c0_6 = arith.constant 0 : index
    %4 = vector.load %arg7[%c1, %c8, %c0_6] : memref<18x32x32xf32, #tpu.memory_space<vmem>>, vector<16x16x32xf32>
    tpu.vector_store %arg7[%c1, %c8, %c0_6], %1 {strides = array<i32>} : memref<18x32x32xf32, #tpu.memory_space<vmem>>, vector<16x16x32xf32>,
    %c0_7 = arith.constant 0 : index
    %c0_8 = arith.constant 0 : index
    %5 = vector.load %arg2[%c0_7, %c0_8] : memref<9x32xf32, #tpu.memory_space<vmem>>, vector<9x32xf32>
    %c0_9 = arith.constant 0 : index
    %c7 = arith.constant 7 : index
    %c0_10 = arith.constant 0 : index
    %6 = vector.load %arg7[%c0_9, %c7, %c0_10] : memref<18x32x32xf32, #tpu.memory_space<vmem>>, vector<16x16x32xf32>
    %7 = vector.extract_strided_slice %5 {offsets = [0, 0], sizes = [1, 32], strides = [1, 1]} : vector<9x32xf32> to vector<1x32xf32>
    %8 = vector.shape_cast %7 : vector<1x32xf32> to vector<32xf32>
    %9 = vector.shape_cast %8 : vector<32xf32> to vector<1x1x32xf32>
    %10 = vector.broadcast %9 : vector<1x1x32xf32> to vector<16x16x32xf32>
    %11 = arith.mulf %6, %10 : vector<16x16x32xf32>
    %c0_11 = arith.constant 0 : index
    %c8_12 = arith.constant 8 : index
    %c0_13 = arith.constant 0 : index
    %12 = vector.load %arg7[%c0_11, %c8_12, %c0_13] : memref<18x32x32xf32, #tpu.memory_space<vmem>>, vector<16x16x32xf32>
    %13 = vector.extract_strided_slice %5 {offsets = [1, 0], sizes = [1, 32], strides = [1, 1]} : vector<9x32xf32> to vector<1x32xf32>
    %14 = vector.shape_cast %13 : vector<1x32xf32> to vector<32xf32>
    %15 = vector.shape_cast %14 : vector<32xf32> to vector<1x1x32xf32>
    %16 = vector.broadcast %15 : vector<1x1x32xf32> to vector<16x16x32xf32>
    %17 = arith.mulf %12, %16 : vector<16x16x32xf32>
    %18 = arith.addf %11, %17 : vector<16x16x32xf32>
    %c0_14 = arith.constant 0 : index
    %c9 = arith.constant 9 : index
    %c0_15 = arith.constant 0 : index
    %19 = vector.load %arg7[%c0_14, %c9, %c0_15] : memref<18x32x32xf32, #tpu.memory_space<vmem>>, vector<16x16x32xf32>
    %20 = vector.extract_strided_slice %5 {offsets = [2, 0], sizes = [1, 32], strides = [1, 1]} : vector<9x32xf32> to vector<1x32xf32>
    %21 = vector.shape_cast %20 : vector<1x32xf32> to vector<32xf32>
    %22 = vector.shape_cast %21 : vector<32xf32> to vector<1x1x32xf32>
    %23 = vector.broadcast %22 : vector<1x1x32xf32> to vector<16x16x32xf32>
    %24 = arith.mulf %19, %23 : vector<16x16x32xf32>
    %25 = arith.addf %18, %24 : vector<16x16x32xf32>
    %c1_16 = arith.constant 1 : index
    %c7_17 = arith.constant 7 : index
    %c0_18 = arith.constant 0 : index
    %26 = vector.load %arg7[%c1_16, %c7_17, %c0_18] : memref<18x32x32xf32, #tpu.memory_space<vmem>>, vector<16x16x32xf32>
    %27 = vector.extract_strided_slice %5 {offsets = [3, 0], sizes = [1, 32], strides = [1, 1]} : vector<9x32xf32> to vector<1x32xf32>
    %28 = vector.shape_cast %27 : vector<1x32xf32> to vector<32xf32>
    %29 = vector.shape_cast %28 : vector<32xf32> to vector<1x1x32xf32>
    %30 = vector.broadcast %29 : vector<1x1x32xf32> to vector<16x16x32xf32>
    %31 = arith.mulf %26, %30 : vector<16x16x32xf32>
    %32 = arith.addf %25, %31 : vector<16x16x32xf32>
    %c1_19 = arith.constant 1 : index
    %c8_20 = arith.constant 8 : index
    %c0_21 = arith.constant 0 : index
    %33 = vector.load %arg7[%c1_19, %c8_20, %c0_21] : memref<18x32x32xf32, #tpu.memory_space<vmem>>, vector<16x16x32xf32>
    %34 = vector.extract_strided_slice %5 {offsets = [4, 0], sizes = [1, 32], strides = [1, 1]} : vector<9x32xf32> to vector<1x32xf32>
    %35 = vector.shape_cast %34 : vector<1x32xf32> to vector<32xf32>
    %36 = vector.shape_cast %35 : vector<32xf32> to vector<1x1x32xf32>
    %37 = vector.broadcast %36 : vector<1x1x32xf32> to vector<16x16x32xf32>
    %38 = arith.mulf %33, %37 : vector<16x16x32xf32>
    %39 = arith.addf %32, %38 : vector<16x16x32xf32>
    %c1_22 = arith.constant 1 : index
    %c9_23 = arith.constant 9 : index
    %c0_24 = arith.constant 0 : index
    %40 = vector.load %arg7[%c1_22, %c9_23, %c0_24] : memref<18x32x32xf32, #tpu.memory_space<vmem>>, vector<16x16x32xf32>
    %41 = vector.extract_strided_slice %5 {offsets = [5, 0], sizes = [1, 32], strides = [1, 1]} : vector<9x32xf32> to vector<1x32xf32>
    %42 = vector.shape_cast %41 : vector<1x32xf32> to vector<32xf32>
    %43 = vector.shape_cast %42 : vector<32xf32> to vector<1x1x32xf32>
    %44 = vector.broadcast %43 : vector<1x1x32xf32> to vector<16x16x32xf32>
    %45 = arith.mulf %40, %44 : vector<16x16x32xf32>
    %46 = arith.addf %39, %45 : vector<16x16x32xf32>
    %c2 = arith.constant 2 : index
    %c7_25 = arith.constant 7 : index
    %c0_26 = arith.constant 0 : index
    %47 = vector.load %arg7[%c2, %c7_25, %c0_26] : memref<18x32x32xf32, #tpu.memory_space<vmem>>, vector<16x16x32xf32>
    %48 = vector.extract_strided_slice %5 {offsets = [6, 0], sizes = [1, 32], strides = [1, 1]} : vector<9x32xf32> to vector<1x32xf32>
    %49 = vector.shape_cast %48 : vector<1x32xf32> to vector<32xf32>
    %50 = vector.shape_cast %49 : vector<32xf32> to vector<1x1x32xf32>
    %51 = vector.broadcast %50 : vector<1x1x32xf32> to vector<16x16x32xf32>
    %52 = arith.mulf %47, %51 : vector<16x16x32xf32>
    %53 = arith.addf %46, %52 : vector<16x16x32xf32>
    %c2_27 = arith.constant 2 : index
    %c8_28 = arith.constant 8 : index
    %c0_29 = arith.constant 0 : index
    %54 = vector.load %arg7[%c2_27, %c8_28, %c0_29] : memref<18x32x32xf32, #tpu.memory_space<vmem>>, vector<16x16x32xf32>
    %55 = vector.extract_strided_slice %5 {offsets = [7, 0], sizes = [1, 32], strides = [1, 1]} : vector<9x32xf32> to vector<1x32xf32>
    %56 = vector.shape_cast %55 : vector<1x32xf32> to vector<32xf32>
    %57 = vector.shape_cast %56 : vector<32xf32> to vector<1x1x32xf32>
    %58 = vector.broadcast %57 : vector<1x1x32xf32> to vector<16x16x32xf32>
    %59 = arith.mulf %54, %58 : vector<16x16x32xf32>
    %60 = arith.addf %53, %59 : vector<16x16x32xf32>
    %c2_30 = arith.constant 2 : index
    %c9_31 = arith.constant 9 : index
    %c0_32 = arith.constant 0 : index
    %61 = vector.load %arg7[%c2_30, %c9_31, %c0_32] : memref<18x32x32xf32, #tpu.memory_space<vmem>>, vector<16x16x32xf32>
    %62 = vector.extract_strided_slice %5 {offsets = [8, 0], sizes = [1, 32], strides = [1, 1]} : vector<9x32xf32> to vector<1x32xf32>
    %63 = vector.shape_cast %62 : vector<1x32xf32> to vector<32xf32>
    %64 = vector.shape_cast %63 : vector<32xf32> to vector<1x1x32xf32>
    %65 = vector.broadcast %64 : vector<1x1x32xf32> to vector<16x16x32xf32>
    %66 = arith.mulf %61, %65 : vector<16x16x32xf32>
    %67 = arith.addf %60, %66 : vector<16x16x32xf32>
    %c0_33 = arith.constant 0 : index
    %c0_34 = arith.constant 0 : index
    %68 = vector.load %arg3[%c0_33, %c0_34] : memref<1x32xf32, #tpu.memory_space<vmem>>, vector<1x32xf32>
    %69 = vector.shape_cast %68 : vector<1x32xf32> to vector<1x1x32xf32>
    %70 = vector.broadcast %69 : vector<1x1x32xf32> to vector<16x16x32xf32>
    %71 = arith.addf %67, %70 : vector<16x16x32xf32>
    %cst_35 = arith.constant 0.000000e+00 : f32
    %cst_36 = arith.constant 6.000000e+00 : f32
    %72 = vector.broadcast %cst_35 : f32 to vector<16x16x32xf32>
    %73 = arith.maximumf %72, %71 : vector<16x16x32xf32>
    %74 = vector.broadcast %cst_36 : f32 to vector<16x16x32xf32>
    %75 = arith.minimumf %74, %73 : vector<16x16x32xf32>
    %76 = vector.shape_cast %75 : vector<16x16x32xf32> to vector<256x32xf32>
    %77 = arith.truncf %76 : vector<256x32xf32> to vector<256x32xbf16>
    %c0_37 = arith.constant 0 : index
    %c0_38 = arith.constant 0 : index
    %78 = vector.load %arg4[%c0_37, %c0_38] : memref<32x16xf32, #tpu.memory_space<vmem>>, vector<32x16xf32>
    %79 = arith.truncf %78 : vector<32x16xf32> to vector<32x16xbf16>
    %cst_39 = arith.constant dense<0.000000e+00> : vector<256x16xf32>
    %80 = tpu.matmul %77, %79, %cst_39 {dimension_numbers = #tpu.dot_dimension_numbers<[1], [0], [0], [1], [0, 0, 1, 1], [], []>} : vector<256x32xbf16>, vector<32x16xbf16>, vector<256x16xf32> -> vector<256x16xf32>
    %c0_40 = arith.constant 0 : index
    %c0_41 = arith.constant 0 : index
    %81 = vector.load %arg5[%c0_40, %c0_41] : memref<1x16xf32, #tpu.memory_space<vmem>>, vector<1x16xf32>
    %82 = vector.broadcast %81 : vector<1x16xf32> to vector<256x16xf32>
    %83 = arith.addf %80, %82 : vector<256x16xf32>
    %84 = vector.shape_cast %83 : vector<256x16xf32> to vector<16x16x16xf32>
    %c0_42 = arith.constant 0 : index
    %c0_43 = arith.constant 0 : index
    %c0_44 = arith.constant 0 : index
    %c0_45 = arith.constant 0 : index
    %85 = vector.load %arg6[%c0_42, %c0_43, %c0_44, %c0_45] : memref<1x16x16x16xf32, #tpu.memory_space<vmem>>, vector<1x16x16x16xf32>
    %86 = vector.shape_cast %85 : vector<1x16x16x16xf32> to vector<16x16x16xf32>
    %87 = vector.shape_cast %84 : vector<16x16x16xf32> to vector<1x16x16x16xf32>
    tpu.vector_store %arg6[%c0_42, %c0_43, %c0_44, %c0_45], %87 {strides = array<i32>} : memref<1x16x16x16xf32, #tpu.memory_space<vmem>>, vector<1x16x16x16xf32>,
    return
  }
  func.func @transform_0(%arg0: i32) -> (i32, i32, i32, i32) {
    %c0_i32 = arith.constant 0 : i32
    %c0_i32_0 = arith.constant 0 : i32
    %c0_i32_1 = arith.constant 0 : i32
    %c0_i32_2 = arith.constant 0 : i32
    return %arg0, %c0_i32, %c0_i32_0, %c0_i32_1 : i32, i32, i32, i32
  }
  func.func @transform_1(%arg0: i32) -> (i32, i32) {
    %c0_i32 = arith.constant 0 : i32
    %c0_i32_0 = arith.constant 0 : i32
    %c0_i32_1 = arith.constant 0 : i32
    return %c0_i32, %c0_i32_0 : i32, i32
  }
  func.func @transform_2(%arg0: i32) -> (i32, i32) {
    %c0_i32 = arith.constant 0 : i32
    %c0_i32_0 = arith.constant 0 : i32
    %c0_i32_1 = arith.constant 0 : i32
    return %c0_i32, %c0_i32_0 : i32, i32
  }
  func.func @transform_3(%arg0: i32) -> (i32, i32) {
    %c0_i32 = arith.constant 0 : i32
    %c0_i32_0 = arith.constant 0 : i32
    %c0_i32_1 = arith.constant 0 : i32
    return %c0_i32, %c0_i32_0 : i32, i32
  }
  func.func @transform_4(%arg0: i32) -> (i32, i32) {
    %c0_i32 = arith.constant 0 : i32
    %c0_i32_0 = arith.constant 0 : i32
    %c0_i32_1 = arith.constant 0 : i32
    return %c0_i32, %c0_i32_0 : i32, i32
  }
  func.func @transform_5(%arg0: i32) -> (i32, i32, i32, i32) {
    %c0_i32 = arith.constant 0 : i32
    %c0_i32_0 = arith.constant 0 : i32
    %c0_i32_1 = arith.constant 0 : i32
    %c0_i32_2 = arith.constant 0 : i32
    return %arg0, %c0_i32, %c0_i32_0, %c0_i32_1 : i32, i32, i32, i32
  }
}

module attributes {stable_mosaic.version = 11 : i64} {
  func.func @kernel(%arg0: i32, %arg1: memref<1x16x16x16xf32, #tpu.memory_space<vmem>>, %arg2: memref<16x96xf32, #tpu.memory_space<vmem>>, %arg3: memref<1x96xf32, #tpu.memory_space<vmem>>, %arg4: memref<9x96xf32, #tpu.memory_space<vmem>>, %arg5: memref<1x96xf32, #tpu.memory_space<vmem>>, %arg6: memref<96x32xf32, #tpu.memory_space<vmem>>, %arg7: memref<1x32xf32, #tpu.memory_space<vmem>>, %arg8: memref<1x16x16x32xf32, #tpu.memory_space<vmem>>, %arg9: memref<18x32x96xf32, #tpu.memory_space<vmem>>) attributes {dimension_semantics = [#tpu.dimension_semantics<parallel>], iteration_bounds = array<i64: 2>, scalar_prefetch = 0 : i64, scratch_operands = 1 : i64, tpu.core_type = #tpu.core_type<tc>, window_params = [{transform_indices = @transform_0, window_bounds = array<i64: 1, 16, 16, 16>}, {pipeline_mode = #tpu.pipeline_mode<synchronous>, transform_indices = @transform_1, window_bounds = array<i64: 16, 96>}, {pipeline_mode = #tpu.pipeline_mode<synchronous>, transform_indices = @transform_2, window_bounds = array<i64: 1, 96>}, {pipeline_mode = #tpu.pipeline_mode<synchronous>, transform_indices = @transform_3, window_bounds = array<i64: 9, 96>}, {pipeline_mode = #tpu.pipeline_mode<synchronous>, transform_indices = @transform_4, window_bounds = array<i64: 1, 96>}, {pipeline_mode = #tpu.pipeline_mode<synchronous>, transform_indices = @transform_5, window_bounds = array<i64: 96, 32>}, {pipeline_mode = #tpu.pipeline_mode<synchronous>, transform_indices = @transform_6, window_bounds = array<i64: 1, 32>}, {transform_indices = @transform_7, window_bounds = array<i64: 1, 16, 16, 32>}]} {
    %c0 = arith.constant 0 : index
    %c0_0 = arith.constant 0 : index
    %c0_1 = arith.constant 0 : index
    %c0_2 = arith.constant 0 : index
    %0 = vector.load %arg1[%c0, %c0_0, %c0_1, %c0_2] : memref<1x16x16x16xf32, #tpu.memory_space<vmem>>, vector<1x16x16x16xf32>
    %1 = vector.shape_cast %0 : vector<1x16x16x16xf32> to vector<16x16x16xf32>
    %2 = vector.shape_cast %1 : vector<16x16x16xf32> to vector<256x16xf32>
    %3 = arith.truncf %2 : vector<256x16xf32> to vector<256x16xbf16>
    %c0_3 = arith.constant 0 : index
    %c0_4 = arith.constant 0 : index
    %4 = vector.load %arg2[%c0_3, %c0_4] : memref<16x96xf32, #tpu.memory_space<vmem>>, vector<16x96xf32>
    %5 = arith.truncf %4 : vector<16x96xf32> to vector<16x96xbf16>
    %cst = arith.constant dense<0.000000e+00> : vector<256x96xf32>
    %6 = tpu.matmul %3, %5, %cst {dimension_numbers = #tpu.dot_dimension_numbers<[1], [0], [0], [1], [0, 0, 1, 1], [], []>} : vector<256x16xbf16>, vector<16x96xbf16>, vector<256x96xf32> -> vector<256x96xf32>
    %c0_5 = arith.constant 0 : index
    %c0_6 = arith.constant 0 : index
    %7 = vector.load %arg3[%c0_5, %c0_6] : memref<1x96xf32, #tpu.memory_space<vmem>>, vector<1x96xf32>
    %8 = vector.broadcast %7 : vector<1x96xf32> to vector<256x96xf32>
    %9 = arith.addf %6, %8 : vector<256x96xf32>
    %cst_7 = arith.constant 0.000000e+00 : f32
    %cst_8 = arith.constant 6.000000e+00 : f32
    %10 = vector.broadcast %cst_7 : f32 to vector<256x96xf32>
    %11 = arith.maximumf %10, %9 : vector<256x96xf32>
    %12 = vector.broadcast %cst_8 : f32 to vector<256x96xf32>
    %13 = arith.minimumf %12, %11 : vector<256x96xf32>
    %14 = vector.shape_cast %13 : vector<256x96xf32> to vector<16x16x96xf32>
    %cst_9 = arith.constant 0.000000e+00 : f32
    %15 = vector.broadcast %cst_9 : f32 to vector<18x32x96xf32>
    %c0_10 = arith.constant 0 : index
    %c0_11 = arith.constant 0 : index
    %c0_12 = arith.constant 0 : index
    %16 = vector.load %arg9[%c0_10, %c0_11, %c0_12] : memref<18x32x96xf32, #tpu.memory_space<vmem>>, vector<18x32x96xf32>
    tpu.vector_store %arg9[%c0_10, %c0_11, %c0_12], %15 {strides = array<i32>} : memref<18x32x96xf32, #tpu.memory_space<vmem>>, vector<18x32x96xf32>,
    %c1 = arith.constant 1 : index
    %c8 = arith.constant 8 : index
    %c0_13 = arith.constant 0 : index
    %17 = vector.load %arg9[%c1, %c8, %c0_13] : memref<18x32x96xf32, #tpu.memory_space<vmem>>, vector<16x16x96xf32>
    tpu.vector_store %arg9[%c1, %c8, %c0_13], %14 {strides = array<i32>} : memref<18x32x96xf32, #tpu.memory_space<vmem>>, vector<16x16x96xf32>,
    %c0_14 = arith.constant 0 : index
    %c0_15 = arith.constant 0 : index
    %18 = vector.load %arg4[%c0_14, %c0_15] : memref<9x96xf32, #tpu.memory_space<vmem>>, vector<9x96xf32>
    %c0_16 = arith.constant 0 : index
    %c7 = arith.constant 7 : index
    %c0_17 = arith.constant 0 : index
    %19 = vector.load %arg9[%c0_16, %c7, %c0_17] : memref<18x32x96xf32, #tpu.memory_space<vmem>>, vector<16x16x96xf32>
    %20 = vector.extract_strided_slice %18 {offsets = [0, 0], sizes = [1, 96], strides = [1, 1]} : vector<9x96xf32> to vector<1x96xf32>
    %21 = vector.shape_cast %20 : vector<1x96xf32> to vector<96xf32>
    %22 = vector.shape_cast %21 : vector<96xf32> to vector<1x1x96xf32>
    %23 = vector.broadcast %22 : vector<1x1x96xf32> to vector<16x16x96xf32>
    %24 = arith.mulf %19, %23 : vector<16x16x96xf32>
    %c0_18 = arith.constant 0 : index
    %c8_19 = arith.constant 8 : index
    %c0_20 = arith.constant 0 : index
    %25 = vector.load %arg9[%c0_18, %c8_19, %c0_20] : memref<18x32x96xf32, #tpu.memory_space<vmem>>, vector<16x16x96xf32>
    %26 = vector.extract_strided_slice %18 {offsets = [1, 0], sizes = [1, 96], strides = [1, 1]} : vector<9x96xf32> to vector<1x96xf32>
    %27 = vector.shape_cast %26 : vector<1x96xf32> to vector<96xf32>
    %28 = vector.shape_cast %27 : vector<96xf32> to vector<1x1x96xf32>
    %29 = vector.broadcast %28 : vector<1x1x96xf32> to vector<16x16x96xf32>
    %30 = arith.mulf %25, %29 : vector<16x16x96xf32>
    %31 = arith.addf %24, %30 : vector<16x16x96xf32>
    %c0_21 = arith.constant 0 : index
    %c9 = arith.constant 9 : index
    %c0_22 = arith.constant 0 : index
    %32 = vector.load %arg9[%c0_21, %c9, %c0_22] : memref<18x32x96xf32, #tpu.memory_space<vmem>>, vector<16x16x96xf32>
    %33 = vector.extract_strided_slice %18 {offsets = [2, 0], sizes = [1, 96], strides = [1, 1]} : vector<9x96xf32> to vector<1x96xf32>
    %34 = vector.shape_cast %33 : vector<1x96xf32> to vector<96xf32>
    %35 = vector.shape_cast %34 : vector<96xf32> to vector<1x1x96xf32>
    %36 = vector.broadcast %35 : vector<1x1x96xf32> to vector<16x16x96xf32>
    %37 = arith.mulf %32, %36 : vector<16x16x96xf32>
    %38 = arith.addf %31, %37 : vector<16x16x96xf32>
    %c1_23 = arith.constant 1 : index
    %c7_24 = arith.constant 7 : index
    %c0_25 = arith.constant 0 : index
    %39 = vector.load %arg9[%c1_23, %c7_24, %c0_25] : memref<18x32x96xf32, #tpu.memory_space<vmem>>, vector<16x16x96xf32>
    %40 = vector.extract_strided_slice %18 {offsets = [3, 0], sizes = [1, 96], strides = [1, 1]} : vector<9x96xf32> to vector<1x96xf32>
    %41 = vector.shape_cast %40 : vector<1x96xf32> to vector<96xf32>
    %42 = vector.shape_cast %41 : vector<96xf32> to vector<1x1x96xf32>
    %43 = vector.broadcast %42 : vector<1x1x96xf32> to vector<16x16x96xf32>
    %44 = arith.mulf %39, %43 : vector<16x16x96xf32>
    %45 = arith.addf %38, %44 : vector<16x16x96xf32>
    %c1_26 = arith.constant 1 : index
    %c8_27 = arith.constant 8 : index
    %c0_28 = arith.constant 0 : index
    %46 = vector.load %arg9[%c1_26, %c8_27, %c0_28] : memref<18x32x96xf32, #tpu.memory_space<vmem>>, vector<16x16x96xf32>
    %47 = vector.extract_strided_slice %18 {offsets = [4, 0], sizes = [1, 96], strides = [1, 1]} : vector<9x96xf32> to vector<1x96xf32>
    %48 = vector.shape_cast %47 : vector<1x96xf32> to vector<96xf32>
    %49 = vector.shape_cast %48 : vector<96xf32> to vector<1x1x96xf32>
    %50 = vector.broadcast %49 : vector<1x1x96xf32> to vector<16x16x96xf32>
    %51 = arith.mulf %46, %50 : vector<16x16x96xf32>
    %52 = arith.addf %45, %51 : vector<16x16x96xf32>
    %c1_29 = arith.constant 1 : index
    %c9_30 = arith.constant 9 : index
    %c0_31 = arith.constant 0 : index
    %53 = vector.load %arg9[%c1_29, %c9_30, %c0_31] : memref<18x32x96xf32, #tpu.memory_space<vmem>>, vector<16x16x96xf32>
    %54 = vector.extract_strided_slice %18 {offsets = [5, 0], sizes = [1, 96], strides = [1, 1]} : vector<9x96xf32> to vector<1x96xf32>
    %55 = vector.shape_cast %54 : vector<1x96xf32> to vector<96xf32>
    %56 = vector.shape_cast %55 : vector<96xf32> to vector<1x1x96xf32>
    %57 = vector.broadcast %56 : vector<1x1x96xf32> to vector<16x16x96xf32>
    %58 = arith.mulf %53, %57 : vector<16x16x96xf32>
    %59 = arith.addf %52, %58 : vector<16x16x96xf32>
    %c2 = arith.constant 2 : index
    %c7_32 = arith.constant 7 : index
    %c0_33 = arith.constant 0 : index
    %60 = vector.load %arg9[%c2, %c7_32, %c0_33] : memref<18x32x96xf32, #tpu.memory_space<vmem>>, vector<16x16x96xf32>
    %61 = vector.extract_strided_slice %18 {offsets = [6, 0], sizes = [1, 96], strides = [1, 1]} : vector<9x96xf32> to vector<1x96xf32>
    %62 = vector.shape_cast %61 : vector<1x96xf32> to vector<96xf32>
    %63 = vector.shape_cast %62 : vector<96xf32> to vector<1x1x96xf32>
    %64 = vector.broadcast %63 : vector<1x1x96xf32> to vector<16x16x96xf32>
    %65 = arith.mulf %60, %64 : vector<16x16x96xf32>
    %66 = arith.addf %59, %65 : vector<16x16x96xf32>
    %c2_34 = arith.constant 2 : index
    %c8_35 = arith.constant 8 : index
    %c0_36 = arith.constant 0 : index
    %67 = vector.load %arg9[%c2_34, %c8_35, %c0_36] : memref<18x32x96xf32, #tpu.memory_space<vmem>>, vector<16x16x96xf32>
    %68 = vector.extract_strided_slice %18 {offsets = [7, 0], sizes = [1, 96], strides = [1, 1]} : vector<9x96xf32> to vector<1x96xf32>
    %69 = vector.shape_cast %68 : vector<1x96xf32> to vector<96xf32>
    %70 = vector.shape_cast %69 : vector<96xf32> to vector<1x1x96xf32>
    %71 = vector.broadcast %70 : vector<1x1x96xf32> to vector<16x16x96xf32>
    %72 = arith.mulf %67, %71 : vector<16x16x96xf32>
    %73 = arith.addf %66, %72 : vector<16x16x96xf32>
    %c2_37 = arith.constant 2 : index
    %c9_38 = arith.constant 9 : index
    %c0_39 = arith.constant 0 : index
    %74 = vector.load %arg9[%c2_37, %c9_38, %c0_39] : memref<18x32x96xf32, #tpu.memory_space<vmem>>, vector<16x16x96xf32>
    %75 = vector.extract_strided_slice %18 {offsets = [8, 0], sizes = [1, 96], strides = [1, 1]} : vector<9x96xf32> to vector<1x96xf32>
    %76 = vector.shape_cast %75 : vector<1x96xf32> to vector<96xf32>
    %77 = vector.shape_cast %76 : vector<96xf32> to vector<1x1x96xf32>
    %78 = vector.broadcast %77 : vector<1x1x96xf32> to vector<16x16x96xf32>
    %79 = arith.mulf %74, %78 : vector<16x16x96xf32>
    %80 = arith.addf %73, %79 : vector<16x16x96xf32>
    %c0_40 = arith.constant 0 : index
    %c0_41 = arith.constant 0 : index
    %81 = vector.load %arg5[%c0_40, %c0_41] : memref<1x96xf32, #tpu.memory_space<vmem>>, vector<1x96xf32>
    %82 = vector.shape_cast %81 : vector<1x96xf32> to vector<1x1x96xf32>
    %83 = vector.broadcast %82 : vector<1x1x96xf32> to vector<16x16x96xf32>
    %84 = arith.addf %80, %83 : vector<16x16x96xf32>
    %cst_42 = arith.constant 0.000000e+00 : f32
    %cst_43 = arith.constant 6.000000e+00 : f32
    %85 = vector.broadcast %cst_42 : f32 to vector<16x16x96xf32>
    %86 = arith.maximumf %85, %84 : vector<16x16x96xf32>
    %87 = vector.broadcast %cst_43 : f32 to vector<16x16x96xf32>
    %88 = arith.minimumf %87, %86 : vector<16x16x96xf32>
    %89 = vector.shape_cast %88 : vector<16x16x96xf32> to vector<256x96xf32>
    %90 = arith.truncf %89 : vector<256x96xf32> to vector<256x96xbf16>
    %c0_44 = arith.constant 0 : index
    %c0_45 = arith.constant 0 : index
    %91 = vector.load %arg6[%c0_44, %c0_45] : memref<96x32xf32, #tpu.memory_space<vmem>>, vector<96x32xf32>
    %92 = arith.truncf %91 : vector<96x32xf32> to vector<96x32xbf16>
    %cst_46 = arith.constant dense<0.000000e+00> : vector<256x32xf32>
    %93 = tpu.matmul %90, %92, %cst_46 {dimension_numbers = #tpu.dot_dimension_numbers<[1], [0], [0], [1], [0, 0, 1, 1], [], []>} : vector<256x96xbf16>, vector<96x32xbf16>, vector<256x32xf32> -> vector<256x32xf32>
    %c0_47 = arith.constant 0 : index
    %c0_48 = arith.constant 0 : index
    %94 = vector.load %arg7[%c0_47, %c0_48] : memref<1x32xf32, #tpu.memory_space<vmem>>, vector<1x32xf32>
    %95 = vector.broadcast %94 : vector<1x32xf32> to vector<256x32xf32>
    %96 = arith.addf %93, %95 : vector<256x32xf32>
    %97 = vector.shape_cast %96 : vector<256x32xf32> to vector<16x16x32xf32>
    %c0_49 = arith.constant 0 : index
    %c0_50 = arith.constant 0 : index
    %c0_51 = arith.constant 0 : index
    %c0_52 = arith.constant 0 : index
    %98 = vector.load %arg8[%c0_49, %c0_50, %c0_51, %c0_52] : memref<1x16x16x32xf32, #tpu.memory_space<vmem>>, vector<1x16x16x32xf32>
    %99 = vector.shape_cast %98 : vector<1x16x16x32xf32> to vector<16x16x32xf32>
    %100 = vector.shape_cast %97 : vector<16x16x32xf32> to vector<1x16x16x32xf32>
    tpu.vector_store %arg8[%c0_49, %c0_50, %c0_51, %c0_52], %100 {strides = array<i32>} : memref<1x16x16x32xf32, #tpu.memory_space<vmem>>, vector<1x16x16x32xf32>,
    return
  }
  func.func @transform_0(%arg0: i32) -> (i32, i32, i32, i32) {
    %c0_i32 = arith.constant 0 : i32
    %c0_i32_0 = arith.constant 0 : i32
    %c0_i32_1 = arith.constant 0 : i32
    %c0_i32_2 = arith.constant 0 : i32
    return %arg0, %c0_i32, %c0_i32_0, %c0_i32_1 : i32, i32, i32, i32
  }
  func.func @transform_1(%arg0: i32) -> (i32, i32) {
    %c0_i32 = arith.constant 0 : i32
    %c0_i32_0 = arith.constant 0 : i32
    %c0_i32_1 = arith.constant 0 : i32
    return %c0_i32, %c0_i32_0 : i32, i32
  }
  func.func @transform_2(%arg0: i32) -> (i32, i32) {
    %c0_i32 = arith.constant 0 : i32
    %c0_i32_0 = arith.constant 0 : i32
    %c0_i32_1 = arith.constant 0 : i32
    return %c0_i32, %c0_i32_0 : i32, i32
  }
  func.func @transform_3(%arg0: i32) -> (i32, i32) {
    %c0_i32 = arith.constant 0 : i32
    %c0_i32_0 = arith.constant 0 : i32
    %c0_i32_1 = arith.constant 0 : i32
    return %c0_i32, %c0_i32_0 : i32, i32
  }
  func.func @transform_4(%arg0: i32) -> (i32, i32) {
    %c0_i32 = arith.constant 0 : i32
    %c0_i32_0 = arith.constant 0 : i32
    %c0_i32_1 = arith.constant 0 : i32
    return %c0_i32, %c0_i32_0 : i32, i32
  }
  func.func @transform_5(%arg0: i32) -> (i32, i32) {
    %c0_i32 = arith.constant 0 : i32
    %c0_i32_0 = arith.constant 0 : i32
    %c0_i32_1 = arith.constant 0 : i32
    return %c0_i32, %c0_i32_0 : i32, i32
  }
  func.func @transform_6(%arg0: i32) -> (i32, i32) {
    %c0_i32 = arith.constant 0 : i32
    %c0_i32_0 = arith.constant 0 : i32
    %c0_i32_1 = arith.constant 0 : i32
    return %c0_i32, %c0_i32_0 : i32, i32
  }
  func.func @transform_7(%arg0: i32) -> (i32, i32, i32, i32) {
    %c0_i32 = arith.constant 0 : i32
    %c0_i32_0 = arith.constant 0 : i32
    %c0_i32_1 = arith.constant 0 : i32
    %c0_i32_2 = arith.constant 0 : i32
    return %arg0, %c0_i32, %c0_i32_0, %c0_i32_1 : i32, i32, i32, i32
  }
}

module attributes {stable_mosaic.version = 11 : i64} {
  func.func @_last_conv_pool_kernel(%arg0: i32, %arg1: memref<1x8x8x32xf32, #tpu.memory_space<vmem>>, %arg2: memref<32x128xf32, #tpu.memory_space<vmem>>, %arg3: memref<1x128xf32, #tpu.memory_space<vmem>>, %arg4: memref<1x1x128xf32, #tpu.memory_space<vmem>>) attributes {dimension_semantics = [#tpu.dimension_semantics<parallel>], iteration_bounds = array<i64: 2>, scalar_prefetch = 0 : i64, scratch_operands = 0 : i64, tpu.core_type = #tpu.core_type<tc>, window_params = [{transform_indices = @transform_0, window_bounds = array<i64: 1, 8, 8, 32>}, {pipeline_mode = #tpu.pipeline_mode<synchronous>, transform_indices = @transform_1, window_bounds = array<i64: 32, 128>}, {pipeline_mode = #tpu.pipeline_mode<synchronous>, transform_indices = @transform_2, window_bounds = array<i64: 1, 128>}, {transform_indices = @transform_3, window_bounds = array<i64: 1, 1, 128>}]} {
    %c0 = arith.constant 0 : index
    %c0_0 = arith.constant 0 : index
    %c0_1 = arith.constant 0 : index
    %c0_2 = arith.constant 0 : index
    %0 = vector.load %arg1[%c0, %c0_0, %c0_1, %c0_2] : memref<1x8x8x32xf32, #tpu.memory_space<vmem>>, vector<1x8x8x32xf32>
    %1 = vector.shape_cast %0 : vector<1x8x8x32xf32> to vector<8x8x32xf32>
    %2 = vector.shape_cast %1 : vector<8x8x32xf32> to vector<64x32xf32>
    %3 = arith.truncf %2 : vector<64x32xf32> to vector<64x32xbf16>
    %c0_3 = arith.constant 0 : index
    %c0_4 = arith.constant 0 : index
    %4 = vector.load %arg2[%c0_3, %c0_4] : memref<32x128xf32, #tpu.memory_space<vmem>>, vector<32x128xf32>
    %5 = arith.truncf %4 : vector<32x128xf32> to vector<32x128xbf16>
    %cst = arith.constant dense<0.000000e+00> : vector<64x128xf32>
    %6 = tpu.matmul %3, %5, %cst {dimension_numbers = #tpu.dot_dimension_numbers<[1], [0], [0], [1], [0, 0, 1, 1], [], []>} : vector<64x32xbf16>, vector<32x128xbf16>, vector<64x128xf32> -> vector<64x128xf32>
    %c0_5 = arith.constant 0 : index
    %c0_6 = arith.constant 0 : index
    %7 = vector.load %arg3[%c0_5, %c0_6] : memref<1x128xf32, #tpu.memory_space<vmem>>, vector<1x128xf32>
    %8 = vector.broadcast %7 : vector<1x128xf32> to vector<64x128xf32>
    %9 = arith.addf %6, %8 : vector<64x128xf32>
    %cst_7 = arith.constant 0.000000e+00 : f32
    %cst_8 = arith.constant 6.000000e+00 : f32
    %10 = vector.broadcast %cst_7 : f32 to vector<64x128xf32>
    %11 = arith.maximumf %10, %9 : vector<64x128xf32>
    %12 = vector.broadcast %cst_8 : f32 to vector<64x128xf32>
    %13 = arith.minimumf %12, %11 : vector<64x128xf32>
    %cst_9 = arith.constant dense<0.000000e+00> : vector<128xf32>
    %14 = vector.multi_reduction <add>, %13, %cst_9 [0] : vector<64x128xf32> to vector<128xf32>
    %15 = vector.shape_cast %14 : vector<128xf32> to vector<1x128xf32>
    %cst_10 = arith.constant 6.400000e+01 : f32
    %16 = vector.broadcast %cst_10 : f32 to vector<1x128xf32>
    %17 = arith.divf %15, %16 : vector<1x128xf32>
    %c0_11 = arith.constant 0 : index
    %c0_12 = arith.constant 0 : index
    %c0_13 = arith.constant 0 : index
    %18 = vector.load %arg4[%c0_11, %c0_12, %c0_13] : memref<1x1x128xf32, #tpu.memory_space<vmem>>, vector<1x1x128xf32>
    %19 = vector.shape_cast %18 : vector<1x1x128xf32> to vector<1x128xf32>
    %20 = vector.shape_cast %17 : vector<1x128xf32> to vector<1x1x128xf32>
    tpu.vector_store %arg4[%c0_11, %c0_12, %c0_13], %20 {strides = array<i32>} : memref<1x1x128xf32, #tpu.memory_space<vmem>>, vector<1x1x128xf32>,
    return
  }
  func.func @transform_0(%arg0: i32) -> (i32, i32, i32, i32) {
    %c0_i32 = arith.constant 0 : i32
    %c0_i32_0 = arith.constant 0 : i32
    %c0_i32_1 = arith.constant 0 : i32
    %c0_i32_2 = arith.constant 0 : i32
    return %arg0, %c0_i32, %c0_i32_0, %c0_i32_1 : i32, i32, i32, i32
  }
  func.func @transform_1(%arg0: i32) -> (i32, i32) {
    %c0_i32 = arith.constant 0 : i32
    %c0_i32_0 = arith.constant 0 : i32
    %c0_i32_1 = arith.constant 0 : i32
    return %c0_i32, %c0_i32_0 : i32, i32
  }
  func.func @transform_2(%arg0: i32) -> (i32, i32) {
    %c0_i32 = arith.constant 0 : i32
    %c0_i32_0 = arith.constant 0 : i32
    %c0_i32_1 = arith.constant 0 : i32
    return %c0_i32, %c0_i32_0 : i32, i32
  }
  func.func @transform_3(%arg0: i32) -> (i32, i32, i32) {
    %c0_i32 = arith.constant 0 : i32
    %c0_i32_0 = arith.constant 0 : i32
    %c0_i32_1 = arith.constant 0 : i32
    return %arg0, %c0_i32, %c0_i32_0 : i32, i32, i32
  }
}

module attributes {stable_mosaic.version = 11 : i64} {
  func.func @kernel(%arg0: i32, %arg1: memref<1x8x8x32xf32, #tpu.memory_space<vmem>>, %arg2: memref<32x192xf32, #tpu.memory_space<vmem>>, %arg3: memref<1x192xf32, #tpu.memory_space<vmem>>, %arg4: memref<9x192xf32, #tpu.memory_space<vmem>>, %arg5: memref<1x192xf32, #tpu.memory_space<vmem>>, %arg6: memref<192x32xf32, #tpu.memory_space<vmem>>, %arg7: memref<1x32xf32, #tpu.memory_space<vmem>>, %arg8: memref<1x8x8x32xf32, #tpu.memory_space<vmem>>, %arg9: memref<10x24x192xf32, #tpu.memory_space<vmem>>) attributes {dimension_semantics = [#tpu.dimension_semantics<parallel>], iteration_bounds = array<i64: 2>, scalar_prefetch = 0 : i64, scratch_operands = 1 : i64, tpu.core_type = #tpu.core_type<tc>, window_params = [{transform_indices = @transform_0, window_bounds = array<i64: 1, 8, 8, 32>}, {pipeline_mode = #tpu.pipeline_mode<synchronous>, transform_indices = @transform_1, window_bounds = array<i64: 32, 192>}, {pipeline_mode = #tpu.pipeline_mode<synchronous>, transform_indices = @transform_2, window_bounds = array<i64: 1, 192>}, {pipeline_mode = #tpu.pipeline_mode<synchronous>, transform_indices = @transform_3, window_bounds = array<i64: 9, 192>}, {pipeline_mode = #tpu.pipeline_mode<synchronous>, transform_indices = @transform_4, window_bounds = array<i64: 1, 192>}, {pipeline_mode = #tpu.pipeline_mode<synchronous>, transform_indices = @transform_5, window_bounds = array<i64: 192, 32>}, {pipeline_mode = #tpu.pipeline_mode<synchronous>, transform_indices = @transform_6, window_bounds = array<i64: 1, 32>}, {transform_indices = @transform_7, window_bounds = array<i64: 1, 8, 8, 32>}]} {
    %c0 = arith.constant 0 : index
    %c0_0 = arith.constant 0 : index
    %c0_1 = arith.constant 0 : index
    %c0_2 = arith.constant 0 : index
    %0 = vector.load %arg1[%c0, %c0_0, %c0_1, %c0_2] : memref<1x8x8x32xf32, #tpu.memory_space<vmem>>, vector<1x8x8x32xf32>
    %1 = vector.shape_cast %0 : vector<1x8x8x32xf32> to vector<8x8x32xf32>
    %2 = vector.shape_cast %1 : vector<8x8x32xf32> to vector<64x32xf32>
    %3 = arith.truncf %2 : vector<64x32xf32> to vector<64x32xbf16>
    %c0_3 = arith.constant 0 : index
    %c0_4 = arith.constant 0 : index
    %4 = vector.load %arg2[%c0_3, %c0_4] : memref<32x192xf32, #tpu.memory_space<vmem>>, vector<32x192xf32>
    %5 = arith.truncf %4 : vector<32x192xf32> to vector<32x192xbf16>
    %cst = arith.constant dense<0.000000e+00> : vector<64x192xf32>
    %6 = tpu.matmul %3, %5, %cst {dimension_numbers = #tpu.dot_dimension_numbers<[1], [0], [0], [1], [0, 0, 1, 1], [], []>} : vector<64x32xbf16>, vector<32x192xbf16>, vector<64x192xf32> -> vector<64x192xf32>
    %c0_5 = arith.constant 0 : index
    %c0_6 = arith.constant 0 : index
    %7 = vector.load %arg3[%c0_5, %c0_6] : memref<1x192xf32, #tpu.memory_space<vmem>>, vector<1x192xf32>
    %8 = vector.broadcast %7 : vector<1x192xf32> to vector<64x192xf32>
    %9 = arith.addf %6, %8 : vector<64x192xf32>
    %cst_7 = arith.constant 0.000000e+00 : f32
    %cst_8 = arith.constant 6.000000e+00 : f32
    %10 = vector.broadcast %cst_7 : f32 to vector<64x192xf32>
    %11 = arith.maximumf %10, %9 : vector<64x192xf32>
    %12 = vector.broadcast %cst_8 : f32 to vector<64x192xf32>
    %13 = arith.minimumf %12, %11 : vector<64x192xf32>
    %14 = vector.shape_cast %13 : vector<64x192xf32> to vector<8x8x192xf32>
    %cst_9 = arith.constant 0.000000e+00 : f32
    %15 = vector.broadcast %cst_9 : f32 to vector<10x24x192xf32>
    %c0_10 = arith.constant 0 : index
    %c0_11 = arith.constant 0 : index
    %c0_12 = arith.constant 0 : index
    %16 = vector.load %arg9[%c0_10, %c0_11, %c0_12] : memref<10x24x192xf32, #tpu.memory_space<vmem>>, vector<10x24x192xf32>
    tpu.vector_store %arg9[%c0_10, %c0_11, %c0_12], %15 {strides = array<i32>} : memref<10x24x192xf32, #tpu.memory_space<vmem>>, vector<10x24x192xf32>,
    %c1 = arith.constant 1 : index
    %c8 = arith.constant 8 : index
    %c0_13 = arith.constant 0 : index
    %17 = vector.load %arg9[%c1, %c8, %c0_13] : memref<10x24x192xf32, #tpu.memory_space<vmem>>, vector<8x8x192xf32>
    tpu.vector_store %arg9[%c1, %c8, %c0_13], %14 {strides = array<i32>} : memref<10x24x192xf32, #tpu.memory_space<vmem>>, vector<8x8x192xf32>,
    %c0_14 = arith.constant 0 : index
    %c0_15 = arith.constant 0 : index
    %18 = vector.load %arg4[%c0_14, %c0_15] : memref<9x192xf32, #tpu.memory_space<vmem>>, vector<9x192xf32>
    %c0_16 = arith.constant 0 : index
    %c7 = arith.constant 7 : index
    %c0_17 = arith.constant 0 : index
    %19 = vector.load %arg9[%c0_16, %c7, %c0_17] : memref<10x24x192xf32, #tpu.memory_space<vmem>>, vector<8x8x192xf32>
    %20 = vector.extract_strided_slice %18 {offsets = [0, 0], sizes = [1, 192], strides = [1, 1]} : vector<9x192xf32> to vector<1x192xf32>
    %21 = vector.shape_cast %20 : vector<1x192xf32> to vector<192xf32>
    %22 = vector.shape_cast %21 : vector<192xf32> to vector<1x1x192xf32>
    %23 = vector.broadcast %22 : vector<1x1x192xf32> to vector<8x8x192xf32>
    %24 = arith.mulf %19, %23 : vector<8x8x192xf32>
    %c0_18 = arith.constant 0 : index
    %c8_19 = arith.constant 8 : index
    %c0_20 = arith.constant 0 : index
    %25 = vector.load %arg9[%c0_18, %c8_19, %c0_20] : memref<10x24x192xf32, #tpu.memory_space<vmem>>, vector<8x8x192xf32>
    %26 = vector.extract_strided_slice %18 {offsets = [1, 0], sizes = [1, 192], strides = [1, 1]} : vector<9x192xf32> to vector<1x192xf32>
    %27 = vector.shape_cast %26 : vector<1x192xf32> to vector<192xf32>
    %28 = vector.shape_cast %27 : vector<192xf32> to vector<1x1x192xf32>
    %29 = vector.broadcast %28 : vector<1x1x192xf32> to vector<8x8x192xf32>
    %30 = arith.mulf %25, %29 : vector<8x8x192xf32>
    %31 = arith.addf %24, %30 : vector<8x8x192xf32>
    %c0_21 = arith.constant 0 : index
    %c9 = arith.constant 9 : index
    %c0_22 = arith.constant 0 : index
    %32 = vector.load %arg9[%c0_21, %c9, %c0_22] : memref<10x24x192xf32, #tpu.memory_space<vmem>>, vector<8x8x192xf32>
    %33 = vector.extract_strided_slice %18 {offsets = [2, 0], sizes = [1, 192], strides = [1, 1]} : vector<9x192xf32> to vector<1x192xf32>
    %34 = vector.shape_cast %33 : vector<1x192xf32> to vector<192xf32>
    %35 = vector.shape_cast %34 : vector<192xf32> to vector<1x1x192xf32>
    %36 = vector.broadcast %35 : vector<1x1x192xf32> to vector<8x8x192xf32>
    %37 = arith.mulf %32, %36 : vector<8x8x192xf32>
    %38 = arith.addf %31, %37 : vector<8x8x192xf32>
    %c1_23 = arith.constant 1 : index
    %c7_24 = arith.constant 7 : index
    %c0_25 = arith.constant 0 : index
    %39 = vector.load %arg9[%c1_23, %c7_24, %c0_25] : memref<10x24x192xf32, #tpu.memory_space<vmem>>, vector<8x8x192xf32>
    %40 = vector.extract_strided_slice %18 {offsets = [3, 0], sizes = [1, 192], strides = [1, 1]} : vector<9x192xf32> to vector<1x192xf32>
    %41 = vector.shape_cast %40 : vector<1x192xf32> to vector<192xf32>
    %42 = vector.shape_cast %41 : vector<192xf32> to vector<1x1x192xf32>
    %43 = vector.broadcast %42 : vector<1x1x192xf32> to vector<8x8x192xf32>
    %44 = arith.mulf %39, %43 : vector<8x8x192xf32>
    %45 = arith.addf %38, %44 : vector<8x8x192xf32>
    %c1_26 = arith.constant 1 : index
    %c8_27 = arith.constant 8 : index
    %c0_28 = arith.constant 0 : index
    %46 = vector.load %arg9[%c1_26, %c8_27, %c0_28] : memref<10x24x192xf32, #tpu.memory_space<vmem>>, vector<8x8x192xf32>
    %47 = vector.extract_strided_slice %18 {offsets = [4, 0], sizes = [1, 192], strides = [1, 1]} : vector<9x192xf32> to vector<1x192xf32>
    %48 = vector.shape_cast %47 : vector<1x192xf32> to vector<192xf32>
    %49 = vector.shape_cast %48 : vector<192xf32> to vector<1x1x192xf32>
    %50 = vector.broadcast %49 : vector<1x1x192xf32> to vector<8x8x192xf32>
    %51 = arith.mulf %46, %50 : vector<8x8x192xf32>
    %52 = arith.addf %45, %51 : vector<8x8x192xf32>
    %c1_29 = arith.constant 1 : index
    %c9_30 = arith.constant 9 : index
    %c0_31 = arith.constant 0 : index
    %53 = vector.load %arg9[%c1_29, %c9_30, %c0_31] : memref<10x24x192xf32, #tpu.memory_space<vmem>>, vector<8x8x192xf32>
    %54 = vector.extract_strided_slice %18 {offsets = [5, 0], sizes = [1, 192], strides = [1, 1]} : vector<9x192xf32> to vector<1x192xf32>
    %55 = vector.shape_cast %54 : vector<1x192xf32> to vector<192xf32>
    %56 = vector.shape_cast %55 : vector<192xf32> to vector<1x1x192xf32>
    %57 = vector.broadcast %56 : vector<1x1x192xf32> to vector<8x8x192xf32>
    %58 = arith.mulf %53, %57 : vector<8x8x192xf32>
    %59 = arith.addf %52, %58 : vector<8x8x192xf32>
    %c2 = arith.constant 2 : index
    %c7_32 = arith.constant 7 : index
    %c0_33 = arith.constant 0 : index
    %60 = vector.load %arg9[%c2, %c7_32, %c0_33] : memref<10x24x192xf32, #tpu.memory_space<vmem>>, vector<8x8x192xf32>
    %61 = vector.extract_strided_slice %18 {offsets = [6, 0], sizes = [1, 192], strides = [1, 1]} : vector<9x192xf32> to vector<1x192xf32>
    %62 = vector.shape_cast %61 : vector<1x192xf32> to vector<192xf32>
    %63 = vector.shape_cast %62 : vector<192xf32> to vector<1x1x192xf32>
    %64 = vector.broadcast %63 : vector<1x1x192xf32> to vector<8x8x192xf32>
    %65 = arith.mulf %60, %64 : vector<8x8x192xf32>
    %66 = arith.addf %59, %65 : vector<8x8x192xf32>
    %c2_34 = arith.constant 2 : index
    %c8_35 = arith.constant 8 : index
    %c0_36 = arith.constant 0 : index
    %67 = vector.load %arg9[%c2_34, %c8_35, %c0_36] : memref<10x24x192xf32, #tpu.memory_space<vmem>>, vector<8x8x192xf32>
    %68 = vector.extract_strided_slice %18 {offsets = [7, 0], sizes = [1, 192], strides = [1, 1]} : vector<9x192xf32> to vector<1x192xf32>
    %69 = vector.shape_cast %68 : vector<1x192xf32> to vector<192xf32>
    %70 = vector.shape_cast %69 : vector<192xf32> to vector<1x1x192xf32>
    %71 = vector.broadcast %70 : vector<1x1x192xf32> to vector<8x8x192xf32>
    %72 = arith.mulf %67, %71 : vector<8x8x192xf32>
    %73 = arith.addf %66, %72 : vector<8x8x192xf32>
    %c2_37 = arith.constant 2 : index
    %c9_38 = arith.constant 9 : index
    %c0_39 = arith.constant 0 : index
    %74 = vector.load %arg9[%c2_37, %c9_38, %c0_39] : memref<10x24x192xf32, #tpu.memory_space<vmem>>, vector<8x8x192xf32>
    %75 = vector.extract_strided_slice %18 {offsets = [8, 0], sizes = [1, 192], strides = [1, 1]} : vector<9x192xf32> to vector<1x192xf32>
    %76 = vector.shape_cast %75 : vector<1x192xf32> to vector<192xf32>
    %77 = vector.shape_cast %76 : vector<192xf32> to vector<1x1x192xf32>
    %78 = vector.broadcast %77 : vector<1x1x192xf32> to vector<8x8x192xf32>
    %79 = arith.mulf %74, %78 : vector<8x8x192xf32>
    %80 = arith.addf %73, %79 : vector<8x8x192xf32>
    %c0_40 = arith.constant 0 : index
    %c0_41 = arith.constant 0 : index
    %81 = vector.load %arg5[%c0_40, %c0_41] : memref<1x192xf32, #tpu.memory_space<vmem>>, vector<1x192xf32>
    %82 = vector.shape_cast %81 : vector<1x192xf32> to vector<1x1x192xf32>
    %83 = vector.broadcast %82 : vector<1x1x192xf32> to vector<8x8x192xf32>
    %84 = arith.addf %80, %83 : vector<8x8x192xf32>
    %cst_42 = arith.constant 0.000000e+00 : f32
    %cst_43 = arith.constant 6.000000e+00 : f32
    %85 = vector.broadcast %cst_42 : f32 to vector<8x8x192xf32>
    %86 = arith.maximumf %85, %84 : vector<8x8x192xf32>
    %87 = vector.broadcast %cst_43 : f32 to vector<8x8x192xf32>
    %88 = arith.minimumf %87, %86 : vector<8x8x192xf32>
    %89 = vector.shape_cast %88 : vector<8x8x192xf32> to vector<64x192xf32>
    %90 = arith.truncf %89 : vector<64x192xf32> to vector<64x192xbf16>
    %c0_44 = arith.constant 0 : index
    %c0_45 = arith.constant 0 : index
    %91 = vector.load %arg6[%c0_44, %c0_45] : memref<192x32xf32, #tpu.memory_space<vmem>>, vector<192x32xf32>
    %92 = arith.truncf %91 : vector<192x32xf32> to vector<192x32xbf16>
    %cst_46 = arith.constant dense<0.000000e+00> : vector<64x32xf32>
    %93 = tpu.matmul %90, %92, %cst_46 {dimension_numbers = #tpu.dot_dimension_numbers<[1], [0], [0], [1], [0, 0, 1, 1], [], []>} : vector<64x192xbf16>, vector<192x32xbf16>, vector<64x32xf32> -> vector<64x32xf32>
    %c0_47 = arith.constant 0 : index
    %c0_48 = arith.constant 0 : index
    %94 = vector.load %arg7[%c0_47, %c0_48] : memref<1x32xf32, #tpu.memory_space<vmem>>, vector<1x32xf32>
    %95 = vector.broadcast %94 : vector<1x32xf32> to vector<64x32xf32>
    %96 = arith.addf %93, %95 : vector<64x32xf32>
    %97 = vector.shape_cast %96 : vector<64x32xf32> to vector<8x8x32xf32>
    %98 = arith.addf %97, %1 : vector<8x8x32xf32>
    %c0_49 = arith.constant 0 : index
    %c0_50 = arith.constant 0 : index
    %c0_51 = arith.constant 0 : index
    %c0_52 = arith.constant 0 : index
    %99 = vector.load %arg8[%c0_49, %c0_50, %c0_51, %c0_52] : memref<1x8x8x32xf32, #tpu.memory_space<vmem>>, vector<1x8x8x32xf32>
    %100 = vector.shape_cast %99 : vector<1x8x8x32xf32> to vector<8x8x32xf32>
    %101 = vector.shape_cast %98 : vector<8x8x32xf32> to vector<1x8x8x32xf32>
    tpu.vector_store %arg8[%c0_49, %c0_50, %c0_51, %c0_52], %101 {strides = array<i32>} : memref<1x8x8x32xf32, #tpu.memory_space<vmem>>, vector<1x8x8x32xf32>,
    return
  }
  func.func @transform_0(%arg0: i32) -> (i32, i32, i32, i32) {
    %c0_i32 = arith.constant 0 : i32
    %c0_i32_0 = arith.constant 0 : i32
    %c0_i32_1 = arith.constant 0 : i32
    %c0_i32_2 = arith.constant 0 : i32
    return %arg0, %c0_i32, %c0_i32_0, %c0_i32_1 : i32, i32, i32, i32
  }
  func.func @transform_1(%arg0: i32) -> (i32, i32) {
    %c0_i32 = arith.constant 0 : i32
    %c0_i32_0 = arith.constant 0 : i32
    %c0_i32_1 = arith.constant 0 : i32
    return %c0_i32, %c0_i32_0 : i32, i32
  }
  func.func @transform_2(%arg0: i32) -> (i32, i32) {
    %c0_i32 = arith.constant 0 : i32
    %c0_i32_0 = arith.constant 0 : i32
    %c0_i32_1 = arith.constant 0 : i32
    return %c0_i32, %c0_i32_0 : i32, i32
  }
  func.func @transform_3(%arg0: i32) -> (i32, i32) {
    %c0_i32 = arith.constant 0 : i32
    %c0_i32_0 = arith.constant 0 : i32
    %c0_i32_1 = arith.constant 0 : i32
    return %c0_i32, %c0_i32_0 : i32, i32
  }
  func.func @transform_4(%arg0: i32) -> (i32, i32) {
    %c0_i32 = arith.constant 0 : i32
    %c0_i32_0 = arith.constant 0 : i32
    %c0_i32_1 = arith.constant 0 : i32
    return %c0_i32, %c0_i32_0 : i32, i32
  }
  func.func @transform_5(%arg0: i32) -> (i32, i32) {
    %c0_i32 = arith.constant 0 : i32
    %c0_i32_0 = arith.constant 0 : i32
    %c0_i32_1 = arith.constant 0 : i32
    return %c0_i32, %c0_i32_0 : i32, i32
  }
  func.func @transform_6(%arg0: i32) -> (i32, i32) {
    %c0_i32 = arith.constant 0 : i32
    %c0_i32_0 = arith.constant 0 : i32
    %c0_i32_1 = arith.constant 0 : i32
    return %c0_i32, %c0_i32_0 : i32, i32
  }
  func.func @transform_7(%arg0: i32) -> (i32, i32, i32, i32) {
    %c0_i32 = arith.constant 0 : i32
    %c0_i32_0 = arith.constant 0 : i32
    %c0_i32_1 = arith.constant 0 : i32
    %c0_i32_2 = arith.constant 0 : i32
    return %arg0, %c0_i32, %c0_i32_0, %c0_i32_1 : i32, i32, i32, i32
  }
}

</mosaic_0001>

<llo_original>
// kernel: mobilenet_v2_forward.5
$region0: #{mobilenet_v2_forward.5}
  #allocation0 [shape = 'u32[]', space=smem, size = 0x4, offset = 0x4, fixed_abs, tag = 'smem constant byte address 0x4 - core index']
  #allocation1 [shape = 'u32[144,128]{1,0:T(1,128)}', space=vmem, size = 0x12000, scoped, tag = 'internal scratch']
  %s0 = inlined_call_operand.vmem [shape: f32[512,27], index: 0, kind: input, shape index: {}]
  %s1 = inlined_call_operand.vmem [shape: f32[27,32], index: 1, kind: input, shape index: {}]
  %s2 = inlined_call_operand.vmem [shape: f32[1,32], index: 2, kind: input, shape index: {}]
  %s3 = inlined_call_operand.vmem [shape: f32[512,32], index: 3, kind: output, shape index: {}]
  %s4 = sld [smem:[#allocation0]]
  $region45: #{mobilenet_v2_forward.5} parent=0
    _
  %s6 = ssub.s32 1, %s4
  %s7 = scalar_select 0, %s6, %s4
  loop: start=0, step=1, limit=6
  $region2: #{mobilenet_v2_forward.5} parent=0 // loop_pre_header
    _
  $region3: #{mobilenet_v2_forward.5} parent=0 // loop_header
    %s9 = sphi 0, %s13
    %p10 = scmp.ge.s32.totalorder %s9, 6
    %s19 = sphi 0, %s21
    %s22 = sphi 0, %s19
    %s23 = sphi 0, %s22
    %s39 = sphi 0, %s23
    %s43 = sphi 0, %s43
    %s45 = sphi 0, %s43
    %s46 = sphi 0, %s45
    %s60 = sphi 0, %s46
    %s64 = sphi 0, %s64
    %s66 = sphi 0, %s64
    %s67 = sphi 0, %s66
    %s81 = sphi 0, %s67
    %s87 = sphi 0, %s89
    %s90 = sphi 0, %s87
    %s91 = sphi 0, %s90
    %s107 = sphi 0, %s91
  $region4: #{mobilenet_v2_forward.5} parent=0 // loop_header_branch
    %12 = sbr.rel (%p10) target = $region8
  $region5: #{mobilenet_v2_forward.5} parent=0 // loop_body
    %s14 = ssub.s32 %s9, 1
    %s15 = ssub.s32 %s9, 2
    %s16 = sadd.s32 %s9, 1
    %s17 = ssub.s32 %s9, %s16
    %p18 = scmp.eq.s32.totalorder %s17, 0
    %s20 = sadd.s32 %s19, 1
    %s21 = scalar_select %p18, %s19, %s20
    %p24 = pneg %p18
    %p25 = scmp.eq.s32.totalorder %s9, 3
    %p26 = por %p24, %p25
    %p27 = scmp.ne.s32.totalorder %s19, %s22
    %p28 = scmp.eq.s32.totalorder %s9, 0
    %p29 = por %p27, %p28
    %p30 = scmp.ne.s32.totalorder %s19, %s22
    %p31 = scmp.eq.s32.totalorder %s14, 3
    %p32 = por %p30, %p31
    %p33 = scmp.ne.s32.totalorder %s22, %s23
    %p34 = scmp.eq.s32.totalorder %s14, 0
    %p35 = por %p33, %p34
    %p36 = scmp.ne.s32.totalorder %s22, %s23
    %p37 = scmp.eq.s32.totalorder %s15, 3
    %p38 = por %p36, %p37
    %p40 = scmp.ne.s32.totalorder %s23, %s39
    %p41 = scmp.eq.s32.totalorder %s15, 0
    %p42 = por %p40, %p41
    %s44 = sadd.s32 %s43, 1
    %p47 = scmp.eq.s32.totalorder %s9, 3
    %p48 = scmp.ne.s32.totalorder %s43, %s45
    %p49 = scmp.eq.s32.totalorder %s9, 0
    %p50 = por %p48, %p49
    %p51 = scmp.ne.s32.totalorder %s43, %s45
    %p52 = scmp.eq.s32.totalorder %s14, 3
    %p53 = por %p51, %p52
    %p54 = scmp.ne.s32.totalorder %s45, %s46
    %p55 = scmp.eq.s32.totalorder %s14, 0
    %p56 = por %p54, %p55
    %p57 = scmp.ne.s32.totalorder %s45, %s46
    %p58 = scmp.eq.s32.totalorder %s15, 3
    %p59 = por %p57, %p58
    %p61 = scmp.ne.s32.totalorder %s46, %s60
    %p62 = scmp.eq.s32.totalorder %s15, 0
    %p63 = por %p61, %p62
    %s65 = sadd.s32 %s64, 1
    %p68 = scmp.eq.s32.totalorder %s9, 3
    %p69 = scmp.ne.s32.totalorder %s64, %s66
    %p70 = scmp.eq.s32.totalorder %s9, 0
    %p71 = por %p69, %p70
    %p72 = scmp.ne.s32.totalorder %s64, %s66
    %p73 = scmp.eq.s32.totalorder %s14, 3
    %p74 = por %p72, %p73
    %p75 = scmp.ne.s32.totalorder %s66, %s67
    %p76 = scmp.eq.s32.totalorder %s14, 0
    %p77 = por %p75, %p76
    %p78 = scmp.ne.s32.totalorder %s66, %s67
    %p79 = scmp.eq.s32.totalorder %s15, 3
    %p80 = por %p78, %p79
    %p82 = scmp.ne.s32.totalorder %s67, %s81
    %p83 = scmp.eq.s32.totalorder %s15, 0
    %p84 = por %p82, %p83
    %s85 = ssub.s32 %s9, %s16
    %p86 = scmp.eq.s32.totalorder %s85, 0
    %s88 = sadd.s32 %s87, 1
    %s89 = scalar_select %p86, %s87, %s88
    %p92 = pneg %p86
    %p93 = scmp.eq.s32.totalorder %s9, 3
    %p94 = por %p92, %p93
    %p95 = scmp.ne.s32.totalorder %s87, %s90
    %p96 = scmp.eq.s32.totalorder %s9, 0
    %p97 = por %p95, %p96
    %p98 = scmp.ne.s32.totalorder %s87, %s90
    %p99 = scmp.eq.s32.totalorder %s14, 3
    %p100 = por %p98, %p99
    %p101 = scmp.ne.s32.totalorder %s90, %s91
    %p102 = scmp.eq.s32.totalorder %s14, 0
    %p103 = por %p101, %p102
    %p104 = scmp.ne.s32.totalorder %s90, %s91
    %p105 = scmp.eq.s32.totalorder %s15, 3
    %p106 = por %p104, %p105
    %p108 = scmp.ne.s32.totalorder %s91, %s107
    %p109 = scmp.eq.s32.totalorder %s15, 0
    %p110 = por %p108, %p109
    %p111 = scmp.le.s32.totalorder 1, %s9
    %p112 = scmp.lt.s32.totalorder %s9, 5
    %p113 = pnand %p111, %p112
    %p114 = pneg %p113
    // Predicated region
    $region9: #{mobilenet_v2_forward.5} parent=5 // pred_check
      _
    $region10: #{mobilenet_v2_forward.5} parent=5 // pred_check_branch
      %116 = sbr.rel (%p113) target = $region12
    $region11: #{mobilenet_v2_forward.5} parent=5 // pred_region
      %s117 = ssub.s32 %s9, 1
      // Predicated region
      $region13: #{mobilenet_v2_forward.5} parent=11 // pred_check
        %p118 = pneg %p56
      $region14: #{mobilenet_v2_forward.5} parent=11 // pred_check_branch
        %120 = sbr.rel (%p118) target = $region16
      $region15: #{mobilenet_v2_forward.5} parent=11 // pred_region
        _
      $region16: #{mobilenet_v2_forward.5} parent=11 // pred_fallthru
        _
      // Predicated region
      $region17: #{mobilenet_v2_forward.5} parent=11 // pred_check
        %p121 = pneg %p77
      $region18: #{mobilenet_v2_forward.5} parent=11 // pred_check_branch
        %123 = sbr.rel (%p121) target = $region20
      $region19: #{mobilenet_v2_forward.5} parent=11 // pred_region
        _
      $region20: #{mobilenet_v2_forward.5} parent=11 // pred_fallthru
        _
    $region12: #{mobilenet_v2_forward.5} parent=5 // pred_fallthru
      _
    %p124 = scmp.lt.s32.totalorder %s9, 4
    // Predicated region
    $region21: #{mobilenet_v2_forward.5} parent=5 // pred_check
      %p125 = pneg %p124
    $region22: #{mobilenet_v2_forward.5} parent=5 // pred_check_branch
      %127 = sbr.rel (%p125) target = $region24
    $region23: #{mobilenet_v2_forward.5} parent=5 // pred_region
      // Predicated region
      $region25: #{mobilenet_v2_forward.5} parent=23 // pred_check
        %p128 = pneg %p29
      $region26: #{mobilenet_v2_forward.5} parent=23 // pred_check_branch
        %130 = sbr.rel (%p128) target = $region28
      $region27: #{mobilenet_v2_forward.5} parent=23 // pred_region
        %s131 = smul.u32 16, %s9
        %p132 = scmp.lt.s32.totalorder %s131, 63
        %s133 = scalar_select %p132, %s131, 63
        %s134 = smul.addr %s133, 8
        %s135 = scalar_lea.vmem %s0, %s134
        %s136 = smul.u32 16, %s9
      $region28: #{mobilenet_v2_forward.5} parent=23 // pred_fallthru
        _
    $region24: #{mobilenet_v2_forward.5} parent=5 // pred_fallthru
      _
    %p137 = scmp.le.s32.totalorder 1, %s9
    %p138 = scmp.lt.s32.totalorder %s9, 5
    %p139 = pnand %p137, %p138
    %p140 = pneg %p139
    // Predicated region
    $region29: #{mobilenet_v2_forward.5} parent=5 // pred_check
      _
    $region30: #{mobilenet_v2_forward.5} parent=5 // pred_check_branch
      %142 = sbr.rel (%p139) target = $region32
    $region31: #{mobilenet_v2_forward.5} parent=5 // pred_region
      %s143 = ssub.s32 %s9, 1
      %s144 = smul.u32 16, %s14
      %p145 = scmp.lt.s32.totalorder %s144, 63
      %s146 = scalar_select %p145, %s144, 63
      %s147 = smul.addr %s146, 8
      %s148 = scalar_lea.vmem %s0, %s147
      %p149 = pneg %p35
      %p150 = pneg %p32
      %p151 = pneg %p56
      %p152 = pneg %p53
      %p153 = pneg %p77
      %p154 = pneg %p74
      %p155 = pneg %p103
      %p156 = pneg %p100
      %s157 = smul.u32 16, %s14
      %p158 = scmp.lt.s32.totalorder %s157, 63
      %s159 = scalar_select %p158, %s157, 63
      %s160 = smul.addr %s159, 8
      %s161 = scalar_lea.vmem %s3, %s160
      %s162 = smul.u32 16, %s14
      %p163 = scmp.lt.s32.totalorder %s162, 63
      %s164 = scalar_select %p163, %s162, 63
      %s165 = smul.addr %s164, 8
      %s166 = scalar_lea.vmem %s0, %s165
      %s167 = smul.u32 16, %s14
      %s168 = smul.u32 16, %s14
      %p169 = scmp.lt.s32.totalorder %s168, 63
      %s170 = scalar_select %p169, %s168, 63
      %s171 = smul.addr %s170, 8
      %s172 = scalar_lea.vmem %s3, %s171
      %s173 = smul.u32 16, %s14
      %v175 = vld [vmem:[%s166] sm:$0xff]
      %v176 = vld [vmem:[%s166 + $0x8] sm:$0xff]
      %v177 = vld [vmem:[%s166 + $0x10] sm:$0xff]
      %v178 = vld [vmem:[%s166 + $0x18] sm:$0xff]
      %v179 = vld [vmem:[%s166 + $0x20] sm:$0xff]
      %v180 = vld [vmem:[%s166 + $0x28] sm:$0xff]
      %v181 = vld [vmem:[%s166 + $0x30] sm:$0xff]
      %v182 = vld [vmem:[%s166 + $0x38] sm:$0xff]
      %v183 = vld [vmem:[%s166 + $0x40] sm:$0xff]
      %v184 = vld [vmem:[%s166 + $0x48] sm:$0xff]
      %v185 = vld [vmem:[%s166 + $0x50] sm:$0xff]
      %v186 = vld [vmem:[%s166 + $0x58] sm:$0xff]
      %v187 = vld [vmem:[%s166 + $0x60] sm:$0xff]
      %v188 = vld [vmem:[%s166 + $0x68] sm:$0xff]
      %v189 = vld [vmem:[%s166 + $0x70] sm:$0xff]
      %v190 = vld [vmem:[%s166 + $0x78] sm:$0xff]
      %v191 = vpack.c.bf16 %v176, %v175
      %v192 = vpack.c.bf16 %v178, %v177
      %v193 = vpack.c.bf16 %v180, %v179
      %v194 = vpack.c.bf16 %v182, %v181
      %v195 = vpack.c.bf16 %v184, %v183
      %v196 = vpack.c.bf16 %v186, %v185
      %v197 = vpack.c.bf16 %v188, %v187
      %v198 = vpack.c.bf16 %v190, %v189
      %v199 = vld [vmem:[%s1] sm:$0xff]
      %v200 = vld [vmem:[%s1 + $0x8] sm:$0xff]
      %v201 = vld [vmem:[%s1 + $0x10] sm:$0xff]
      %v202 = vld [vmem:[%s1 + $0x18] sm:$0x7]
      %v203 = vpack.c.bf16 %v200, %v199
      %v204 = vpack.c.bf16 %v202, %v201
      %v205 = vld [vmem:[%s2] sm:$0x1]
      %v207 = vlaneseq
      %v208 = vshrl.u32 %v207, 7
      %v209 = vsub.s32 0, %v208
      %v210 = vrot.slane %v205, %v209
      %vm212 = vcmask 220160
      %v214 = vsel %vm212, %v191, 0
      %v217 = vsel %vm212, %v192, 0
      %v220 = vsel %vm212, %v193, 0
      %v223 = vsel %vm212, %v194, 0
      %v226 = vsel %vm212, %v195, 0
      %v229 = vsel %vm212, %v196, 0
      %v232 = vsel %vm212, %v197, 0
      %v235 = vsel %vm212, %v198, 0
      %vm237 = vcmask 1044480
      %vm238 = vcmask 1045504
      %v239 = vsel %vm237, 4294967295, 65535
      %v240 = vsel %vm238, %v239, 0
      %v242 = vand.u32 %v204, %v240
      %244 = vmatprep.subr.bf16.mxu0 0
      %245 = vmatpush1.bf16.msra.mxu0 0
      %246 = vmatprep.subr.bf16.mxu0 0
      %247 = vmatpush1.bf16.msra.mxu0 0
      %248 = vmatprep.subr.bf16.mxu0 0
      %249 = vmatpush1.bf16.msra.mxu0 0
      %250 = vmatprep.subr.bf16.mxu0 0
      %251 = vmatpush1.bf16.msra.mxu0 0
      %252 = vmatprep.subr.bf16.mxu0 0
      %253 = vmatpush1.bf16.msra.mxu0 0
      %254 = vmatprep.subr.bf16.mxu0 0
      %255 = vmatpush1.bf16.msra.mxu0 0
      %256 = vmatprep.subr.bf16.mxu0 0
      %257 = vmatpush1.bf16.msra.mxu0 %v242
      %258 = vmatprep.subr.bf16.mxu0 0
      %259 = vmatpush1.bf16.msra.mxu0 %v203
      %260 = vmatprep.subr.bf16.mxu0 0
      %261 = vmatpush2.bf16.msra.mxu0 0
      %262 = vmatprep.subr.bf16.mxu0 0
      %263 = vmatpush2.bf16.msra.mxu0 0
      %264 = vmatprep.subr.bf16.mxu0 0
      %265 = vmatpush2.bf16.msra.mxu0 0
      %266 = vmatprep.subr.bf16.mxu0 0
      %267 = vmatpush2.bf16.msra.mxu0 0
      %268 = vmatprep.subr.bf16.mxu0 0
      %269 = vmatpush2.bf16.msra.mxu0 0
      %270 = vmatprep.subr.bf16.mxu0 0
      %271 = vmatpush2.bf16.msra.mxu0 0
      %272 = vmatprep.subr.bf16.mxu0 0
      %273 = vmatpush2.bf16.msra.mxu0 0
      %274 = vmatprep.subr.bf16.mxu0 0
      %275 = vmatpush2.bf16.msra.mxu0 0
      %276 = vmatprep.mubr.bf16.mxu0 0
      %277 = vmatmul.mubr.bf16.gmra.mxu0 %v214
      %v278 = vpop.f32.mrf.mxu0
      %v279 = vadd.f32 %v210, %v278
      %v280 = vpop.f32.mrf.mxu0
      %v281 = vpop.f32.mrf.mxu0
      %v282 = vadd.f32 %v210, %v281
      %v283 = vpop.f32.mrf.mxu0
      %284 = vmatprep.mubr.bf16.mxu0 0
      %285 = vmatmul.mubr.bf16.gmra.mxu0 %v217
      %v286 = vpop.f32.mrf.mxu0
      %v287 = vadd.f32 %v210, %v286
      %v288 = vpop.f32.mrf.mxu0
      %v289 = vpop.f32.mrf.mxu0
      %v290 = vadd.f32 %v210, %v289
      %v291 = vpop.f32.mrf.mxu0
      %292 = vmatprep.mubr.bf16.mxu0 0
      %293 = vmatmul.mubr.bf16.gmra.mxu0 %v220
      %v294 = vpop.f32.mrf.mxu0
      %v295 = vadd.f32 %v210, %v294
      %v296 = vpop.f32.mrf.mxu0
      %v297 = vpop.f32.mrf.mxu0
      %v298 = vadd.f32 %v210, %v297
      %v299 = vpop.f32.mrf.mxu0
      %300 = vmatprep.mubr.bf16.mxu0 0
      %301 = vmatmul.mubr.bf16.gmra.mxu0 %v223
      %v302 = vpop.f32.mrf.mxu0
      %v303 = vadd.f32 %v210, %v302
      %v304 = vpop.f32.mrf.mxu0
      %v305 = vpop.f32.mrf.mxu0
      %v306 = vadd.f32 %v210, %v305
      %v307 = vpop.f32.mrf.mxu0
      %308 = vmatprep.mubr.bf16.mxu0 0
      %309 = vmatmul.mubr.bf16.gmra.mxu0 %v226
      %v310 = vpop.f32.mrf.mxu0
      %v311 = vadd.f32 %v210, %v310
      %v312 = vpop.f32.mrf.mxu0
      %v313 = vpop.f32.mrf.mxu0
      %v314 = vadd.f32 %v210, %v313
      %v315 = vpop.f32.mrf.mxu0
      %316 = vmatprep.mubr.bf16.mxu0 0
      %317 = vmatmul.mubr.bf16.gmra.mxu0 %v229
      %v318 = vpop.f32.mrf.mxu0
      %v319 = vadd.f32 %v210, %v318
      %v320 = vpop.f32.mrf.mxu0
      %v321 = vpop.f32.mrf.mxu0
      %v322 = vadd.f32 %v210, %v321
      %v323 = vpop.f32.mrf.mxu0
      %324 = vmatprep.mubr.bf16.mxu0 0
      %325 = vmatmul.mubr.bf16.gmra.mxu0 %v232
      %v326 = vpop.f32.mrf.mxu0
      %v327 = vadd.f32 %v210, %v326
      %v328 = vpop.f32.mrf.mxu0
      %v329 = vpop.f32.mrf.mxu0
      %v330 = vadd.f32 %v210, %v329
      %v331 = vpop.f32.mrf.mxu0
      %332 = vmatprep.mubr.bf16.mxu0 0
      %333 = vmatmul.mubr.bf16.gmra.mxu0 %v235
      %v334 = vpop.f32.mrf.mxu0
      %v335 = vadd.f32 %v210, %v334
      %v336 = vpop.f32.mrf.mxu0
      %v337 = vpop.f32.mrf.mxu0
      %v338 = vadd.f32 %v210, %v337
      %v339 = vpop.f32.mrf.mxu0
      %340 = vdwg.mxu0
      %v341 = vmax.f32 %v279, 0.0
      %v342 = vmax.f32 %v282, 0.0
      %v343 = vmax.f32 %v287, 0.0
      %v344 = vmax.f32 %v290, 0.0
      %v345 = vmax.f32 %v295, 0.0
      %v346 = vmax.f32 %v298, 0.0
      %v347 = vmax.f32 %v303, 0.0
      %v348 = vmax.f32 %v306, 0.0
      %v349 = vmax.f32 %v311, 0.0
      %v350 = vmax.f32 %v314, 0.0
      %v351 = vmax.f32 %v319, 0.0
      %v352 = vmax.f32 %v322, 0.0
      %v353 = vmax.f32 %v327, 0.0
      %v354 = vmax.f32 %v330, 0.0
      %v355 = vmax.f32 %v335, 0.0
      %v356 = vmax.f32 %v338, 0.0
      %v357 = vmin.f32 %v341, 6.0
      %v358 = vmin.f32 %v342, 6.0
      %v359 = vmin.f32 %v343, 6.0
      %v360 = vmin.f32 %v344, 6.0
      %v361 = vmin.f32 %v345, 6.0
      %v362 = vmin.f32 %v346, 6.0
      %v363 = vmin.f32 %v347, 6.0
      %v364 = vmin.f32 %v348, 6.0
      %v365 = vmin.f32 %v349, 6.0
      %v366 = vmin.f32 %v350, 6.0
      %v367 = vmin.f32 %v351, 6.0
      %v368 = vmin.f32 %v352, 6.0
      %v369 = vmin.f32 %v353, 6.0
      %v370 = vmin.f32 %v354, 6.0
      %v371 = vmin.f32 %v355, 6.0
      %v372 = vmin.f32 %v356, 6.0
      %vm373 = vcmask 261120
      %374 = vst.msk [vmem:[%s172] sm:$0xff] %vm373, %v357
      %375 = vst.msk [vmem:[%s172 + $0x8] sm:$0xff] %vm373, %v358
      %376 = vst.msk [vmem:[%s172 + $0x10] sm:$0xff] %vm373, %v359
      %377 = vst.msk [vmem:[%s172 + $0x18] sm:$0xff] %vm373, %v360
      %378 = vst.msk [vmem:[%s172 + $0x20] sm:$0xff] %vm373, %v361
      %379 = vst.msk [vmem:[%s172 + $0x28] sm:$0xff] %vm373, %v362
      %380 = vst.msk [vmem:[%s172 + $0x30] sm:$0xff] %vm373, %v363
      %381 = vst.msk [vmem:[%s172 + $0x38] sm:$0xff] %vm373, %v364
      %382 = vst.msk [vmem:[%s172 + $0x40] sm:$0xff] %vm373, %v365
      %383 = vst.msk [vmem:[%s172 + $0x48] sm:$0xff] %vm373, %v366
      %384 = vst.msk [vmem:[%s172 + $0x50] sm:$0xff] %vm373, %v367
      %385 = vst.msk [vmem:[%s172 + $0x58] sm:$0xff] %vm373, %v368
      %386 = vst.msk [vmem:[%s172 + $0x60] sm:$0xff] %vm373, %v369
      %387 = vst.msk [vmem:[%s172 + $0x68] sm:$0xff] %vm373, %v370
      %388 = vst.msk [vmem:[%s172 + $0x70] sm:$0xff] %vm373, %v371
      %389 = vst.msk [vmem:[%s172 + $0x78] sm:$0xff] %vm373, %v372
      %s390 = smul.u32 16, %s14
      %p391 = scmp.lt.s32.totalorder %s390, 63
      %s392 = scalar_select %p391, %s390, 63
      %s393 = smul.addr %s392, 8
      %s394 = scalar_lea.vmem %s3, %s393
      // Predicated region
      $region33: #{mobilenet_v2_forward.5} parent=31 // pred_check
        %p395 = pneg %p100
      $region34: #{mobilenet_v2_forward.5} parent=31 // pred_check_branch
        %397 = sbr.rel (%p395) target = $region36
      $region35: #{mobilenet_v2_forward.5} parent=31 // pred_region
        %s398 = smul.u32 16, %s14
      $region36: #{mobilenet_v2_forward.5} parent=31 // pred_fallthru
        _
    $region32: #{mobilenet_v2_forward.5} parent=5 // pred_fallthru
      _
    %p399 = scmp.le.s32.totalorder 2, %s9
    // Predicated region
    $region37: #{mobilenet_v2_forward.5} parent=5 // pred_check
      %p400 = pneg %p399
    $region38: #{mobilenet_v2_forward.5} parent=5 // pred_check_branch
      %402 = sbr.rel (%p400) target = $region40
    $region39: #{mobilenet_v2_forward.5} parent=5 // pred_region
      %s403 = ssub.s32 %s9, 2
      // Predicated region
      $region41: #{mobilenet_v2_forward.5} parent=39 // pred_check
        %p404 = pneg %p106
      $region42: #{mobilenet_v2_forward.5} parent=39 // pred_check_branch
        %406 = sbr.rel (%p404) target = $region44
      $region43: #{mobilenet_v2_forward.5} parent=39 // pred_region
        %s407 = smul.u32 16, %s15
        %p408 = scmp.lt.s32.totalorder %s407, 63
        %s409 = scalar_select %p408, %s407, 63
        %s410 = smul.addr %s409, 8
        %s411 = scalar_lea.vmem %s3, %s410
      $region44: #{mobilenet_v2_forward.5} parent=39 // pred_fallthru
        _
    $region40: #{mobilenet_v2_forward.5} parent=5 // pred_fallthru
      _
  $region6: #{mobilenet_v2_forward.5} parent=0 // loop_footer
    %s13 = sadd.s32 1, %s9
  $region7: #{mobilenet_v2_forward.5} parent=0 // loop_footer_branch
    %8 = sbr.rel target = $region3
  $region8: #{mobilenet_v2_forward.5} parent=0 // loop_exit
    _

// kernel: mobilenet_v2_forward.6
$region0: #{mobilenet_v2_forward.6}
  #allocation0 [shape = 'u32[]', space=smem, size = 0x4, offset = 0x4, fixed_abs, tag = 'smem constant byte address 0x4 - core index']
  #allocation1 [shape = 'u32[144,128]{1,0:T(1,128)}', space=vmem, size = 0x12000, scoped, tag = 'internal scratch']
  #allocation2 [shape = 'f32[18,32,32]{2,1,0:T(8,128)}', space=vmem, size = 0x48000, scoped, tag = 'scratch operand']
  %s0 = inlined_call_operand.vmem [shape: f32[2,16,16,32], index: 0, kind: input, shape index: {}]
  %s1 = inlined_call_operand.vmem [shape: f32[9,32], index: 1, kind: input, shape index: {}]
  %s2 = inlined_call_operand.vmem [shape: f32[1,32], index: 2, kind: input, shape index: {}]
  %s3 = inlined_call_operand.vmem [shape: f32[32,16], index: 3, kind: input, shape index: {}]
  %s4 = inlined_call_operand.vmem [shape: f32[1,16], index: 4, kind: input, shape index: {}]
  %s5 = inlined_call_operand.vmem [shape: f32[2,16,16,16], index: 5, kind: output, shape index: {}]
  %s6 = sld [smem:[#allocation0]]
  $region53: #{mobilenet_v2_forward.6} parent=0
    _
  %s8 = ssub.s32 1, %s6
  %s9 = scalar_select 0, %s8, %s6
  loop: start=0, step=1, limit=4
  $region2: #{mobilenet_v2_forward.6} parent=0 // loop_pre_header
    _
  $region3: #{mobilenet_v2_forward.6} parent=0 // loop_header
    %s11 = sphi 0, %s15
    %p12 = scmp.ge.s32.totalorder %s11, 4
    %s21 = sphi 0, %s23
    %s24 = sphi 0, %s21
    %s25 = sphi 0, %s24
    %s41 = sphi 0, %s25
    %s45 = sphi 0, %s45
    %s47 = sphi 0, %s45
    %s48 = sphi 0, %s47
    %s62 = sphi 0, %s48
    %s66 = sphi 0, %s66
    %s68 = sphi 0, %s66
    %s69 = sphi 0, %s68
    %s83 = sphi 0, %s69
    %s87 = sphi 0, %s87
    %s89 = sphi 0, %s87
    %s90 = sphi 0, %s89
    %s104 = sphi 0, %s90
    %s108 = sphi 0, %s108
    %s110 = sphi 0, %s108
    %s111 = sphi 0, %s110
    %s125 = sphi 0, %s111
    %s131 = sphi 0, %s133
    %s134 = sphi 0, %s131
    %s135 = sphi 0, %s134
    %s151 = sphi 0, %s135
  $region4: #{mobilenet_v2_forward.6} parent=0 // loop_header_branch
    %14 = sbr.rel (%p12) target = $region8
  $region5: #{mobilenet_v2_forward.6} parent=0 // loop_body
    %s16 = ssub.s32 %s11, 1
    %s17 = ssub.s32 %s11, 2
    %s18 = sadd.s32 %s11, 1
    %s19 = ssub.s32 %s11, %s18
    %p20 = scmp.eq.s32.totalorder %s19, 0
    %s22 = sadd.s32 %s21, 1
    %s23 = scalar_select %p20, %s21, %s22
    %p26 = pneg %p20
    %p27 = scmp.eq.s32.totalorder %s11, 1
    %p28 = por %p26, %p27
    %p29 = scmp.ne.s32.totalorder %s21, %s24
    %p30 = scmp.eq.s32.totalorder %s11, 0
    %p31 = por %p29, %p30
    %p32 = scmp.ne.s32.totalorder %s21, %s24
    %p33 = scmp.eq.s32.totalorder %s16, 1
    %p34 = por %p32, %p33
    %p35 = scmp.ne.s32.totalorder %s24, %s25
    %p36 = scmp.eq.s32.totalorder %s16, 0
    %p37 = por %p35, %p36
    %p38 = scmp.ne.s32.totalorder %s24, %s25
    %p39 = scmp.eq.s32.totalorder %s17, 1
    %p40 = por %p38, %p39
    %p42 = scmp.ne.s32.totalorder %s25, %s41
    %p43 = scmp.eq.s32.totalorder %s17, 0
    %p44 = por %p42, %p43
    %s46 = sadd.s32 %s45, 1
    %p49 = scmp.eq.s32.totalorder %s11, 1
    %p50 = scmp.ne.s32.totalorder %s45, %s47
    %p51 = scmp.eq.s32.totalorder %s11, 0
    %p52 = por %p50, %p51
    %p53 = scmp.ne.s32.totalorder %s45, %s47
    %p54 = scmp.eq.s32.totalorder %s16, 1
    %p55 = por %p53, %p54
    %p56 = scmp.ne.s32.totalorder %s47, %s48
    %p57 = scmp.eq.s32.totalorder %s16, 0
    %p58 = por %p56, %p57
    %p59 = scmp.ne.s32.totalorder %s47, %s48
    %p60 = scmp.eq.s32.totalorder %s17, 1
    %p61 = por %p59, %p60
    %p63 = scmp.ne.s32.totalorder %s48, %s62
    %p64 = scmp.eq.s32.totalorder %s17, 0
    %p65 = por %p63, %p64
    %s67 = sadd.s32 %s66, 1
    %p70 = scmp.eq.s32.totalorder %s11, 1
    %p71 = scmp.ne.s32.totalorder %s66, %s68
    %p72 = scmp.eq.s32.totalorder %s11, 0
    %p73 = por %p71, %p72
    %p74 = scmp.ne.s32.totalorder %s66, %s68
    %p75 = scmp.eq.s32.totalorder %s16, 1
    %p76 = por %p74, %p75
    %p77 = scmp.ne.s32.totalorder %s68, %s69
    %p78 = scmp.eq.s32.totalorder %s16, 0
    %p79 = por %p77, %p78
    %p80 = scmp.ne.s32.totalorder %s68, %s69
    %p81 = scmp.eq.s32.totalorder %s17, 1
    %p82 = por %p80, %p81
    %p84 = scmp.ne.s32.totalorder %s69, %s83
    %p85 = scmp.eq.s32.totalorder %s17, 0
    %p86 = por %p84, %p85
    %s88 = sadd.s32 %s87, 1
    %p91 = scmp.eq.s32.totalorder %s11, 1
    %p92 = scmp.ne.s32.totalorder %s87, %s89
    %p93 = scmp.eq.s32.totalorder %s11, 0
    %p94 = por %p92, %p93
    %p95 = scmp.ne.s32.totalorder %s87, %s89
    %p96 = scmp.eq.s32.totalorder %s16, 1
    %p97 = por %p95, %p96
    %p98 = scmp.ne.s32.totalorder %s89, %s90
    %p99 = scmp.eq.s32.totalorder %s16, 0
    %p100 = por %p98, %p99
    %p101 = scmp.ne.s32.totalorder %s89, %s90
    %p102 = scmp.eq.s32.totalorder %s17, 1
    %p103 = por %p101, %p102
    %p105 = scmp.ne.s32.totalorder %s90, %s104
    %p106 = scmp.eq.s32.totalorder %s17, 0
    %p107 = por %p105, %p106
    %s109 = sadd.s32 %s108, 1
    %p112 = scmp.eq.s32.totalorder %s11, 1
    %p113 = scmp.ne.s32.totalorder %s108, %s110
    %p114 = scmp.eq.s32.totalorder %s11, 0
    %p115 = por %p113, %p114
    %p116 = scmp.ne.s32.totalorder %s108, %s110
    %p117 = scmp.eq.s32.totalorder %s16, 1
    %p118 = por %p116, %p117
    %p119 = scmp.ne.s32.totalorder %s110, %s111
    %p120 = scmp.eq.s32.totalorder %s16, 0
    %p121 = por %p119, %p120
    %p122 = scmp.ne.s32.totalorder %s110, %s111
    %p123 = scmp.eq.s32.totalorder %s17, 1
    %p124 = por %p122, %p123
    %p126 = scmp.ne.s32.totalorder %s111, %s125
    %p127 = scmp.eq.s32.totalorder %s17, 0
    %p128 = por %p126, %p127
    %s129 = ssub.s32 %s11, %s18
    %p130 = scmp.eq.s32.totalorder %s129, 0
    %s132 = sadd.s32 %s131, 1
    %s133 = scalar_select %p130, %s131, %s132
    %p136 = pneg %p130
    %p137 = scmp.eq.s32.totalorder %s11, 1
    %p138 = por %p136, %p137
    %p139 = scmp.ne.s32.totalorder %s131, %s134
    %p140 = scmp.eq.s32.totalorder %s11, 0
    %p141 = por %p139, %p140
    %p142 = scmp.ne.s32.totalorder %s131, %s134
    %p143 = scmp.eq.s32.totalorder %s16, 1
    %p144 = por %p142, %p143
    %p145 = scmp.ne.s32.totalorder %s134, %s135
    %p146 = scmp.eq.s32.totalorder %s16, 0
    %p147 = por %p145, %p146
    %p148 = scmp.ne.s32.totalorder %s134, %s135
    %p149 = scmp.eq.s32.totalorder %s17, 1
    %p150 = por %p148, %p149
    %p152 = scmp.ne.s32.totalorder %s135, %s151
    %p153 = scmp.eq.s32.totalorder %s17, 0
    %p154 = por %p152, %p153
    %p155 = scmp.le.s32.totalorder 1, %s11
    %p156 = scmp.lt.s32.totalorder %s11, 3
    %p157 = pnand %p155, %p156
    %p158 = pneg %p157
    // Predicated region
    $region9: #{mobilenet_v2_forward.6} parent=5 // pred_check
      _
    $region10: #{mobilenet_v2_forward.6} parent=5 // pred_check_branch
      %160 = sbr.rel (%p157) target = $region12
    $region11: #{mobilenet_v2_forward.6} parent=5 // pred_region
      %s161 = ssub.s32 %s11, 1
      // Predicated region
      $region13: #{mobilenet_v2_forward.6} parent=11 // pred_check
        %p162 = pneg %p58
      $region14: #{mobilenet_v2_forward.6} parent=11 // pred_check_branch
        %164 = sbr.rel (%p162) target = $region16
      $region15: #{mobilenet_v2_forward.6} parent=11 // pred_region
        _
      $region16: #{mobilenet_v2_forward.6} parent=11 // pred_fallthru
        _
      // Predicated region
      $region17: #{mobilenet_v2_forward.6} parent=11 // pred_check
        %p165 = pneg %p79
      $region18: #{mobilenet_v2_forward.6} parent=11 // pred_check_branch
        %167 = sbr.rel (%p165) target = $region20
      $region19: #{mobilenet_v2_forward.6} parent=11 // pred_region
        _
      $region20: #{mobilenet_v2_forward.6} parent=11 // pred_fallthru
        _
      // Predicated region
      $region21: #{mobilenet_v2_forward.6} parent=11 // pred_check
        %p168 = pneg %p100
      $region22: #{mobilenet_v2_forward.6} parent=11 // pred_check_branch
        %170 = sbr.rel (%p168) target = $region24
      $region23: #{mobilenet_v2_forward.6} parent=11 // pred_region
        _
      $region24: #{mobilenet_v2_forward.6} parent=11 // pred_fallthru
        _
      // Predicated region
      $region25: #{mobilenet_v2_forward.6} parent=11 // pred_check
        %p171 = pneg %p121
      $region26: #{mobilenet_v2_forward.6} parent=11 // pred_check_branch
        %173 = sbr.rel (%p171) target = $region28
      $region27: #{mobilenet_v2_forward.6} parent=11 // pred_region
        _
      $region28: #{mobilenet_v2_forward.6} parent=11 // pred_fallthru
        _
    $region12: #{mobilenet_v2_forward.6} parent=5 // pred_fallthru
      _
    %p174 = scmp.lt.s32.totalorder %s11, 2
    // Predicated region
    $region29: #{mobilenet_v2_forward.6} parent=5 // pred_check
      %p175 = pneg %p174
    $region30: #{mobilenet_v2_forward.6} parent=5 // pred_check_branch
      %177 = sbr.rel (%p175) target = $region32
    $region31: #{mobilenet_v2_forward.6} parent=5 // pred_region
      // Predicated region
      $region33: #{mobilenet_v2_forward.6} parent=31 // pred_check
        %p178 = pneg %p31
      $region34: #{mobilenet_v2_forward.6} parent=31 // pred_check_branch
        %180 = sbr.rel (%p178) target = $region36
      $region35: #{mobilenet_v2_forward.6} parent=31 // pred_region
        %p181 = scmp.lt.s32.totalorder %s11, 1
        %s182 = scalar_select %p181, %s11, 1
        %s183 = smul.addr %s182, 32
        %s184 = smul.addr %s183, 8
        %s185 = scalar_lea.vmem %s0, %s184
      $region36: #{mobilenet_v2_forward.6} parent=31 // pred_fallthru
        _
    $region32: #{mobilenet_v2_forward.6} parent=5 // pred_fallthru
      _
    %p186 = scmp.le.s32.totalorder 1, %s11
    %p187 = scmp.lt.s32.totalorder %s11, 3
    %p188 = pnand %p186, %p187
    %p189 = pneg %p188
    // Predicated region
    $region37: #{mobilenet_v2_forward.6} parent=5 // pred_check
      _
    $region38: #{mobilenet_v2_forward.6} parent=5 // pred_check_branch
      %191 = sbr.rel (%p188) target = $region40
    $region39: #{mobilenet_v2_forward.6} parent=5 // pred_region
      %s192 = ssub.s32 %s11, 1
      %p193 = scmp.lt.s32.totalorder %s16, 1
      %s194 = scalar_select %p193, %s16, 1
      %s195 = smul.addr %s194, 32
      %s196 = smul.addr %s195, 8
      %s197 = scalar_lea.vmem %s0, %s196
      %p198 = pneg %p37
      %p199 = pneg %p34
      %p200 = pneg %p58
      %p201 = pneg %p55
      %p202 = pneg %p79
      %p203 = pneg %p76
      %p204 = pneg %p100
      %p205 = pneg %p97
      %p206 = pneg %p121
      %p207 = pneg %p118
      %p208 = pneg %p147
      %p209 = pneg %p144
      %p210 = scmp.lt.s32.totalorder %s16, 1
      %s211 = scalar_select %p210, %s16, 1
      %s212 = smul.addr %s211, 32
      %s213 = smul.addr %s212, 8
      %s214 = scalar_lea.vmem %s5, %s213
      %p215 = scmp.lt.s32.totalorder %s16, 1
      %s216 = scalar_select %p215, %s16, 1
      %s217 = smul.addr %s216, 32
      %s218 = smul.addr %s217, 8
      %s219 = scalar_lea.vmem %s0, %s218
      %p220 = scmp.lt.s32.totalorder %s16, 1
      %s221 = scalar_select %p220, %s16, 1
      %s222 = smul.addr %s221, 32
      %s223 = smul.addr %s222, 8
      %s224 = scalar_lea.vmem %s5, %s223
      %v226 = vld [vmem:[%s219] sm:$0xff]
      %v227 = vld [vmem:[%s219 + $0x8] sm:$0xff]
      %v228 = vld [vmem:[%s219 + $0x10] sm:$0xff]
      %v229 = vld [vmem:[%s219 + $0x18] sm:$0xff]
      %v230 = vld [vmem:[%s219 + $0x20] sm:$0xff]
      %v231 = vld [vmem:[%s219 + $0x28] sm:$0xff]
      %v232 = vld [vmem:[%s219 + $0x30] sm:$0xff]
      %v233 = vld [vmem:[%s219 + $0x38] sm:$0xff]
      %v234 = vld [vmem:[%s219 + $0x40] sm:$0xff]
      %v235 = vld [vmem:[%s219 + $0x48] sm:$0xff]
      %v236 = vld [vmem:[%s219 + $0x50] sm:$0xff]
      %v237 = vld [vmem:[%s219 + $0x58] sm:$0xff]
      %v238 = vld [vmem:[%s219 + $0x60] sm:$0xff]
      %v239 = vld [vmem:[%s219 + $0x68] sm:$0xff]
      %v240 = vld [vmem:[%s219 + $0x70] sm:$0xff]
      %v241 = vld [vmem:[%s219 + $0x78] sm:$0xff]
      %v242 = vld [vmem:[%s219 + $0x80] sm:$0xff]
      %v243 = vld [vmem:[%s219 + $0x88] sm:$0xff]
      %v244 = vld [vmem:[%s219 + $0x90] sm:$0xff]
      %v245 = vld [vmem:[%s219 + $0x98] sm:$0xff]
      %v246 = vld [vmem:[%s219 + $0xa0] sm:$0xff]
      %v247 = vld [vmem:[%s219 + $0xa8] sm:$0xff]
      %v248 = vld [vmem:[%s219 + $0xb0] sm:$0xff]
      %v249 = vld [vmem:[%s219 + $0xb8] sm:$0xff]
      %v250 = vld [vmem:[%s219 + $0xc0] sm:$0xff]
      %v251 = vld [vmem:[%s219 + $0xc8] sm:$0xff]
      %v252 = vld [vmem:[%s219 + $0xd0] sm:$0xff]
      %v253 = vld [vmem:[%s219 + $0xd8] sm:$0xff]
      %v254 = vld [vmem:[%s219 + $0xe0] sm:$0xff]
      %v255 = vld [vmem:[%s219 + $0xe8] sm:$0xff]
      %v256 = vld [vmem:[%s219 + $0xf0] sm:$0xff]
      %v257 = vld [vmem:[%s219 + $0xf8] sm:$0xff]
      %vm258 = vcmask 261120
      %259 = vst.msk [vmem:[#allocation2] sm:$0xff] %vm258, 0.0
      %260 = vst.msk [vmem:[#allocation2 + $0x8] sm:$0xff] %vm258, 0.0
      %261 = vst.msk [vmem:[#allocation2 + $0x10] sm:$0xff] %vm258, 0.0
      %262 = vst.msk [vmem:[#allocation2 + $0x18] sm:$0xff] %vm258, 0.0
      %263 = vst.msk [vmem:[#allocation2 + $0x20] sm:$0xff] %vm258, 0.0
      %264 = vst.msk [vmem:[#allocation2 + $0x28] sm:$0xff] %vm258, 0.0
      %265 = vst.msk [vmem:[#allocation2 + $0x30] sm:$0xff] %vm258, 0.0
      %266 = vst.msk [vmem:[#allocation2 + $0x38] sm:$0xff] %vm258, 0.0
      %267 = vst.msk [vmem:[#allocation2 + $0x40] sm:$0xff] %vm258, 0.0
      %268 = vst.msk [vmem:[#allocation2 + $0x48] sm:$0xff] %vm258, 0.0
      %269 = vst.msk [vmem:[#allocation2 + $0x50] sm:$0xff] %vm258, 0.0
      %270 = vst.msk [vmem:[#allocation2 + $0x58] sm:$0xff] %vm258, 0.0
      %271 = vst.msk [vmem:[#allocation2 + $0x60] sm:$0xff] %vm258, 0.0
      %272 = vst.msk [vmem:[#allocation2 + $0x68] sm:$0xff] %vm258, 0.0
      %273 = vst.msk [vmem:[#allocation2 + $0x70] sm:$0xff] %vm258, 0.0
      %274 = vst.msk [vmem:[#allocation2 + $0x78] sm:$0xff] %vm258, 0.0
      %275 = vst.msk [vmem:[#allocation2 + $0x80] sm:$0xff] %vm258, 0.0
      %276 = vst.msk [vmem:[#allocation2 + $0x88] sm:$0xff] %vm258, 0.0
      %277 = vst.msk [vmem:[#allocation2 + $0x90] sm:$0xff] %vm258, 0.0
      %278 = vst.msk [vmem:[#allocation2 + $0x98] sm:$0xff] %vm258, 0.0
      %279 = vst.msk [vmem:[#allocation2 + $0xa0] sm:$0xff] %vm258, 0.0
      %280 = vst.msk [vmem:[#allocation2 + $0xa8] sm:$0xff] %vm258, 0.0
      %281 = vst.msk [vmem:[#allocation2 + $0xb0] sm:$0xff] %vm258, 0.0
      %282 = vst.msk [vmem:[#allocation2 + $0xb8] sm:$0xff] %vm258, 0.0
      %283 = vst.msk [vmem:[#allocation2 + $0xc0] sm:$0xff] %vm258, 0.0
      %284 = vst.msk [vmem:[#allocation2 + $0xc8] sm:$0xff] %vm258, 0.0
      %285 = vst.msk [vmem:[#allocation2 + $0xd0] sm:$0xff] %vm258, 0.0
      %286 = vst.msk [vmem:[#allocation2 + $0xd8] sm:$0xff] %vm258, 0.0
      %287 = vst.msk [vmem:[#allocation2 + $0xe0] sm:$0xff] %vm258, 0.0
      %288 = vst.msk [vmem:[#allocation2 + $0xe8] sm:$0xff] %vm258, 0.0
      %289 = vst.msk [vmem:[#allocation2 + $0xf0] sm:$0xff] %vm258, 0.0
      %290 = vst.msk [vmem:[#allocation2 + $0xf8] sm:$0xff] %vm258, 0.0
      %291 = vst.msk [vmem:[#allocation2 + $0x100] sm:$0xff] %vm258, 0.0
      %292 = vst.msk [vmem:[#allocation2 + $0x108] sm:$0xff] %vm258, 0.0
      %293 = vst.msk [vmem:[#allocation2 + $0x110] sm:$0xff] %vm258, 0.0
      %294 = vst.msk [vmem:[#allocation2 + $0x118] sm:$0xff] %vm258, 0.0
      %295 = vst.msk [vmem:[#allocation2 + $0x120] sm:$0xff] %vm258, 0.0
      %296 = vst.msk [vmem:[#allocation2 + $0x128] sm:$0xff] %vm258, 0.0
      %297 = vst.msk [vmem:[#allocation2 + $0x130] sm:$0xff] %vm258, 0.0
      %298 = vst.msk [vmem:[#allocation2 + $0x138] sm:$0xff] %vm258, 0.0
      %299 = vst.msk [vmem:[#allocation2 + $0x140] sm:$0xff] %vm258, 0.0
      %300 = vst.msk [vmem:[#allocation2 + $0x148] sm:$0xff] %vm258, 0.0
      %301 = vst.msk [vmem:[#allocation2 + $0x150] sm:$0xff] %vm258, 0.0
      %302 = vst.msk [vmem:[#allocation2 + $0x158] sm:$0xff] %vm258, 0.0
      %303 = vst.msk [vmem:[#allocation2 + $0x160] sm:$0xff] %vm258, 0.0
      %304 = vst.msk [vmem:[#allocation2 + $0x168] sm:$0xff] %vm258, 0.0
      %305 = vst.msk [vmem:[#allocation2 + $0x170] sm:$0xff] %vm258, 0.0
      %306 = vst.msk [vmem:[#allocation2 + $0x178] sm:$0xff] %vm258, 0.0
      %307 = vst.msk [vmem:[#allocation2 + $0x180] sm:$0xff] %vm258, 0.0
      %308 = vst.msk [vmem:[#allocation2 + $0x188] sm:$0xff] %vm258, 0.0
      %309 = vst.msk [vmem:[#allocation2 + $0x190] sm:$0xff] %vm258, 0.0
      %310 = vst.msk [vmem:[#allocation2 + $0x198] sm:$0xff] %vm258, 0.0
      %311 = vst.msk [vmem:[#allocation2 + $0x1a0] sm:$0xff] %vm258, 0.0
      %312 = vst.msk [vmem:[#allocation2 + $0x1a8] sm:$0xff] %vm258, 0.0
      %313 = vst.msk [vmem:[#allocation2 + $0x1b0] sm:$0xff] %vm258, 0.0
      %314 = vst.msk [vmem:[#allocation2 + $0x1b8] sm:$0xff] %vm258, 0.0
      %315 = vst.msk [vmem:[#allocation2 + $0x1c0] sm:$0xff] %vm258, 0.0
      %316 = vst.msk [vmem:[#allocation2 + $0x1c8] sm:$0xff] %vm258, 0.0
      %317 = vst.msk [vmem:[#allocation2 + $0x1d0] sm:$0xff] %vm258, 0.0
      %318 = vst.msk [vmem:[#allocation2 + $0x1d8] sm:$0xff] %vm258, 0.0
      %319 = vst.msk [vmem:[#allocation2 + $0x1e0] sm:$0xff] %vm258, 0.0
      %320 = vst.msk [vmem:[#allocation2 + $0x1e8] sm:$0xff] %vm258, 0.0
      %321 = vst.msk [vmem:[#allocation2 + $0x1f0] sm:$0xff] %vm258, 0.0
      %322 = vst.msk [vmem:[#allocation2 + $0x1f8] sm:$0xff] %vm258, 0.0
      %323 = vst.msk [vmem:[#allocation2 + $0x200] sm:$0xff] %vm258, 0.0
      %324 = vst.msk [vmem:[#allocation2 + $0x208] sm:$0xff] %vm258, 0.0
      %325 = vst.msk [vmem:[#allocation2 + $0x210] sm:$0xff] %vm258, 0.0
      %326 = vst.msk [vmem:[#allocation2 + $0x218] sm:$0xff] %vm258, 0.0
      %327 = vst.msk [vmem:[#allocation2 + $0x220] sm:$0xff] %vm258, 0.0
      %328 = vst.msk [vmem:[#allocation2 + $0x228] sm:$0xff] %vm258, 0.0
      %329 = vst.msk [vmem:[#allocation2 + $0x230] sm:$0xff] %vm258, 0.0
      %330 = vst.msk [vmem:[#allocation2 + $0x238] sm:$0xff] %vm258, 0.0
      %s331 = scalar_lea.vmem [#allocation2], 32
      %332 = vst.msk [vmem:[%s331 + $0x8] sm:$0xff] %vm258, %v226
      %333 = vst.msk [vmem:[%s331 + $0x10] sm:$0xff] %vm258, %v227
      %334 = vst.msk [vmem:[%s331 + $0x28] sm:$0xff] %vm258, %v228
      %335 = vst.msk [vmem:[%s331 + $0x30] sm:$0xff] %vm258, %v229
      %336 = vst.msk [vmem:[%s331 + $0x48] sm:$0xff] %vm258, %v230
      %337 = vst.msk [vmem:[%s331 + $0x50] sm:$0xff] %vm258, %v231
      %338 = vst.msk [vmem:[%s331 + $0x68] sm:$0xff] %vm258, %v232
      %339 = vst.msk [vmem:[%s331 + $0x70] sm:$0xff] %vm258, %v233
      %340 = vst.msk [vmem:[%s331 + $0x88] sm:$0xff] %vm258, %v234
      %341 = vst.msk [vmem:[%s331 + $0x90] sm:$0xff] %vm258, %v235
      %342 = vst.msk [vmem:[%s331 + $0xa8] sm:$0xff] %vm258, %v236
      %343 = vst.msk [vmem:[%s331 + $0xb0] sm:$0xff] %vm258, %v237
      %344 = vst.msk [vmem:[%s331 + $0xc8] sm:$0xff] %vm258, %v238
      %345 = vst.msk [vmem:[%s331 + $0xd0] sm:$0xff] %vm258, %v239
      %346 = vst.msk [vmem:[%s331 + $0xe8] sm:$0xff] %vm258, %v240
      %347 = vst.msk [vmem:[%s331 + $0xf0] sm:$0xff] %vm258, %v241
      %348 = vst.msk [vmem:[%s331 + $0x108] sm:$0xff] %vm258, %v242
      %349 = vst.msk [vmem:[%s331 + $0x110] sm:$0xff] %vm258, %v243
      %350 = vst.msk [vmem:[%s331 + $0x128] sm:$0xff] %vm258, %v244
      %351 = vst.msk [vmem:[%s331 + $0x130] sm:$0xff] %vm258, %v245
      %352 = vst.msk [vmem:[%s331 + $0x148] sm:$0xff] %vm258, %v246
      %353 = vst.msk [vmem:[%s331 + $0x150] sm:$0xff] %vm258, %v247
      %354 = vst.msk [vmem:[%s331 + $0x168] sm:$0xff] %vm258, %v248
      %355 = vst.msk [vmem:[%s331 + $0x170] sm:$0xff] %vm258, %v249
      %356 = vst.msk [vmem:[%s331 + $0x188] sm:$0xff] %vm258, %v250
      %357 = vst.msk [vmem:[%s331 + $0x190] sm:$0xff] %vm258, %v251
      %358 = vst.msk [vmem:[%s331 + $0x1a8] sm:$0xff] %vm258, %v252
      %359 = vst.msk [vmem:[%s331 + $0x1b0] sm:$0xff] %vm258, %v253
      %360 = vst.msk [vmem:[%s331 + $0x1c8] sm:$0xff] %vm258, %v254
      %361 = vst.msk [vmem:[%s331 + $0x1d0] sm:$0xff] %vm258, %v255
      %362 = vst.msk [vmem:[%s331 + $0x1e8] sm:$0xff] %vm258, %v256
      %363 = vst.msk [vmem:[%s331 + $0x1f0] sm:$0xff] %vm258, %v257
      %v364 = vld [vmem:[%s1] sm:$0xff]
      %v365 = vld [vmem:[%s1 + $0x8] sm:$0x1]
      %v366 = vld [vmem:[#allocation2 + $0x7] sm:$0xff]
      %v367 = vld [vmem:[#allocation2 + $0xf] sm:$0xff]
      %v368 = vld [vmem:[#allocation2 + $0x27] sm:$0xff]
      %v369 = vld [vmem:[#allocation2 + $0x2f] sm:$0xff]
      %v370 = vld [vmem:[#allocation2 + $0x47] sm:$0xff]
      %v371 = vld [vmem:[#allocation2 + $0x4f] sm:$0xff]
      %v372 = vld [vmem:[#allocation2 + $0x67] sm:$0xff]
      %v373 = vld [vmem:[#allocation2 + $0x6f] sm:$0xff]
      %v374 = vld [vmem:[#allocation2 + $0x87] sm:$0xff]
      %v375 = vld [vmem:[#allocation2 + $0x8f] sm:$0xff]
      %v376 = vld [vmem:[#allocation2 + $0xa7] sm:$0xff]
      %v377 = vld [vmem:[#allocation2 + $0xaf] sm:$0xff]
      %v378 = vld [vmem:[#allocation2 + $0xc7] sm:$0xff]
      %v379 = vld [vmem:[#allocation2 + $0xcf] sm:$0xff]
      %v380 = vld [vmem:[#allocation2 + $0xe7] sm:$0xff]
      %v381 = vld [vmem:[#allocation2 + $0xef] sm:$0xff]
      %v382 = vld [vmem:[#allocation2 + $0x107] sm:$0xff]
      %v383 = vld [vmem:[#allocation2 + $0x10f] sm:$0xff]
      %v384 = vld [vmem:[#allocation2 + $0x127] sm:$0xff]
      %v385 = vld [vmem:[#allocation2 + $0x12f] sm:$0xff]
      %v386 = vld [vmem:[#allocation2 + $0x147] sm:$0xff]
      %v387 = vld [vmem:[#allocation2 + $0x14f] sm:$0xff]
      %v388 = vld [vmem:[#allocation2 + $0x167] sm:$0xff]
      %v389 = vld [vmem:[#allocation2 + $0x16f] sm:$0xff]
      %v390 = vld [vmem:[#allocation2 + $0x187] sm:$0xff]
      %v391 = vld [vmem:[#allocation2 + $0x18f] sm:$0xff]
      %v392 = vld [vmem:[#allocation2 + $0x1a7] sm:$0xff]
      %v393 = vld [vmem:[#allocation2 + $0x1af] sm:$0xff]
      %v394 = vld [vmem:[#allocation2 + $0x1c7] sm:$0xff]
      %v395 = vld [vmem:[#allocation2 + $0x1cf] sm:$0xff]
      %v396 = vld [vmem:[#allocation2 + $0x1e7] sm:$0xff]
      %v397 = vld [vmem:[#allocation2 + $0x1ef] sm:$0xff]
      %v398 = vlaneseq
      %v399 = vshrl.u32 %v398, 7
      %v400 = vsub.s32 0, %v399
      %v401 = vrot.slane %v364, %v400
      %v402 = vmul.f32 %v366, %v401
      %v403 = vmul.f32 %v367, %v401
      %v404 = vmul.f32 %v368, %v401
      %v405 = vmul.f32 %v369, %v401
      %v406 = vmul.f32 %v370, %v401
      %v407 = vmul.f32 %v371, %v401
      %v408 = vmul.f32 %v372, %v401
      %v409 = vmul.f32 %v373, %v401
      %v410 = vmul.f32 %v374, %v401
      %v411 = vmul.f32 %v375, %v401
      %v412 = vmul.f32 %v376, %v401
      %v413 = vmul.f32 %v377, %v401
      %v414 = vmul.f32 %v378, %v401
      %v415 = vmul.f32 %v379, %v401
      %v416 = vmul.f32 %v380, %v401
      %v417 = vmul.f32 %v381, %v401
      %v418 = vmul.f32 %v382, %v401
      %v419 = vmul.f32 %v383, %v401
      %v420 = vmul.f32 %v384, %v401
      %v421 = vmul.f32 %v385, %v401
      %v422 = vmul.f32 %v386, %v401
      %v423 = vmul.f32 %v387, %v401
      %v424 = vmul.f32 %v388, %v401
      %v425 = vmul.f32 %v389, %v401
      %v426 = vmul.f32 %v390, %v401
      %v427 = vmul.f32 %v391, %v401
      %v428 = vmul.f32 %v392, %v401
      %v429 = vmul.f32 %v393, %v401
      %v430 = vmul.f32 %v394, %v401
      %v431 = vmul.f32 %v395, %v401
      %v432 = vmul.f32 %v396, %v401
      %v433 = vmul.f32 %v397, %v401
      %v434 = vld [vmem:[#allocation2 + $0x8] sm:$0xff]
      %v435 = vld [vmem:[#allocation2 + $0x10] sm:$0xff]
      %v436 = vld [vmem:[#allocation2 + $0x28] sm:$0xff]
      %v437 = vld [vmem:[#allocation2 + $0x30] sm:$0xff]
      %v438 = vld [vmem:[#allocation2 + $0x48] sm:$0xff]
      %v439 = vld [vmem:[#allocation2 + $0x50] sm:$0xff]
      %v440 = vld [vmem:[#allocation2 + $0x68] sm:$0xff]
      %v441 = vld [vmem:[#allocation2 + $0x70] sm:$0xff]
      %v442 = vld [vmem:[#allocation2 + $0x88] sm:$0xff]
      %v443 = vld [vmem:[#allocation2 + $0x90] sm:$0xff]
      %v444 = vld [vmem:[#allocation2 + $0xa8] sm:$0xff]
      %v445 = vld [vmem:[#allocation2 + $0xb0] sm:$0xff]
      %v446 = vld [vmem:[#allocation2 + $0xc8] sm:$0xff]
      %v447 = vld [vmem:[#allocation2 + $0xd0] sm:$0xff]
      %v448 = vld [vmem:[#allocation2 + $0xe8] sm:$0xff]
      %v449 = vld [vmem:[#allocation2 + $0xf0] sm:$0xff]
      %v450 = vld [vmem:[#allocation2 + $0x108] sm:$0xff]
      %v451 = vld [vmem:[#allocation2 + $0x110] sm:$0xff]
      %v452 = vld [vmem:[#allocation2 + $0x128] sm:$0xff]
      %v453 = vld [vmem:[#allocation2 + $0x130] sm:$0xff]
      %v454 = vld [vmem:[#allocation2 + $0x148] sm:$0xff]
      %v455 = vld [vmem:[#allocation2 + $0x150] sm:$0xff]
      %v456 = vld [vmem:[#allocation2 + $0x168] sm:$0xff]
      %v457 = vld [vmem:[#allocation2 + $0x170] sm:$0xff]
      %v458 = vld [vmem:[#allocation2 + $0x188] sm:$0xff]
      %v459 = vld [vmem:[#allocation2 + $0x190] sm:$0xff]
      %v460 = vld [vmem:[#allocation2 + $0x1a8] sm:$0xff]
      %v461 = vld [vmem:[#allocation2 + $0x1b0] sm:$0xff]
      %v462 = vld [vmem:[#allocation2 + $0x1c8] sm:$0xff]
      %v463 = vld [vmem:[#allocation2 + $0x1d0] sm:$0xff]
      %v464 = vld [vmem:[#allocation2 + $0x1e8] sm:$0xff]
      %v465 = vld [vmem:[#allocation2 + $0x1f0] sm:$0xff]
      %v466 = vlaneseq
      %v467 = vshrl.u32 %v466, 7
      %v468 = vsub.s32 1, %v467
      %v469 = vrot.slane %v364, %v468
      %v470 = vmul.f32 %v434, %v469
      %v471 = vmul.f32 %v435, %v469
      %v472 = vmul.f32 %v436, %v469
      %v473 = vmul.f32 %v437, %v469
      %v474 = vmul.f32 %v438, %v469
      %v475 = vmul.f32 %v439, %v469
      %v476 = vmul.f32 %v440, %v469
      %v477 = vmul.f32 %v441, %v469
      %v478 = vmul.f32 %v442, %v469
      %v479 = vmul.f32 %v443, %v469
      %v480 = vmul.f32 %v444, %v469
      %v481 = vmul.f32 %v445, %v469
      %v482 = vmul.f32 %v446, %v469
      %v483 = vmul.f32 %v447, %v469
      %v484 = vmul.f32 %v448, %v469
      %v485 = vmul.f32 %v449, %v469
      %v486 = vmul.f32 %v450, %v469
      %v487 = vmul.f32 %v451, %v469
      %v488 = vmul.f32 %v452, %v469
      %v489 = vmul.f32 %v453, %v469
      %v490 = vmul.f32 %v454, %v469
      %v491 = vmul.f32 %v455, %v469
      %v492 = vmul.f32 %v456, %v469
      %v493 = vmul.f32 %v457, %v469
      %v494 = vmul.f32 %v458, %v469
      %v495 = vmul.f32 %v459, %v469
      %v496 = vmul.f32 %v460, %v469
      %v497 = vmul.f32 %v461, %v469
      %v498 = vmul.f32 %v462, %v469
      %v499 = vmul.f32 %v463, %v469
      %v500 = vmul.f32 %v464, %v469
      %v501 = vmul.f32 %v465, %v469
      %v502 = vadd.f32 %v402, %v470
      %v503 = vadd.f32 %v403, %v471
      %v504 = vadd.f32 %v404, %v472
      %v505 = vadd.f32 %v405, %v473
      %v506 = vadd.f32 %v406, %v474
      %v507 = vadd.f32 %v407, %v475
      %v508 = vadd.f32 %v408, %v476
      %v509 = vadd.f32 %v409, %v477
      %v510 = vadd.f32 %v410, %v478
      %v511 = vadd.f32 %v411, %v479
      %v512 = vadd.f32 %v412, %v480
      %v513 = vadd.f32 %v413, %v481
      %v514 = vadd.f32 %v414, %v482
      %v515 = vadd.f32 %v415, %v483
      %v516 = vadd.f32 %v416, %v484
      %v517 = vadd.f32 %v417, %v485
      %v518 = vadd.f32 %v418, %v486
      %v519 = vadd.f32 %v419, %v487
      %v520 = vadd.f32 %v420, %v488
      %v521 = vadd.f32 %v421, %v489
      %v522 = vadd.f32 %v422, %v490
      %v523 = vadd.f32 %v423, %v491
      %v524 = vadd.f32 %v424, %v492
      %v525 = vadd.f32 %v425, %v493
      %v526 = vadd.f32 %v426, %v494
      %v527 = vadd.f32 %v427, %v495
      %v528 = vadd.f32 %v428, %v496
      %v529 = vadd.f32 %v429, %v497
      %v530 = vadd.f32 %v430, %v498
      %v531 = vadd.f32 %v431, %v499
      %v532 = vadd.f32 %v432, %v500
      %v533 = vadd.f32 %v433, %v501
      %v534 = vld [vmem:[#allocation2 + $0x9] sm:$0xff]
      %v535 = vld [vmem:[#allocation2 + $0x11] sm:$0xff]
      %v536 = vld [vmem:[#allocation2 + $0x29] sm:$0xff]
      %v537 = vld [vmem:[#allocation2 + $0x31] sm:$0xff]
      %v538 = vld [vmem:[#allocation2 + $0x49] sm:$0xff]
      %v539 = vld [vmem:[#allocation2 + $0x51] sm:$0xff]
      %v540 = vld [vmem:[#allocation2 + $0x69] sm:$0xff]
      %v541 = vld [vmem:[#allocation2 + $0x71] sm:$0xff]
      %v542 = vld [vmem:[#allocation2 + $0x89] sm:$0xff]
      %v543 = vld [vmem:[#allocation2 + $0x91] sm:$0xff]
      %v544 = vld [vmem:[#allocation2 + $0xa9] sm:$0xff]
      %v545 = vld [vmem:[#allocation2 + $0xb1] sm:$0xff]
      %v546 = vld [vmem:[#allocation2 + $0xc9] sm:$0xff]
      %v547 = vld [vmem:[#allocation2 + $0xd1] sm:$0xff]
      %v548 = vld [vmem:[#allocation2 + $0xe9] sm:$0xff]
      %v549 = vld [vmem:[#allocation2 + $0xf1] sm:$0xff]
      %v550 = vld [vmem:[#allocation2 + $0x109] sm:$0xff]
      %v551 = vld [vmem:[#allocation2 + $0x111] sm:$0xff]
      %v552 = vld [vmem:[#allocation2 + $0x129] sm:$0xff]
      %v553 = vld [vmem:[#allocation2 + $0x131] sm:$0xff]
      %v554 = vld [vmem:[#allocation2 + $0x149] sm:$0xff]
      %v555 = vld [vmem:[#allocation2 + $0x151] sm:$0xff]
      %v556 = vld [vmem:[#allocation2 + $0x169] sm:$0xff]
      %v557 = vld [vmem:[#allocation2 + $0x171] sm:$0xff]
      %v558 = vld [vmem:[#allocation2 + $0x189] sm:$0xff]
      %v559 = vld [vmem:[#allocation2 + $0x191] sm:$0xff]
      %v560 = vld [vmem:[#allocation2 + $0x1a9] sm:$0xff]
      %v561 = vld [vmem:[#allocation2 + $0x1b1] sm:$0xff]
      %v562 = vld [vmem:[#allocation2 + $0x1c9] sm:$0xff]
      %v563 = vld [vmem:[#allocation2 + $0x1d1] sm:$0xff]
      %v564 = vld [vmem:[#allocation2 + $0x1e9] sm:$0xff]
      %v565 = vld [vmem:[#allocation2 + $0x1f1] sm:$0xff]
      %v566 = vlaneseq
      %v567 = vshrl.u32 %v566, 7
      %v568 = vsub.s32 2, %v567
      %v569 = vrot.slane %v364, %v568
      %v570 = vmul.f32 %v534, %v569
      %v571 = vmul.f32 %v535, %v569
      %v572 = vmul.f32 %v536, %v569
      %v573 = vmul.f32 %v537, %v569
      %v574 = vmul.f32 %v538, %v569
      %v575 = vmul.f32 %v539, %v569
      %v576 = vmul.f32 %v540, %v569
      %v577 = vmul.f32 %v541, %v569
      %v578 = vmul.f32 %v542, %v569
      %v579 = vmul.f32 %v543, %v569
      %v580 = vmul.f32 %v544, %v569
      %v581 = vmul.f32 %v545, %v569
      %v582 = vmul.f32 %v546, %v569
      %v583 = vmul.f32 %v547, %v569
      %v584 = vmul.f32 %v548, %v569
      %v585 = vmul.f32 %v549, %v569
      %v586 = vmul.f32 %v550, %v569
      %v587 = vmul.f32 %v551, %v569
      %v588 = vmul.f32 %v552, %v569
      %v589 = vmul.f32 %v553, %v569
      %v590 = vmul.f32 %v554, %v569
      %v591 = vmul.f32 %v555, %v569
      %v592 = vmul.f32 %v556, %v569
      %v593 = vmul.f32 %v557, %v569
      %v594 = vmul.f32 %v558, %v569
      %v595 = vmul.f32 %v559, %v569
      %v596 = vmul.f32 %v560, %v569
      %v597 = vmul.f32 %v561, %v569
      %v598 = vmul.f32 %v562, %v569
      %v599 = vmul.f32 %v563, %v569
      %v600 = vmul.f32 %v564, %v569
      %v601 = vmul.f32 %v565, %v569
      %v602 = vadd.f32 %v502, %v570
      %v603 = vadd.f32 %v503, %v571
      %v604 = vadd.f32 %v504, %v572
      %v605 = vadd.f32 %v505, %v573
      %v606 = vadd.f32 %v506, %v574
      %v607 = vadd.f32 %v507, %v575
      %v608 = vadd.f32 %v508, %v576
      %v609 = vadd.f32 %v509, %v577
      %v610 = vadd.f32 %v510, %v578
      %v611 = vadd.f32 %v511, %v579
      %v612 = vadd.f32 %v512, %v580
      %v613 = vadd.f32 %v513, %v581
      %v614 = vadd.f32 %v514, %v582
      %v615 = vadd.f32 %v515, %v583
      %v616 = vadd.f32 %v516, %v584
      %v617 = vadd.f32 %v517, %v585
      %v618 = vadd.f32 %v518, %v586
      %v619 = vadd.f32 %v519, %v587
      %v620 = vadd.f32 %v520, %v588
      %v621 = vadd.f32 %v521, %v589
      %v622 = vadd.f32 %v522, %v590
      %v623 = vadd.f32 %v523, %v591
      %v624 = vadd.f32 %v524, %v592
      %v625 = vadd.f32 %v525, %v593
      %v626 = vadd.f32 %v526, %v594
      %v627 = vadd.f32 %v527, %v595
      %v628 = vadd.f32 %v528, %v596
      %v629 = vadd.f32 %v529, %v597
      %v630 = vadd.f32 %v530, %v598
      %v631 = vadd.f32 %v531, %v599
      %v632 = vadd.f32 %v532, %v600
      %v633 = vadd.f32 %v533, %v601
      %v634 = vld [vmem:[%s331 + $0x7] sm:$0xff]
      %v635 = vld [vmem:[%s331 + $0xf] sm:$0xff]
      %v636 = vld [vmem:[%s331 + $0x27] sm:$0xff]
      %v637 = vld [vmem:[%s331 + $0x2f] sm:$0xff]
      %v638 = vld [vmem:[%s331 + $0x47] sm:$0xff]
      %v639 = vld [vmem:[%s331 + $0x4f] sm:$0xff]
      %v640 = vld [vmem:[%s331 + $0x67] sm:$0xff]
      %v641 = vld [vmem:[%s331 + $0x6f] sm:$0xff]
      %v642 = vld [vmem:[%s331 + $0x87] sm:$0xff]
      %v643 = vld [vmem:[%s331 + $0x8f] sm:$0xff]
      %v644 = vld [vmem:[%s331 + $0xa7] sm:$0xff]
      %v645 = vld [vmem:[%s331 + $0xaf] sm:$0xff]
      %v646 = vld [vmem:[%s331 + $0xc7] sm:$0xff]
      %v647 = vld [vmem:[%s331 + $0xcf] sm:$0xff]
      %v648 = vld [vmem:[%s331 + $0xe7] sm:$0xff]
      %v649 = vld [vmem:[%s331 + $0xef] sm:$0xff]
      %v650 = vld [vmem:[%s331 + $0x107] sm:$0xff]
      %v651 = vld [vmem:[%s331 + $0x10f] sm:$0xff]
      %v652 = vld [vmem:[%s331 + $0x127] sm:$0xff]
      %v653 = vld [vmem:[%s331 + $0x12f] sm:$0xff]
      %v654 = vld [vmem:[%s331 + $0x147] sm:$0xff]
      %v655 = vld [vmem:[%s331 + $0x14f] sm:$0xff]
      %v656 = vld [vmem:[%s331 + $0x167] sm:$0xff]
      %v657 = vld [vmem:[%s331 + $0x16f] sm:$0xff]
      %v658 = vld [vmem:[%s331 + $0x187] sm:$0xff]
      %v659 = vld [vmem:[%s331 + $0x18f] sm:$0xff]
      %v660 = vld [vmem:[%s331 + $0x1a7] sm:$0xff]
      %v661 = vld [vmem:[%s331 + $0x1af] sm:$0xff]
      %v662 = vld [vmem:[%s331 + $0x1c7] sm:$0xff]
      %v663 = vld [vmem:[%s331 + $0x1cf] sm:$0xff]
      %v664 = vld [vmem:[%s331 + $0x1e7] sm:$0xff]
      %v665 = vld [vmem:[%s331 + $0x1ef] sm:$0xff]
      %v666 = vlaneseq
      %v667 = vshrl.u32 %v666, 7
      %v668 = vsub.s32 3, %v667
      %v669 = vrot.slane %v364, %v668
      %v670 = vmul.f32 %v634, %v669
      %v671 = vmul.f32 %v635, %v669
      %v672 = vmul.f32 %v636, %v669
      %v673 = vmul.f32 %v637, %v669
      %v674 = vmul.f32 %v638, %v669
      %v675 = vmul.f32 %v639, %v669
      %v676 = vmul.f32 %v640, %v669
      %v677 = vmul.f32 %v641, %v669
      %v678 = vmul.f32 %v642, %v669
      %v679 = vmul.f32 %v643, %v669
      %v680 = vmul.f32 %v644, %v669
      %v681 = vmul.f32 %v645, %v669
      %v682 = vmul.f32 %v646, %v669
      %v683 = vmul.f32 %v647, %v669
      %v684 = vmul.f32 %v648, %v669
      %v685 = vmul.f32 %v649, %v669
      %v686 = vmul.f32 %v650, %v669
      %v687 = vmul.f32 %v651, %v669
      %v688 = vmul.f32 %v652, %v669
      %v689 = vmul.f32 %v653, %v669
      %v690 = vmul.f32 %v654, %v669
      %v691 = vmul.f32 %v655, %v669
      %v692 = vmul.f32 %v656, %v669
      %v693 = vmul.f32 %v657, %v669
      %v694 = vmul.f32 %v658, %v669
      %v695 = vmul.f32 %v659, %v669
      %v696 = vmul.f32 %v660, %v669
      %v697 = vmul.f32 %v661, %v669
      %v698 = vmul.f32 %v662, %v669
      %v699 = vmul.f32 %v663, %v669
      %v700 = vmul.f32 %v664, %v669
      %v701 = vmul.f32 %v665, %v669
      %v702 = vadd.f32 %v602, %v670
      %v703 = vadd.f32 %v603, %v671
      %v704 = vadd.f32 %v604, %v672
      %v705 = vadd.f32 %v605, %v673
      %v706 = vadd.f32 %v606, %v674
      %v707 = vadd.f32 %v607, %v675
      %v708 = vadd.f32 %v608, %v676
      %v709 = vadd.f32 %v609, %v677
      %v710 = vadd.f32 %v610, %v678
      %v711 = vadd.f32 %v611, %v679
      %v712 = vadd.f32 %v612, %v680
      %v713 = vadd.f32 %v613, %v681
      %v714 = vadd.f32 %v614, %v682
      %v715 = vadd.f32 %v615, %v683
      %v716 = vadd.f32 %v616, %v684
      %v717 = vadd.f32 %v617, %v685
      %v718 = vadd.f32 %v618, %v686
      %v719 = vadd.f32 %v619, %v687
      %v720 = vadd.f32 %v620, %v688
      %v721 = vadd.f32 %v621, %v689
      %v722 = vadd.f32 %v622, %v690
      %v723 = vadd.f32 %v623, %v691
      %v724 = vadd.f32 %v624, %v692
      %v725 = vadd.f32 %v625, %v693
      %v726 = vadd.f32 %v626, %v694
      %v727 = vadd.f32 %v627, %v695
      %v728 = vadd.f32 %v628, %v696
      %v729 = vadd.f32 %v629, %v697
      %v730 = vadd.f32 %v630, %v698
      %v731 = vadd.f32 %v631, %v699
      %v732 = vadd.f32 %v632, %v700
      %v733 = vadd.f32 %v633, %v701
      %v734 = vld [vmem:[%s331 + $0x8] sm:$0xff]
      %v735 = vld [vmem:[%s331 + $0x10] sm:$0xff]
      %v736 = vld [vmem:[%s331 + $0x28] sm:$0xff]
      %v737 = vld [vmem:[%s331 + $0x30] sm:$0xff]
      %v738 = vld [vmem:[%s331 + $0x48] sm:$0xff]
      %v739 = vld [vmem:[%s331 + $0x50] sm:$0xff]
      %v740 = vld [vmem:[%s331 + $0x68] sm:$0xff]
      %v741 = vld [vmem:[%s331 + $0x70] sm:$0xff]
      %v742 = vld [vmem:[%s331 + $0x88] sm:$0xff]
      %v743 = vld [vmem:[%s331 + $0x90] sm:$0xff]
      %v744 = vld [vmem:[%s331 + $0xa8] sm:$0xff]
      %v745 = vld [vmem:[%s331 + $0xb0] sm:$0xff]
      %v746 = vld [vmem:[%s331 + $0xc8] sm:$0xff]
      %v747 = vld [vmem:[%s331 + $0xd0] sm:$0xff]
      %v748 = vld [vmem:[%s331 + $0xe8] sm:$0xff]
      %v749 = vld [vmem:[%s331 + $0xf0] sm:$0xff]
      %v750 = vld [vmem:[%s331 + $0x108] sm:$0xff]
      %v751 = vld [vmem:[%s331 + $0x110] sm:$0xff]
      %v752 = vld [vmem:[%s331 + $0x128] sm:$0xff]
      %v753 = vld [vmem:[%s331 + $0x130] sm:$0xff]
      %v754 = vld [vmem:[%s331 + $0x148] sm:$0xff]
      %v755 = vld [vmem:[%s331 + $0x150] sm:$0xff]
      %v756 = vld [vmem:[%s331 + $0x168] sm:$0xff]
      %v757 = vld [vmem:[%s331 + $0x170] sm:$0xff]
      %v758 = vld [vmem:[%s331 + $0x188] sm:$0xff]
      %v759 = vld [vmem:[%s331 + $0x190] sm:$0xff]
      %v760 = vld [vmem:[%s331 + $0x1a8] sm:$0xff]
      %v761 = vld [vmem:[%s331 + $0x1b0] sm:$0xff]
      %v762 = vld [vmem:[%s331 + $0x1c8] sm:$0xff]
      %v763 = vld [vmem:[%s331 + $0x1d0] sm:$0xff]
      %v764 = vld [vmem:[%s331 + $0x1e8] sm:$0xff]
      %v765 = vld [vmem:[%s331 + $0x1f0] sm:$0xff]
      %v766 = vlaneseq
      %v767 = vshrl.u32 %v766, 7
      %v768 = vsub.s32 4, %v767
      %v769 = vrot.slane %v364, %v768
      %v770 = vmul.f32 %v734, %v769
      %v771 = vmul.f32 %v735, %v769
      %v772 = vmul.f32 %v736, %v769
      %v773 = vmul.f32 %v737, %v769
      %v774 = vmul.f32 %v738, %v769
      %v775 = vmul.f32 %v739, %v769
      %v776 = vmul.f32 %v740, %v769
      %v777 = vmul.f32 %v741, %v769
      %v778 = vmul.f32 %v742, %v769
      %v779 = vmul.f32 %v743, %v769
      %v780 = vmul.f32 %v744, %v769
      %v781 = vmul.f32 %v745, %v769
      %v782 = vmul.f32 %v746, %v769
      %v783 = vmul.f32 %v747, %v769
      %v784 = vmul.f32 %v748, %v769
      %v785 = vmul.f32 %v749, %v769
      %v786 = vmul.f32 %v750, %v769
      %v787 = vmul.f32 %v751, %v769
      %v788 = vmul.f32 %v752, %v769
      %v789 = vmul.f32 %v753, %v769
      %v790 = vmul.f32 %v754, %v769
      %v791 = vmul.f32 %v755, %v769
      %v792 = vmul.f32 %v756, %v769
      %v793 = vmul.f32 %v757, %v769
      %v794 = vmul.f32 %v758, %v769
      %v795 = vmul.f32 %v759, %v769
      %v796 = vmul.f32 %v760, %v769
      %v797 = vmul.f32 %v761, %v769
      %v798 = vmul.f32 %v762, %v769
      %v799 = vmul.f32 %v763, %v769
      %v800 = vmul.f32 %v764, %v769
      %v801 = vmul.f32 %v765, %v769
      %v802 = vadd.f32 %v702, %v770
      %v803 = vadd.f32 %v703, %v771
      %v804 = vadd.f32 %v704, %v772
      %v805 = vadd.f32 %v705, %v773
      %v806 = vadd.f32 %v706, %v774
      %v807 = vadd.f32 %v707, %v775
      %v808 = vadd.f32 %v708, %v776
      %v809 = vadd.f32 %v709, %v777
      %v810 = vadd.f32 %v710, %v778
      %v811 = vadd.f32 %v711, %v779
      %v812 = vadd.f32 %v712, %v780
      %v813 = vadd.f32 %v713, %v781
      %v814 = vadd.f32 %v714, %v782
      %v815 = vadd.f32 %v715, %v783
      %v816 = vadd.f32 %v716, %v784
      %v817 = vadd.f32 %v717, %v785
      %v818 = vadd.f32 %v718, %v786
      %v819 = vadd.f32 %v719, %v787
      %v820 = vadd.f32 %v720, %v788
      %v821 = vadd.f32 %v721, %v789
      %v822 = vadd.f32 %v722, %v790
      %v823 = vadd.f32 %v723, %v791
      %v824 = vadd.f32 %v724, %v792
      %v825 = vadd.f32 %v725, %v793
      %v826 = vadd.f32 %v726, %v794
      %v827 = vadd.f32 %v727, %v795
      %v828 = vadd.f32 %v728, %v796
      %v829 = vadd.f32 %v729, %v797
      %v830 = vadd.f32 %v730, %v798
      %v831 = vadd.f32 %v731, %v799
      %v832 = vadd.f32 %v732, %v800
      %v833 = vadd.f32 %v733, %v801
      %v834 = vld [vmem:[%s331 + $0x9] sm:$0xff]
      %v835 = vld [vmem:[%s331 + $0x11] sm:$0xff]
      %v836 = vld [vmem:[%s331 + $0x29] sm:$0xff]
      %v837 = vld [vmem:[%s331 + $0x31] sm:$0xff]
      %v838 = vld [vmem:[%s331 + $0x49] sm:$0xff]
      %v839 = vld [vmem:[%s331 + $0x51] sm:$0xff]
      %v840 = vld [vmem:[%s331 + $0x69] sm:$0xff]
      %v841 = vld [vmem:[%s331 + $0x71] sm:$0xff]
      %v842 = vld [vmem:[%s331 + $0x89] sm:$0xff]
      %v843 = vld [vmem:[%s331 + $0x91] sm:$0xff]
      %v844 = vld [vmem:[%s331 + $0xa9] sm:$0xff]
      %v845 = vld [vmem:[%s331 + $0xb1] sm:$0xff]
      %v846 = vld [vmem:[%s331 + $0xc9] sm:$0xff]
      %v847 = vld [vmem:[%s331 + $0xd1] sm:$0xff]
      %v848 = vld [vmem:[%s331 + $0xe9] sm:$0xff]
      %v849 = vld [vmem:[%s331 + $0xf1] sm:$0xff]
      %v850 = vld [vmem:[%s331 + $0x109] sm:$0xff]
      %v851 = vld [vmem:[%s331 + $0x111] sm:$0xff]
      %v852 = vld [vmem:[%s331 + $0x129] sm:$0xff]
      %v853 = vld [vmem:[%s331 + $0x131] sm:$0xff]
      %v854 = vld [vmem:[%s331 + $0x149] sm:$0xff]
      %v855 = vld [vmem:[%s331 + $0x151] sm:$0xff]
      %v856 = vld [vmem:[%s331 + $0x169] sm:$0xff]
      %v857 = vld [vmem:[%s331 + $0x171] sm:$0xff]
      %v858 = vld [vmem:[%s331 + $0x189] sm:$0xff]
      %v859 = vld [vmem:[%s331 + $0x191] sm:$0xff]
      %v860 = vld [vmem:[%s331 + $0x1a9] sm:$0xff]
      %v861 = vld [vmem:[%s331 + $0x1b1] sm:$0xff]
      %v862 = vld [vmem:[%s331 + $0x1c9] sm:$0xff]
      %v863 = vld [vmem:[%s331 + $0x1d1] sm:$0xff]
      %v864 = vld [vmem:[%s331 + $0x1e9] sm:$0xff]
      %v865 = vld [vmem:[%s331 + $0x1f1] sm:$0xff]
      %v866 = vlaneseq
      %v867 = vshrl.u32 %v866, 7
      %v868 = vsub.s32 5, %v867
      %v869 = vrot.slane %v364, %v868
      %v870 = vmul.f32 %v834, %v869
      %v871 = vmul.f32 %v835, %v869
      %v872 = vmul.f32 %v836, %v869
      %v873 = vmul.f32 %v837, %v869
      %v874 = vmul.f32 %v838, %v869
      %v875 = vmul.f32 %v839, %v869
      %v876 = vmul.f32 %v840, %v869
      %v877 = vmul.f32 %v841, %v869
      %v878 = vmul.f32 %v842, %v869
      %v879 = vmul.f32 %v843, %v869
      %v880 = vmul.f32 %v844, %v869
      %v881 = vmul.f32 %v845, %v869
      %v882 = vmul.f32 %v846, %v869
      %v883 = vmul.f32 %v847, %v869
      %v884 = vmul.f32 %v848, %v869
      %v885 = vmul.f32 %v849, %v869
      %v886 = vmul.f32 %v850, %v869
      %v887 = vmul.f32 %v851, %v869
      %v888 = vmul.f32 %v852, %v869
      %v889 = vmul.f32 %v853, %v869
      %v890 = vmul.f32 %v854, %v869
      %v891 = vmul.f32 %v855, %v869
      %v892 = vmul.f32 %v856, %v869
      %v893 = vmul.f32 %v857, %v869
      %v894 = vmul.f32 %v858, %v869
      %v895 = vmul.f32 %v859, %v869
      %v896 = vmul.f32 %v860, %v869
      %v897 = vmul.f32 %v861, %v869
      %v898 = vmul.f32 %v862, %v869
      %v899 = vmul.f32 %v863, %v869
      %v900 = vmul.f32 %v864, %v869
      %v901 = vmul.f32 %v865, %v869
      %v902 = vadd.f32 %v802, %v870
      %v903 = vadd.f32 %v803, %v871
      %v904 = vadd.f32 %v804, %v872
      %v905 = vadd.f32 %v805, %v873
      %v906 = vadd.f32 %v806, %v874
      %v907 = vadd.f32 %v807, %v875
      %v908 = vadd.f32 %v808, %v876
      %v909 = vadd.f32 %v809, %v877
      %v910 = vadd.f32 %v810, %v878
      %v911 = vadd.f32 %v811, %v879
      %v912 = vadd.f32 %v812, %v880
      %v913 = vadd.f32 %v813, %v881
      %v914 = vadd.f32 %v814, %v882
      %v915 = vadd.f32 %v815, %v883
      %v916 = vadd.f32 %v816, %v884
      %v917 = vadd.f32 %v817, %v885
      %v918 = vadd.f32 %v818, %v886
      %v919 = vadd.f32 %v819, %v887
      %v920 = vadd.f32 %v820, %v888
      %v921 = vadd.f32 %v821, %v889
      %v922 = vadd.f32 %v822, %v890
      %v923 = vadd.f32 %v823, %v891
      %v924 = vadd.f32 %v824, %v892
      %v925 = vadd.f32 %v825, %v893
      %v926 = vadd.f32 %v826, %v894
      %v927 = vadd.f32 %v827, %v895
      %v928 = vadd.f32 %v828, %v896
      %v929 = vadd.f32 %v829, %v897
      %v930 = vadd.f32 %v830, %v898
      %v931 = vadd.f32 %v831, %v899
      %v932 = vadd.f32 %v832, %v900
      %v933 = vadd.f32 %v833, %v901
      %s934 = scalar_lea.vmem [#allocation2], 64
      %v935 = vld [vmem:[%s934 + $0x7] sm:$0xff]
      %v936 = vld [vmem:[%s934 + $0xf] sm:$0xff]
      %v937 = vld [vmem:[%s934 + $0x27] sm:$0xff]
      %v938 = vld [vmem:[%s934 + $0x2f] sm:$0xff]
      %v939 = vld [vmem:[%s934 + $0x47] sm:$0xff]
      %v940 = vld [vmem:[%s934 + $0x4f] sm:$0xff]
      %v941 = vld [vmem:[%s934 + $0x67] sm:$0xff]
      %v942 = vld [vmem:[%s934 + $0x6f] sm:$0xff]
      %v943 = vld [vmem:[%s934 + $0x87] sm:$0xff]
      %v944 = vld [vmem:[%s934 + $0x8f] sm:$0xff]
      %v945 = vld [vmem:[%s934 + $0xa7] sm:$0xff]
      %v946 = vld [vmem:[%s934 + $0xaf] sm:$0xff]
      %v947 = vld [vmem:[%s934 + $0xc7] sm:$0xff]
      %v948 = vld [vmem:[%s934 + $0xcf] sm:$0xff]
      %v949 = vld [vmem:[%s934 + $0xe7] sm:$0xff]
      %v950 = vld [vmem:[%s934 + $0xef] sm:$0xff]
      %v951 = vld [vmem:[%s934 + $0x107] sm:$0xff]
      %v952 = vld [vmem:[%s934 + $0x10f] sm:$0xff]
      %v953 = vld [vmem:[%s934 + $0x127] sm:$0xff]
      %v954 = vld [vmem:[%s934 + $0x12f] sm:$0xff]
      %v955 = vld [vmem:[%s934 + $0x147] sm:$0xff]
      %v956 = vld [vmem:[%s934 + $0x14f] sm:$0xff]
      %v957 = vld [vmem:[%s934 + $0x167] sm:$0xff]
      %v958 = vld [vmem:[%s934 + $0x16f] sm:$0xff]
      %v959 = vld [vmem:[%s934 + $0x187] sm:$0xff]
      %v960 = vld [vmem:[%s934 + $0x18f] sm:$0xff]
      %v961 = vld [vmem:[%s934 + $0x1a7] sm:$0xff]
      %v962 = vld [vmem:[%s934 + $0x1af] sm:$0xff]
      %v963 = vld [vmem:[%s934 + $0x1c7] sm:$0xff]
      %v964 = vld [vmem:[%s934 + $0x1cf] sm:$0xff]
      %v965 = vld [vmem:[%s934 + $0x1e7] sm:$0xff]
      %v966 = vld [vmem:[%s934 + $0x1ef] sm:$0xff]
      %v967 = vlaneseq
      %v968 = vshrl.u32 %v967, 7
      %v969 = vsub.s32 6, %v968
      %v970 = vrot.slane %v364, %v969
      %v971 = vmul.f32 %v935, %v970
      %v972 = vmul.f32 %v936, %v970
      %v973 = vmul.f32 %v937, %v970
      %v974 = vmul.f32 %v938, %v970
      %v975 = vmul.f32 %v939, %v970
      %v976 = vmul.f32 %v940, %v970
      %v977 = vmul.f32 %v941, %v970
      %v978 = vmul.f32 %v942, %v970
      %v979 = vmul.f32 %v943, %v970
      %v980 = vmul.f32 %v944, %v970
      %v981 = vmul.f32 %v945, %v970
      %v982 = vmul.f32 %v946, %v970
      %v983 = vmul.f32 %v947, %v970
      %v984 = vmul.f32 %v948, %v970
      %v985 = vmul.f32 %v949, %v970
      %v986 = vmul.f32 %v950, %v970
      %v987 = vmul.f32 %v951, %v970
      %v988 = vmul.f32 %v952, %v970
      %v989 = vmul.f32 %v953, %v970
      %v990 = vmul.f32 %v954, %v970
      %v991 = vmul.f32 %v955, %v970
      %v992 = vmul.f32 %v956, %v970
      %v993 = vmul.f32 %v957, %v970
      %v994 = vmul.f32 %v958, %v970
      %v995 = vmul.f32 %v959, %v970
      %v996 = vmul.f32 %v960, %v970
      %v997 = vmul.f32 %v961, %v970
      %v998 = vmul.f32 %v962, %v970
      %v999 = vmul.f32 %v963, %v970
      %v1000 = vmul.f32 %v964, %v970
      %v1001 = vmul.f32 %v965, %v970
      %v1002 = vmul.f32 %v966, %v970
      %v1003 = vadd.f32 %v902, %v971
      %v1004 = vadd.f32 %v903, %v972
      %v1005 = vadd.f32 %v904, %v973
      %v1006 = vadd.f32 %v905, %v974
      %v1007 = vadd.f32 %v906, %v975
      %v1008 = vadd.f32 %v907, %v976
      %v1009 = vadd.f32 %v908, %v977
      %v1010 = vadd.f32 %v909, %v978
      %v1011 = vadd.f32 %v910, %v979
      %v1012 = vadd.f32 %v911, %v980
      %v1013 = vadd.f32 %v912, %v981
      %v1014 = vadd.f32 %v913, %v982
      %v1015 = vadd.f32 %v914, %v983
      %v1016 = vadd.f32 %v915, %v984
      %v1017 = vadd.f32 %v916, %v985
      %v1018 = vadd.f32 %v917, %v986
      %v1019 = vadd.f32 %v918, %v987
      %v1020 = vadd.f32 %v919, %v988
      %v1021 = vadd.f32 %v920, %v989
      %v1022 = vadd.f32 %v921, %v990
      %v1023 = vadd.f32 %v922, %v991
      %v1024 = vadd.f32 %v923, %v992
      %v1025 = vadd.f32 %v924, %v993
      %v1026 = vadd.f32 %v925, %v994
      %v1027 = vadd.f32 %v926, %v995
      %v1028 = vadd.f32 %v927, %v996
      %v1029 = vadd.f32 %v928, %v997
      %v1030 = vadd.f32 %v929, %v998
      %v1031 = vadd.f32 %v930, %v999
      %v1032 = vadd.f32 %v931, %v1000
      %v1033 = vadd.f32 %v932, %v1001
      %v1034 = vadd.f32 %v933, %v1002
      %v1035 = vld [vmem:[%s934 + $0x8] sm:$0xff]
      %v1036 = vld [vmem:[%s934 + $0x10] sm:$0xff]
      %v1037 = vld [vmem:[%s934 + $0x28] sm:$0xff]
      %v1038 = vld [vmem:[%s934 + $0x30] sm:$0xff]
      %v1039 = vld [vmem:[%s934 + $0x48] sm:$0xff]
      %v1040 = vld [vmem:[%s934 + $0x50] sm:$0xff]
      %v1041 = vld [vmem:[%s934 + $0x68] sm:$0xff]
      %v1042 = vld [vmem:[%s934 + $0x70] sm:$0xff]
      %v1043 = vld [vmem:[%s934 + $0x88] sm:$0xff]
      %v1044 = vld [vmem:[%s934 + $0x90] sm:$0xff]
      %v1045 = vld [vmem:[%s934 + $0xa8] sm:$0xff]
      %v1046 = vld [vmem:[%s934 + $0xb0] sm:$0xff]
      %v1047 = vld [vmem:[%s934 + $0xc8] sm:$0xff]
      %v1048 = vld [vmem:[%s934 + $0xd0] sm:$0xff]
      %v1049 = vld [vmem:[%s934 + $0xe8] sm:$0xff]
      %v1050 = vld [vmem:[%s934 + $0xf0] sm:$0xff]
      %v1051 = vld [vmem:[%s934 + $0x108] sm:$0xff]
      %v1052 = vld [vmem:[%s934 + $0x110] sm:$0xff]
      %v1053 = vld [vmem:[%s934 + $0x128] sm:$0xff]
      %v1054 = vld [vmem:[%s934 + $0x130] sm:$0xff]
      %v1055 = vld [vmem:[%s934 + $0x148] sm:$0xff]
      %v1056 = vld [vmem:[%s934 + $0x150] sm:$0xff]
      %v1057 = vld [vmem:[%s934 + $0x168] sm:$0xff]
      %v1058 = vld [vmem:[%s934 + $0x170] sm:$0xff]
      %v1059 = vld [vmem:[%s934 + $0x188] sm:$0xff]
      %v1060 = vld [vmem:[%s934 + $0x190] sm:$0xff]
      %v1061 = vld [vmem:[%s934 + $0x1a8] sm:$0xff]
      %v1062 = vld [vmem:[%s934 + $0x1b0] sm:$0xff]
      %v1063 = vld [vmem:[%s934 + $0x1c8] sm:$0xff]
      %v1064 = vld [vmem:[%s934 + $0x1d0] sm:$0xff]
      %v1065 = vld [vmem:[%s934 + $0x1e8] sm:$0xff]
      %v1066 = vld [vmem:[%s934 + $0x1f0] sm:$0xff]
      %v1067 = vlaneseq
      %v1068 = vshrl.u32 %v1067, 7
      %v1069 = vsub.s32 7, %v1068
      %v1070 = vrot.slane %v364, %v1069
      %v1071 = vmul.f32 %v1035, %v1070
      %v1072 = vmul.f32 %v1036, %v1070
      %v1073 = vmul.f32 %v1037, %v1070
      %v1074 = vmul.f32 %v1038, %v1070
      %v1075 = vmul.f32 %v1039, %v1070
      %v1076 = vmul.f32 %v1040, %v1070
      %v1077 = vmul.f32 %v1041, %v1070
      %v1078 = vmul.f32 %v1042, %v1070
      %v1079 = vmul.f32 %v1043, %v1070
      %v1080 = vmul.f32 %v1044, %v1070
      %v1081 = vmul.f32 %v1045, %v1070
      %v1082 = vmul.f32 %v1046, %v1070
      %v1083 = vmul.f32 %v1047, %v1070
      %v1084 = vmul.f32 %v1048, %v1070
      %v1085 = vmul.f32 %v1049, %v1070
      %v1086 = vmul.f32 %v1050, %v1070
      %v1087 = vmul.f32 %v1051, %v1070
      %v1088 = vmul.f32 %v1052, %v1070
      %v1089 = vmul.f32 %v1053, %v1070
      %v1090 = vmul.f32 %v1054, %v1070
      %v1091 = vmul.f32 %v1055, %v1070
      %v1092 = vmul.f32 %v1056, %v1070
      %v1093 = vmul.f32 %v1057, %v1070
      %v1094 = vmul.f32 %v1058, %v1070
      %v1095 = vmul.f32 %v1059, %v1070
      %v1096 = vmul.f32 %v1060, %v1070
      %v1097 = vmul.f32 %v1061, %v1070
      %v1098 = vmul.f32 %v1062, %v1070
      %v1099 = vmul.f32 %v1063, %v1070
      %v1100 = vmul.f32 %v1064, %v1070
      %v1101 = vmul.f32 %v1065, %v1070
      %v1102 = vmul.f32 %v1066, %v1070
      %v1103 = vadd.f32 %v1003, %v1071
      %v1104 = vadd.f32 %v1004, %v1072
      %v1105 = vadd.f32 %v1005, %v1073
      %v1106 = vadd.f32 %v1006, %v1074
      %v1107 = vadd.f32 %v1007, %v1075
      %v1108 = vadd.f32 %v1008, %v1076
      %v1109 = vadd.f32 %v1009, %v1077
      %v1110 = vadd.f32 %v1010, %v1078
      %v1111 = vadd.f32 %v1011, %v1079
      %v1112 = vadd.f32 %v1012, %v1080
      %v1113 = vadd.f32 %v1013, %v1081
      %v1114 = vadd.f32 %v1014, %v1082
      %v1115 = vadd.f32 %v1015, %v1083
      %v1116 = vadd.f32 %v1016, %v1084
      %v1117 = vadd.f32 %v1017, %v1085
      %v1118 = vadd.f32 %v1018, %v1086
      %v1119 = vadd.f32 %v1019, %v1087
      %v1120 = vadd.f32 %v1020, %v1088
      %v1121 = vadd.f32 %v1021, %v1089
      %v1122 = vadd.f32 %v1022, %v1090
      %v1123 = vadd.f32 %v1023, %v1091
      %v1124 = vadd.f32 %v1024, %v1092
      %v1125 = vadd.f32 %v1025, %v1093
      %v1126 = vadd.f32 %v1026, %v1094
      %v1127 = vadd.f32 %v1027, %v1095
      %v1128 = vadd.f32 %v1028, %v1096
      %v1129 = vadd.f32 %v1029, %v1097
      %v1130 = vadd.f32 %v1030, %v1098
      %v1131 = vadd.f32 %v1031, %v1099
      %v1132 = vadd.f32 %v1032, %v1100
      %v1133 = vadd.f32 %v1033, %v1101
      %v1134 = vadd.f32 %v1034, %v1102
      %v1135 = vld [vmem:[%s934 + $0x9] sm:$0xff]
      %v1136 = vld [vmem:[%s934 + $0x11] sm:$0xff]
      %v1137 = vld [vmem:[%s934 + $0x29] sm:$0xff]
      %v1138 = vld [vmem:[%s934 + $0x31] sm:$0xff]
      %v1139 = vld [vmem:[%s934 + $0x49] sm:$0xff]
      %v1140 = vld [vmem:[%s934 + $0x51] sm:$0xff]
      %v1141 = vld [vmem:[%s934 + $0x69] sm:$0xff]
      %v1142 = vld [vmem:[%s934 + $0x71] sm:$0xff]
      %v1143 = vld [vmem:[%s934 + $0x89] sm:$0xff]
      %v1144 = vld [vmem:[%s934 + $0x91] sm:$0xff]
      %v1145 = vld [vmem:[%s934 + $0xa9] sm:$0xff]
      %v1146 = vld [vmem:[%s934 + $0xb1] sm:$0xff]
      %v1147 = vld [vmem:[%s934 + $0xc9] sm:$0xff]
      %v1148 = vld [vmem:[%s934 + $0xd1] sm:$0xff]
      %v1149 = vld [vmem:[%s934 + $0xe9] sm:$0xff]
      %v1150 = vld [vmem:[%s934 + $0xf1] sm:$0xff]
      %v1151 = vld [vmem:[%s934 + $0x109] sm:$0xff]
      %v1152 = vld [vmem:[%s934 + $0x111] sm:$0xff]
      %v1153 = vld [vmem:[%s934 + $0x129] sm:$0xff]
      %v1154 = vld [vmem:[%s934 + $0x131] sm:$0xff]
      %v1155 = vld [vmem:[%s934 + $0x149] sm:$0xff]
      %v1156 = vld [vmem:[%s934 + $0x151] sm:$0xff]
      %v1157 = vld [vmem:[%s934 + $0x169] sm:$0xff]
      %v1158 = vld [vmem:[%s934 + $0x171] sm:$0xff]
      %v1159 = vld [vmem:[%s934 + $0x189] sm:$0xff]
      %v1160 = vld [vmem:[%s934 + $0x191] sm:$0xff]
      %v1161 = vld [vmem:[%s934 + $0x1a9] sm:$0xff]
      %v1162 = vld [vmem:[%s934 + $0x1b1] sm:$0xff]
      %v1163 = vld [vmem:[%s934 + $0x1c9] sm:$0xff]
      %v1164 = vld [vmem:[%s934 + $0x1d1] sm:$0xff]
      %v1165 = vld [vmem:[%s934 + $0x1e9] sm:$0xff]
      %v1166 = vld [vmem:[%s934 + $0x1f1] sm:$0xff]
      %v1167 = vlaneseq
      %v1168 = vshrl.u32 %v1167, 7
      %v1169 = vsub.s32 0, %v1168
      %v1170 = vrot.slane %v365, %v1169
      %v1171 = vmul.f32 %v1135, %v1170
      %v1172 = vmul.f32 %v1136, %v1170
      %v1173 = vmul.f32 %v1137, %v1170
      %v1174 = vmul.f32 %v1138, %v1170
      %v1175 = vmul.f32 %v1139, %v1170
      %v1176 = vmul.f32 %v1140, %v1170
      %v1177 = vmul.f32 %v1141, %v1170
      %v1178 = vmul.f32 %v1142, %v1170
      %v1179 = vmul.f32 %v1143, %v1170
      %v1180 = vmul.f32 %v1144, %v1170
      %v1181 = vmul.f32 %v1145, %v1170
      %v1182 = vmul.f32 %v1146, %v1170
      %v1183 = vmul.f32 %v1147, %v1170
      %v1184 = vmul.f32 %v1148, %v1170
      %v1185 = vmul.f32 %v1149, %v1170
      %v1186 = vmul.f32 %v1150, %v1170
      %v1187 = vmul.f32 %v1151, %v1170
      %v1188 = vmul.f32 %v1152, %v1170
      %v1189 = vmul.f32 %v1153, %v1170
      %v1190 = vmul.f32 %v1154, %v1170
      %v1191 = vmul.f32 %v1155, %v1170
      %v1192 = vmul.f32 %v1156, %v1170
      %v1193 = vmul.f32 %v1157, %v1170
      %v1194 = vmul.f32 %v1158, %v1170
      %v1195 = vmul.f32 %v1159, %v1170
      %v1196 = vmul.f32 %v1160, %v1170
      %v1197 = vmul.f32 %v1161, %v1170
      %v1198 = vmul.f32 %v1162, %v1170
      %v1199 = vmul.f32 %v1163, %v1170
      %v1200 = vmul.f32 %v1164, %v1170
      %v1201 = vmul.f32 %v1165, %v1170
      %v1202 = vmul.f32 %v1166, %v1170
      %v1203 = vadd.f32 %v1103, %v1171
      %v1204 = vadd.f32 %v1104, %v1172
      %v1205 = vadd.f32 %v1105, %v1173
      %v1206 = vadd.f32 %v1106, %v1174
      %v1207 = vadd.f32 %v1107, %v1175
      %v1208 = vadd.f32 %v1108, %v1176
      %v1209 = vadd.f32 %v1109, %v1177
      %v1210 = vadd.f32 %v1110, %v1178
      %v1211 = vadd.f32 %v1111, %v1179
      %v1212 = vadd.f32 %v1112, %v1180
      %v1213 = vadd.f32 %v1113, %v1181
      %v1214 = vadd.f32 %v1114, %v1182
      %v1215 = vadd.f32 %v1115, %v1183
      %v1216 = vadd.f32 %v1116, %v1184
      %v1217 = vadd.f32 %v1117, %v1185
      %v1218 = vadd.f32 %v1118, %v1186
      %v1219 = vadd.f32 %v1119, %v1187
      %v1220 = vadd.f32 %v1120, %v1188
      %v1221 = vadd.f32 %v1121, %v1189
      %v1222 = vadd.f32 %v1122, %v1190
      %v1223 = vadd.f32 %v1123, %v1191
      %v1224 = vadd.f32 %v1124, %v1192
      %v1225 = vadd.f32 %v1125, %v1193
      %v1226 = vadd.f32 %v1126, %v1194
      %v1227 = vadd.f32 %v1127, %v1195
      %v1228 = vadd.f32 %v1128, %v1196
      %v1229 = vadd.f32 %v1129, %v1197
      %v1230 = vadd.f32 %v1130, %v1198
      %v1231 = vadd.f32 %v1131, %v1199
      %v1232 = vadd.f32 %v1132, %v1200
      %v1233 = vadd.f32 %v1133, %v1201
      %v1234 = vadd.f32 %v1134, %v1202
      %v1235 = vld [vmem:[%s2] sm:$0x1]
      %v1237 = vlaneseq
      %v1238 = vshrl.u32 %v1237, 7
      %v1239 = vsub.s32 0, %v1238
      %v1240 = vrot.slane %v1235, %v1239
      %v1242 = vadd.f32 %v1203, %v1240
      %v1243 = vadd.f32 %v1204, %v1240
      %v1244 = vadd.f32 %v1205, %v1240
      %v1245 = vadd.f32 %v1206, %v1240
      %v1246 = vadd.f32 %v1207, %v1240
      %v1247 = vadd.f32 %v1208, %v1240
      %v1248 = vadd.f32 %v1209, %v1240
      %v1249 = vadd.f32 %v1210, %v1240
      %v1250 = vadd.f32 %v1211, %v1240
      %v1251 = vadd.f32 %v1212, %v1240
      %v1252 = vadd.f32 %v1213, %v1240
      %v1253 = vadd.f32 %v1214, %v1240
      %v1254 = vadd.f32 %v1215, %v1240
      %v1255 = vadd.f32 %v1216, %v1240
      %v1256 = vadd.f32 %v1217, %v1240
      %v1257 = vadd.f32 %v1218, %v1240
      %v1258 = vadd.f32 %v1219, %v1240
      %v1259 = vadd.f32 %v1220, %v1240
      %v1260 = vadd.f32 %v1221, %v1240
      %v1261 = vadd.f32 %v1222, %v1240
      %v1262 = vadd.f32 %v1223, %v1240
      %v1263 = vadd.f32 %v1224, %v1240
      %v1264 = vadd.f32 %v1225, %v1240
      %v1265 = vadd.f32 %v1226, %v1240
      %v1266 = vadd.f32 %v1227, %v1240
      %v1267 = vadd.f32 %v1228, %v1240
      %v1268 = vadd.f32 %v1229, %v1240
      %v1269 = vadd.f32 %v1230, %v1240
      %v1270 = vadd.f32 %v1231, %v1240
      %v1271 = vadd.f32 %v1232, %v1240
      %v1272 = vadd.f32 %v1233, %v1240
      %v1273 = vadd.f32 %v1234, %v1240
      %v1274 = vmax.f32 %v1242, 0.0
      %v1275 = vmax.f32 %v1243, 0.0
      %v1276 = vmax.f32 %v1244, 0.0
      %v1277 = vmax.f32 %v1245, 0.0
      %v1278 = vmax.f32 %v1246, 0.0
      %v1279 = vmax.f32 %v1247, 0.0
      %v1280 = vmax.f32 %v1248, 0.0
      %v1281 = vmax.f32 %v1249, 0.0
      %v1282 = vmax.f32 %v1250, 0.0
      %v1283 = vmax.f32 %v1251, 0.0
      %v1284 = vmax.f32 %v1252, 0.0
      %v1285 = vmax.f32 %v1253, 0.0
      %v1286 = vmax.f32 %v1254, 0.0
      %v1287 = vmax.f32 %v1255, 0.0
      %v1288 = vmax.f32 %v1256, 0.0
      %v1289 = vmax.f32 %v1257, 0.0
      %v1290 = vmax.f32 %v1258, 0.0
      %v1291 = vmax.f32 %v1259, 0.0
      %v1292 = vmax.f32 %v1260, 0.0
      %v1293 = vmax.f32 %v1261, 0.0
      %v1294 = vmax.f32 %v1262, 0.0
      %v1295 = vmax.f32 %v1263, 0.0
      %v1296 = vmax.f32 %v1264, 0.0
      %v1297 = vmax.f32 %v1265, 0.0
      %v1298 = vmax.f32 %v1266, 0.0
      %v1299 = vmax.f32 %v1267, 0.0
      %v1300 = vmax.f32 %v1268, 0.0
      %v1301 = vmax.f32 %v1269, 0.0
      %v1302 = vmax.f32 %v1270, 0.0
      %v1303 = vmax.f32 %v1271, 0.0
      %v1304 = vmax.f32 %v1272, 0.0
      %v1305 = vmax.f32 %v1273, 0.0
      %v1306 = vmin.f32 %v1274, 6.0
      %v1307 = vmin.f32 %v1275, 6.0
      %v1308 = vmin.f32 %v1276, 6.0
      %v1309 = vmin.f32 %v1277, 6.0
      %v1310 = vmin.f32 %v1278, 6.0
      %v1311 = vmin.f32 %v1279, 6.0
      %v1312 = vmin.f32 %v1280, 6.0
      %v1313 = vmin.f32 %v1281, 6.0
      %v1314 = vmin.f32 %v1282, 6.0
      %v1315 = vmin.f32 %v1283, 6.0
      %v1316 = vmin.f32 %v1284, 6.0
      %v1317 = vmin.f32 %v1285, 6.0
      %v1318 = vmin.f32 %v1286, 6.0
      %v1319 = vmin.f32 %v1287, 6.0
      %v1320 = vmin.f32 %v1288, 6.0
      %v1321 = vmin.f32 %v1289, 6.0
      %v1322 = vmin.f32 %v1290, 6.0
      %v1323 = vmin.f32 %v1291, 6.0
      %v1324 = vmin.f32 %v1292, 6.0
      %v1325 = vmin.f32 %v1293, 6.0
      %v1326 = vmin.f32 %v1294, 6.0
      %v1327 = vmin.f32 %v1295, 6.0
      %v1328 = vmin.f32 %v1296, 6.0
      %v1329 = vmin.f32 %v1297, 6.0
      %v1330 = vmin.f32 %v1298, 6.0
      %v1331 = vmin.f32 %v1299, 6.0
      %v1332 = vmin.f32 %v1300, 6.0
      %v1333 = vmin.f32 %v1301, 6.0
      %v1334 = vmin.f32 %v1302, 6.0
      %v1335 = vmin.f32 %v1303, 6.0
      %v1336 = vmin.f32 %v1304, 6.0
      %v1337 = vmin.f32 %v1305, 6.0
      %v1338 = vpack.c.bf16 %v1307, %v1306
      %v1339 = vpack.c.bf16 %v1309, %v1308
      %v1340 = vpack.c.bf16 %v1311, %v1310
      %v1341 = vpack.c.bf16 %v1313, %v1312
      %v1342 = vpack.c.bf16 %v1315, %v1314
      %v1343 = vpack.c.bf16 %v1317, %v1316
      %v1344 = vpack.c.bf16 %v1319, %v1318
      %v1345 = vpack.c.bf16 %v1321, %v1320
      %v1346 = vpack.c.bf16 %v1323, %v1322
      %v1347 = vpack.c.bf16 %v1325, %v1324
      %v1348 = vpack.c.bf16 %v1327, %v1326
      %v1349 = vpack.c.bf16 %v1329, %v1328
      %v1350 = vpack.c.bf16 %v1331, %v1330
      %v1351 = vpack.c.bf16 %v1333, %v1332
      %v1352 = vpack.c.bf16 %v1335, %v1334
      %v1353 = vpack.c.bf16 %v1337, %v1336
      %v1354 = vld [vmem:[%s3] sm:$0xff]
      %v1355 = vld [vmem:[%s3 + $0x8] sm:$0xff]
      %v1356 = vld [vmem:[%s3 + $0x10] sm:$0xff]
      %v1357 = vld [vmem:[%s3 + $0x18] sm:$0xff]
      %v1358 = vpack.c.bf16 %v1355, %v1354
      %v1359 = vpack.c.bf16 %v1357, %v1356
      %v1360 = vld [vmem:[%s4] sm:$0x1]
      %v1362 = vlaneseq
      %v1363 = vshrl.u32 %v1362, 7
      %v1364 = vsub.s32 0, %v1363
      %v1365 = vrot.slane %v1360, %v1364
      %v1368 = vsel %vm258, %v1338, 0
      %v1371 = vsel %vm258, %v1339, 0
      %v1374 = vsel %vm258, %v1340, 0
      %v1377 = vsel %vm258, %v1341, 0
      %v1380 = vsel %vm258, %v1342, 0
      %v1383 = vsel %vm258, %v1343, 0
      %v1386 = vsel %vm258, %v1344, 0
      %v1389 = vsel %vm258, %v1345, 0
      %v1392 = vsel %vm258, %v1346, 0
      %v1395 = vsel %vm258, %v1347, 0
      %v1398 = vsel %vm258, %v1348, 0
      %v1401 = vsel %vm258, %v1349, 0
      %v1404 = vsel %vm258, %v1350, 0
      %v1407 = vsel %vm258, %v1351, 0
      %v1410 = vsel %vm258, %v1352, 0
      %v1413 = vsel %vm258, %v1353, 0
      %1415 = vmatprep.subr.bf16.mxu0 0
      %1416 = vmatpush1.bf16.msra.mxu0 0
      %1417 = vmatprep.subr.bf16.mxu0 0
      %1418 = vmatpush1.bf16.msra.mxu0 0
      %1419 = vmatprep.subr.bf16.mxu0 0
      %1420 = vmatpush1.bf16.msra.mxu0 0
      %1421 = vmatprep.subr.bf16.mxu0 0
      %1422 = vmatpush1.bf16.msra.mxu0 0
      %1423 = vmatprep.subr.bf16.mxu0 0
      %1424 = vmatpush1.bf16.msra.mxu0 0
      %1425 = vmatprep.subr.bf16.mxu0 0
      %1426 = vmatpush1.bf16.msra.mxu0 0
      %1427 = vmatprep.subr.bf16.mxu0 0
      %1428 = vmatpush1.bf16.msra.mxu0 %v1359
      %1429 = vmatprep.subr.bf16.mxu0 0
      %1430 = vmatpush1.bf16.msra.mxu0 %v1358
      %1431 = vmatprep.subr.bf16.mxu0 0
      %1432 = vmatpush2.bf16.msra.mxu0 0
      %1433 = vmatprep.subr.bf16.mxu0 0
      %1434 = vmatpush2.bf16.msra.mxu0 0
      %1435 = vmatprep.subr.bf16.mxu0 0
      %1436 = vmatpush2.bf16.msra.mxu0 0
      %1437 = vmatprep.subr.bf16.mxu0 0
      %1438 = vmatpush2.bf16.msra.mxu0 0
      %1439 = vmatprep.subr.bf16.mxu0 0
      %1440 = vmatpush2.bf16.msra.mxu0 0
      %1441 = vmatprep.subr.bf16.mxu0 0
      %1442 = vmatpush2.bf16.msra.mxu0 0
      %1443 = vmatprep.subr.bf16.mxu0 0
      %1444 = vmatpush2.bf16.msra.mxu0 0
      %1445 = vmatprep.subr.bf16.mxu0 0
      %1446 = vmatpush2.bf16.msra.mxu0 0
      %1447 = vmatprep.mubr.bf16.mxu0 0
      %1448 = vmatmul.mubr.bf16.gmra.mxu0 %v1368
      %v1449 = vpop.f32.mrf.mxu0
      %v1450 = vadd.f32 %v1365, %v1449
      %v1451 = vpop.f32.mrf.mxu0
      %v1452 = vpop.f32.mrf.mxu0
      %v1453 = vadd.f32 %v1365, %v1452
      %v1454 = vpop.f32.mrf.mxu0
      %1455 = vmatprep.mubr.bf16.mxu0 0
      %1456 = vmatmul.mubr.bf16.gmra.mxu0 %v1371
      %v1457 = vpop.f32.mrf.mxu0
      %v1458 = vadd.f32 %v1365, %v1457
      %v1459 = vpop.f32.mrf.mxu0
      %v1460 = vpop.f32.mrf.mxu0
      %v1461 = vadd.f32 %v1365, %v1460
      %v1462 = vpop.f32.mrf.mxu0
      %1463 = vmatprep.mubr.bf16.mxu0 0
      %1464 = vmatmul.mubr.bf16.gmra.mxu0 %v1374
      %v1465 = vpop.f32.mrf.mxu0
      %v1466 = vadd.f32 %v1365, %v1465
      %v1467 = vpop.f32.mrf.mxu0
      %v1468 = vpop.f32.mrf.mxu0
      %v1469 = vadd.f32 %v1365, %v1468
      %v1470 = vpop.f32.mrf.mxu0
      %1471 = vmatprep.mubr.bf16.mxu0 0
      %1472 = vmatmul.mubr.bf16.gmra.mxu0 %v1377
      %v1473 = vpop.f32.mrf.mxu0
      %v1474 = vadd.f32 %v1365, %v1473
      %v1475 = vpop.f32.mrf.mxu0
      %v1476 = vpop.f32.mrf.mxu0
      %v1477 = vadd.f32 %v1365, %v1476
      %v1478 = vpop.f32.mrf.mxu0
      %1479 = vmatprep.mubr.bf16.mxu0 0
      %1480 = vmatmul.mubr.bf16.gmra.mxu0 %v1380
      %v1481 = vpop.f32.mrf.mxu0
      %v1482 = vadd.f32 %v1365, %v1481
      %v1483 = vpop.f32.mrf.mxu0
      %v1484 = vpop.f32.mrf.mxu0
      %v1485 = vadd.f32 %v1365, %v1484
      %v1486 = vpop.f32.mrf.mxu0
      %1487 = vmatprep.mubr.bf16.mxu0 0
      %1488 = vmatmul.mubr.bf16.gmra.mxu0 %v1383
      %v1489 = vpop.f32.mrf.mxu0
      %v1490 = vadd.f32 %v1365, %v1489
      %v1491 = vpop.f32.mrf.mxu0
      %v1492 = vpop.f32.mrf.mxu0
      %v1493 = vadd.f32 %v1365, %v1492
      %v1494 = vpop.f32.mrf.mxu0
      %1495 = vmatprep.mubr.bf16.mxu0 0
      %1496 = vmatmul.mubr.bf16.gmra.mxu0 %v1386
      %v1497 = vpop.f32.mrf.mxu0
      %v1498 = vadd.f32 %v1365, %v1497
      %v1499 = vpop.f32.mrf.mxu0
      %v1500 = vpop.f32.mrf.mxu0
      %v1501 = vadd.f32 %v1365, %v1500
      %v1502 = vpop.f32.mrf.mxu0
      %1503 = vmatprep.mubr.bf16.mxu0 0
      %1504 = vmatmul.mubr.bf16.gmra.mxu0 %v1389
      %v1505 = vpop.f32.mrf.mxu0
      %v1506 = vadd.f32 %v1365, %v1505
      %v1507 = vpop.f32.mrf.mxu0
      %v1508 = vpop.f32.mrf.mxu0
      %v1509 = vadd.f32 %v1365, %v1508
      %v1510 = vpop.f32.mrf.mxu0
      %1511 = vmatprep.mubr.bf16.mxu0 0
      %1512 = vmatmul.mubr.bf16.gmra.mxu0 %v1392
      %v1513 = vpop.f32.mrf.mxu0
      %v1514 = vadd.f32 %v1365, %v1513
      %v1515 = vpop.f32.mrf.mxu0
      %v1516 = vpop.f32.mrf.mxu0
      %v1517 = vadd.f32 %v1365, %v1516
      %v1518 = vpop.f32.mrf.mxu0
      %1519 = vmatprep.mubr.bf16.mxu0 0
      %1520 = vmatmul.mubr.bf16.gmra.mxu0 %v1395
      %v1521 = vpop.f32.mrf.mxu0
      %v1522 = vadd.f32 %v1365, %v1521
      %v1523 = vpop.f32.mrf.mxu0
      %v1524 = vpop.f32.mrf.mxu0
      %v1525 = vadd.f32 %v1365, %v1524
      %v1526 = vpop.f32.mrf.mxu0
      %1527 = vmatprep.mubr.bf16.mxu0 0
      %1528 = vmatmul.mubr.bf16.gmra.mxu0 %v1398
      %v1529 = vpop.f32.mrf.mxu0
      %v1530 = vadd.f32 %v1365, %v1529
      %v1531 = vpop.f32.mrf.mxu0
      %v1532 = vpop.f32.mrf.mxu0
      %v1533 = vadd.f32 %v1365, %v1532
      %v1534 = vpop.f32.mrf.mxu0
      %1535 = vmatprep.mubr.bf16.mxu0 0
      %1536 = vmatmul.mubr.bf16.gmra.mxu0 %v1401
      %v1537 = vpop.f32.mrf.mxu0
      %v1538 = vadd.f32 %v1365, %v1537
      %v1539 = vpop.f32.mrf.mxu0
      %v1540 = vpop.f32.mrf.mxu0
      %v1541 = vadd.f32 %v1365, %v1540
      %v1542 = vpop.f32.mrf.mxu0
      %1543 = vmatprep.mubr.bf16.mxu0 0
      %1544 = vmatmul.mubr.bf16.gmra.mxu0 %v1404
      %v1545 = vpop.f32.mrf.mxu0
      %v1546 = vadd.f32 %v1365, %v1545
      %v1547 = vpop.f32.mrf.mxu0
      %v1548 = vpop.f32.mrf.mxu0
      %v1549 = vadd.f32 %v1365, %v1548
      %v1550 = vpop.f32.mrf.mxu0
      %1551 = vmatprep.mubr.bf16.mxu0 0
      %1552 = vmatmul.mubr.bf16.gmra.mxu0 %v1407
      %v1553 = vpop.f32.mrf.mxu0
      %v1554 = vadd.f32 %v1365, %v1553
      %v1555 = vpop.f32.mrf.mxu0
      %v1556 = vpop.f32.mrf.mxu0
      %v1557 = vadd.f32 %v1365, %v1556
      %v1558 = vpop.f32.mrf.mxu0
      %1559 = vmatprep.mubr.bf16.mxu0 0
      %1560 = vmatmul.mubr.bf16.gmra.mxu0 %v1410
      %v1561 = vpop.f32.mrf.mxu0
      %v1562 = vadd.f32 %v1365, %v1561
      %v1563 = vpop.f32.mrf.mxu0
      %v1564 = vpop.f32.mrf.mxu0
      %v1565 = vadd.f32 %v1365, %v1564
      %v1566 = vpop.f32.mrf.mxu0
      %1567 = vmatprep.mubr.bf16.mxu0 0
      %1568 = vmatmul.mubr.bf16.gmra.mxu0 %v1413
      %v1569 = vpop.f32.mrf.mxu0
      %v1570 = vadd.f32 %v1365, %v1569
      %v1571 = vpop.f32.mrf.mxu0
      %v1572 = vpop.f32.mrf.mxu0
      %v1573 = vadd.f32 %v1365, %v1572
      %v1574 = vpop.f32.mrf.mxu0
      %1575 = vdwg.mxu0
      %vm1576 = vcmask 130048
      %1577 = vst.msk [vmem:[%s224] sm:$0xff] %vm1576, %v1450
      %1578 = vst.msk [vmem:[%s224 + $0x8] sm:$0xff] %vm1576, %v1453
      %1579 = vst.msk [vmem:[%s224 + $0x10] sm:$0xff] %vm1576, %v1458
      %1580 = vst.msk [vmem:[%s224 + $0x18] sm:$0xff] %vm1576, %v1461
      %1581 = vst.msk [vmem:[%s224 + $0x20] sm:$0xff] %vm1576, %v1466
      %1582 = vst.msk [vmem:[%s224 + $0x28] sm:$0xff] %vm1576, %v1469
      %1583 = vst.msk [vmem:[%s224 + $0x30] sm:$0xff] %vm1576, %v1474
      %1584 = vst.msk [vmem:[%s224 + $0x38] sm:$0xff] %vm1576, %v1477
      %1585 = vst.msk [vmem:[%s224 + $0x40] sm:$0xff] %vm1576, %v1482
      %1586 = vst.msk [vmem:[%s224 + $0x48] sm:$0xff] %vm1576, %v1485
      %1587 = vst.msk [vmem:[%s224 + $0x50] sm:$0xff] %vm1576, %v1490
      %1588 = vst.msk [vmem:[%s224 + $0x58] sm:$0xff] %vm1576, %v1493
      %1589 = vst.msk [vmem:[%s224 + $0x60] sm:$0xff] %vm1576, %v1498
      %1590 = vst.msk [vmem:[%s224 + $0x68] sm:$0xff] %vm1576, %v1501
      %1591 = vst.msk [vmem:[%s224 + $0x70] sm:$0xff] %vm1576, %v1506
      %1592 = vst.msk [vmem:[%s224 + $0x78] sm:$0xff] %vm1576, %v1509
      %1593 = vst.msk [vmem:[%s224 + $0x80] sm:$0xff] %vm1576, %v1514
      %1594 = vst.msk [vmem:[%s224 + $0x88] sm:$0xff] %vm1576, %v1517
      %1595 = vst.msk [vmem:[%s224 + $0x90] sm:$0xff] %vm1576, %v1522
      %1596 = vst.msk [vmem:[%s224 + $0x98] sm:$0xff] %vm1576, %v1525
      %1597 = vst.msk [vmem:[%s224 + $0xa0] sm:$0xff] %vm1576, %v1530
      %1598 = vst.msk [vmem:[%s224 + $0xa8] sm:$0xff] %vm1576, %v1533
      %1599 = vst.msk [vmem:[%s224 + $0xb0] sm:$0xff] %vm1576, %v1538
      %1600 = vst.msk [vmem:[%s224 + $0xb8] sm:$0xff] %vm1576, %v1541
      %1601 = vst.msk [vmem:[%s224 + $0xc0] sm:$0xff] %vm1576, %v1546
      %1602 = vst.msk [vmem:[%s224 + $0xc8] sm:$0xff] %vm1576, %v1549
      %1603 = vst.msk [vmem:[%s224 + $0xd0] sm:$0xff] %vm1576, %v1554
      %1604 = vst.msk [vmem:[%s224 + $0xd8] sm:$0xff] %vm1576, %v1557
      %1605 = vst.msk [vmem:[%s224 + $0xe0] sm:$0xff] %vm1576, %v1562
      %1606 = vst.msk [vmem:[%s224 + $0xe8] sm:$0xff] %vm1576, %v1565
      %1607 = vst.msk [vmem:[%s224 + $0xf0] sm:$0xff] %vm1576, %v1570
      %1608 = vst.msk [vmem:[%s224 + $0xf8] sm:$0xff] %vm1576, %v1573
      %p1609 = scmp.lt.s32.totalorder %s16, 1
      %s1610 = scalar_select %p1609, %s16, 1
      %s1611 = smul.addr %s1610, 32
      %s1612 = smul.addr %s1611, 8
      %s1613 = scalar_lea.vmem %s5, %s1612
      // Predicated region
      $region41: #{mobilenet_v2_forward.6} parent=39 // pred_check
        %p1614 = pneg %p144
      $region42: #{mobilenet_v2_forward.6} parent=39 // pred_check_branch
        %1616 = sbr.rel (%p1614) target = $region44
      $region43: #{mobilenet_v2_forward.6} parent=39 // pred_region
        _
      $region44: #{mobilenet_v2_forward.6} parent=39 // pred_fallthru
        _
    $region40: #{mobilenet_v2_forward.6} parent=5 // pred_fallthru
      _
    %p1617 = scmp.le.s32.totalorder 2, %s11
    // Predicated region
    $region45: #{mobilenet_v2_forward.6} parent=5 // pred_check
      %p1618 = pneg %p1617
    $region46: #{mobilenet_v2_forward.6} parent=5 // pred_check_branch
      %1620 = sbr.rel (%p1618) target = $region48
    $region47: #{mobilenet_v2_forward.6} parent=5 // pred_region
      %s1621 = ssub.s32 %s11, 2
      // Predicated region
      $region49: #{mobilenet_v2_forward.6} parent=47 // pred_check
        %p1622 = pneg %p150
      $region50: #{mobilenet_v2_forward.6} parent=47 // pred_check_branch
        %1624 = sbr.rel (%p1622) target = $region52
      $region51: #{mobilenet_v2_forward.6} parent=47 // pred_region
        %p1625 = scmp.lt.s32.totalorder %s17, 1
        %s1626 = scalar_select %p1625, %s17, 1
        %s1627 = smul.addr %s1626, 32
        %s1628 = smul.addr %s1627, 8
        %s1629 = scalar_lea.vmem %s5, %s1628
      $region52: #{mobilenet_v2_forward.6} parent=47 // pred_fallthru
        _
    $region48: #{mobilenet_v2_forward.6} parent=5 // pred_fallthru
      _
  $region6: #{mobilenet_v2_forward.6} parent=0 // loop_footer
    %s15 = sadd.s32 1, %s11
  $region7: #{mobilenet_v2_forward.6} parent=0 // loop_footer_branch
    %10 = sbr.rel target = $region3
  $region8: #{mobilenet_v2_forward.6} parent=0 // loop_exit
    _

// kernel: mobilenet_v2_forward.7
$region0: #{mobilenet_v2_forward.7}
  #allocation0 [shape = 'u32[]', space=smem, size = 0x4, offset = 0x4, fixed_abs, tag = 'smem constant byte address 0x4 - core index']
  #allocation1 [shape = 'u32[144,128]{1,0:T(1,128)}', space=vmem, size = 0x12000, scoped, tag = 'internal scratch']
  #allocation2 [shape = 'f32[18,32,96]{2,1,0:T(8,128)}', space=vmem, size = 0x48000, scoped, tag = 'scratch operand']
  %s0 = inlined_call_operand.vmem [shape: f32[2,16,16,16], index: 0, kind: input, shape index: {}]
  %s1 = inlined_call_operand.vmem [shape: f32[16,96], index: 1, kind: input, shape index: {}]
  %s2 = inlined_call_operand.vmem [shape: f32[1,96], index: 2, kind: input, shape index: {}]
  %s3 = inlined_call_operand.vmem [shape: f32[9,96], index: 3, kind: input, shape index: {}]
  %s4 = inlined_call_operand.vmem [shape: f32[1,96], index: 4, kind: input, shape index: {}]
  %s5 = inlined_call_operand.vmem [shape: f32[96,32], index: 5, kind: input, shape index: {}]
  %s6 = inlined_call_operand.vmem [shape: f32[1,32], index: 6, kind: input, shape index: {}]
  %s7 = inlined_call_operand.vmem [shape: f32[2,16,16,32], index: 7, kind: output, shape index: {}]
  %s8 = sld [smem:[#allocation0]]
  $region61: #{mobilenet_v2_forward.7} parent=0
    _
  %s10 = ssub.s32 1, %s8
  %s11 = scalar_select 0, %s10, %s8
  loop: start=0, step=1, limit=4
  $region2: #{mobilenet_v2_forward.7} parent=0 // loop_pre_header
    _
  $region3: #{mobilenet_v2_forward.7} parent=0 // loop_header
    %s13 = sphi 0, %s17
    %p14 = scmp.ge.s32.totalorder %s13, 4
    %s23 = sphi 0, %s25
    %s26 = sphi 0, %s23
    %s27 = sphi 0, %s26
    %s43 = sphi 0, %s27
    %s47 = sphi 0, %s47
    %s49 = sphi 0, %s47
    %s50 = sphi 0, %s49
    %s64 = sphi 0, %s50
    %s68 = sphi 0, %s68
    %s70 = sphi 0, %s68
    %s71 = sphi 0, %s70
    %s85 = sphi 0, %s71
    %s89 = sphi 0, %s89
    %s91 = sphi 0, %s89
    %s92 = sphi 0, %s91
    %s106 = sphi 0, %s92
    %s110 = sphi 0, %s110
    %s112 = sphi 0, %s110
    %s113 = sphi 0, %s112
    %s127 = sphi 0, %s113
    %s131 = sphi 0, %s131
    %s133 = sphi 0, %s131
    %s134 = sphi 0, %s133
    %s148 = sphi 0, %s134
    %s152 = sphi 0, %s152
    %s154 = sphi 0, %s152
    %s155 = sphi 0, %s154
    %s169 = sphi 0, %s155
    %s175 = sphi 0, %s177
    %s178 = sphi 0, %s175
    %s179 = sphi 0, %s178
    %s195 = sphi 0, %s179
  $region4: #{mobilenet_v2_forward.7} parent=0 // loop_header_branch
    %16 = sbr.rel (%p14) target = $region8
  $region5: #{mobilenet_v2_forward.7} parent=0 // loop_body
    %s18 = ssub.s32 %s13, 1
    %s19 = ssub.s32 %s13, 2
    %s20 = sadd.s32 %s13, 1
    %s21 = ssub.s32 %s13, %s20
    %p22 = scmp.eq.s32.totalorder %s21, 0
    %s24 = sadd.s32 %s23, 1
    %s25 = scalar_select %p22, %s23, %s24
    %p28 = pneg %p22
    %p29 = scmp.eq.s32.totalorder %s13, 1
    %p30 = por %p28, %p29
    %p31 = scmp.ne.s32.totalorder %s23, %s26
    %p32 = scmp.eq.s32.totalorder %s13, 0
    %p33 = por %p31, %p32
    %p34 = scmp.ne.s32.totalorder %s23, %s26
    %p35 = scmp.eq.s32.totalorder %s18, 1
    %p36 = por %p34, %p35
    %p37 = scmp.ne.s32.totalorder %s26, %s27
    %p38 = scmp.eq.s32.totalorder %s18, 0
    %p39 = por %p37, %p38
    %p40 = scmp.ne.s32.totalorder %s26, %s27
    %p41 = scmp.eq.s32.totalorder %s19, 1
    %p42 = por %p40, %p41
    %p44 = scmp.ne.s32.totalorder %s27, %s43
    %p45 = scmp.eq.s32.totalorder %s19, 0
    %p46 = por %p44, %p45
    %s48 = sadd.s32 %s47, 1
    %p51 = scmp.eq.s32.totalorder %s13, 1
    %p52 = scmp.ne.s32.totalorder %s47, %s49
    %p53 = scmp.eq.s32.totalorder %s13, 0
    %p54 = por %p52, %p53
    %p55 = scmp.ne.s32.totalorder %s47, %s49
    %p56 = scmp.eq.s32.totalorder %s18, 1
    %p57 = por %p55, %p56
    %p58 = scmp.ne.s32.totalorder %s49, %s50
    %p59 = scmp.eq.s32.totalorder %s18, 0
    %p60 = por %p58, %p59
    %p61 = scmp.ne.s32.totalorder %s49, %s50
    %p62 = scmp.eq.s32.totalorder %s19, 1
    %p63 = por %p61, %p62
    %p65 = scmp.ne.s32.totalorder %s50, %s64
    %p66 = scmp.eq.s32.totalorder %s19, 0
    %p67 = por %p65, %p66
    %s69 = sadd.s32 %s68, 1
    %p72 = scmp.eq.s32.totalorder %s13, 1
    %p73 = scmp.ne.s32.totalorder %s68, %s70
    %p74 = scmp.eq.s32.totalorder %s13, 0
    %p75 = por %p73, %p74
    %p76 = scmp.ne.s32.totalorder %s68, %s70
    %p77 = scmp.eq.s32.totalorder %s18, 1
    %p78 = por %p76, %p77
    %p79 = scmp.ne.s32.totalorder %s70, %s71
    %p80 = scmp.eq.s32.totalorder %s18, 0
    %p81 = por %p79, %p80
    %p82 = scmp.ne.s32.totalorder %s70, %s71
    %p83 = scmp.eq.s32.totalorder %s19, 1
    %p84 = por %p82, %p83
    %p86 = scmp.ne.s32.totalorder %s71, %s85
    %p87 = scmp.eq.s32.totalorder %s19, 0
    %p88 = por %p86, %p87
    %s90 = sadd.s32 %s89, 1
    %p93 = scmp.eq.s32.totalorder %s13, 1
    %p94 = scmp.ne.s32.totalorder %s89, %s91
    %p95 = scmp.eq.s32.totalorder %s13, 0
    %p96 = por %p94, %p95
    %p97 = scmp.ne.s32.totalorder %s89, %s91
    %p98 = scmp.eq.s32.totalorder %s18, 1
    %p99 = por %p97, %p98
    %p100 = scmp.ne.s32.totalorder %s91, %s92
    %p101 = scmp.eq.s32.totalorder %s18, 0
    %p102 = por %p100, %p101
    %p103 = scmp.ne.s32.totalorder %s91, %s92
    %p104 = scmp.eq.s32.totalorder %s19, 1
    %p105 = por %p103, %p104
    %p107 = scmp.ne.s32.totalorder %s92, %s106
    %p108 = scmp.eq.s32.totalorder %s19, 0
    %p109 = por %p107, %p108
    %s111 = sadd.s32 %s110, 1
    %p114 = scmp.eq.s32.totalorder %s13, 1
    %p115 = scmp.ne.s32.totalorder %s110, %s112
    %p116 = scmp.eq.s32.totalorder %s13, 0
    %p117 = por %p115, %p116
    %p118 = scmp.ne.s32.totalorder %s110, %s112
    %p119 = scmp.eq.s32.totalorder %s18, 1
    %p120 = por %p118, %p119
    %p121 = scmp.ne.s32.totalorder %s112, %s113
    %p122 = scmp.eq.s32.totalorder %s18, 0
    %p123 = por %p121, %p122
    %p124 = scmp.ne.s32.totalorder %s112, %s113
    %p125 = scmp.eq.s32.totalorder %s19, 1
    %p126 = por %p124, %p125
    %p128 = scmp.ne.s32.totalorder %s113, %s127
    %p129 = scmp.eq.s32.totalorder %s19, 0
    %p130 = por %p128, %p129
    %s132 = sadd.s32 %s131, 1
    %p135 = scmp.eq.s32.totalorder %s13, 1
    %p136 = scmp.ne.s32.totalorder %s131, %s133
    %p137 = scmp.eq.s32.totalorder %s13, 0
    %p138 = por %p136, %p137
    %p139 = scmp.ne.s32.totalorder %s131, %s133
    %p140 = scmp.eq.s32.totalorder %s18, 1
    %p141 = por %p139, %p140
    %p142 = scmp.ne.s32.totalorder %s133, %s134
    %p143 = scmp.eq.s32.totalorder %s18, 0
    %p144 = por %p142, %p143
    %p145 = scmp.ne.s32.totalorder %s133, %s134
    %p146 = scmp.eq.s32.totalorder %s19, 1
    %p147 = por %p145, %p146
    %p149 = scmp.ne.s32.totalorder %s134, %s148
    %p150 = scmp.eq.s32.totalorder %s19, 0
    %p151 = por %p149, %p150
    %s153 = sadd.s32 %s152, 1
    %p156 = scmp.eq.s32.totalorder %s13, 1
    %p157 = scmp.ne.s32.totalorder %s152, %s154
    %p158 = scmp.eq.s32.totalorder %s13, 0
    %p159 = por %p157, %p158
    %p160 = scmp.ne.s32.totalorder %s152, %s154
    %p161 = scmp.eq.s32.totalorder %s18, 1
    %p162 = por %p160, %p161
    %p163 = scmp.ne.s32.totalorder %s154, %s155
    %p164 = scmp.eq.s32.totalorder %s18, 0
    %p165 = por %p163, %p164
    %p166 = scmp.ne.s32.totalorder %s154, %s155
    %p167 = scmp.eq.s32.totalorder %s19, 1
    %p168 = por %p166, %p167
    %p170 = scmp.ne.s32.totalorder %s155, %s169
    %p171 = scmp.eq.s32.totalorder %s19, 0
    %p172 = por %p170, %p171
    %s173 = ssub.s32 %s13, %s20
    %p174 = scmp.eq.s32.totalorder %s173, 0
    %s176 = sadd.s32 %s175, 1
    %s177 = scalar_select %p174, %s175, %s176
    %p180 = pneg %p174
    %p181 = scmp.eq.s32.totalorder %s13, 1
    %p182 = por %p180, %p181
    %p183 = scmp.ne.s32.totalorder %s175, %s178
    %p184 = scmp.eq.s32.totalorder %s13, 0
    %p185 = por %p183, %p184
    %p186 = scmp.ne.s32.totalorder %s175, %s178
    %p187 = scmp.eq.s32.totalorder %s18, 1
    %p188 = por %p186, %p187
    %p189 = scmp.ne.s32.totalorder %s178, %s179
    %p190 = scmp.eq.s32.totalorder %s18, 0
    %p191 = por %p189, %p190
    %p192 = scmp.ne.s32.totalorder %s178, %s179
    %p193 = scmp.eq.s32.totalorder %s19, 1
    %p194 = por %p192, %p193
    %p196 = scmp.ne.s32.totalorder %s179, %s195
    %p197 = scmp.eq.s32.totalorder %s19, 0
    %p198 = por %p196, %p197
    %p199 = scmp.le.s32.totalorder 1, %s13
    %p200 = scmp.lt.s32.totalorder %s13, 3
    %p201 = pnand %p199, %p200
    %p202 = pneg %p201
    // Predicated region
    $region9: #{mobilenet_v2_forward.7} parent=5 // pred_check
      _
    $region10: #{mobilenet_v2_forward.7} parent=5 // pred_check_branch
      %204 = sbr.rel (%p201) target = $region12
    $region11: #{mobilenet_v2_forward.7} parent=5 // pred_region
      %s205 = ssub.s32 %s13, 1
      // Predicated region
      $region13: #{mobilenet_v2_forward.7} parent=11 // pred_check
        %p206 = pneg %p60
      $region14: #{mobilenet_v2_forward.7} parent=11 // pred_check_branch
        %208 = sbr.rel (%p206) target = $region16
      $region15: #{mobilenet_v2_forward.7} parent=11 // pred_region
        _
      $region16: #{mobilenet_v2_forward.7} parent=11 // pred_fallthru
        _
      // Predicated region
      $region17: #{mobilenet_v2_forward.7} parent=11 // pred_check
        %p209 = pneg %p81
      $region18: #{mobilenet_v2_forward.7} parent=11 // pred_check_branch
        %211 = sbr.rel (%p209) target = $region20
      $region19: #{mobilenet_v2_forward.7} parent=11 // pred_region
        _
      $region20: #{mobilenet_v2_forward.7} parent=11 // pred_fallthru
        _
      // Predicated region
      $region21: #{mobilenet_v2_forward.7} parent=11 // pred_check
        %p212 = pneg %p102
      $region22: #{mobilenet_v2_forward.7} parent=11 // pred_check_branch
        %214 = sbr.rel (%p212) target = $region24
      $region23: #{mobilenet_v2_forward.7} parent=11 // pred_region
        _
      $region24: #{mobilenet_v2_forward.7} parent=11 // pred_fallthru
        _
      // Predicated region
      $region25: #{mobilenet_v2_forward.7} parent=11 // pred_check
        %p215 = pneg %p123
      $region26: #{mobilenet_v2_forward.7} parent=11 // pred_check_branch
        %217 = sbr.rel (%p215) target = $region28
      $region27: #{mobilenet_v2_forward.7} parent=11 // pred_region
        _
      $region28: #{mobilenet_v2_forward.7} parent=11 // pred_fallthru
        _
      // Predicated region
      $region29: #{mobilenet_v2_forward.7} parent=11 // pred_check
        %p218 = pneg %p144
      $region30: #{mobilenet_v2_forward.7} parent=11 // pred_check_branch
        %220 = sbr.rel (%p218) target = $region32
      $region31: #{mobilenet_v2_forward.7} parent=11 // pred_region
        _
      $region32: #{mobilenet_v2_forward.7} parent=11 // pred_fallthru
        _
      // Predicated region
      $region33: #{mobilenet_v2_forward.7} parent=11 // pred_check
        %p221 = pneg %p165
      $region34: #{mobilenet_v2_forward.7} parent=11 // pred_check_branch
        %223 = sbr.rel (%p221) target = $region36
      $region35: #{mobilenet_v2_forward.7} parent=11 // pred_region
        _
      $region36: #{mobilenet_v2_forward.7} parent=11 // pred_fallthru
        _
    $region12: #{mobilenet_v2_forward.7} parent=5 // pred_fallthru
      _
    %p224 = scmp.lt.s32.totalorder %s13, 2
    // Predicated region
    $region37: #{mobilenet_v2_forward.7} parent=5 // pred_check
      %p225 = pneg %p224
    $region38: #{mobilenet_v2_forward.7} parent=5 // pred_check_branch
      %227 = sbr.rel (%p225) target = $region40
    $region39: #{mobilenet_v2_forward.7} parent=5 // pred_region
      // Predicated region
      $region41: #{mobilenet_v2_forward.7} parent=39 // pred_check
        %p228 = pneg %p33
      $region42: #{mobilenet_v2_forward.7} parent=39 // pred_check_branch
        %230 = sbr.rel (%p228) target = $region44
      $region43: #{mobilenet_v2_forward.7} parent=39 // pred_region
        %p231 = scmp.lt.s32.totalorder %s13, 1
        %s232 = scalar_select %p231, %s13, 1
        %s233 = smul.addr %s232, 32
        %s234 = smul.addr %s233, 8
        %s235 = scalar_lea.vmem %s0, %s234
      $region44: #{mobilenet_v2_forward.7} parent=39 // pred_fallthru
        _
    $region40: #{mobilenet_v2_forward.7} parent=5 // pred_fallthru
      _
    %p236 = scmp.le.s32.totalorder 1, %s13
    %p237 = scmp.lt.s32.totalorder %s13, 3
    %p238 = pnand %p236, %p237
    %p239 = pneg %p238
    // Predicated region
    $region45: #{mobilenet_v2_forward.7} parent=5 // pred_check
      _
    $region46: #{mobilenet_v2_forward.7} parent=5 // pred_check_branch
      %241 = sbr.rel (%p238) target = $region48
    $region47: #{mobilenet_v2_forward.7} parent=5 // pred_region
      %s242 = ssub.s32 %s13, 1
      %p243 = scmp.lt.s32.totalorder %s18, 1
      %s244 = scalar_select %p243, %s18, 1
      %s245 = smul.addr %s244, 32
      %s246 = smul.addr %s245, 8
      %s247 = scalar_lea.vmem %s0, %s246
      %p248 = pneg %p39
      %p249 = pneg %p36
      %p250 = pneg %p60
      %p251 = pneg %p57
      %p252 = pneg %p81
      %p253 = pneg %p78
      %p254 = pneg %p102
      %p255 = pneg %p99
      %p256 = pneg %p123
      %p257 = pneg %p120
      %p258 = pneg %p144
      %p259 = pneg %p141
      %p260 = pneg %p165
      %p261 = pneg %p162
      %p262 = pneg %p191
      %p263 = pneg %p188
      %p264 = scmp.lt.s32.totalorder %s18, 1
      %s265 = scalar_select %p264, %s18, 1
      %s266 = smul.addr %s265, 32
      %s267 = smul.addr %s266, 8
      %s268 = scalar_lea.vmem %s7, %s267
      %p269 = scmp.lt.s32.totalorder %s18, 1
      %s270 = scalar_select %p269, %s18, 1
      %s271 = smul.addr %s270, 32
      %s272 = smul.addr %s271, 8
      %s273 = scalar_lea.vmem %s0, %s272
      %p274 = scmp.lt.s32.totalorder %s18, 1
      %s275 = scalar_select %p274, %s18, 1
      %s276 = smul.addr %s275, 32
      %s277 = smul.addr %s276, 8
      %s278 = scalar_lea.vmem %s7, %s277
      %v280 = vld [vmem:[%s273] sm:$0xff]
      %v281 = vld [vmem:[%s273 + $0x8] sm:$0xff]
      %v282 = vld [vmem:[%s273 + $0x10] sm:$0xff]
      %v283 = vld [vmem:[%s273 + $0x18] sm:$0xff]
      %v284 = vld [vmem:[%s273 + $0x20] sm:$0xff]
      %v285 = vld [vmem:[%s273 + $0x28] sm:$0xff]
      %v286 = vld [vmem:[%s273 + $0x30] sm:$0xff]
      %v287 = vld [vmem:[%s273 + $0x38] sm:$0xff]
      %v288 = vld [vmem:[%s273 + $0x40] sm:$0xff]
      %v289 = vld [vmem:[%s273 + $0x48] sm:$0xff]
      %v290 = vld [vmem:[%s273 + $0x50] sm:$0xff]
      %v291 = vld [vmem:[%s273 + $0x58] sm:$0xff]
      %v292 = vld [vmem:[%s273 + $0x60] sm:$0xff]
      %v293 = vld [vmem:[%s273 + $0x68] sm:$0xff]
      %v294 = vld [vmem:[%s273 + $0x70] sm:$0xff]
      %v295 = vld [vmem:[%s273 + $0x78] sm:$0xff]
      %v296 = vld [vmem:[%s273 + $0x80] sm:$0xff]
      %v297 = vld [vmem:[%s273 + $0x88] sm:$0xff]
      %v298 = vld [vmem:[%s273 + $0x90] sm:$0xff]
      %v299 = vld [vmem:[%s273 + $0x98] sm:$0xff]
      %v300 = vld [vmem:[%s273 + $0xa0] sm:$0xff]
      %v301 = vld [vmem:[%s273 + $0xa8] sm:$0xff]
      %v302 = vld [vmem:[%s273 + $0xb0] sm:$0xff]
      %v303 = vld [vmem:[%s273 + $0xb8] sm:$0xff]
      %v304 = vld [vmem:[%s273 + $0xc0] sm:$0xff]
      %v305 = vld [vmem:[%s273 + $0xc8] sm:$0xff]
      %v306 = vld [vmem:[%s273 + $0xd0] sm:$0xff]
      %v307 = vld [vmem:[%s273 + $0xd8] sm:$0xff]
      %v308 = vld [vmem:[%s273 + $0xe0] sm:$0xff]
      %v309 = vld [vmem:[%s273 + $0xe8] sm:$0xff]
      %v310 = vld [vmem:[%s273 + $0xf0] sm:$0xff]
      %v311 = vld [vmem:[%s273 + $0xf8] sm:$0xff]
      %v312 = vpack.c.bf16 %v281, %v280
      %v313 = vpack.c.bf16 %v283, %v282
      %v314 = vpack.c.bf16 %v285, %v284
      %v315 = vpack.c.bf16 %v287, %v286
      %v316 = vpack.c.bf16 %v289, %v288
      %v317 = vpack.c.bf16 %v291, %v290
      %v318 = vpack.c.bf16 %v293, %v292
      %v319 = vpack.c.bf16 %v295, %v294
      %v320 = vpack.c.bf16 %v297, %v296
      %v321 = vpack.c.bf16 %v299, %v298
      %v322 = vpack.c.bf16 %v301, %v300
      %v323 = vpack.c.bf16 %v303, %v302
      %v324 = vpack.c.bf16 %v305, %v304
      %v325 = vpack.c.bf16 %v307, %v306
      %v326 = vpack.c.bf16 %v309, %v308
      %v327 = vpack.c.bf16 %v311, %v310
      %v328 = vld [vmem:[%s1] sm:$0xff]
      %v329 = vld [vmem:[%s1 + $0x8] sm:$0xff]
      %v330 = vpack.c.bf16 %v329, %v328
      %v331 = vld [vmem:[%s2] sm:$0x1]
      %v333 = vlaneseq
      %v334 = vshrl.u32 %v333, 7
      %v335 = vsub.s32 0, %v334
      %v336 = vrot.slane %v331, %v335
      %vm338 = vcmask 130048
      %v340 = vsel %vm338, %v312, 0
      %v343 = vsel %vm338, %v313, 0
      %v346 = vsel %vm338, %v314, 0
      %v349 = vsel %vm338, %v315, 0
      %v352 = vsel %vm338, %v316, 0
      %v355 = vsel %vm338, %v317, 0
      %v358 = vsel %vm338, %v318, 0
      %v361 = vsel %vm338, %v319, 0
      %v364 = vsel %vm338, %v320, 0
      %v367 = vsel %vm338, %v321, 0
      %v370 = vsel %vm338, %v322, 0
      %v373 = vsel %vm338, %v323, 0
      %v376 = vsel %vm338, %v324, 0
      %v379 = vsel %vm338, %v325, 0
      %v382 = vsel %vm338, %v326, 0
      %v385 = vsel %vm338, %v327, 0
      %387 = vmatprep.subr.bf16.mxu0 0
      %388 = vmatpush1.bf16.msra.mxu0 0
      %389 = vmatprep.subr.bf16.mxu0 0
      %390 = vmatpush1.bf16.msra.mxu0 0
      %391 = vmatprep.subr.bf16.mxu0 0
      %392 = vmatpush1.bf16.msra.mxu0 0
      %393 = vmatprep.subr.bf16.mxu0 0
      %394 = vmatpush1.bf16.msra.mxu0 0
      %395 = vmatprep.subr.bf16.mxu0 0
      %396 = vmatpush1.bf16.msra.mxu0 0
      %397 = vmatprep.subr.bf16.mxu0 0
      %398 = vmatpush1.bf16.msra.mxu0 0
      %399 = vmatprep.subr.bf16.mxu0 0
      %400 = vmatpush1.bf16.msra.mxu0 0
      %401 = vmatprep.subr.bf16.mxu0 0
      %402 = vmatpush1.bf16.msra.mxu0 %v330
      %403 = vmatprep.subr.bf16.mxu0 0
      %404 = vmatpush2.bf16.msra.mxu0 0
      %405 = vmatprep.subr.bf16.mxu0 0
      %406 = vmatpush2.bf16.msra.mxu0 0
      %407 = vmatprep.subr.bf16.mxu0 0
      %408 = vmatpush2.bf16.msra.mxu0 0
      %409 = vmatprep.subr.bf16.mxu0 0
      %410 = vmatpush2.bf16.msra.mxu0 0
      %411 = vmatprep.subr.bf16.mxu0 0
      %412 = vmatpush2.bf16.msra.mxu0 0
      %413 = vmatprep.subr.bf16.mxu0 0
      %414 = vmatpush2.bf16.msra.mxu0 0
      %415 = vmatprep.subr.bf16.mxu0 0
      %416 = vmatpush2.bf16.msra.mxu0 0
      %417 = vmatprep.subr.bf16.mxu0 0
      %418 = vmatpush2.bf16.msra.mxu0 0
      %419 = vmatprep.mubr.bf16.mxu0 0
      %420 = vmatmul.mubr.bf16.gmra.mxu0 %v340
      %v421 = vpop.f32.mrf.mxu0
      %v422 = vadd.f32 %v336, %v421
      %v423 = vpop.f32.mrf.mxu0
      %v424 = vpop.f32.mrf.mxu0
      %v425 = vadd.f32 %v336, %v424
      %v426 = vpop.f32.mrf.mxu0
      %427 = vmatprep.mubr.bf16.mxu0 0
      %428 = vmatmul.mubr.bf16.gmra.mxu0 %v343
      %v429 = vpop.f32.mrf.mxu0
      %v430 = vadd.f32 %v336, %v429
      %v431 = vpop.f32.mrf.mxu0
      %v432 = vpop.f32.mrf.mxu0
      %v433 = vadd.f32 %v336, %v432
      %v434 = vpop.f32.mrf.mxu0
      %435 = vmatprep.mubr.bf16.mxu0 0
      %436 = vmatmul.mubr.bf16.gmra.mxu0 %v346
      %v437 = vpop.f32.mrf.mxu0
      %v438 = vadd.f32 %v336, %v437
      %v439 = vpop.f32.mrf.mxu0
      %v440 = vpop.f32.mrf.mxu0
      %v441 = vadd.f32 %v336, %v440
      %v442 = vpop.f32.mrf.mxu0
      %443 = vmatprep.mubr.bf16.mxu0 0
      %444 = vmatmul.mubr.bf16.gmra.mxu0 %v349
      %v445 = vpop.f32.mrf.mxu0
      %v446 = vadd.f32 %v336, %v445
      %v447 = vpop.f32.mrf.mxu0
      %v448 = vpop.f32.mrf.mxu0
      %v449 = vadd.f32 %v336, %v448
      %v450 = vpop.f32.mrf.mxu0
      %451 = vmatprep.mubr.bf16.mxu0 0
      %452 = vmatmul.mubr.bf16.gmra.mxu0 %v352
      %v453 = vpop.f32.mrf.mxu0
      %v454 = vadd.f32 %v336, %v453
      %v455 = vpop.f32.mrf.mxu0
      %v456 = vpop.f32.mrf.mxu0
      %v457 = vadd.f32 %v336, %v456
      %v458 = vpop.f32.mrf.mxu0
      %459 = vmatprep.mubr.bf16.mxu0 0
      %460 = vmatmul.mubr.bf16.gmra.mxu0 %v355
      %v461 = vpop.f32.mrf.mxu0
      %v462 = vadd.f32 %v336, %v461
      %v463 = vpop.f32.mrf.mxu0
      %v464 = vpop.f32.mrf.mxu0
      %v465 = vadd.f32 %v336, %v464
      %v466 = vpop.f32.mrf.mxu0
      %467 = vmatprep.mubr.bf16.mxu0 0
      %468 = vmatmul.mubr.bf16.gmra.mxu0 %v358
      %v469 = vpop.f32.mrf.mxu0
      %v470 = vadd.f32 %v336, %v469
      %v471 = vpop.f32.mrf.mxu0
      %v472 = vpop.f32.mrf.mxu0
      %v473 = vadd.f32 %v336, %v472
      %v474 = vpop.f32.mrf.mxu0
      %475 = vmatprep.mubr.bf16.mxu0 0
      %476 = vmatmul.mubr.bf16.gmra.mxu0 %v361
      %v477 = vpop.f32.mrf.mxu0
      %v478 = vadd.f32 %v336, %v477
      %v479 = vpop.f32.mrf.mxu0
      %v480 = vpop.f32.mrf.mxu0
      %v481 = vadd.f32 %v336, %v480
      %v482 = vpop.f32.mrf.mxu0
      %483 = vmatprep.mubr.bf16.mxu0 0
      %484 = vmatmul.mubr.bf16.gmra.mxu0 %v364
      %v485 = vpop.f32.mrf.mxu0
      %v486 = vadd.f32 %v336, %v485
      %v487 = vpop.f32.mrf.mxu0
      %v488 = vpop.f32.mrf.mxu0
      %v489 = vadd.f32 %v336, %v488
      %v490 = vpop.f32.mrf.mxu0
      %491 = vmatprep.mubr.bf16.mxu0 0
      %492 = vmatmul.mubr.bf16.gmra.mxu0 %v367
      %v493 = vpop.f32.mrf.mxu0
      %v494 = vadd.f32 %v336, %v493
      %v495 = vpop.f32.mrf.mxu0
      %v496 = vpop.f32.mrf.mxu0
      %v497 = vadd.f32 %v336, %v496
      %v498 = vpop.f32.mrf.mxu0
      %499 = vmatprep.mubr.bf16.mxu0 0
      %500 = vmatmul.mubr.bf16.gmra.mxu0 %v370
      %v501 = vpop.f32.mrf.mxu0
      %v502 = vadd.f32 %v336, %v501
      %v503 = vpop.f32.mrf.mxu0
      %v504 = vpop.f32.mrf.mxu0
      %v505 = vadd.f32 %v336, %v504
      %v506 = vpop.f32.mrf.mxu0
      %507 = vmatprep.mubr.bf16.mxu0 0
      %508 = vmatmul.mubr.bf16.gmra.mxu0 %v373
      %v509 = vpop.f32.mrf.mxu0
      %v510 = vadd.f32 %v336, %v509
      %v511 = vpop.f32.mrf.mxu0
      %v512 = vpop.f32.mrf.mxu0
      %v513 = vadd.f32 %v336, %v512
      %v514 = vpop.f32.mrf.mxu0
      %515 = vmatprep.mubr.bf16.mxu0 0
      %516 = vmatmul.mubr.bf16.gmra.mxu0 %v376
      %v517 = vpop.f32.mrf.mxu0
      %v518 = vadd.f32 %v336, %v517
      %v519 = vpop.f32.mrf.mxu0
      %v520 = vpop.f32.mrf.mxu0
      %v521 = vadd.f32 %v336, %v520
      %v522 = vpop.f32.mrf.mxu0
      %523 = vmatprep.mubr.bf16.mxu0 0
      %524 = vmatmul.mubr.bf16.gmra.mxu0 %v379
      %v525 = vpop.f32.mrf.mxu0
      %v526 = vadd.f32 %v336, %v525
      %v527 = vpop.f32.mrf.mxu0
      %v528 = vpop.f32.mrf.mxu0
      %v529 = vadd.f32 %v336, %v528
      %v530 = vpop.f32.mrf.mxu0
      %531 = vmatprep.mubr.bf16.mxu0 0
      %532 = vmatmul.mubr.bf16.gmra.mxu0 %v382
      %v533 = vpop.f32.mrf.mxu0
      %v534 = vadd.f32 %v336, %v533
      %v535 = vpop.f32.mrf.mxu0
      %v536 = vpop.f32.mrf.mxu0
      %v537 = vadd.f32 %v336, %v536
      %v538 = vpop.f32.mrf.mxu0
      %539 = vmatprep.mubr.bf16.mxu0 0
      %540 = vmatmul.mubr.bf16.gmra.mxu0 %v385
      %v541 = vpop.f32.mrf.mxu0
      %v542 = vadd.f32 %v336, %v541
      %v543 = vpop.f32.mrf.mxu0
      %v544 = vpop.f32.mrf.mxu0
      %v545 = vadd.f32 %v336, %v544
      %v546 = vpop.f32.mrf.mxu0
      %547 = vdwg.mxu0
      %v548 = vmax.f32 %v422, 0.0
      %v549 = vmax.f32 %v425, 0.0
      %v550 = vmax.f32 %v430, 0.0
      %v551 = vmax.f32 %v433, 0.0
      %v552 = vmax.f32 %v438, 0.0
      %v553 = vmax.f32 %v441, 0.0
      %v554 = vmax.f32 %v446, 0.0
      %v555 = vmax.f32 %v449, 0.0
      %v556 = vmax.f32 %v454, 0.0
      %v557 = vmax.f32 %v457, 0.0
      %v558 = vmax.f32 %v462, 0.0
      %v559 = vmax.f32 %v465, 0.0
      %v560 = vmax.f32 %v470, 0.0
      %v561 = vmax.f32 %v473, 0.0
      %v562 = vmax.f32 %v478, 0.0
      %v563 = vmax.f32 %v481, 0.0
      %v564 = vmax.f32 %v486, 0.0
      %v565 = vmax.f32 %v489, 0.0
      %v566 = vmax.f32 %v494, 0.0
      %v567 = vmax.f32 %v497, 0.0
      %v568 = vmax.f32 %v502, 0.0
      %v569 = vmax.f32 %v505, 0.0
      %v570 = vmax.f32 %v510, 0.0
      %v571 = vmax.f32 %v513, 0.0
      %v572 = vmax.f32 %v518, 0.0
      %v573 = vmax.f32 %v521, 0.0
      %v574 = vmax.f32 %v526, 0.0
      %v575 = vmax.f32 %v529, 0.0
      %v576 = vmax.f32 %v534, 0.0
      %v577 = vmax.f32 %v537, 0.0
      %v578 = vmax.f32 %v542, 0.0
      %v579 = vmax.f32 %v545, 0.0
      %v580 = vmin.f32 %v548, 6.0
      %v581 = vmin.f32 %v549, 6.0
      %v582 = vmin.f32 %v550, 6.0
      %v583 = vmin.f32 %v551, 6.0
      %v584 = vmin.f32 %v552, 6.0
      %v585 = vmin.f32 %v553, 6.0
      %v586 = vmin.f32 %v554, 6.0
      %v587 = vmin.f32 %v555, 6.0
      %v588 = vmin.f32 %v556, 6.0
      %v589 = vmin.f32 %v557, 6.0
      %v590 = vmin.f32 %v558, 6.0
      %v591 = vmin.f32 %v559, 6.0
      %v592 = vmin.f32 %v560, 6.0
      %v593 = vmin.f32 %v561, 6.0
      %v594 = vmin.f32 %v562, 6.0
      %v595 = vmin.f32 %v563, 6.0
      %v596 = vmin.f32 %v564, 6.0
      %v597 = vmin.f32 %v565, 6.0
      %v598 = vmin.f32 %v566, 6.0
      %v599 = vmin.f32 %v567, 6.0
      %v600 = vmin.f32 %v568, 6.0
      %v601 = vmin.f32 %v569, 6.0
      %v602 = vmin.f32 %v570, 6.0
      %v603 = vmin.f32 %v571, 6.0
      %v604 = vmin.f32 %v572, 6.0
      %v605 = vmin.f32 %v573, 6.0
      %v606 = vmin.f32 %v574, 6.0
      %v607 = vmin.f32 %v575, 6.0
      %v608 = vmin.f32 %v576, 6.0
      %v609 = vmin.f32 %v577, 6.0
      %v610 = vmin.f32 %v578, 6.0
      %v611 = vmin.f32 %v579, 6.0
      %vm612 = vcmask 785408
      %613 = vst.msk [vmem:[#allocation2] sm:$0xff] %vm612, 0.0
      %614 = vst.msk [vmem:[#allocation2 + $0x8] sm:$0xff] %vm612, 0.0
      %615 = vst.msk [vmem:[#allocation2 + $0x10] sm:$0xff] %vm612, 0.0
      %616 = vst.msk [vmem:[#allocation2 + $0x18] sm:$0xff] %vm612, 0.0
      %617 = vst.msk [vmem:[#allocation2 + $0x20] sm:$0xff] %vm612, 0.0
      %618 = vst.msk [vmem:[#allocation2 + $0x28] sm:$0xff] %vm612, 0.0
      %619 = vst.msk [vmem:[#allocation2 + $0x30] sm:$0xff] %vm612, 0.0
      %620 = vst.msk [vmem:[#allocation2 + $0x38] sm:$0xff] %vm612, 0.0
      %621 = vst.msk [vmem:[#allocation2 + $0x40] sm:$0xff] %vm612, 0.0
      %622 = vst.msk [vmem:[#allocation2 + $0x48] sm:$0xff] %vm612, 0.0
      %623 = vst.msk [vmem:[#allocation2 + $0x50] sm:$0xff] %vm612, 0.0
      %624 = vst.msk [vmem:[#allocation2 + $0x58] sm:$0xff] %vm612, 0.0
      %625 = vst.msk [vmem:[#allocation2 + $0x60] sm:$0xff] %vm612, 0.0
      %626 = vst.msk [vmem:[#allocation2 + $0x68] sm:$0xff] %vm612, 0.0
      %627 = vst.msk [vmem:[#allocation2 + $0x70] sm:$0xff] %vm612, 0.0
      %628 = vst.msk [vmem:[#allocation2 + $0x78] sm:$0xff] %vm612, 0.0
      %629 = vst.msk [vmem:[#allocation2 + $0x80] sm:$0xff] %vm612, 0.0
      %630 = vst.msk [vmem:[#allocation2 + $0x88] sm:$0xff] %vm612, 0.0
      %631 = vst.msk [vmem:[#allocation2 + $0x90] sm:$0xff] %vm612, 0.0
      %632 = vst.msk [vmem:[#allocation2 + $0x98] sm:$0xff] %vm612, 0.0
      %633 = vst.msk [vmem:[#allocation2 + $0xa0] sm:$0xff] %vm612, 0.0
      %634 = vst.msk [vmem:[#allocation2 + $0xa8] sm:$0xff] %vm612, 0.0
      %635 = vst.msk [vmem:[#allocation2 + $0xb0] sm:$0xff] %vm612, 0.0
      %636 = vst.msk [vmem:[#allocation2 + $0xb8] sm:$0xff] %vm612, 0.0
      %637 = vst.msk [vmem:[#allocation2 + $0xc0] sm:$0xff] %vm612, 0.0
      %638 = vst.msk [vmem:[#allocation2 + $0xc8] sm:$0xff] %vm612, 0.0
      %639 = vst.msk [vmem:[#allocation2 + $0xd0] sm:$0xff] %vm612, 0.0
      %640 = vst.msk [vmem:[#allocation2 + $0xd8] sm:$0xff] %vm612, 0.0
      %641 = vst.msk [vmem:[#allocation2 + $0xe0] sm:$0xff] %vm612, 0.0
      %642 = vst.msk [vmem:[#allocation2 + $0xe8] sm:$0xff] %vm612, 0.0
      %643 = vst.msk [vmem:[#allocation2 + $0xf0] sm:$0xff] %vm612, 0.0
      %644 = vst.msk [vmem:[#allocation2 + $0xf8] sm:$0xff] %vm612, 0.0
      %645 = vst.msk [vmem:[#allocation2 + $0x100] sm:$0xff] %vm612, 0.0
      %646 = vst.msk [vmem:[#allocation2 + $0x108] sm:$0xff] %vm612, 0.0
      %647 = vst.msk [vmem:[#allocation2 + $0x110] sm:$0xff] %vm612, 0.0
      %648 = vst.msk [vmem:[#allocation2 + $0x118] sm:$0xff] %vm612, 0.0
      %649 = vst.msk [vmem:[#allocation2 + $0x120] sm:$0xff] %vm612, 0.0
      %650 = vst.msk [vmem:[#allocation2 + $0x128] sm:$0xff] %vm612, 0.0
      %651 = vst.msk [vmem:[#allocation2 + $0x130] sm:$0xff] %vm612, 0.0
      %652 = vst.msk [vmem:[#allocation2 + $0x138] sm:$0xff] %vm612, 0.0
      %653 = vst.msk [vmem:[#allocation2 + $0x140] sm:$0xff] %vm612, 0.0
      %654 = vst.msk [vmem:[#allocation2 + $0x148] sm:$0xff] %vm612, 0.0
      %655 = vst.msk [vmem:[#allocation2 + $0x150] sm:$0xff] %vm612, 0.0
      %656 = vst.msk [vmem:[#allocation2 + $0x158] sm:$0xff] %vm612, 0.0
      %657 = vst.msk [vmem:[#allocation2 + $0x160] sm:$0xff] %vm612, 0.0
      %658 = vst.msk [vmem:[#allocation2 + $0x168] sm:$0xff] %vm612, 0.0
      %659 = vst.msk [vmem:[#allocation2 + $0x170] sm:$0xff] %vm612, 0.0
      %660 = vst.msk [vmem:[#allocation2 + $0x178] sm:$0xff] %vm612, 0.0
      %661 = vst.msk [vmem:[#allocation2 + $0x180] sm:$0xff] %vm612, 0.0
      %662 = vst.msk [vmem:[#allocation2 + $0x188] sm:$0xff] %vm612, 0.0
      %663 = vst.msk [vmem:[#allocation2 + $0x190] sm:$0xff] %vm612, 0.0
      %664 = vst.msk [vmem:[#allocation2 + $0x198] sm:$0xff] %vm612, 0.0
      %665 = vst.msk [vmem:[#allocation2 + $0x1a0] sm:$0xff] %vm612, 0.0
      %666 = vst.msk [vmem:[#allocation2 + $0x1a8] sm:$0xff] %vm612, 0.0
      %667 = vst.msk [vmem:[#allocation2 + $0x1b0] sm:$0xff] %vm612, 0.0
      %668 = vst.msk [vmem:[#allocation2 + $0x1b8] sm:$0xff] %vm612, 0.0
      %669 = vst.msk [vmem:[#allocation2 + $0x1c0] sm:$0xff] %vm612, 0.0
      %670 = vst.msk [vmem:[#allocation2 + $0x1c8] sm:$0xff] %vm612, 0.0
      %671 = vst.msk [vmem:[#allocation2 + $0x1d0] sm:$0xff] %vm612, 0.0
      %672 = vst.msk [vmem:[#allocation2 + $0x1d8] sm:$0xff] %vm612, 0.0
      %673 = vst.msk [vmem:[#allocation2 + $0x1e0] sm:$0xff] %vm612, 0.0
      %674 = vst.msk [vmem:[#allocation2 + $0x1e8] sm:$0xff] %vm612, 0.0
      %675 = vst.msk [vmem:[#allocation2 + $0x1f0] sm:$0xff] %vm612, 0.0
      %676 = vst.msk [vmem:[#allocation2 + $0x1f8] sm:$0xff] %vm612, 0.0
      %677 = vst.msk [vmem:[#allocation2 + $0x200] sm:$0xff] %vm612, 0.0
      %678 = vst.msk [vmem:[#allocation2 + $0x208] sm:$0xff] %vm612, 0.0
      %679 = vst.msk [vmem:[#allocation2 + $0x210] sm:$0xff] %vm612, 0.0
      %680 = vst.msk [vmem:[#allocation2 + $0x218] sm:$0xff] %vm612, 0.0
      %681 = vst.msk [vmem:[#allocation2 + $0x220] sm:$0xff] %vm612, 0.0
      %682 = vst.msk [vmem:[#allocation2 + $0x228] sm:$0xff] %vm612, 0.0
      %683 = vst.msk [vmem:[#allocation2 + $0x230] sm:$0xff] %vm612, 0.0
      %684 = vst.msk [vmem:[#allocation2 + $0x238] sm:$0xff] %vm612, 0.0
      %s685 = scalar_lea.vmem [#allocation2], 32
      %686 = vst.msk [vmem:[%s685 + $0x8] sm:$0xff] %vm612, %v580
      %687 = vst.msk [vmem:[%s685 + $0x10] sm:$0xff] %vm612, %v581
      %688 = vst.msk [vmem:[%s685 + $0x28] sm:$0xff] %vm612, %v582
      %689 = vst.msk [vmem:[%s685 + $0x30] sm:$0xff] %vm612, %v583
      %690 = vst.msk [vmem:[%s685 + $0x48] sm:$0xff] %vm612, %v584
      %691 = vst.msk [vmem:[%s685 + $0x50] sm:$0xff] %vm612, %v585
      %692 = vst.msk [vmem:[%s685 + $0x68] sm:$0xff] %vm612, %v586
      %693 = vst.msk [vmem:[%s685 + $0x70] sm:$0xff] %vm612, %v587
      %694 = vst.msk [vmem:[%s685 + $0x88] sm:$0xff] %vm612, %v588
      %695 = vst.msk [vmem:[%s685 + $0x90] sm:$0xff] %vm612, %v589
      %696 = vst.msk [vmem:[%s685 + $0xa8] sm:$0xff] %vm612, %v590
      %697 = vst.msk [vmem:[%s685 + $0xb0] sm:$0xff] %vm612, %v591
      %698 = vst.msk [vmem:[%s685 + $0xc8] sm:$0xff] %vm612, %v592
      %699 = vst.msk [vmem:[%s685 + $0xd0] sm:$0xff] %vm612, %v593
      %700 = vst.msk [vmem:[%s685 + $0xe8] sm:$0xff] %vm612, %v594
      %701 = vst.msk [vmem:[%s685 + $0xf0] sm:$0xff] %vm612, %v595
      %702 = vst.msk [vmem:[%s685 + $0x108] sm:$0xff] %vm612, %v596
      %703 = vst.msk [vmem:[%s685 + $0x110] sm:$0xff] %vm612, %v597
      %704 = vst.msk [vmem:[%s685 + $0x128] sm:$0xff] %vm612, %v598
      %705 = vst.msk [vmem:[%s685 + $0x130] sm:$0xff] %vm612, %v599
      %706 = vst.msk [vmem:[%s685 + $0x148] sm:$0xff] %vm612, %v600
      %707 = vst.msk [vmem:[%s685 + $0x150] sm:$0xff] %vm612, %v601
      %708 = vst.msk [vmem:[%s685 + $0x168] sm:$0xff] %vm612, %v602
      %709 = vst.msk [vmem:[%s685 + $0x170] sm:$0xff] %vm612, %v603
      %710 = vst.msk [vmem:[%s685 + $0x188] sm:$0xff] %vm612, %v604
      %711 = vst.msk [vmem:[%s685 + $0x190] sm:$0xff] %vm612, %v605
      %712 = vst.msk [vmem:[%s685 + $0x1a8] sm:$0xff] %vm612, %v606
      %713 = vst.msk [vmem:[%s685 + $0x1b0] sm:$0xff] %vm612, %v607
      %714 = vst.msk [vmem:[%s685 + $0x1c8] sm:$0xff] %vm612, %v608
      %715 = vst.msk [vmem:[%s685 + $0x1d0] sm:$0xff] %vm612, %v609
      %716 = vst.msk [vmem:[%s685 + $0x1e8] sm:$0xff] %vm612, %v610
      %717 = vst.msk [vmem:[%s685 + $0x1f0] sm:$0xff] %vm612, %v611
      %v718 = vld [vmem:[%s3] sm:$0xff]
      %v719 = vld [vmem:[%s3 + $0x8] sm:$0x1]
      %v720 = vld [vmem:[#allocation2 + $0x7] sm:$0xff]
      %v721 = vld [vmem:[#allocation2 + $0xf] sm:$0xff]
      %v722 = vld [vmem:[#allocation2 + $0x27] sm:$0xff]
      %v723 = vld [vmem:[#allocation2 + $0x2f] sm:$0xff]
      %v724 = vld [vmem:[#allocation2 + $0x47] sm:$0xff]
      %v725 = vld [vmem:[#allocation2 + $0x4f] sm:$0xff]
      %v726 = vld [vmem:[#allocation2 + $0x67] sm:$0xff]
      %v727 = vld [vmem:[#allocation2 + $0x6f] sm:$0xff]
      %v728 = vld [vmem:[#allocation2 + $0x87] sm:$0xff]
      %v729 = vld [vmem:[#allocation2 + $0x8f] sm:$0xff]
      %v730 = vld [vmem:[#allocation2 + $0xa7] sm:$0xff]
      %v731 = vld [vmem:[#allocation2 + $0xaf] sm:$0xff]
      %v732 = vld [vmem:[#allocation2 + $0xc7] sm:$0xff]
      %v733 = vld [vmem:[#allocation2 + $0xcf] sm:$0xff]
      %v734 = vld [vmem:[#allocation2 + $0xe7] sm:$0xff]
      %v735 = vld [vmem:[#allocation2 + $0xef] sm:$0xff]
      %v736 = vld [vmem:[#allocation2 + $0x107] sm:$0xff]
      %v737 = vld [vmem:[#allocation2 + $0x10f] sm:$0xff]
      %v738 = vld [vmem:[#allocation2 + $0x127] sm:$0xff]
      %v739 = vld [vmem:[#allocation2 + $0x12f] sm:$0xff]
      %v740 = vld [vmem:[#allocation2 + $0x147] sm:$0xff]
      %v741 = vld [vmem:[#allocation2 + $0x14f] sm:$0xff]
      %v742 = vld [vmem:[#allocation2 + $0x167] sm:$0xff]
      %v743 = vld [vmem:[#allocation2 + $0x16f] sm:$0xff]
      %v744 = vld [vmem:[#allocation2 + $0x187] sm:$0xff]
      %v745 = vld [vmem:[#allocation2 + $0x18f] sm:$0xff]
      %v746 = vld [vmem:[#allocation2 + $0x1a7] sm:$0xff]
      %v747 = vld [vmem:[#allocation2 + $0x1af] sm:$0xff]
      %v748 = vld [vmem:[#allocation2 + $0x1c7] sm:$0xff]
      %v749 = vld [vmem:[#allocation2 + $0x1cf] sm:$0xff]
      %v750 = vld [vmem:[#allocation2 + $0x1e7] sm:$0xff]
      %v751 = vld [vmem:[#allocation2 + $0x1ef] sm:$0xff]
      %v752 = vlaneseq
      %v753 = vshrl.u32 %v752, 7
      %v754 = vsub.s32 0, %v753
      %v755 = vrot.slane %v718, %v754
      %v756 = vmul.f32 %v720, %v755
      %v757 = vmul.f32 %v721, %v755
      %v758 = vmul.f32 %v722, %v755
      %v759 = vmul.f32 %v723, %v755
      %v760 = vmul.f32 %v724, %v755
      %v761 = vmul.f32 %v725, %v755
      %v762 = vmul.f32 %v726, %v755
      %v763 = vmul.f32 %v727, %v755
      %v764 = vmul.f32 %v728, %v755
      %v765 = vmul.f32 %v729, %v755
      %v766 = vmul.f32 %v730, %v755
      %v767 = vmul.f32 %v731, %v755
      %v768 = vmul.f32 %v732, %v755
      %v769 = vmul.f32 %v733, %v755
      %v770 = vmul.f32 %v734, %v755
      %v771 = vmul.f32 %v735, %v755
      %v772 = vmul.f32 %v736, %v755
      %v773 = vmul.f32 %v737, %v755
      %v774 = vmul.f32 %v738, %v755
      %v775 = vmul.f32 %v739, %v755
      %v776 = vmul.f32 %v740, %v755
      %v777 = vmul.f32 %v741, %v755
      %v778 = vmul.f32 %v742, %v755
      %v779 = vmul.f32 %v743, %v755
      %v780 = vmul.f32 %v744, %v755
      %v781 = vmul.f32 %v745, %v755
      %v782 = vmul.f32 %v746, %v755
      %v783 = vmul.f32 %v747, %v755
      %v784 = vmul.f32 %v748, %v755
      %v785 = vmul.f32 %v749, %v755
      %v786 = vmul.f32 %v750, %v755
      %v787 = vmul.f32 %v751, %v755
      %v788 = vld [vmem:[#allocation2 + $0x8] sm:$0xff]
      %v789 = vld [vmem:[#allocation2 + $0x10] sm:$0xff]
      %v790 = vld [vmem:[#allocation2 + $0x28] sm:$0xff]
      %v791 = vld [vmem:[#allocation2 + $0x30] sm:$0xff]
      %v792 = vld [vmem:[#allocation2 + $0x48] sm:$0xff]
      %v793 = vld [vmem:[#allocation2 + $0x50] sm:$0xff]
      %v794 = vld [vmem:[#allocation2 + $0x68] sm:$0xff]
      %v795 = vld [vmem:[#allocation2 + $0x70] sm:$0xff]
      %v796 = vld [vmem:[#allocation2 + $0x88] sm:$0xff]
      %v797 = vld [vmem:[#allocation2 + $0x90] sm:$0xff]
      %v798 = vld [vmem:[#allocation2 + $0xa8] sm:$0xff]
      %v799 = vld [vmem:[#allocation2 + $0xb0] sm:$0xff]
      %v800 = vld [vmem:[#allocation2 + $0xc8] sm:$0xff]
      %v801 = vld [vmem:[#allocation2 + $0xd0] sm:$0xff]
      %v802 = vld [vmem:[#allocation2 + $0xe8] sm:$0xff]
      %v803 = vld [vmem:[#allocation2 + $0xf0] sm:$0xff]
      %v804 = vld [vmem:[#allocation2 + $0x108] sm:$0xff]
      %v805 = vld [vmem:[#allocation2 + $0x110] sm:$0xff]
      %v806 = vld [vmem:[#allocation2 + $0x128] sm:$0xff]
      %v807 = vld [vmem:[#allocation2 + $0x130] sm:$0xff]
      %v808 = vld [vmem:[#allocation2 + $0x148] sm:$0xff]
      %v809 = vld [vmem:[#allocation2 + $0x150] sm:$0xff]
      %v810 = vld [vmem:[#allocation2 + $0x168] sm:$0xff]
      %v811 = vld [vmem:[#allocation2 + $0x170] sm:$0xff]
      %v812 = vld [vmem:[#allocation2 + $0x188] sm:$0xff]
      %v813 = vld [vmem:[#allocation2 + $0x190] sm:$0xff]
      %v814 = vld [vmem:[#allocation2 + $0x1a8] sm:$0xff]
      %v815 = vld [vmem:[#allocation2 + $0x1b0] sm:$0xff]
      %v816 = vld [vmem:[#allocation2 + $0x1c8] sm:$0xff]
      %v817 = vld [vmem:[#allocation2 + $0x1d0] sm:$0xff]
      %v818 = vld [vmem:[#allocation2 + $0x1e8] sm:$0xff]
      %v819 = vld [vmem:[#allocation2 + $0x1f0] sm:$0xff]
      %v820 = vlaneseq
      %v821 = vshrl.u32 %v820, 7
      %v822 = vsub.s32 1, %v821
      %v823 = vrot.slane %v718, %v822
      %v824 = vmul.f32 %v788, %v823
      %v825 = vmul.f32 %v789, %v823
      %v826 = vmul.f32 %v790, %v823
      %v827 = vmul.f32 %v791, %v823
      %v828 = vmul.f32 %v792, %v823
      %v829 = vmul.f32 %v793, %v823
      %v830 = vmul.f32 %v794, %v823
      %v831 = vmul.f32 %v795, %v823
      %v832 = vmul.f32 %v796, %v823
      %v833 = vmul.f32 %v797, %v823
      %v834 = vmul.f32 %v798, %v823
      %v835 = vmul.f32 %v799, %v823
      %v836 = vmul.f32 %v800, %v823
      %v837 = vmul.f32 %v801, %v823
      %v838 = vmul.f32 %v802, %v823
      %v839 = vmul.f32 %v803, %v823
      %v840 = vmul.f32 %v804, %v823
      %v841 = vmul.f32 %v805, %v823
      %v842 = vmul.f32 %v806, %v823
      %v843 = vmul.f32 %v807, %v823
      %v844 = vmul.f32 %v808, %v823
      %v845 = vmul.f32 %v809, %v823
      %v846 = vmul.f32 %v810, %v823
      %v847 = vmul.f32 %v811, %v823
      %v848 = vmul.f32 %v812, %v823
      %v849 = vmul.f32 %v813, %v823
      %v850 = vmul.f32 %v814, %v823
      %v851 = vmul.f32 %v815, %v823
      %v852 = vmul.f32 %v816, %v823
      %v853 = vmul.f32 %v817, %v823
      %v854 = vmul.f32 %v818, %v823
      %v855 = vmul.f32 %v819, %v823
      %v856 = vadd.f32 %v756, %v824
      %v857 = vadd.f32 %v757, %v825
      %v858 = vadd.f32 %v758, %v826
      %v859 = vadd.f32 %v759, %v827
      %v860 = vadd.f32 %v760, %v828
      %v861 = vadd.f32 %v761, %v829
      %v862 = vadd.f32 %v762, %v830
      %v863 = vadd.f32 %v763, %v831
      %v864 = vadd.f32 %v764, %v832
      %v865 = vadd.f32 %v765, %v833
      %v866 = vadd.f32 %v766, %v834
      %v867 = vadd.f32 %v767, %v835
      %v868 = vadd.f32 %v768, %v836
      %v869 = vadd.f32 %v769, %v837
      %v870 = vadd.f32 %v770, %v838
      %v871 = vadd.f32 %v771, %v839
      %v872 = vadd.f32 %v772, %v840
      %v873 = vadd.f32 %v773, %v841
      %v874 = vadd.f32 %v774, %v842
      %v875 = vadd.f32 %v775, %v843
      %v876 = vadd.f32 %v776, %v844
      %v877 = vadd.f32 %v777, %v845
      %v878 = vadd.f32 %v778, %v846
      %v879 = vadd.f32 %v779, %v847
      %v880 = vadd.f32 %v780, %v848
      %v881 = vadd.f32 %v781, %v849
      %v882 = vadd.f32 %v782, %v850
      %v883 = vadd.f32 %v783, %v851
      %v884 = vadd.f32 %v784, %v852
      %v885 = vadd.f32 %v785, %v853
      %v886 = vadd.f32 %v786, %v854
      %v887 = vadd.f32 %v787, %v855
      %v888 = vld [vmem:[#allocation2 + $0x9] sm:$0xff]
      %v889 = vld [vmem:[#allocation2 + $0x11] sm:$0xff]
      %v890 = vld [vmem:[#allocation2 + $0x29] sm:$0xff]
      %v891 = vld [vmem:[#allocation2 + $0x31] sm:$0xff]
      %v892 = vld [vmem:[#allocation2 + $0x49] sm:$0xff]
      %v893 = vld [vmem:[#allocation2 + $0x51] sm:$0xff]
      %v894 = vld [vmem:[#allocation2 + $0x69] sm:$0xff]
      %v895 = vld [vmem:[#allocation2 + $0x71] sm:$0xff]
      %v896 = vld [vmem:[#allocation2 + $0x89] sm:$0xff]
      %v897 = vld [vmem:[#allocation2 + $0x91] sm:$0xff]
      %v898 = vld [vmem:[#allocation2 + $0xa9] sm:$0xff]
      %v899 = vld [vmem:[#allocation2 + $0xb1] sm:$0xff]
      %v900 = vld [vmem:[#allocation2 + $0xc9] sm:$0xff]
      %v901 = vld [vmem:[#allocation2 + $0xd1] sm:$0xff]
      %v902 = vld [vmem:[#allocation2 + $0xe9] sm:$0xff]
      %v903 = vld [vmem:[#allocation2 + $0xf1] sm:$0xff]
      %v904 = vld [vmem:[#allocation2 + $0x109] sm:$0xff]
      %v905 = vld [vmem:[#allocation2 + $0x111] sm:$0xff]
      %v906 = vld [vmem:[#allocation2 + $0x129] sm:$0xff]
      %v907 = vld [vmem:[#allocation2 + $0x131] sm:$0xff]
      %v908 = vld [vmem:[#allocation2 + $0x149] sm:$0xff]
      %v909 = vld [vmem:[#allocation2 + $0x151] sm:$0xff]
      %v910 = vld [vmem:[#allocation2 + $0x169] sm:$0xff]
      %v911 = vld [vmem:[#allocation2 + $0x171] sm:$0xff]
      %v912 = vld [vmem:[#allocation2 + $0x189] sm:$0xff]
      %v913 = vld [vmem:[#allocation2 + $0x191] sm:$0xff]
      %v914 = vld [vmem:[#allocation2 + $0x1a9] sm:$0xff]
      %v915 = vld [vmem:[#allocation2 + $0x1b1] sm:$0xff]
      %v916 = vld [vmem:[#allocation2 + $0x1c9] sm:$0xff]
      %v917 = vld [vmem:[#allocation2 + $0x1d1] sm:$0xff]
      %v918 = vld [vmem:[#allocation2 + $0x1e9] sm:$0xff]
      %v919 = vld [vmem:[#allocation2 + $0x1f1] sm:$0xff]
      %v920 = vlaneseq
      %v921 = vshrl.u32 %v920, 7
      %v922 = vsub.s32 2, %v921
      %v923 = vrot.slane %v718, %v922
      %v924 = vmul.f32 %v888, %v923
      %v925 = vmul.f32 %v889, %v923
      %v926 = vmul.f32 %v890, %v923
      %v927 = vmul.f32 %v891, %v923
      %v928 = vmul.f32 %v892, %v923
      %v929 = vmul.f32 %v893, %v923
      %v930 = vmul.f32 %v894, %v923
      %v931 = vmul.f32 %v895, %v923
      %v932 = vmul.f32 %v896, %v923
      %v933 = vmul.f32 %v897, %v923
      %v934 = vmul.f32 %v898, %v923
      %v935 = vmul.f32 %v899, %v923
      %v936 = vmul.f32 %v900, %v923
      %v937 = vmul.f32 %v901, %v923
      %v938 = vmul.f32 %v902, %v923
      %v939 = vmul.f32 %v903, %v923
      %v940 = vmul.f32 %v904, %v923
      %v941 = vmul.f32 %v905, %v923
      %v942 = vmul.f32 %v906, %v923
      %v943 = vmul.f32 %v907, %v923
      %v944 = vmul.f32 %v908, %v923
      %v945 = vmul.f32 %v909, %v923
      %v946 = vmul.f32 %v910, %v923
      %v947 = vmul.f32 %v911, %v923
      %v948 = vmul.f32 %v912, %v923
      %v949 = vmul.f32 %v913, %v923
      %v950 = vmul.f32 %v914, %v923
      %v951 = vmul.f32 %v915, %v923
      %v952 = vmul.f32 %v916, %v923
      %v953 = vmul.f32 %v917, %v923
      %v954 = vmul.f32 %v918, %v923
      %v955 = vmul.f32 %v919, %v923
      %v956 = vadd.f32 %v856, %v924
      %v957 = vadd.f32 %v857, %v925
      %v958 = vadd.f32 %v858, %v926
      %v959 = vadd.f32 %v859, %v927
      %v960 = vadd.f32 %v860, %v928
      %v961 = vadd.f32 %v861, %v929
      %v962 = vadd.f32 %v862, %v930
      %v963 = vadd.f32 %v863, %v931
      %v964 = vadd.f32 %v864, %v932
      %v965 = vadd.f32 %v865, %v933
      %v966 = vadd.f32 %v866, %v934
      %v967 = vadd.f32 %v867, %v935
      %v968 = vadd.f32 %v868, %v936
      %v969 = vadd.f32 %v869, %v937
      %v970 = vadd.f32 %v870, %v938
      %v971 = vadd.f32 %v871, %v939
      %v972 = vadd.f32 %v872, %v940
      %v973 = vadd.f32 %v873, %v941
      %v974 = vadd.f32 %v874, %v942
      %v975 = vadd.f32 %v875, %v943
      %v976 = vadd.f32 %v876, %v944
      %v977 = vadd.f32 %v877, %v945
      %v978 = vadd.f32 %v878, %v946
      %v979 = vadd.f32 %v879, %v947
      %v980 = vadd.f32 %v880, %v948
      %v981 = vadd.f32 %v881, %v949
      %v982 = vadd.f32 %v882, %v950
      %v983 = vadd.f32 %v883, %v951
      %v984 = vadd.f32 %v884, %v952
      %v985 = vadd.f32 %v885, %v953
      %v986 = vadd.f32 %v886, %v954
      %v987 = vadd.f32 %v887, %v955
      %v988 = vld [vmem:[%s685 + $0x7] sm:$0xff]
      %v989 = vld [vmem:[%s685 + $0xf] sm:$0xff]
      %v990 = vld [vmem:[%s685 + $0x27] sm:$0xff]
      %v991 = vld [vmem:[%s685 + $0x2f] sm:$0xff]
      %v992 = vld [vmem:[%s685 + $0x47] sm:$0xff]
      %v993 = vld [vmem:[%s685 + $0x4f] sm:$0xff]
      %v994 = vld [vmem:[%s685 + $0x67] sm:$0xff]
      %v995 = vld [vmem:[%s685 + $0x6f] sm:$0xff]
      %v996 = vld [vmem:[%s685 + $0x87] sm:$0xff]
      %v997 = vld [vmem:[%s685 + $0x8f] sm:$0xff]
      %v998 = vld [vmem:[%s685 + $0xa7] sm:$0xff]
      %v999 = vld [vmem:[%s685 + $0xaf] sm:$0xff]
      %v1000 = vld [vmem:[%s685 + $0xc7] sm:$0xff]
      %v1001 = vld [vmem:[%s685 + $0xcf] sm:$0xff]
      %v1002 = vld [vmem:[%s685 + $0xe7] sm:$0xff]
      %v1003 = vld [vmem:[%s685 + $0xef] sm:$0xff]
      %v1004 = vld [vmem:[%s685 + $0x107] sm:$0xff]
      %v1005 = vld [vmem:[%s685 + $0x10f] sm:$0xff]
      %v1006 = vld [vmem:[%s685 + $0x127] sm:$0xff]
      %v1007 = vld [vmem:[%s685 + $0x12f] sm:$0xff]
      %v1008 = vld [vmem:[%s685 + $0x147] sm:$0xff]
      %v1009 = vld [vmem:[%s685 + $0x14f] sm:$0xff]
      %v1010 = vld [vmem:[%s685 + $0x167] sm:$0xff]
      %v1011 = vld [vmem:[%s685 + $0x16f] sm:$0xff]
      %v1012 = vld [vmem:[%s685 + $0x187] sm:$0xff]
      %v1013 = vld [vmem:[%s685 + $0x18f] sm:$0xff]
      %v1014 = vld [vmem:[%s685 + $0x1a7] sm:$0xff]
      %v1015 = vld [vmem:[%s685 + $0x1af] sm:$0xff]
      %v1016 = vld [vmem:[%s685 + $0x1c7] sm:$0xff]
      %v1017 = vld [vmem:[%s685 + $0x1cf] sm:$0xff]
      %v1018 = vld [vmem:[%s685 + $0x1e7] sm:$0xff]
      %v1019 = vld [vmem:[%s685 + $0x1ef] sm:$0xff]
      %v1020 = vlaneseq
      %v1021 = vshrl.u32 %v1020, 7
      %v1022 = vsub.s32 3, %v1021
      %v1023 = vrot.slane %v718, %v1022
      %v1024 = vmul.f32 %v988, %v1023
      %v1025 = vmul.f32 %v989, %v1023
      %v1026 = vmul.f32 %v990, %v1023
      %v1027 = vmul.f32 %v991, %v1023
      %v1028 = vmul.f32 %v992, %v1023
      %v1029 = vmul.f32 %v993, %v1023
      %v1030 = vmul.f32 %v994, %v1023
      %v1031 = vmul.f32 %v995, %v1023
      %v1032 = vmul.f32 %v996, %v1023
      %v1033 = vmul.f32 %v997, %v1023
      %v1034 = vmul.f32 %v998, %v1023
      %v1035 = vmul.f32 %v999, %v1023
      %v1036 = vmul.f32 %v1000, %v1023
      %v1037 = vmul.f32 %v1001, %v1023
      %v1038 = vmul.f32 %v1002, %v1023
      %v1039 = vmul.f32 %v1003, %v1023
      %v1040 = vmul.f32 %v1004, %v1023
      %v1041 = vmul.f32 %v1005, %v1023
      %v1042 = vmul.f32 %v1006, %v1023
      %v1043 = vmul.f32 %v1007, %v1023
      %v1044 = vmul.f32 %v1008, %v1023
      %v1045 = vmul.f32 %v1009, %v1023
      %v1046 = vmul.f32 %v1010, %v1023
      %v1047 = vmul.f32 %v1011, %v1023
      %v1048 = vmul.f32 %v1012, %v1023
      %v1049 = vmul.f32 %v1013, %v1023
      %v1050 = vmul.f32 %v1014, %v1023
      %v1051 = vmul.f32 %v1015, %v1023
      %v1052 = vmul.f32 %v1016, %v1023
      %v1053 = vmul.f32 %v1017, %v1023
      %v1054 = vmul.f32 %v1018, %v1023
      %v1055 = vmul.f32 %v1019, %v1023
      %v1056 = vadd.f32 %v956, %v1024
      %v1057 = vadd.f32 %v957, %v1025
      %v1058 = vadd.f32 %v958, %v1026
      %v1059 = vadd.f32 %v959, %v1027
      %v1060 = vadd.f32 %v960, %v1028
      %v1061 = vadd.f32 %v961, %v1029
      %v1062 = vadd.f32 %v962, %v1030
      %v1063 = vadd.f32 %v963, %v1031
      %v1064 = vadd.f32 %v964, %v1032
      %v1065 = vadd.f32 %v965, %v1033
      %v1066 = vadd.f32 %v966, %v1034
      %v1067 = vadd.f32 %v967, %v1035
      %v1068 = vadd.f32 %v968, %v1036
      %v1069 = vadd.f32 %v969, %v1037
      %v1070 = vadd.f32 %v970, %v1038
      %v1071 = vadd.f32 %v971, %v1039
      %v1072 = vadd.f32 %v972, %v1040
      %v1073 = vadd.f32 %v973, %v1041
      %v1074 = vadd.f32 %v974, %v1042
      %v1075 = vadd.f32 %v975, %v1043
      %v1076 = vadd.f32 %v976, %v1044
      %v1077 = vadd.f32 %v977, %v1045
      %v1078 = vadd.f32 %v978, %v1046
      %v1079 = vadd.f32 %v979, %v1047
      %v1080 = vadd.f32 %v980, %v1048
      %v1081 = vadd.f32 %v981, %v1049
      %v1082 = vadd.f32 %v982, %v1050
      %v1083 = vadd.f32 %v983, %v1051
      %v1084 = vadd.f32 %v984, %v1052
      %v1085 = vadd.f32 %v985, %v1053
      %v1086 = vadd.f32 %v986, %v1054
      %v1087 = vadd.f32 %v987, %v1055
      %v1088 = vld [vmem:[%s685 + $0x8] sm:$0xff]
      %v1089 = vld [vmem:[%s685 + $0x10] sm:$0xff]
      %v1090 = vld [vmem:[%s685 + $0x28] sm:$0xff]
      %v1091 = vld [vmem:[%s685 + $0x30] sm:$0xff]
      %v1092 = vld [vmem:[%s685 + $0x48] sm:$0xff]
      %v1093 = vld [vmem:[%s685 + $0x50] sm:$0xff]
      %v1094 = vld [vmem:[%s685 + $0x68] sm:$0xff]
      %v1095 = vld [vmem:[%s685 + $0x70] sm:$0xff]
      %v1096 = vld [vmem:[%s685 + $0x88] sm:$0xff]
      %v1097 = vld [vmem:[%s685 + $0x90] sm:$0xff]
      %v1098 = vld [vmem:[%s685 + $0xa8] sm:$0xff]
      %v1099 = vld [vmem:[%s685 + $0xb0] sm:$0xff]
      %v1100 = vld [vmem:[%s685 + $0xc8] sm:$0xff]
      %v1101 = vld [vmem:[%s685 + $0xd0] sm:$0xff]
      %v1102 = vld [vmem:[%s685 + $0xe8] sm:$0xff]
      %v1103 = vld [vmem:[%s685 + $0xf0] sm:$0xff]
      %v1104 = vld [vmem:[%s685 + $0x108] sm:$0xff]
      %v1105 = vld [vmem:[%s685 + $0x110] sm:$0xff]
      %v1106 = vld [vmem:[%s685 + $0x128] sm:$0xff]
      %v1107 = vld [vmem:[%s685 + $0x130] sm:$0xff]
      %v1108 = vld [vmem:[%s685 + $0x148] sm:$0xff]
      %v1109 = vld [vmem:[%s685 + $0x150] sm:$0xff]
      %v1110 = vld [vmem:[%s685 + $0x168] sm:$0xff]
      %v1111 = vld [vmem:[%s685 + $0x170] sm:$0xff]
      %v1112 = vld [vmem:[%s685 + $0x188] sm:$0xff]
      %v1113 = vld [vmem:[%s685 + $0x190] sm:$0xff]
      %v1114 = vld [vmem:[%s685 + $0x1a8] sm:$0xff]
      %v1115 = vld [vmem:[%s685 + $0x1b0] sm:$0xff]
      %v1116 = vld [vmem:[%s685 + $0x1c8] sm:$0xff]
      %v1117 = vld [vmem:[%s685 + $0x1d0] sm:$0xff]
      %v1118 = vld [vmem:[%s685 + $0x1e8] sm:$0xff]
      %v1119 = vld [vmem:[%s685 + $0x1f0] sm:$0xff]
      %v1120 = vlaneseq
      %v1121 = vshrl.u32 %v1120, 7
      %v1122 = vsub.s32 4, %v1121
      %v1123 = vrot.slane %v718, %v1122
      %v1124 = vmul.f32 %v1088, %v1123
      %v1125 = vmul.f32 %v1089, %v1123
      %v1126 = vmul.f32 %v1090, %v1123
      %v1127 = vmul.f32 %v1091, %v1123
      %v1128 = vmul.f32 %v1092, %v1123
      %v1129 = vmul.f32 %v1093, %v1123
      %v1130 = vmul.f32 %v1094, %v1123
      %v1131 = vmul.f32 %v1095, %v1123
      %v1132 = vmul.f32 %v1096, %v1123
      %v1133 = vmul.f32 %v1097, %v1123
      %v1134 = vmul.f32 %v1098, %v1123
      %v1135 = vmul.f32 %v1099, %v1123
      %v1136 = vmul.f32 %v1100, %v1123
      %v1137 = vmul.f32 %v1101, %v1123
      %v1138 = vmul.f32 %v1102, %v1123
      %v1139 = vmul.f32 %v1103, %v1123
      %v1140 = vmul.f32 %v1104, %v1123
      %v1141 = vmul.f32 %v1105, %v1123
      %v1142 = vmul.f32 %v1106, %v1123
      %v1143 = vmul.f32 %v1107, %v1123
      %v1144 = vmul.f32 %v1108, %v1123
      %v1145 = vmul.f32 %v1109, %v1123
      %v1146 = vmul.f32 %v1110, %v1123
      %v1147 = vmul.f32 %v1111, %v1123
      %v1148 = vmul.f32 %v1112, %v1123
      %v1149 = vmul.f32 %v1113, %v1123
      %v1150 = vmul.f32 %v1114, %v1123
      %v1151 = vmul.f32 %v1115, %v1123
      %v1152 = vmul.f32 %v1116, %v1123
      %v1153 = vmul.f32 %v1117, %v1123
      %v1154 = vmul.f32 %v1118, %v1123
      %v1155 = vmul.f32 %v1119, %v1123
      %v1156 = vadd.f32 %v1056, %v1124
      %v1157 = vadd.f32 %v1057, %v1125
      %v1158 = vadd.f32 %v1058, %v1126
      %v1159 = vadd.f32 %v1059, %v1127
      %v1160 = vadd.f32 %v1060, %v1128
      %v1161 = vadd.f32 %v1061, %v1129
      %v1162 = vadd.f32 %v1062, %v1130
      %v1163 = vadd.f32 %v1063, %v1131
      %v1164 = vadd.f32 %v1064, %v1132
      %v1165 = vadd.f32 %v1065, %v1133
      %v1166 = vadd.f32 %v1066, %v1134
      %v1167 = vadd.f32 %v1067, %v1135
      %v1168 = vadd.f32 %v1068, %v1136
      %v1169 = vadd.f32 %v1069, %v1137
      %v1170 = vadd.f32 %v1070, %v1138
      %v1171 = vadd.f32 %v1071, %v1139
      %v1172 = vadd.f32 %v1072, %v1140
      %v1173 = vadd.f32 %v1073, %v1141
      %v1174 = vadd.f32 %v1074, %v1142
      %v1175 = vadd.f32 %v1075, %v1143
      %v1176 = vadd.f32 %v1076, %v1144
      %v1177 = vadd.f32 %v1077, %v1145
      %v1178 = vadd.f32 %v1078, %v1146
      %v1179 = vadd.f32 %v1079, %v1147
      %v1180 = vadd.f32 %v1080, %v1148
      %v1181 = vadd.f32 %v1081, %v1149
      %v1182 = vadd.f32 %v1082, %v1150
      %v1183 = vadd.f32 %v1083, %v1151
      %v1184 = vadd.f32 %v1084, %v1152
      %v1185 = vadd.f32 %v1085, %v1153
      %v1186 = vadd.f32 %v1086, %v1154
      %v1187 = vadd.f32 %v1087, %v1155
      %v1188 = vld [vmem:[%s685 + $0x9] sm:$0xff]
      %v1189 = vld [vmem:[%s685 + $0x11] sm:$0xff]
      %v1190 = vld [vmem:[%s685 + $0x29] sm:$0xff]
      %v1191 = vld [vmem:[%s685 + $0x31] sm:$0xff]
      %v1192 = vld [vmem:[%s685 + $0x49] sm:$0xff]
      %v1193 = vld [vmem:[%s685 + $0x51] sm:$0xff]
      %v1194 = vld [vmem:[%s685 + $0x69] sm:$0xff]
      %v1195 = vld [vmem:[%s685 + $0x71] sm:$0xff]
      %v1196 = vld [vmem:[%s685 + $0x89] sm:$0xff]
      %v1197 = vld [vmem:[%s685 + $0x91] sm:$0xff]
      %v1198 = vld [vmem:[%s685 + $0xa9] sm:$0xff]
      %v1199 = vld [vmem:[%s685 + $0xb1] sm:$0xff]
      %v1200 = vld [vmem:[%s685 + $0xc9] sm:$0xff]
      %v1201 = vld [vmem:[%s685 + $0xd1] sm:$0xff]
      %v1202 = vld [vmem:[%s685 + $0xe9] sm:$0xff]
      %v1203 = vld [vmem:[%s685 + $0xf1] sm:$0xff]
      %v1204 = vld [vmem:[%s685 + $0x109] sm:$0xff]
      %v1205 = vld [vmem:[%s685 + $0x111] sm:$0xff]
      %v1206 = vld [vmem:[%s685 + $0x129] sm:$0xff]
      %v1207 = vld [vmem:[%s685 + $0x131] sm:$0xff]
      %v1208 = vld [vmem:[%s685 + $0x149] sm:$0xff]
      %v1209 = vld [vmem:[%s685 + $0x151] sm:$0xff]
      %v1210 = vld [vmem:[%s685 + $0x169] sm:$0xff]
      %v1211 = vld [vmem:[%s685 + $0x171] sm:$0xff]
      %v1212 = vld [vmem:[%s685 + $0x189] sm:$0xff]
      %v1213 = vld [vmem:[%s685 + $0x191] sm:$0xff]
      %v1214 = vld [vmem:[%s685 + $0x1a9] sm:$0xff]
      %v1215 = vld [vmem:[%s685 + $0x1b1] sm:$0xff]
      %v1216 = vld [vmem:[%s685 + $0x1c9] sm:$0xff]
      %v1217 = vld [vmem:[%s685 + $0x1d1] sm:$0xff]
      %v1218 = vld [vmem:[%s685 + $0x1e9] sm:$0xff]
      %v1219 = vld [vmem:[%s685 + $0x1f1] sm:$0xff]
      %v1220 = vlaneseq
      %v1221 = vshrl.u32 %v1220, 7
      %v1222 = vsub.s32 5, %v1221
      %v1223 = vrot.slane %v718, %v1222
      %v1224 = vmul.f32 %v1188, %v1223
      %v1225 = vmul.f32 %v1189, %v1223
      %v1226 = vmul.f32 %v1190, %v1223
      %v1227 = vmul.f32 %v1191, %v1223
      %v1228 = vmul.f32 %v1192, %v1223
      %v1229 = vmul.f32 %v1193, %v1223
      %v1230 = vmul.f32 %v1194, %v1223
      %v1231 = vmul.f32 %v1195, %v1223
      %v1232 = vmul.f32 %v1196, %v1223
      %v1233 = vmul.f32 %v1197, %v1223
      %v1234 = vmul.f32 %v1198, %v1223
      %v1235 = vmul.f32 %v1199, %v1223
      %v1236 = vmul.f32 %v1200, %v1223
      %v1237 = vmul.f32 %v1201, %v1223
      %v1238 = vmul.f32 %v1202, %v1223
      %v1239 = vmul.f32 %v1203, %v1223
      %v1240 = vmul.f32 %v1204, %v1223
      %v1241 = vmul.f32 %v1205, %v1223
      %v1242 = vmul.f32 %v1206, %v1223
      %v1243 = vmul.f32 %v1207, %v1223
      %v1244 = vmul.f32 %v1208, %v1223
      %v1245 = vmul.f32 %v1209, %v1223
      %v1246 = vmul.f32 %v1210, %v1223
      %v1247 = vmul.f32 %v1211, %v1223
      %v1248 = vmul.f32 %v1212, %v1223
      %v1249 = vmul.f32 %v1213, %v1223
      %v1250 = vmul.f32 %v1214, %v1223
      %v1251 = vmul.f32 %v1215, %v1223
      %v1252 = vmul.f32 %v1216, %v1223
      %v1253 = vmul.f32 %v1217, %v1223
      %v1254 = vmul.f32 %v1218, %v1223
      %v1255 = vmul.f32 %v1219, %v1223
      %v1256 = vadd.f32 %v1156, %v1224
      %v1257 = vadd.f32 %v1157, %v1225
      %v1258 = vadd.f32 %v1158, %v1226
      %v1259 = vadd.f32 %v1159, %v1227
      %v1260 = vadd.f32 %v1160, %v1228
      %v1261 = vadd.f32 %v1161, %v1229
      %v1262 = vadd.f32 %v1162, %v1230
      %v1263 = vadd.f32 %v1163, %v1231
      %v1264 = vadd.f32 %v1164, %v1232
      %v1265 = vadd.f32 %v1165, %v1233
      %v1266 = vadd.f32 %v1166, %v1234
      %v1267 = vadd.f32 %v1167, %v1235
      %v1268 = vadd.f32 %v1168, %v1236
      %v1269 = vadd.f32 %v1169, %v1237
      %v1270 = vadd.f32 %v1170, %v1238
      %v1271 = vadd.f32 %v1171, %v1239
      %v1272 = vadd.f32 %v1172, %v1240
      %v1273 = vadd.f32 %v1173, %v1241
      %v1274 = vadd.f32 %v1174, %v1242
      %v1275 = vadd.f32 %v1175, %v1243
      %v1276 = vadd.f32 %v1176, %v1244
      %v1277 = vadd.f32 %v1177, %v1245
      %v1278 = vadd.f32 %v1178, %v1246
      %v1279 = vadd.f32 %v1179, %v1247
      %v1280 = vadd.f32 %v1180, %v1248
      %v1281 = vadd.f32 %v1181, %v1249
      %v1282 = vadd.f32 %v1182, %v1250
      %v1283 = vadd.f32 %v1183, %v1251
      %v1284 = vadd.f32 %v1184, %v1252
      %v1285 = vadd.f32 %v1185, %v1253
      %v1286 = vadd.f32 %v1186, %v1254
      %v1287 = vadd.f32 %v1187, %v1255
      %s1288 = scalar_lea.vmem [#allocation2], 64
      %v1289 = vld [vmem:[%s1288 + $0x7] sm:$0xff]
      %v1290 = vld [vmem:[%s1288 + $0xf] sm:$0xff]
      %v1291 = vld [vmem:[%s1288 + $0x27] sm:$0xff]
      %v1292 = vld [vmem:[%s1288 + $0x2f] sm:$0xff]
      %v1293 = vld [vmem:[%s1288 + $0x47] sm:$0xff]
      %v1294 = vld [vmem:[%s1288 + $0x4f] sm:$0xff]
      %v1295 = vld [vmem:[%s1288 + $0x67] sm:$0xff]
      %v1296 = vld [vmem:[%s1288 + $0x6f] sm:$0xff]
      %v1297 = vld [vmem:[%s1288 + $0x87] sm:$0xff]
      %v1298 = vld [vmem:[%s1288 + $0x8f] sm:$0xff]
      %v1299 = vld [vmem:[%s1288 + $0xa7] sm:$0xff]
      %v1300 = vld [vmem:[%s1288 + $0xaf] sm:$0xff]
      %v1301 = vld [vmem:[%s1288 + $0xc7] sm:$0xff]
      %v1302 = vld [vmem:[%s1288 + $0xcf] sm:$0xff]
      %v1303 = vld [vmem:[%s1288 + $0xe7] sm:$0xff]
      %v1304 = vld [vmem:[%s1288 + $0xef] sm:$0xff]
      %v1305 = vld [vmem:[%s1288 + $0x107] sm:$0xff]
      %v1306 = vld [vmem:[%s1288 + $0x10f] sm:$0xff]
      %v1307 = vld [vmem:[%s1288 + $0x127] sm:$0xff]
      %v1308 = vld [vmem:[%s1288 + $0x12f] sm:$0xff]
      %v1309 = vld [vmem:[%s1288 + $0x147] sm:$0xff]
      %v1310 = vld [vmem:[%s1288 + $0x14f] sm:$0xff]
      %v1311 = vld [vmem:[%s1288 + $0x167] sm:$0xff]
      %v1312 = vld [vmem:[%s1288 + $0x16f] sm:$0xff]
      %v1313 = vld [vmem:[%s1288 + $0x187] sm:$0xff]
      %v1314 = vld [vmem:[%s1288 + $0x18f] sm:$0xff]
      %v1315 = vld [vmem:[%s1288 + $0x1a7] sm:$0xff]
      %v1316 = vld [vmem:[%s1288 + $0x1af] sm:$0xff]
      %v1317 = vld [vmem:[%s1288 + $0x1c7] sm:$0xff]
      %v1318 = vld [vmem:[%s1288 + $0x1cf] sm:$0xff]
      %v1319 = vld [vmem:[%s1288 + $0x1e7] sm:$0xff]
      %v1320 = vld [vmem:[%s1288 + $0x1ef] sm:$0xff]
      %v1321 = vlaneseq
      %v1322 = vshrl.u32 %v1321, 7
      %v1323 = vsub.s32 6, %v1322
      %v1324 = vrot.slane %v718, %v1323
      %v1325 = vmul.f32 %v1289, %v1324
      %v1326 = vmul.f32 %v1290, %v1324
      %v1327 = vmul.f32 %v1291, %v1324
      %v1328 = vmul.f32 %v1292, %v1324
      %v1329 = vmul.f32 %v1293, %v1324
      %v1330 = vmul.f32 %v1294, %v1324
      %v1331 = vmul.f32 %v1295, %v1324
      %v1332 = vmul.f32 %v1296, %v1324
      %v1333 = vmul.f32 %v1297, %v1324
      %v1334 = vmul.f32 %v1298, %v1324
      %v1335 = vmul.f32 %v1299, %v1324
      %v1336 = vmul.f32 %v1300, %v1324
      %v1337 = vmul.f32 %v1301, %v1324
      %v1338 = vmul.f32 %v1302, %v1324
      %v1339 = vmul.f32 %v1303, %v1324
      %v1340 = vmul.f32 %v1304, %v1324
      %v1341 = vmul.f32 %v1305, %v1324
      %v1342 = vmul.f32 %v1306, %v1324
      %v1343 = vmul.f32 %v1307, %v1324
      %v1344 = vmul.f32 %v1308, %v1324
      %v1345 = vmul.f32 %v1309, %v1324
      %v1346 = vmul.f32 %v1310, %v1324
      %v1347 = vmul.f32 %v1311, %v1324
      %v1348 = vmul.f32 %v1312, %v1324
      %v1349 = vmul.f32 %v1313, %v1324
      %v1350 = vmul.f32 %v1314, %v1324
      %v1351 = vmul.f32 %v1315, %v1324
      %v1352 = vmul.f32 %v1316, %v1324
      %v1353 = vmul.f32 %v1317, %v1324
      %v1354 = vmul.f32 %v1318, %v1324
      %v1355 = vmul.f32 %v1319, %v1324
      %v1356 = vmul.f32 %v1320, %v1324
      %v1357 = vadd.f32 %v1256, %v1325
      %v1358 = vadd.f32 %v1257, %v1326
      %v1359 = vadd.f32 %v1258, %v1327
      %v1360 = vadd.f32 %v1259, %v1328
      %v1361 = vadd.f32 %v1260, %v1329
      %v1362 = vadd.f32 %v1261, %v1330
      %v1363 = vadd.f32 %v1262, %v1331
      %v1364 = vadd.f32 %v1263, %v1332
      %v1365 = vadd.f32 %v1264, %v1333
      %v1366 = vadd.f32 %v1265, %v1334
      %v1367 = vadd.f32 %v1266, %v1335
      %v1368 = vadd.f32 %v1267, %v1336
      %v1369 = vadd.f32 %v1268, %v1337
      %v1370 = vadd.f32 %v1269, %v1338
      %v1371 = vadd.f32 %v1270, %v1339
      %v1372 = vadd.f32 %v1271, %v1340
      %v1373 = vadd.f32 %v1272, %v1341
      %v1374 = vadd.f32 %v1273, %v1342
      %v1375 = vadd.f32 %v1274, %v1343
      %v1376 = vadd.f32 %v1275, %v1344
      %v1377 = vadd.f32 %v1276, %v1345
      %v1378 = vadd.f32 %v1277, %v1346
      %v1379 = vadd.f32 %v1278, %v1347
      %v1380 = vadd.f32 %v1279, %v1348
      %v1381 = vadd.f32 %v1280, %v1349
      %v1382 = vadd.f32 %v1281, %v1350
      %v1383 = vadd.f32 %v1282, %v1351
      %v1384 = vadd.f32 %v1283, %v1352
      %v1385 = vadd.f32 %v1284, %v1353
      %v1386 = vadd.f32 %v1285, %v1354
      %v1387 = vadd.f32 %v1286, %v1355
      %v1388 = vadd.f32 %v1287, %v1356
      %v1389 = vld [vmem:[%s1288 + $0x8] sm:$0xff]
      %v1390 = vld [vmem:[%s1288 + $0x10] sm:$0xff]
      %v1391 = vld [vmem:[%s1288 + $0x28] sm:$0xff]
      %v1392 = vld [vmem:[%s1288 + $0x30] sm:$0xff]
      %v1393 = vld [vmem:[%s1288 + $0x48] sm:$0xff]
      %v1394 = vld [vmem:[%s1288 + $0x50] sm:$0xff]
      %v1395 = vld [vmem:[%s1288 + $0x68] sm:$0xff]
      %v1396 = vld [vmem:[%s1288 + $0x70] sm:$0xff]
      %v1397 = vld [vmem:[%s1288 + $0x88] sm:$0xff]
      %v1398 = vld [vmem:[%s1288 + $0x90] sm:$0xff]
      %v1399 = vld [vmem:[%s1288 + $0xa8] sm:$0xff]
      %v1400 = vld [vmem:[%s1288 + $0xb0] sm:$0xff]
      %v1401 = vld [vmem:[%s1288 + $0xc8] sm:$0xff]
      %v1402 = vld [vmem:[%s1288 + $0xd0] sm:$0xff]
      %v1403 = vld [vmem:[%s1288 + $0xe8] sm:$0xff]
      %v1404 = vld [vmem:[%s1288 + $0xf0] sm:$0xff]
      %v1405 = vld [vmem:[%s1288 + $0x108] sm:$0xff]
      %v1406 = vld [vmem:[%s1288 + $0x110] sm:$0xff]
      %v1407 = vld [vmem:[%s1288 + $0x128] sm:$0xff]
      %v1408 = vld [vmem:[%s1288 + $0x130] sm:$0xff]
      %v1409 = vld [vmem:[%s1288 + $0x148] sm:$0xff]
      %v1410 = vld [vmem:[%s1288 + $0x150] sm:$0xff]
      %v1411 = vld [vmem:[%s1288 + $0x168] sm:$0xff]
      %v1412 = vld [vmem:[%s1288 + $0x170] sm:$0xff]
      %v1413 = vld [vmem:[%s1288 + $0x188] sm:$0xff]
      %v1414 = vld [vmem:[%s1288 + $0x190] sm:$0xff]
      %v1415 = vld [vmem:[%s1288 + $0x1a8] sm:$0xff]
      %v1416 = vld [vmem:[%s1288 + $0x1b0] sm:$0xff]
      %v1417 = vld [vmem:[%s1288 + $0x1c8] sm:$0xff]
      %v1418 = vld [vmem:[%s1288 + $0x1d0] sm:$0xff]
      %v1419 = vld [vmem:[%s1288 + $0x1e8] sm:$0xff]
      %v1420 = vld [vmem:[%s1288 + $0x1f0] sm:$0xff]
      %v1421 = vlaneseq
      %v1422 = vshrl.u32 %v1421, 7
      %v1423 = vsub.s32 7, %v1422
      %v1424 = vrot.slane %v718, %v1423
      %v1425 = vmul.f32 %v1389, %v1424
      %v1426 = vmul.f32 %v1390, %v1424
      %v1427 = vmul.f32 %v1391, %v1424
      %v1428 = vmul.f32 %v1392, %v1424
      %v1429 = vmul.f32 %v1393, %v1424
      %v1430 = vmul.f32 %v1394, %v1424
      %v1431 = vmul.f32 %v1395, %v1424
      %v1432 = vmul.f32 %v1396, %v1424
      %v1433 = vmul.f32 %v1397, %v1424
      %v1434 = vmul.f32 %v1398, %v1424
      %v1435 = vmul.f32 %v1399, %v1424
      %v1436 = vmul.f32 %v1400, %v1424
      %v1437 = vmul.f32 %v1401, %v1424
      %v1438 = vmul.f32 %v1402, %v1424
      %v1439 = vmul.f32 %v1403, %v1424
      %v1440 = vmul.f32 %v1404, %v1424
      %v1441 = vmul.f32 %v1405, %v1424
      %v1442 = vmul.f32 %v1406, %v1424
      %v1443 = vmul.f32 %v1407, %v1424
      %v1444 = vmul.f32 %v1408, %v1424
      %v1445 = vmul.f32 %v1409, %v1424
      %v1446 = vmul.f32 %v1410, %v1424
      %v1447 = vmul.f32 %v1411, %v1424
      %v1448 = vmul.f32 %v1412, %v1424
      %v1449 = vmul.f32 %v1413, %v1424
      %v1450 = vmul.f32 %v1414, %v1424
      %v1451 = vmul.f32 %v1415, %v1424
      %v1452 = vmul.f32 %v1416, %v1424
      %v1453 = vmul.f32 %v1417, %v1424
      %v1454 = vmul.f32 %v1418, %v1424
      %v1455 = vmul.f32 %v1419, %v1424
      %v1456 = vmul.f32 %v1420, %v1424
      %v1457 = vadd.f32 %v1357, %v1425
      %v1458 = vadd.f32 %v1358, %v1426
      %v1459 = vadd.f32 %v1359, %v1427
      %v1460 = vadd.f32 %v1360, %v1428
      %v1461 = vadd.f32 %v1361, %v1429
      %v1462 = vadd.f32 %v1362, %v1430
      %v1463 = vadd.f32 %v1363, %v1431
      %v1464 = vadd.f32 %v1364, %v1432
      %v1465 = vadd.f32 %v1365, %v1433
      %v1466 = vadd.f32 %v1366, %v1434
      %v1467 = vadd.f32 %v1367, %v1435
      %v1468 = vadd.f32 %v1368, %v1436
      %v1469 = vadd.f32 %v1369, %v1437
      %v1470 = vadd.f32 %v1370, %v1438
      %v1471 = vadd.f32 %v1371, %v1439
      %v1472 = vadd.f32 %v1372, %v1440
      %v1473 = vadd.f32 %v1373, %v1441
      %v1474 = vadd.f32 %v1374, %v1442
      %v1475 = vadd.f32 %v1375, %v1443
      %v1476 = vadd.f32 %v1376, %v1444
      %v1477 = vadd.f32 %v1377, %v1445
      %v1478 = vadd.f32 %v1378, %v1446
      %v1479 = vadd.f32 %v1379, %v1447
      %v1480 = vadd.f32 %v1380, %v1448
      %v1481 = vadd.f32 %v1381, %v1449
      %v1482 = vadd.f32 %v1382, %v1450
      %v1483 = vadd.f32 %v1383, %v1451
      %v1484 = vadd.f32 %v1384, %v1452
      %v1485 = vadd.f32 %v1385, %v1453
      %v1486 = vadd.f32 %v1386, %v1454
      %v1487 = vadd.f32 %v1387, %v1455
      %v1488 = vadd.f32 %v1388, %v1456
      %v1489 = vld [vmem:[%s1288 + $0x9] sm:$0xff]
      %v1490 = vld [vmem:[%s1288 + $0x11] sm:$0xff]
      %v1491 = vld [vmem:[%s1288 + $0x29] sm:$0xff]
      %v1492 = vld [vmem:[%s1288 + $0x31] sm:$0xff]
      %v1493 = vld [vmem:[%s1288 + $0x49] sm:$0xff]
      %v1494 = vld [vmem:[%s1288 + $0x51] sm:$0xff]
      %v1495 = vld [vmem:[%s1288 + $0x69] sm:$0xff]
      %v1496 = vld [vmem:[%s1288 + $0x71] sm:$0xff]
      %v1497 = vld [vmem:[%s1288 + $0x89] sm:$0xff]
      %v1498 = vld [vmem:[%s1288 + $0x91] sm:$0xff]
      %v1499 = vld [vmem:[%s1288 + $0xa9] sm:$0xff]
      %v1500 = vld [vmem:[%s1288 + $0xb1] sm:$0xff]
      %v1501 = vld [vmem:[%s1288 + $0xc9] sm:$0xff]
      %v1502 = vld [vmem:[%s1288 + $0xd1] sm:$0xff]
      %v1503 = vld [vmem:[%s1288 + $0xe9] sm:$0xff]
      %v1504 = vld [vmem:[%s1288 + $0xf1] sm:$0xff]
      %v1505 = vld [vmem:[%s1288 + $0x109] sm:$0xff]
      %v1506 = vld [vmem:[%s1288 + $0x111] sm:$0xff]
      %v1507 = vld [vmem:[%s1288 + $0x129] sm:$0xff]
      %v1508 = vld [vmem:[%s1288 + $0x131] sm:$0xff]
      %v1509 = vld [vmem:[%s1288 + $0x149] sm:$0xff]
      %v1510 = vld [vmem:[%s1288 + $0x151] sm:$0xff]
      %v1511 = vld [vmem:[%s1288 + $0x169] sm:$0xff]
      %v1512 = vld [vmem:[%s1288 + $0x171] sm:$0xff]
      %v1513 = vld [vmem:[%s1288 + $0x189] sm:$0xff]
      %v1514 = vld [vmem:[%s1288 + $0x191] sm:$0xff]
      %v1515 = vld [vmem:[%s1288 + $0x1a9] sm:$0xff]
      %v1516 = vld [vmem:[%s1288 + $0x1b1] sm:$0xff]
      %v1517 = vld [vmem:[%s1288 + $0x1c9] sm:$0xff]
      %v1518 = vld [vmem:[%s1288 + $0x1d1] sm:$0xff]
      %v1519 = vld [vmem:[%s1288 + $0x1e9] sm:$0xff]
      %v1520 = vld [vmem:[%s1288 + $0x1f1] sm:$0xff]
      %v1521 = vlaneseq
      %v1522 = vshrl.u32 %v1521, 7
      %v1523 = vsub.s32 0, %v1522
      %v1524 = vrot.slane %v719, %v1523
      %v1525 = vmul.f32 %v1489, %v1524
      %v1526 = vmul.f32 %v1490, %v1524
      %v1527 = vmul.f32 %v1491, %v1524
      %v1528 = vmul.f32 %v1492, %v1524
      %v1529 = vmul.f32 %v1493, %v1524
      %v1530 = vmul.f32 %v1494, %v1524
      %v1531 = vmul.f32 %v1495, %v1524
      %v1532 = vmul.f32 %v1496, %v1524
      %v1533 = vmul.f32 %v1497, %v1524
      %v1534 = vmul.f32 %v1498, %v1524
      %v1535 = vmul.f32 %v1499, %v1524
      %v1536 = vmul.f32 %v1500, %v1524
      %v1537 = vmul.f32 %v1501, %v1524
      %v1538 = vmul.f32 %v1502, %v1524
      %v1539 = vmul.f32 %v1503, %v1524
      %v1540 = vmul.f32 %v1504, %v1524
      %v1541 = vmul.f32 %v1505, %v1524
      %v1542 = vmul.f32 %v1506, %v1524
      %v1543 = vmul.f32 %v1507, %v1524
      %v1544 = vmul.f32 %v1508, %v1524
      %v1545 = vmul.f32 %v1509, %v1524
      %v1546 = vmul.f32 %v1510, %v1524
      %v1547 = vmul.f32 %v1511, %v1524
      %v1548 = vmul.f32 %v1512, %v1524
      %v1549 = vmul.f32 %v1513, %v1524
      %v1550 = vmul.f32 %v1514, %v1524
      %v1551 = vmul.f32 %v1515, %v1524
      %v1552 = vmul.f32 %v1516, %v1524
      %v1553 = vmul.f32 %v1517, %v1524
      %v1554 = vmul.f32 %v1518, %v1524
      %v1555 = vmul.f32 %v1519, %v1524
      %v1556 = vmul.f32 %v1520, %v1524
      %v1557 = vadd.f32 %v1457, %v1525
      %v1558 = vadd.f32 %v1458, %v1526
      %v1559 = vadd.f32 %v1459, %v1527
      %v1560 = vadd.f32 %v1460, %v1528
      %v1561 = vadd.f32 %v1461, %v1529
      %v1562 = vadd.f32 %v1462, %v1530
      %v1563 = vadd.f32 %v1463, %v1531
      %v1564 = vadd.f32 %v1464, %v1532
      %v1565 = vadd.f32 %v1465, %v1533
      %v1566 = vadd.f32 %v1466, %v1534
      %v1567 = vadd.f32 %v1467, %v1535
      %v1568 = vadd.f32 %v1468, %v1536
      %v1569 = vadd.f32 %v1469, %v1537
      %v1570 = vadd.f32 %v1470, %v1538
      %v1571 = vadd.f32 %v1471, %v1539
      %v1572 = vadd.f32 %v1472, %v1540
      %v1573 = vadd.f32 %v1473, %v1541
      %v1574 = vadd.f32 %v1474, %v1542
      %v1575 = vadd.f32 %v1475, %v1543
      %v1576 = vadd.f32 %v1476, %v1544
      %v1577 = vadd.f32 %v1477, %v1545
      %v1578 = vadd.f32 %v1478, %v1546
      %v1579 = vadd.f32 %v1479, %v1547
      %v1580 = vadd.f32 %v1480, %v1548
      %v1581 = vadd.f32 %v1481, %v1549
      %v1582 = vadd.f32 %v1482, %v1550
      %v1583 = vadd.f32 %v1483, %v1551
      %v1584 = vadd.f32 %v1484, %v1552
      %v1585 = vadd.f32 %v1485, %v1553
      %v1586 = vadd.f32 %v1486, %v1554
      %v1587 = vadd.f32 %v1487, %v1555
      %v1588 = vadd.f32 %v1488, %v1556
      %v1589 = vld [vmem:[%s4] sm:$0x1]
      %v1591 = vlaneseq
      %v1592 = vshrl.u32 %v1591, 7
      %v1593 = vsub.s32 0, %v1592
      %v1594 = vrot.slane %v1589, %v1593
      %v1596 = vadd.f32 %v1557, %v1594
      %v1597 = vadd.f32 %v1558, %v1594
      %v1598 = vadd.f32 %v1559, %v1594
      %v1599 = vadd.f32 %v1560, %v1594
      %v1600 = vadd.f32 %v1561, %v1594
      %v1601 = vadd.f32 %v1562, %v1594
      %v1602 = vadd.f32 %v1563, %v1594
      %v1603 = vadd.f32 %v1564, %v1594
      %v1604 = vadd.f32 %v1565, %v1594
      %v1605 = vadd.f32 %v1566, %v1594
      %v1606 = vadd.f32 %v1567, %v1594
      %v1607 = vadd.f32 %v1568, %v1594
      %v1608 = vadd.f32 %v1569, %v1594
      %v1609 = vadd.f32 %v1570, %v1594
      %v1610 = vadd.f32 %v1571, %v1594
      %v1611 = vadd.f32 %v1572, %v1594
      %v1612 = vadd.f32 %v1573, %v1594
      %v1613 = vadd.f32 %v1574, %v1594
      %v1614 = vadd.f32 %v1575, %v1594
      %v1615 = vadd.f32 %v1576, %v1594
      %v1616 = vadd.f32 %v1577, %v1594
      %v1617 = vadd.f32 %v1578, %v1594
      %v1618 = vadd.f32 %v1579, %v1594
      %v1619 = vadd.f32 %v1580, %v1594
      %v1620 = vadd.f32 %v1581, %v1594
      %v1621 = vadd.f32 %v1582, %v1594
      %v1622 = vadd.f32 %v1583, %v1594
      %v1623 = vadd.f32 %v1584, %v1594
      %v1624 = vadd.f32 %v1585, %v1594
      %v1625 = vadd.f32 %v1586, %v1594
      %v1626 = vadd.f32 %v1587, %v1594
      %v1627 = vadd.f32 %v1588, %v1594
      %v1628 = vmax.f32 %v1596, 0.0
      %v1629 = vmax.f32 %v1597, 0.0
      %v1630 = vmax.f32 %v1598, 0.0
      %v1631 = vmax.f32 %v1599, 0.0
      %v1632 = vmax.f32 %v1600, 0.0
      %v1633 = vmax.f32 %v1601, 0.0
      %v1634 = vmax.f32 %v1602, 0.0
      %v1635 = vmax.f32 %v1603, 0.0
      %v1636 = vmax.f32 %v1604, 0.0
      %v1637 = vmax.f32 %v1605, 0.0
      %v1638 = vmax.f32 %v1606, 0.0
      %v1639 = vmax.f32 %v1607, 0.0
      %v1640 = vmax.f32 %v1608, 0.0
      %v1641 = vmax.f32 %v1609, 0.0
      %v1642 = vmax.f32 %v1610, 0.0
      %v1643 = vmax.f32 %v1611, 0.0
      %v1644 = vmax.f32 %v1612, 0.0
      %v1645 = vmax.f32 %v1613, 0.0
      %v1646 = vmax.f32 %v1614, 0.0
      %v1647 = vmax.f32 %v1615, 0.0
      %v1648 = vmax.f32 %v1616, 0.0
      %v1649 = vmax.f32 %v1617, 0.0
      %v1650 = vmax.f32 %v1618, 0.0
      %v1651 = vmax.f32 %v1619, 0.0
      %v1652 = vmax.f32 %v1620, 0.0
      %v1653 = vmax.f32 %v1621, 0.0
      %v1654 = vmax.f32 %v1622, 0.0
      %v1655 = vmax.f32 %v1623, 0.0
      %v1656 = vmax.f32 %v1624, 0.0
      %v1657 = vmax.f32 %v1625, 0.0
      %v1658 = vmax.f32 %v1626, 0.0
      %v1659 = vmax.f32 %v1627, 0.0
      %v1660 = vmin.f32 %v1628, 6.0
      %v1661 = vmin.f32 %v1629, 6.0
      %v1662 = vmin.f32 %v1630, 6.0
      %v1663 = vmin.f32 %v1631, 6.0
      %v1664 = vmin.f32 %v1632, 6.0
      %v1665 = vmin.f32 %v1633, 6.0
      %v1666 = vmin.f32 %v1634, 6.0
      %v1667 = vmin.f32 %v1635, 6.0
      %v1668 = vmin.f32 %v1636, 6.0
      %v1669 = vmin.f32 %v1637, 6.0
      %v1670 = vmin.f32 %v1638, 6.0
      %v1671 = vmin.f32 %v1639, 6.0
      %v1672 = vmin.f32 %v1640, 6.0
      %v1673 = vmin.f32 %v1641, 6.0
      %v1674 = vmin.f32 %v1642, 6.0
      %v1675 = vmin.f32 %v1643, 6.0
      %v1676 = vmin.f32 %v1644, 6.0
      %v1677 = vmin.f32 %v1645, 6.0
      %v1678 = vmin.f32 %v1646, 6.0
      %v1679 = vmin.f32 %v1647, 6.0
      %v1680 = vmin.f32 %v1648, 6.0
      %v1681 = vmin.f32 %v1649, 6.0
      %v1682 = vmin.f32 %v1650, 6.0
      %v1683 = vmin.f32 %v1651, 6.0
      %v1684 = vmin.f32 %v1652, 6.0
      %v1685 = vmin.f32 %v1653, 6.0
      %v1686 = vmin.f32 %v1654, 6.0
      %v1687 = vmin.f32 %v1655, 6.0
      %v1688 = vmin.f32 %v1656, 6.0
      %v1689 = vmin.f32 %v1657, 6.0
      %v1690 = vmin.f32 %v1658, 6.0
      %v1691 = vmin.f32 %v1659, 6.0
      %v1692 = vpack.c.bf16 %v1661, %v1660
      %v1693 = vpack.c.bf16 %v1663, %v1662
      %v1694 = vpack.c.bf16 %v1665, %v1664
      %v1695 = vpack.c.bf16 %v1667, %v1666
      %v1696 = vpack.c.bf16 %v1669, %v1668
      %v1697 = vpack.c.bf16 %v1671, %v1670
      %v1698 = vpack.c.bf16 %v1673, %v1672
      %v1699 = vpack.c.bf16 %v1675, %v1674
      %v1700 = vpack.c.bf16 %v1677, %v1676
      %v1701 = vpack.c.bf16 %v1679, %v1678
      %v1702 = vpack.c.bf16 %v1681, %v1680
      %v1703 = vpack.c.bf16 %v1683, %v1682
      %v1704 = vpack.c.bf16 %v1685, %v1684
      %v1705 = vpack.c.bf16 %v1687, %v1686
      %v1706 = vpack.c.bf16 %v1689, %v1688
      %v1707 = vpack.c.bf16 %v1691, %v1690
      %v1708 = vld [vmem:[%s5] sm:$0xff]
      %v1709 = vld [vmem:[%s5 + $0x8] sm:$0xff]
      %v1710 = vld [vmem:[%s5 + $0x10] sm:$0xff]
      %v1711 = vld [vmem:[%s5 + $0x18] sm:$0xff]
      %v1712 = vld [vmem:[%s5 + $0x20] sm:$0xff]
      %v1713 = vld [vmem:[%s5 + $0x28] sm:$0xff]
      %v1714 = vld [vmem:[%s5 + $0x30] sm:$0xff]
      %v1715 = vld [vmem:[%s5 + $0x38] sm:$0xff]
      %v1716 = vld [vmem:[%s5 + $0x40] sm:$0xff]
      %v1717 = vld [vmem:[%s5 + $0x48] sm:$0xff]
      %v1718 = vld [vmem:[%s5 + $0x50] sm:$0xff]
      %v1719 = vld [vmem:[%s5 + $0x58] sm:$0xff]
      %v1720 = vpack.c.bf16 %v1709, %v1708
      %v1721 = vpack.c.bf16 %v1711, %v1710
      %v1722 = vpack.c.bf16 %v1713, %v1712
      %v1723 = vpack.c.bf16 %v1715, %v1714
      %v1724 = vpack.c.bf16 %v1717, %v1716
      %v1725 = vpack.c.bf16 %v1719, %v1718
      %v1726 = vld [vmem:[%s6] sm:$0x1]
      %v1728 = vlaneseq
      %v1729 = vshrl.u32 %v1728, 7
      %v1730 = vsub.s32 0, %v1729
      %v1731 = vrot.slane %v1726, %v1730
      %v1734 = vsel %vm612, %v1692, 0
      %v1737 = vsel %vm612, %v1693, 0
      %v1740 = vsel %vm612, %v1694, 0
      %v1743 = vsel %vm612, %v1695, 0
      %v1746 = vsel %vm612, %v1696, 0
      %v1749 = vsel %vm612, %v1697, 0
      %v1752 = vsel %vm612, %v1698, 0
      %v1755 = vsel %vm612, %v1699, 0
      %v1758 = vsel %vm612, %v1700, 0
      %v1761 = vsel %vm612, %v1701, 0
      %v1764 = vsel %vm612, %v1702, 0
      %v1767 = vsel %vm612, %v1703, 0
      %v1770 = vsel %vm612, %v1704, 0
      %v1773 = vsel %vm612, %v1705, 0
      %v1776 = vsel %vm612, %v1706, 0
      %v1779 = vsel %vm612, %v1707, 0
      %1781 = vmatprep.subr.bf16.mxu0 0
      %1782 = vmatpush1.bf16.msra.mxu0 0
      %1783 = vmatprep.subr.bf16.mxu0 0
      %1784 = vmatpush1.bf16.msra.mxu0 0
      %1785 = vmatprep.subr.bf16.mxu0 0
      %1786 = vmatpush1.bf16.msra.mxu0 %v1725
      %1787 = vmatprep.subr.bf16.mxu0 0
      %1788 = vmatpush1.bf16.msra.mxu0 %v1724
      %1789 = vmatprep.subr.bf16.mxu0 0
      %1790 = vmatpush1.bf16.msra.mxu0 %v1723
      %1791 = vmatprep.subr.bf16.mxu0 0
      %1792 = vmatpush1.bf16.msra.mxu0 %v1722
      %1793 = vmatprep.subr.bf16.mxu0 0
      %1794 = vmatpush1.bf16.msra.mxu0 %v1721
      %1795 = vmatprep.subr.bf16.mxu0 0
      %1796 = vmatpush1.bf16.msra.mxu0 %v1720
      %1797 = vmatprep.subr.bf16.mxu0 0
      %1798 = vmatpush2.bf16.msra.mxu0 0
      %1799 = vmatprep.subr.bf16.mxu0 0
      %1800 = vmatpush2.bf16.msra.mxu0 0
      %1801 = vmatprep.subr.bf16.mxu0 0
      %1802 = vmatpush2.bf16.msra.mxu0 0
      %1803 = vmatprep.subr.bf16.mxu0 0
      %1804 = vmatpush2.bf16.msra.mxu0 0
      %1805 = vmatprep.subr.bf16.mxu0 0
      %1806 = vmatpush2.bf16.msra.mxu0 0
      %1807 = vmatprep.subr.bf16.mxu0 0
      %1808 = vmatpush2.bf16.msra.mxu0 0
      %1809 = vmatprep.subr.bf16.mxu0 0
      %1810 = vmatpush2.bf16.msra.mxu0 0
      %1811 = vmatprep.subr.bf16.mxu0 0
      %1812 = vmatpush2.bf16.msra.mxu0 0
      %1813 = vmatprep.mubr.bf16.mxu0 0
      %1814 = vmatmul.mubr.bf16.gmra.mxu0 %v1734
      %v1815 = vpop.f32.mrf.mxu0
      %v1816 = vadd.f32 %v1731, %v1815
      %v1817 = vpop.f32.mrf.mxu0
      %v1818 = vpop.f32.mrf.mxu0
      %v1819 = vadd.f32 %v1731, %v1818
      %v1820 = vpop.f32.mrf.mxu0
      %1821 = vmatprep.mubr.bf16.mxu0 0
      %1822 = vmatmul.mubr.bf16.gmra.mxu0 %v1737
      %v1823 = vpop.f32.mrf.mxu0
      %v1824 = vadd.f32 %v1731, %v1823
      %v1825 = vpop.f32.mrf.mxu0
      %v1826 = vpop.f32.mrf.mxu0
      %v1827 = vadd.f32 %v1731, %v1826
      %v1828 = vpop.f32.mrf.mxu0
      %1829 = vmatprep.mubr.bf16.mxu0 0
      %1830 = vmatmul.mubr.bf16.gmra.mxu0 %v1740
      %v1831 = vpop.f32.mrf.mxu0
      %v1832 = vadd.f32 %v1731, %v1831
      %v1833 = vpop.f32.mrf.mxu0
      %v1834 = vpop.f32.mrf.mxu0
      %v1835 = vadd.f32 %v1731, %v1834
      %v1836 = vpop.f32.mrf.mxu0
      %1837 = vmatprep.mubr.bf16.mxu0 0
      %1838 = vmatmul.mubr.bf16.gmra.mxu0 %v1743
      %v1839 = vpop.f32.mrf.mxu0
      %v1840 = vadd.f32 %v1731, %v1839
      %v1841 = vpop.f32.mrf.mxu0
      %v1842 = vpop.f32.mrf.mxu0
      %v1843 = vadd.f32 %v1731, %v1842
      %v1844 = vpop.f32.mrf.mxu0
      %1845 = vmatprep.mubr.bf16.mxu0 0
      %1846 = vmatmul.mubr.bf16.gmra.mxu0 %v1746
      %v1847 = vpop.f32.mrf.mxu0
      %v1848 = vadd.f32 %v1731, %v1847
      %v1849 = vpop.f32.mrf.mxu0
      %v1850 = vpop.f32.mrf.mxu0
      %v1851 = vadd.f32 %v1731, %v1850
      %v1852 = vpop.f32.mrf.mxu0
      %1853 = vmatprep.mubr.bf16.mxu0 0
      %1854 = vmatmul.mubr.bf16.gmra.mxu0 %v1749
      %v1855 = vpop.f32.mrf.mxu0
      %v1856 = vadd.f32 %v1731, %v1855
      %v1857 = vpop.f32.mrf.mxu0
      %v1858 = vpop.f32.mrf.mxu0
      %v1859 = vadd.f32 %v1731, %v1858
      %v1860 = vpop.f32.mrf.mxu0
      %1861 = vmatprep.mubr.bf16.mxu0 0
      %1862 = vmatmul.mubr.bf16.gmra.mxu0 %v1752
      %v1863 = vpop.f32.mrf.mxu0
      %v1864 = vadd.f32 %v1731, %v1863
      %v1865 = vpop.f32.mrf.mxu0
      %v1866 = vpop.f32.mrf.mxu0
      %v1867 = vadd.f32 %v1731, %v1866
      %v1868 = vpop.f32.mrf.mxu0
      %1869 = vmatprep.mubr.bf16.mxu0 0
      %1870 = vmatmul.mubr.bf16.gmra.mxu0 %v1755
      %v1871 = vpop.f32.mrf.mxu0
      %v1872 = vadd.f32 %v1731, %v1871
      %v1873 = vpop.f32.mrf.mxu0
      %v1874 = vpop.f32.mrf.mxu0
      %v1875 = vadd.f32 %v1731, %v1874
      %v1876 = vpop.f32.mrf.mxu0
      %1877 = vmatprep.mubr.bf16.mxu0 0
      %1878 = vmatmul.mubr.bf16.gmra.mxu0 %v1758
      %v1879 = vpop.f32.mrf.mxu0
      %v1880 = vadd.f32 %v1731, %v1879
      %v1881 = vpop.f32.mrf.mxu0
      %v1882 = vpop.f32.mrf.mxu0
      %v1883 = vadd.f32 %v1731, %v1882
      %v1884 = vpop.f32.mrf.mxu0
      %1885 = vmatprep.mubr.bf16.mxu0 0
      %1886 = vmatmul.mubr.bf16.gmra.mxu0 %v1761
      %v1887 = vpop.f32.mrf.mxu0
      %v1888 = vadd.f32 %v1731, %v1887
      %v1889 = vpop.f32.mrf.mxu0
      %v1890 = vpop.f32.mrf.mxu0
      %v1891 = vadd.f32 %v1731, %v1890
      %v1892 = vpop.f32.mrf.mxu0
      %1893 = vmatprep.mubr.bf16.mxu0 0
      %1894 = vmatmul.mubr.bf16.gmra.mxu0 %v1764
      %v1895 = vpop.f32.mrf.mxu0
      %v1896 = vadd.f32 %v1731, %v1895
      %v1897 = vpop.f32.mrf.mxu0
      %v1898 = vpop.f32.mrf.mxu0
      %v1899 = vadd.f32 %v1731, %v1898
      %v1900 = vpop.f32.mrf.mxu0
      %1901 = vmatprep.mubr.bf16.mxu0 0
      %1902 = vmatmul.mubr.bf16.gmra.mxu0 %v1767
      %v1903 = vpop.f32.mrf.mxu0
      %v1904 = vadd.f32 %v1731, %v1903
      %v1905 = vpop.f32.mrf.mxu0
      %v1906 = vpop.f32.mrf.mxu0
      %v1907 = vadd.f32 %v1731, %v1906
      %v1908 = vpop.f32.mrf.mxu0
      %1909 = vmatprep.mubr.bf16.mxu0 0
      %1910 = vmatmul.mubr.bf16.gmra.mxu0 %v1770
      %v1911 = vpop.f32.mrf.mxu0
      %v1912 = vadd.f32 %v1731, %v1911
      %v1913 = vpop.f32.mrf.mxu0
      %v1914 = vpop.f32.mrf.mxu0
      %v1915 = vadd.f32 %v1731, %v1914
      %v1916 = vpop.f32.mrf.mxu0
      %1917 = vmatprep.mubr.bf16.mxu0 0
      %1918 = vmatmul.mubr.bf16.gmra.mxu0 %v1773
      %v1919 = vpop.f32.mrf.mxu0
      %v1920 = vadd.f32 %v1731, %v1919
      %v1921 = vpop.f32.mrf.mxu0
      %v1922 = vpop.f32.mrf.mxu0
      %v1923 = vadd.f32 %v1731, %v1922
      %v1924 = vpop.f32.mrf.mxu0
      %1925 = vmatprep.mubr.bf16.mxu0 0
      %1926 = vmatmul.mubr.bf16.gmra.mxu0 %v1776
      %v1927 = vpop.f32.mrf.mxu0
      %v1928 = vadd.f32 %v1731, %v1927
      %v1929 = vpop.f32.mrf.mxu0
      %v1930 = vpop.f32.mrf.mxu0
      %v1931 = vadd.f32 %v1731, %v1930
      %v1932 = vpop.f32.mrf.mxu0
      %1933 = vmatprep.mubr.bf16.mxu0 0
      %1934 = vmatmul.mubr.bf16.gmra.mxu0 %v1779
      %v1935 = vpop.f32.mrf.mxu0
      %v1936 = vadd.f32 %v1731, %v1935
      %v1937 = vpop.f32.mrf.mxu0
      %v1938 = vpop.f32.mrf.mxu0
      %v1939 = vadd.f32 %v1731, %v1938
      %v1940 = vpop.f32.mrf.mxu0
      %1941 = vdwg.mxu0
      %vm1942 = vcmask 261120
      %1943 = vst.msk [vmem:[%s278] sm:$0xff] %vm1942, %v1816
      %1944 = vst.msk [vmem:[%s278 + $0x8] sm:$0xff] %vm1942, %v1819
      %1945 = vst.msk [vmem:[%s278 + $0x10] sm:$0xff] %vm1942, %v1824
      %1946 = vst.msk [vmem:[%s278 + $0x18] sm:$0xff] %vm1942, %v1827
      %1947 = vst.msk [vmem:[%s278 + $0x20] sm:$0xff] %vm1942, %v1832
      %1948 = vst.msk [vmem:[%s278 + $0x28] sm:$0xff] %vm1942, %v1835
      %1949 = vst.msk [vmem:[%s278 + $0x30] sm:$0xff] %vm1942, %v1840
      %1950 = vst.msk [vmem:[%s278 + $0x38] sm:$0xff] %vm1942, %v1843
      %1951 = vst.msk [vmem:[%s278 + $0x40] sm:$0xff] %vm1942, %v1848
      %1952 = vst.msk [vmem:[%s278 + $0x48] sm:$0xff] %vm1942, %v1851
      %1953 = vst.msk [vmem:[%s278 + $0x50] sm:$0xff] %vm1942, %v1856
      %1954 = vst.msk [vmem:[%s278 + $0x58] sm:$0xff] %vm1942, %v1859
      %1955 = vst.msk [vmem:[%s278 + $0x60] sm:$0xff] %vm1942, %v1864
      %1956 = vst.msk [vmem:[%s278 + $0x68] sm:$0xff] %vm1942, %v1867
      %1957 = vst.msk [vmem:[%s278 + $0x70] sm:$0xff] %vm1942, %v1872
      %1958 = vst.msk [vmem:[%s278 + $0x78] sm:$0xff] %vm1942, %v1875
      %1959 = vst.msk [vmem:[%s278 + $0x80] sm:$0xff] %vm1942, %v1880
      %1960 = vst.msk [vmem:[%s278 + $0x88] sm:$0xff] %vm1942, %v1883
      %1961 = vst.msk [vmem:[%s278 + $0x90] sm:$0xff] %vm1942, %v1888
      %1962 = vst.msk [vmem:[%s278 + $0x98] sm:$0xff] %vm1942, %v1891
      %1963 = vst.msk [vmem:[%s278 + $0xa0] sm:$0xff] %vm1942, %v1896
      %1964 = vst.msk [vmem:[%s278 + $0xa8] sm:$0xff] %vm1942, %v1899
      %1965 = vst.msk [vmem:[%s278 + $0xb0] sm:$0xff] %vm1942, %v1904
      %1966 = vst.msk [vmem:[%s278 + $0xb8] sm:$0xff] %vm1942, %v1907
      %1967 = vst.msk [vmem:[%s278 + $0xc0] sm:$0xff] %vm1942, %v1912
      %1968 = vst.msk [vmem:[%s278 + $0xc8] sm:$0xff] %vm1942, %v1915
      %1969 = vst.msk [vmem:[%s278 + $0xd0] sm:$0xff] %vm1942, %v1920
      %1970 = vst.msk [vmem:[%s278 + $0xd8] sm:$0xff] %vm1942, %v1923
      %1971 = vst.msk [vmem:[%s278 + $0xe0] sm:$0xff] %vm1942, %v1928
      %1972 = vst.msk [vmem:[%s278 + $0xe8] sm:$0xff] %vm1942, %v1931
      %1973 = vst.msk [vmem:[%s278 + $0xf0] sm:$0xff] %vm1942, %v1936
      %1974 = vst.msk [vmem:[%s278 + $0xf8] sm:$0xff] %vm1942, %v1939
      %p1975 = scmp.lt.s32.totalorder %s18, 1
      %s1976 = scalar_select %p1975, %s18, 1
      %s1977 = smul.addr %s1976, 32
      %s1978 = smul.addr %s1977, 8
      %s1979 = scalar_lea.vmem %s7, %s1978
      // Predicated region
      $region49: #{mobilenet_v2_forward.7} parent=47 // pred_check
        %p1980 = pneg %p188
      $region50: #{mobilenet_v2_forward.7} parent=47 // pred_check_branch
        %1982 = sbr.rel (%p1980) target = $region52
      $region51: #{mobilenet_v2_forward.7} parent=47 // pred_region
        _
      $region52: #{mobilenet_v2_forward.7} parent=47 // pred_fallthru
        _
    $region48: #{mobilenet_v2_forward.7} parent=5 // pred_fallthru
      _
    %p1983 = scmp.le.s32.totalorder 2, %s13
    // Predicated region
    $region53: #{mobilenet_v2_forward.7} parent=5 // pred_check
      %p1984 = pneg %p1983
    $region54: #{mobilenet_v2_forward.7} parent=5 // pred_check_branch
      %1986 = sbr.rel (%p1984) target = $region56
    $region55: #{mobilenet_v2_forward.7} parent=5 // pred_region
      %s1987 = ssub.s32 %s13, 2
      // Predicated region
      $region57: #{mobilenet_v2_forward.7} parent=55 // pred_check
        %p1988 = pneg %p194
      $region58: #{mobilenet_v2_forward.7} parent=55 // pred_check_branch
        %1990 = sbr.rel (%p1988) target = $region60
      $region59: #{mobilenet_v2_forward.7} parent=55 // pred_region
        %p1991 = scmp.lt.s32.totalorder %s19, 1
        %s1992 = scalar_select %p1991, %s19, 1
        %s1993 = smul.addr %s1992, 32
        %s1994 = smul.addr %s1993, 8
        %s1995 = scalar_lea.vmem %s7, %s1994
      $region60: #{mobilenet_v2_forward.7} parent=55 // pred_fallthru
        _
    $region56: #{mobilenet_v2_forward.7} parent=5 // pred_fallthru
      _
  $region6: #{mobilenet_v2_forward.7} parent=0 // loop_footer
    %s17 = sadd.s32 1, %s13
  $region7: #{mobilenet_v2_forward.7} parent=0 // loop_footer_branch
    %12 = sbr.rel target = $region3
  $region8: #{mobilenet_v2_forward.7} parent=0 // loop_exit
    _

// kernel: mobilenet_v2_forward.9
$region0: #{mobilenet_v2_forward.9}
  #allocation0 [shape = 'u32[]', space=smem, size = 0x4, offset = 0x4, fixed_abs, tag = 'smem constant byte address 0x4 - core index']
  #allocation1 [shape = 'u32[144,128]{1,0:T(1,128)}', space=vmem, size = 0x12000, scoped, tag = 'internal scratch']
  %s0 = inlined_call_operand.vmem [shape: f32[2,8,8,32], index: 0, kind: input, shape index: {}]
  %s1 = inlined_call_operand.vmem [shape: f32[32,128], index: 1, kind: input, shape index: {}]
  %s2 = inlined_call_operand.vmem [shape: f32[1,128], index: 2, kind: input, shape index: {}]
  %s3 = inlined_call_operand.vmem [shape: f32[2,1,128], index: 3, kind: output, shape index: {}]
  %s4 = sld [smem:[#allocation0]]
  $region45: #{mobilenet_v2_forward.9} parent=0
    _
  %s6 = ssub.s32 1, %s4
  %s7 = scalar_select 0, %s6, %s4
  loop: start=0, step=1, limit=4
  $region2: #{mobilenet_v2_forward.9} parent=0 // loop_pre_header
    _
  $region3: #{mobilenet_v2_forward.9} parent=0 // loop_header
    %s9 = sphi 0, %s13
    %p10 = scmp.ge.s32.totalorder %s9, 4
    %s19 = sphi 0, %s21
    %s22 = sphi 0, %s19
    %s23 = sphi 0, %s22
    %s39 = sphi 0, %s23
    %s43 = sphi 0, %s43
    %s45 = sphi 0, %s43
    %s46 = sphi 0, %s45
    %s60 = sphi 0, %s46
    %s64 = sphi 0, %s64
    %s66 = sphi 0, %s64
    %s67 = sphi 0, %s66
    %s81 = sphi 0, %s67
    %s87 = sphi 0, %s89
    %s90 = sphi 0, %s87
    %s91 = sphi 0, %s90
    %s107 = sphi 0, %s91
  $region4: #{mobilenet_v2_forward.9} parent=0 // loop_header_branch
    %12 = sbr.rel (%p10) target = $region8
  $region5: #{mobilenet_v2_forward.9} parent=0 // loop_body
    %s14 = ssub.s32 %s9, 1
    %s15 = ssub.s32 %s9, 2
    %s16 = sadd.s32 %s9, 1
    %s17 = ssub.s32 %s9, %s16
    %p18 = scmp.eq.s32.totalorder %s17, 0
    %s20 = sadd.s32 %s19, 1
    %s21 = scalar_select %p18, %s19, %s20
    %p24 = pneg %p18
    %p25 = scmp.eq.s32.totalorder %s9, 1
    %p26 = por %p24, %p25
    %p27 = scmp.ne.s32.totalorder %s19, %s22
    %p28 = scmp.eq.s32.totalorder %s9, 0
    %p29 = por %p27, %p28
    %p30 = scmp.ne.s32.totalorder %s19, %s22
    %p31 = scmp.eq.s32.totalorder %s14, 1
    %p32 = por %p30, %p31
    %p33 = scmp.ne.s32.totalorder %s22, %s23
    %p34 = scmp.eq.s32.totalorder %s14, 0
    %p35 = por %p33, %p34
    %p36 = scmp.ne.s32.totalorder %s22, %s23
    %p37 = scmp.eq.s32.totalorder %s15, 1
    %p38 = por %p36, %p37
    %p40 = scmp.ne.s32.totalorder %s23, %s39
    %p41 = scmp.eq.s32.totalorder %s15, 0
    %p42 = por %p40, %p41
    %s44 = sadd.s32 %s43, 1
    %p47 = scmp.eq.s32.totalorder %s9, 1
    %p48 = scmp.ne.s32.totalorder %s43, %s45
    %p49 = scmp.eq.s32.totalorder %s9, 0
    %p50 = por %p48, %p49
    %p51 = scmp.ne.s32.totalorder %s43, %s45
    %p52 = scmp.eq.s32.totalorder %s14, 1
    %p53 = por %p51, %p52
    %p54 = scmp.ne.s32.totalorder %s45, %s46
    %p55 = scmp.eq.s32.totalorder %s14, 0
    %p56 = por %p54, %p55
    %p57 = scmp.ne.s32.totalorder %s45, %s46
    %p58 = scmp.eq.s32.totalorder %s15, 1
    %p59 = por %p57, %p58
    %p61 = scmp.ne.s32.totalorder %s46, %s60
    %p62 = scmp.eq.s32.totalorder %s15, 0
    %p63 = por %p61, %p62
    %s65 = sadd.s32 %s64, 1
    %p68 = scmp.eq.s32.totalorder %s9, 1
    %p69 = scmp.ne.s32.totalorder %s64, %s66
    %p70 = scmp.eq.s32.totalorder %s9, 0
    %p71 = por %p69, %p70
    %p72 = scmp.ne.s32.totalorder %s64, %s66
    %p73 = scmp.eq.s32.totalorder %s14, 1
    %p74 = por %p72, %p73
    %p75 = scmp.ne.s32.totalorder %s66, %s67
    %p76 = scmp.eq.s32.totalorder %s14, 0
    %p77 = por %p75, %p76
    %p78 = scmp.ne.s32.totalorder %s66, %s67
    %p79 = scmp.eq.s32.totalorder %s15, 1
    %p80 = por %p78, %p79
    %p82 = scmp.ne.s32.totalorder %s67, %s81
    %p83 = scmp.eq.s32.totalorder %s15, 0
    %p84 = por %p82, %p83
    %s85 = ssub.s32 %s9, %s16
    %p86 = scmp.eq.s32.totalorder %s85, 0
    %s88 = sadd.s32 %s87, 1
    %s89 = scalar_select %p86, %s87, %s88
    %p92 = pneg %p86
    %p93 = scmp.eq.s32.totalorder %s9, 1
    %p94 = por %p92, %p93
    %p95 = scmp.ne.s32.totalorder %s87, %s90
    %p96 = scmp.eq.s32.totalorder %s9, 0
    %p97 = por %p95, %p96
    %p98 = scmp.ne.s32.totalorder %s87, %s90
    %p99 = scmp.eq.s32.totalorder %s14, 1
    %p100 = por %p98, %p99
    %p101 = scmp.ne.s32.totalorder %s90, %s91
    %p102 = scmp.eq.s32.totalorder %s14, 0
    %p103 = por %p101, %p102
    %p104 = scmp.ne.s32.totalorder %s90, %s91
    %p105 = scmp.eq.s32.totalorder %s15, 1
    %p106 = por %p104, %p105
    %p108 = scmp.ne.s32.totalorder %s91, %s107
    %p109 = scmp.eq.s32.totalorder %s15, 0
    %p110 = por %p108, %p109
    %p111 = scmp.le.s32.totalorder 1, %s9
    %p112 = scmp.lt.s32.totalorder %s9, 3
    %p113 = pnand %p111, %p112
    %p114 = pneg %p113
    // Predicated region
    $region9: #{mobilenet_v2_forward.9} parent=5 // pred_check
      _
    $region10: #{mobilenet_v2_forward.9} parent=5 // pred_check_branch
      %116 = sbr.rel (%p113) target = $region12
    $region11: #{mobilenet_v2_forward.9} parent=5 // pred_region
      %s117 = ssub.s32 %s9, 1
      // Predicated region
      $region13: #{mobilenet_v2_forward.9} parent=11 // pred_check
        %p118 = pneg %p56
      $region14: #{mobilenet_v2_forward.9} parent=11 // pred_check_branch
        %120 = sbr.rel (%p118) target = $region16
      $region15: #{mobilenet_v2_forward.9} parent=11 // pred_region
        _
      $region16: #{mobilenet_v2_forward.9} parent=11 // pred_fallthru
        _
      // Predicated region
      $region17: #{mobilenet_v2_forward.9} parent=11 // pred_check
        %p121 = pneg %p77
      $region18: #{mobilenet_v2_forward.9} parent=11 // pred_check_branch
        %123 = sbr.rel (%p121) target = $region20
      $region19: #{mobilenet_v2_forward.9} parent=11 // pred_region
        _
      $region20: #{mobilenet_v2_forward.9} parent=11 // pred_fallthru
        _
    $region12: #{mobilenet_v2_forward.9} parent=5 // pred_fallthru
      _
    %p124 = scmp.lt.s32.totalorder %s9, 2
    // Predicated region
    $region21: #{mobilenet_v2_forward.9} parent=5 // pred_check
      %p125 = pneg %p124
    $region22: #{mobilenet_v2_forward.9} parent=5 // pred_check_branch
      %127 = sbr.rel (%p125) target = $region24
    $region23: #{mobilenet_v2_forward.9} parent=5 // pred_region
      // Predicated region
      $region25: #{mobilenet_v2_forward.9} parent=23 // pred_check
        %p128 = pneg %p29
      $region26: #{mobilenet_v2_forward.9} parent=23 // pred_check_branch
        %130 = sbr.rel (%p128) target = $region28
      $region27: #{mobilenet_v2_forward.9} parent=23 // pred_region
        %p131 = scmp.lt.s32.totalorder %s9, 1
        %s132 = scalar_select %p131, %s9, 1
        %s133 = smul.addr %s132, 8
        %s134 = smul.addr %s133, 8
        %s135 = scalar_lea.vmem %s0, %s134
      $region28: #{mobilenet_v2_forward.9} parent=23 // pred_fallthru
        _
    $region24: #{mobilenet_v2_forward.9} parent=5 // pred_fallthru
      _
    %p136 = scmp.le.s32.totalorder 1, %s9
    %p137 = scmp.lt.s32.totalorder %s9, 3
    %p138 = pnand %p136, %p137
    %p139 = pneg %p138
    // Predicated region
    $region29: #{mobilenet_v2_forward.9} parent=5 // pred_check
      _
    $region30: #{mobilenet_v2_forward.9} parent=5 // pred_check_branch
      %141 = sbr.rel (%p138) target = $region32
    $region31: #{mobilenet_v2_forward.9} parent=5 // pred_region
      %s142 = ssub.s32 %s9, 1
      %p143 = scmp.lt.s32.totalorder %s14, 1
      %s144 = scalar_select %p143, %s14, 1
      %s145 = smul.addr %s144, 8
      %s146 = smul.addr %s145, 8
      %s147 = scalar_lea.vmem %s0, %s146
      %p148 = pneg %p35
      %p149 = pneg %p32
      %p150 = pneg %p56
      %p151 = pneg %p53
      %p152 = pneg %p77
      %p153 = pneg %p74
      %p154 = pneg %p103
      %p155 = pneg %p100
      %p156 = scmp.lt.s32.totalorder %s14, 1
      %s157 = scalar_select %p156, %s14, 1
      %s158 = scalar_lea.vmem %s3, %s157
      %p159 = scmp.lt.s32.totalorder %s14, 1
      %s160 = scalar_select %p159, %s14, 1
      %s161 = smul.addr %s160, 8
      %s162 = smul.addr %s161, 8
      %s163 = scalar_lea.vmem %s0, %s162
      %p164 = scmp.lt.s32.totalorder %s14, 1
      %s165 = scalar_select %p164, %s14, 1
      %s166 = scalar_lea.vmem %s3, %s165
      %v168 = vld [vmem:[%s163] sm:$0xff]
      %v169 = vld [vmem:[%s163 + $0x8] sm:$0xff]
      %v170 = vld [vmem:[%s163 + $0x10] sm:$0xff]
      %v171 = vld [vmem:[%s163 + $0x18] sm:$0xff]
      %v172 = vld [vmem:[%s163 + $0x20] sm:$0xff]
      %v173 = vld [vmem:[%s163 + $0x28] sm:$0xff]
      %v174 = vld [vmem:[%s163 + $0x30] sm:$0xff]
      %v175 = vld [vmem:[%s163 + $0x38] sm:$0xff]
      %v176 = vpack.c.bf16 %v169, %v168
      %v177 = vpack.c.bf16 %v171, %v170
      %v178 = vpack.c.bf16 %v173, %v172
      %v179 = vpack.c.bf16 %v175, %v174
      %v180 = vld [vmem:[%s1] sm:$0xff]
      %v181 = vld [vmem:[%s1 + $0x8] sm:$0xff]
      %v182 = vld [vmem:[%s1 + $0x10] sm:$0xff]
      %v183 = vld [vmem:[%s1 + $0x18] sm:$0xff]
      %v184 = vpack.c.bf16 %v181, %v180
      %v185 = vpack.c.bf16 %v183, %v182
      %v186 = vld [vmem:[%s2] sm:$0x1]
      %v188 = vlaneseq
      %v189 = vshrl.u32 %v188, 7
      %v190 = vsub.s32 0, %v189
      %v191 = vrot.slane %v186, %v190
      %vm193 = vcmask 261120
      %v195 = vsel %vm193, %v176, 0
      %v198 = vsel %vm193, %v177, 0
      %v201 = vsel %vm193, %v178, 0
      %v204 = vsel %vm193, %v179, 0
      %206 = vmatprep.subr.bf16.mxu0 0
      %207 = vmatpush1.bf16.msra.mxu0 0
      %208 = vmatprep.subr.bf16.mxu0 0
      %209 = vmatpush1.bf16.msra.mxu0 0
      %210 = vmatprep.subr.bf16.mxu0 0
      %211 = vmatpush1.bf16.msra.mxu0 0
      %212 = vmatprep.subr.bf16.mxu0 0
      %213 = vmatpush1.bf16.msra.mxu0 0
      %214 = vmatprep.subr.bf16.mxu0 0
      %215 = vmatpush1.bf16.msra.mxu0 0
      %216 = vmatprep.subr.bf16.mxu0 0
      %217 = vmatpush1.bf16.msra.mxu0 0
      %218 = vmatprep.subr.bf16.mxu0 0
      %219 = vmatpush1.bf16.msra.mxu0 %v185
      %220 = vmatprep.subr.bf16.mxu0 0
      %221 = vmatpush1.bf16.msra.mxu0 %v184
      %222 = vmatprep.subr.bf16.mxu0 0
      %223 = vmatpush2.bf16.msra.mxu0 0
      %224 = vmatprep.subr.bf16.mxu0 0
      %225 = vmatpush2.bf16.msra.mxu0 0
      %226 = vmatprep.subr.bf16.mxu0 0
      %227 = vmatpush2.bf16.msra.mxu0 0
      %228 = vmatprep.subr.bf16.mxu0 0
      %229 = vmatpush2.bf16.msra.mxu0 0
      %230 = vmatprep.subr.bf16.mxu0 0
      %231 = vmatpush2.bf16.msra.mxu0 0
      %232 = vmatprep.subr.bf16.mxu0 0
      %233 = vmatpush2.bf16.msra.mxu0 0
      %234 = vmatprep.subr.bf16.mxu0 0
      %235 = vmatpush2.bf16.msra.mxu0 0
      %236 = vmatprep.subr.bf16.mxu0 0
      %237 = vmatpush2.bf16.msra.mxu0 0
      %238 = vmatprep.mubr.bf16.mxu0 0
      %239 = vmatmul.mubr.bf16.gmra.mxu0 %v195
      %v240 = vpop.f32.mrf.mxu0
      %v241 = vadd.f32 %v191, %v240
      %v242 = vpop.f32.mrf.mxu0
      %v243 = vpop.f32.mrf.mxu0
      %v244 = vadd.f32 %v191, %v243
      %v245 = vpop.f32.mrf.mxu0
      %246 = vmatprep.mubr.bf16.mxu0 0
      %247 = vmatmul.mubr.bf16.gmra.mxu0 %v198
      %v248 = vpop.f32.mrf.mxu0
      %v249 = vadd.f32 %v191, %v248
      %v250 = vpop.f32.mrf.mxu0
      %v251 = vpop.f32.mrf.mxu0
      %v252 = vadd.f32 %v191, %v251
      %v253 = vpop.f32.mrf.mxu0
      %254 = vmatprep.mubr.bf16.mxu0 0
      %255 = vmatmul.mubr.bf16.gmra.mxu0 %v201
      %v256 = vpop.f32.mrf.mxu0
      %v257 = vadd.f32 %v191, %v256
      %v258 = vpop.f32.mrf.mxu0
      %v259 = vpop.f32.mrf.mxu0
      %v260 = vadd.f32 %v191, %v259
      %v261 = vpop.f32.mrf.mxu0
      %262 = vmatprep.mubr.bf16.mxu0 0
      %263 = vmatmul.mubr.bf16.gmra.mxu0 %v204
      %v264 = vpop.f32.mrf.mxu0
      %v265 = vadd.f32 %v191, %v264
      %v266 = vpop.f32.mrf.mxu0
      %v267 = vpop.f32.mrf.mxu0
      %v268 = vadd.f32 %v191, %v267
      %v269 = vpop.f32.mrf.mxu0
      %270 = vdwg.mxu0
      %v271 = vmax.f32 %v241, 0.0
      %v272 = vmax.f32 %v244, 0.0
      %v273 = vmax.f32 %v249, 0.0
      %v274 = vmax.f32 %v252, 0.0
      %v275 = vmax.f32 %v257, 0.0
      %v276 = vmax.f32 %v260, 0.0
      %v277 = vmax.f32 %v265, 0.0
      %v278 = vmax.f32 %v268, 0.0
      %v279 = vmin.f32 %v271, 6.0
      %v280 = vmin.f32 %v272, 6.0
      %v281 = vmin.f32 %v273, 6.0
      %v282 = vmin.f32 %v274, 6.0
      %v283 = vmin.f32 %v275, 6.0
      %v284 = vmin.f32 %v276, 6.0
      %v285 = vmin.f32 %v277, 6.0
      %v286 = vmin.f32 %v278, 6.0
      %v287 = vadd.f32 %v279, %v280
      %v288 = vadd.f32 %v287, %v281
      %v289 = vadd.f32 %v288, %v282
      %v290 = vadd.f32 %v289, %v283
      %v291 = vadd.f32 %v290, %v284
      %v292 = vadd.f32 %v291, %v285
      %v293 = vadd.f32 %v292, %v286
      %v294 = vrot.slane %v293, 4
      %v295 = vadd.f32 %v293, %v294
      %v296 = vrot.slane %v295, 2
      %v297 = vadd.f32 %v295, %v296
      %v298 = vrot.slane %v297, 1
      %v299 = vadd.f32 %v297, %v298
      %v300 = vrcp.pop 64.0
      %v301 = vmul.f32 %v299, %v300
      %302 = vst [vmem:[%s166] sm:$0x1] %v301
      %p303 = scmp.lt.s32.totalorder %s14, 1
      %s304 = scalar_select %p303, %s14, 1
      %s305 = scalar_lea.vmem %s3, %s304
      // Predicated region
      $region33: #{mobilenet_v2_forward.9} parent=31 // pred_check
        %p306 = pneg %p100
      $region34: #{mobilenet_v2_forward.9} parent=31 // pred_check_branch
        %308 = sbr.rel (%p306) target = $region36
      $region35: #{mobilenet_v2_forward.9} parent=31 // pred_region
        _
      $region36: #{mobilenet_v2_forward.9} parent=31 // pred_fallthru
        _
    $region32: #{mobilenet_v2_forward.9} parent=5 // pred_fallthru
      _
    %p309 = scmp.le.s32.totalorder 2, %s9
    // Predicated region
    $region37: #{mobilenet_v2_forward.9} parent=5 // pred_check
      %p310 = pneg %p309
    $region38: #{mobilenet_v2_forward.9} parent=5 // pred_check_branch
      %312 = sbr.rel (%p310) target = $region40
    $region39: #{mobilenet_v2_forward.9} parent=5 // pred_region
      %s313 = ssub.s32 %s9, 2
      // Predicated region
      $region41: #{mobilenet_v2_forward.9} parent=39 // pred_check
        %p314 = pneg %p106
      $region42: #{mobilenet_v2_forward.9} parent=39 // pred_check_branch
        %316 = sbr.rel (%p314) target = $region44
      $region43: #{mobilenet_v2_forward.9} parent=39 // pred_region
        %p317 = scmp.lt.s32.totalorder %s15, 1
        %s318 = scalar_select %p317, %s15, 1
        %s319 = scalar_lea.vmem %s3, %s318
      $region44: #{mobilenet_v2_forward.9} parent=39 // pred_fallthru
        _
    $region40: #{mobilenet_v2_forward.9} parent=5 // pred_fallthru
      _
  $region6: #{mobilenet_v2_forward.9} parent=0 // loop_footer
    %s13 = sadd.s32 1, %s9
  $region7: #{mobilenet_v2_forward.9} parent=0 // loop_footer_branch
    %8 = sbr.rel target = $region3
  $region8: #{mobilenet_v2_forward.9} parent=0 // loop_exit
    _

// kernel: mobilenet_v2_forward.8
$region0: #{mobilenet_v2_forward.8}
  #allocation0 [shape = 'u32[]', space=smem, size = 0x4, offset = 0x4, fixed_abs, tag = 'smem constant byte address 0x4 - core index']
  #allocation1 [shape = 'u32[144,128]{1,0:T(1,128)}', space=vmem, size = 0x12000, scoped, tag = 'internal scratch']
  #allocation2 [shape = 'f32[10,24,192]{2,1,0:T(8,128)}', space=vmem, size = 0x3c000, scoped, tag = 'scratch operand']
  %s0 = inlined_call_operand.vmem [shape: f32[2,8,8,32], index: 0, kind: input, shape index: {}]
  %s1 = inlined_call_operand.vmem [shape: f32[32,192], index: 1, kind: input, shape index: {}]
  %s2 = inlined_call_operand.vmem [shape: f32[1,192], index: 2, kind: input, shape index: {}]
  %s3 = inlined_call_operand.vmem [shape: f32[9,192], index: 3, kind: input, shape index: {}]
  %s4 = inlined_call_operand.vmem [shape: f32[1,192], index: 4, kind: input, shape index: {}]
  %s5 = inlined_call_operand.vmem [shape: f32[192,32], index: 5, kind: input, shape index: {}]
  %s6 = inlined_call_operand.vmem [shape: f32[1,32], index: 6, kind: input, shape index: {}]
  %s7 = inlined_call_operand.vmem [shape: f32[2,8,8,32], index: 7, kind: output, shape index: {}]
  %s8 = sld [smem:[#allocation0]]
  $region61: #{mobilenet_v2_forward.8} parent=0
    _
  %s10 = ssub.s32 1, %s8
  %s11 = scalar_select 0, %s10, %s8
  loop: start=0, step=1, limit=4
  $region2: #{mobilenet_v2_forward.8} parent=0 // loop_pre_header
    _
  $region3: #{mobilenet_v2_forward.8} parent=0 // loop_header
    %s13 = sphi 0, %s17
    %p14 = scmp.ge.s32.totalorder %s13, 4
    %s23 = sphi 0, %s25
    %s26 = sphi 0, %s23
    %s27 = sphi 0, %s26
    %s43 = sphi 0, %s27
    %s47 = sphi 0, %s47
    %s49 = sphi 0, %s47
    %s50 = sphi 0, %s49
    %s64 = sphi 0, %s50
    %s68 = sphi 0, %s68
    %s70 = sphi 0, %s68
    %s71 = sphi 0, %s70
    %s85 = sphi 0, %s71
    %s89 = sphi 0, %s89
    %s91 = sphi 0, %s89
    %s92 = sphi 0, %s91
    %s106 = sphi 0, %s92
    %s110 = sphi 0, %s110
    %s112 = sphi 0, %s110
    %s113 = sphi 0, %s112
    %s127 = sphi 0, %s113
    %s131 = sphi 0, %s131
    %s133 = sphi 0, %s131
    %s134 = sphi 0, %s133
    %s148 = sphi 0, %s134
    %s152 = sphi 0, %s152
    %s154 = sphi 0, %s152
    %s155 = sphi 0, %s154
    %s169 = sphi 0, %s155
    %s175 = sphi 0, %s177
    %s178 = sphi 0, %s175
    %s179 = sphi 0, %s178
    %s195 = sphi 0, %s179
  $region4: #{mobilenet_v2_forward.8} parent=0 // loop_header_branch
    %16 = sbr.rel (%p14) target = $region8
  $region5: #{mobilenet_v2_forward.8} parent=0 // loop_body
    %s18 = ssub.s32 %s13, 1
    %s19 = ssub.s32 %s13, 2
    %s20 = sadd.s32 %s13, 1
    %s21 = ssub.s32 %s13, %s20
    %p22 = scmp.eq.s32.totalorder %s21, 0
    %s24 = sadd.s32 %s23, 1
    %s25 = scalar_select %p22, %s23, %s24
    %p28 = pneg %p22
    %p29 = scmp.eq.s32.totalorder %s13, 1
    %p30 = por %p28, %p29
    %p31 = scmp.ne.s32.totalorder %s23, %s26
    %p32 = scmp.eq.s32.totalorder %s13, 0
    %p33 = por %p31, %p32
    %p34 = scmp.ne.s32.totalorder %s23, %s26
    %p35 = scmp.eq.s32.totalorder %s18, 1
    %p36 = por %p34, %p35
    %p37 = scmp.ne.s32.totalorder %s26, %s27
    %p38 = scmp.eq.s32.totalorder %s18, 0
    %p39 = por %p37, %p38
    %p40 = scmp.ne.s32.totalorder %s26, %s27
    %p41 = scmp.eq.s32.totalorder %s19, 1
    %p42 = por %p40, %p41
    %p44 = scmp.ne.s32.totalorder %s27, %s43
    %p45 = scmp.eq.s32.totalorder %s19, 0
    %p46 = por %p44, %p45
    %s48 = sadd.s32 %s47, 1
    %p51 = scmp.eq.s32.totalorder %s13, 1
    %p52 = scmp.ne.s32.totalorder %s47, %s49
    %p53 = scmp.eq.s32.totalorder %s13, 0
    %p54 = por %p52, %p53
    %p55 = scmp.ne.s32.totalorder %s47, %s49
    %p56 = scmp.eq.s32.totalorder %s18, 1
    %p57 = por %p55, %p56
    %p58 = scmp.ne.s32.totalorder %s49, %s50
    %p59 = scmp.eq.s32.totalorder %s18, 0
    %p60 = por %p58, %p59
    %p61 = scmp.ne.s32.totalorder %s49, %s50
    %p62 = scmp.eq.s32.totalorder %s19, 1
    %p63 = por %p61, %p62
    %p65 = scmp.ne.s32.totalorder %s50, %s64
    %p66 = scmp.eq.s32.totalorder %s19, 0
    %p67 = por %p65, %p66
    %s69 = sadd.s32 %s68, 1
    %p72 = scmp.eq.s32.totalorder %s13, 1
    %p73 = scmp.ne.s32.totalorder %s68, %s70
    %p74 = scmp.eq.s32.totalorder %s13, 0
    %p75 = por %p73, %p74
    %p76 = scmp.ne.s32.totalorder %s68, %s70
    %p77 = scmp.eq.s32.totalorder %s18, 1
    %p78 = por %p76, %p77
    %p79 = scmp.ne.s32.totalorder %s70, %s71
    %p80 = scmp.eq.s32.totalorder %s18, 0
    %p81 = por %p79, %p80
    %p82 = scmp.ne.s32.totalorder %s70, %s71
    %p83 = scmp.eq.s32.totalorder %s19, 1
    %p84 = por %p82, %p83
    %p86 = scmp.ne.s32.totalorder %s71, %s85
    %p87 = scmp.eq.s32.totalorder %s19, 0
    %p88 = por %p86, %p87
    %s90 = sadd.s32 %s89, 1
    %p93 = scmp.eq.s32.totalorder %s13, 1
    %p94 = scmp.ne.s32.totalorder %s89, %s91
    %p95 = scmp.eq.s32.totalorder %s13, 0
    %p96 = por %p94, %p95
    %p97 = scmp.ne.s32.totalorder %s89, %s91
    %p98 = scmp.eq.s32.totalorder %s18, 1
    %p99 = por %p97, %p98
    %p100 = scmp.ne.s32.totalorder %s91, %s92
    %p101 = scmp.eq.s32.totalorder %s18, 0
    %p102 = por %p100, %p101
    %p103 = scmp.ne.s32.totalorder %s91, %s92
    %p104 = scmp.eq.s32.totalorder %s19, 1
    %p105 = por %p103, %p104
    %p107 = scmp.ne.s32.totalorder %s92, %s106
    %p108 = scmp.eq.s32.totalorder %s19, 0
    %p109 = por %p107, %p108
    %s111 = sadd.s32 %s110, 1
    %p114 = scmp.eq.s32.totalorder %s13, 1
    %p115 = scmp.ne.s32.totalorder %s110, %s112
    %p116 = scmp.eq.s32.totalorder %s13, 0
    %p117 = por %p115, %p116
    %p118 = scmp.ne.s32.totalorder %s110, %s112
    %p119 = scmp.eq.s32.totalorder %s18, 1
    %p120 = por %p118, %p119
    %p121 = scmp.ne.s32.totalorder %s112, %s113
    %p122 = scmp.eq.s32.totalorder %s18, 0
    %p123 = por %p121, %p122
    %p124 = scmp.ne.s32.totalorder %s112, %s113
    %p125 = scmp.eq.s32.totalorder %s19, 1
    %p126 = por %p124, %p125
    %p128 = scmp.ne.s32.totalorder %s113, %s127
    %p129 = scmp.eq.s32.totalorder %s19, 0
    %p130 = por %p128, %p129
    %s132 = sadd.s32 %s131, 1
    %p135 = scmp.eq.s32.totalorder %s13, 1
    %p136 = scmp.ne.s32.totalorder %s131, %s133
    %p137 = scmp.eq.s32.totalorder %s13, 0
    %p138 = por %p136, %p137
    %p139 = scmp.ne.s32.totalorder %s131, %s133
    %p140 = scmp.eq.s32.totalorder %s18, 1
    %p141 = por %p139, %p140
    %p142 = scmp.ne.s32.totalorder %s133, %s134
    %p143 = scmp.eq.s32.totalorder %s18, 0
    %p144 = por %p142, %p143
    %p145 = scmp.ne.s32.totalorder %s133, %s134
    %p146 = scmp.eq.s32.totalorder %s19, 1
    %p147 = por %p145, %p146
    %p149 = scmp.ne.s32.totalorder %s134, %s148
    %p150 = scmp.eq.s32.totalorder %s19, 0
    %p151 = por %p149, %p150
    %s153 = sadd.s32 %s152, 1
    %p156 = scmp.eq.s32.totalorder %s13, 1
    %p157 = scmp.ne.s32.totalorder %s152, %s154
    %p158 = scmp.eq.s32.totalorder %s13, 0
    %p159 = por %p157, %p158
    %p160 = scmp.ne.s32.totalorder %s152, %s154
    %p161 = scmp.eq.s32.totalorder %s18, 1
    %p162 = por %p160, %p161
    %p163 = scmp.ne.s32.totalorder %s154, %s155
    %p164 = scmp.eq.s32.totalorder %s18, 0
    %p165 = por %p163, %p164
    %p166 = scmp.ne.s32.totalorder %s154, %s155
    %p167 = scmp.eq.s32.totalorder %s19, 1
    %p168 = por %p166, %p167
    %p170 = scmp.ne.s32.totalorder %s155, %s169
    %p171 = scmp.eq.s32.totalorder %s19, 0
    %p172 = por %p170, %p171
    %s173 = ssub.s32 %s13, %s20
    %p174 = scmp.eq.s32.totalorder %s173, 0
    %s176 = sadd.s32 %s175, 1
    %s177 = scalar_select %p174, %s175, %s176
    %p180 = pneg %p174
    %p181 = scmp.eq.s32.totalorder %s13, 1
    %p182 = por %p180, %p181
    %p183 = scmp.ne.s32.totalorder %s175, %s178
    %p184 = scmp.eq.s32.totalorder %s13, 0
    %p185 = por %p183, %p184
    %p186 = scmp.ne.s32.totalorder %s175, %s178
    %p187 = scmp.eq.s32.totalorder %s18, 1
    %p188 = por %p186, %p187
    %p189 = scmp.ne.s32.totalorder %s178, %s179
    %p190 = scmp.eq.s32.totalorder %s18, 0
    %p191 = por %p189, %p190
    %p192 = scmp.ne.s32.totalorder %s178, %s179
    %p193 = scmp.eq.s32.totalorder %s19, 1
    %p194 = por %p192, %p193
    %p196 = scmp.ne.s32.totalorder %s179, %s195
    %p197 = scmp.eq.s32.totalorder %s19, 0
    %p198 = por %p196, %p197
    %p199 = scmp.le.s32.totalorder 1, %s13
    %p200 = scmp.lt.s32.totalorder %s13, 3
    %p201 = pnand %p199, %p200
    %p202 = pneg %p201
    // Predicated region
    $region9: #{mobilenet_v2_forward.8} parent=5 // pred_check
      _
    $region10: #{mobilenet_v2_forward.8} parent=5 // pred_check_branch
      %204 = sbr.rel (%p201) target = $region12
    $region11: #{mobilenet_v2_forward.8} parent=5 // pred_region
      %s205 = ssub.s32 %s13, 1
      // Predicated region
      $region13: #{mobilenet_v2_forward.8} parent=11 // pred_check
        %p206 = pneg %p60
      $region14: #{mobilenet_v2_forward.8} parent=11 // pred_check_branch
        %208 = sbr.rel (%p206) target = $region16
      $region15: #{mobilenet_v2_forward.8} parent=11 // pred_region
        _
      $region16: #{mobilenet_v2_forward.8} parent=11 // pred_fallthru
        _
      // Predicated region
      $region17: #{mobilenet_v2_forward.8} parent=11 // pred_check
        %p209 = pneg %p81
      $region18: #{mobilenet_v2_forward.8} parent=11 // pred_check_branch
        %211 = sbr.rel (%p209) target = $region20
      $region19: #{mobilenet_v2_forward.8} parent=11 // pred_region
        _
      $region20: #{mobilenet_v2_forward.8} parent=11 // pred_fallthru
        _
      // Predicated region
      $region21: #{mobilenet_v2_forward.8} parent=11 // pred_check
        %p212 = pneg %p102
      $region22: #{mobilenet_v2_forward.8} parent=11 // pred_check_branch
        %214 = sbr.rel (%p212) target = $region24
      $region23: #{mobilenet_v2_forward.8} parent=11 // pred_region
        _
      $region24: #{mobilenet_v2_forward.8} parent=11 // pred_fallthru
        _
      // Predicated region
      $region25: #{mobilenet_v2_forward.8} parent=11 // pred_check
        %p215 = pneg %p123
      $region26: #{mobilenet_v2_forward.8} parent=11 // pred_check_branch
        %217 = sbr.rel (%p215) target = $region28
      $region27: #{mobilenet_v2_forward.8} parent=11 // pred_region
        _
      $region28: #{mobilenet_v2_forward.8} parent=11 // pred_fallthru
        _
      // Predicated region
      $region29: #{mobilenet_v2_forward.8} parent=11 // pred_check
        %p218 = pneg %p144
      $region30: #{mobilenet_v2_forward.8} parent=11 // pred_check_branch
        %220 = sbr.rel (%p218) target = $region32
      $region31: #{mobilenet_v2_forward.8} parent=11 // pred_region
        _
      $region32: #{mobilenet_v2_forward.8} parent=11 // pred_fallthru
        _
      // Predicated region
      $region33: #{mobilenet_v2_forward.8} parent=11 // pred_check
        %p221 = pneg %p165
      $region34: #{mobilenet_v2_forward.8} parent=11 // pred_check_branch
        %223 = sbr.rel (%p221) target = $region36
      $region35: #{mobilenet_v2_forward.8} parent=11 // pred_region
        _
      $region36: #{mobilenet_v2_forward.8} parent=11 // pred_fallthru
        _
    $region12: #{mobilenet_v2_forward.8} parent=5 // pred_fallthru
      _
    %p224 = scmp.lt.s32.totalorder %s13, 2
    // Predicated region
    $region37: #{mobilenet_v2_forward.8} parent=5 // pred_check
      %p225 = pneg %p224
    $region38: #{mobilenet_v2_forward.8} parent=5 // pred_check_branch
      %227 = sbr.rel (%p225) target = $region40
    $region39: #{mobilenet_v2_forward.8} parent=5 // pred_region
      // Predicated region
      $region41: #{mobilenet_v2_forward.8} parent=39 // pred_check
        %p228 = pneg %p33
      $region42: #{mobilenet_v2_forward.8} parent=39 // pred_check_branch
        %230 = sbr.rel (%p228) target = $region44
      $region43: #{mobilenet_v2_forward.8} parent=39 // pred_region
        %p231 = scmp.lt.s32.totalorder %s13, 1
        %s232 = scalar_select %p231, %s13, 1
        %s233 = smul.addr %s232, 8
        %s234 = smul.addr %s233, 8
        %s235 = scalar_lea.vmem %s0, %s234
      $region44: #{mobilenet_v2_forward.8} parent=39 // pred_fallthru
        _
    $region40: #{mobilenet_v2_forward.8} parent=5 // pred_fallthru
      _
    %p236 = scmp.le.s32.totalorder 1, %s13
    %p237 = scmp.lt.s32.totalorder %s13, 3
    %p238 = pnand %p236, %p237
    %p239 = pneg %p238
    // Predicated region
    $region45: #{mobilenet_v2_forward.8} parent=5 // pred_check
      _
    $region46: #{mobilenet_v2_forward.8} parent=5 // pred_check_branch
      %241 = sbr.rel (%p238) target = $region48
    $region47: #{mobilenet_v2_forward.8} parent=5 // pred_region
      %s242 = ssub.s32 %s13, 1
      %p243 = scmp.lt.s32.totalorder %s18, 1
      %s244 = scalar_select %p243, %s18, 1
      %s245 = smul.addr %s244, 8
      %s246 = smul.addr %s245, 8
      %s247 = scalar_lea.vmem %s0, %s246
      %p248 = pneg %p39
      %p249 = pneg %p36
      %p250 = pneg %p60
      %p251 = pneg %p57
      %p252 = pneg %p81
      %p253 = pneg %p78
      %p254 = pneg %p102
      %p255 = pneg %p99
      %p256 = pneg %p123
      %p257 = pneg %p120
      %p258 = pneg %p144
      %p259 = pneg %p141
      %p260 = pneg %p165
      %p261 = pneg %p162
      %p262 = pneg %p191
      %p263 = pneg %p188
      %p264 = scmp.lt.s32.totalorder %s18, 1
      %s265 = scalar_select %p264, %s18, 1
      %s266 = smul.addr %s265, 8
      %s267 = smul.addr %s266, 8
      %s268 = scalar_lea.vmem %s7, %s267
      %p269 = scmp.lt.s32.totalorder %s18, 1
      %s270 = scalar_select %p269, %s18, 1
      %s271 = smul.addr %s270, 8
      %s272 = smul.addr %s271, 8
      %s273 = scalar_lea.vmem %s0, %s272
      %p274 = scmp.lt.s32.totalorder %s18, 1
      %s275 = scalar_select %p274, %s18, 1
      %s276 = smul.addr %s275, 8
      %s277 = smul.addr %s276, 8
      %s278 = scalar_lea.vmem %s7, %s277
      %v280 = vld [vmem:[%s273] sm:$0xff]
      %v281 = vld [vmem:[%s273 + $0x8] sm:$0xff]
      %v282 = vld [vmem:[%s273 + $0x10] sm:$0xff]
      %v283 = vld [vmem:[%s273 + $0x18] sm:$0xff]
      %v284 = vld [vmem:[%s273 + $0x20] sm:$0xff]
      %v285 = vld [vmem:[%s273 + $0x28] sm:$0xff]
      %v286 = vld [vmem:[%s273 + $0x30] sm:$0xff]
      %v287 = vld [vmem:[%s273 + $0x38] sm:$0xff]
      %v288 = vpack.c.bf16 %v281, %v280
      %v289 = vpack.c.bf16 %v283, %v282
      %v290 = vpack.c.bf16 %v285, %v284
      %v291 = vpack.c.bf16 %v287, %v286
      %v292 = vld [vmem:[%s1] sm:$0xff]
      %v293 = vld [vmem:[%s1 + $0x8] sm:$0xff]
      %v294 = vld [vmem:[%s1 + $0x10] sm:$0xff]
      %v295 = vld [vmem:[%s1 + $0x18] sm:$0xff]
      %v296 = vld [vmem:[%s1 + $0x20] sm:$0xff]
      %v297 = vld [vmem:[%s1 + $0x28] sm:$0xff]
      %v298 = vld [vmem:[%s1 + $0x30] sm:$0xff]
      %v299 = vld [vmem:[%s1 + $0x38] sm:$0xff]
      %v300 = vpack.c.bf16 %v294, %v292
      %v301 = vpack.c.bf16 %v295, %v293
      %v302 = vpack.c.bf16 %v298, %v296
      %v303 = vpack.c.bf16 %v299, %v297
      %v304 = vld [vmem:[%s2] sm:$0x3]
      %v306 = vlaneseq
      %v307 = vshrl.u32 %v306, 7
      %v308 = vsub.s32 0, %v307
      %v309 = vrot.slane %v304, %v308
      %v310 = vlaneseq
      %v311 = vshrl.u32 %v310, 7
      %v312 = vsub.s32 1, %v311
      %v313 = vrot.slane %v304, %v312
      %vm316 = vcmask 261120
      %v318 = vsel %vm316, %v288, 0
      %v321 = vsel %vm316, %v289, 0
      %v324 = vsel %vm316, %v290, 0
      %v327 = vsel %vm316, %v291, 0
      %329 = vmatprep.subr.bf16.mxu0 0
      %330 = vmatpush1.bf16.msra.mxu0 0
      %331 = vmatprep.subr.bf16.mxu0 0
      %332 = vmatpush1.bf16.msra.mxu0 0
      %333 = vmatprep.subr.bf16.mxu0 0
      %334 = vmatpush1.bf16.msra.mxu0 0
      %335 = vmatprep.subr.bf16.mxu0 0
      %336 = vmatpush1.bf16.msra.mxu0 0
      %337 = vmatprep.subr.bf16.mxu0 0
      %338 = vmatpush1.bf16.msra.mxu0 0
      %339 = vmatprep.subr.bf16.mxu0 0
      %340 = vmatpush1.bf16.msra.mxu0 0
      %341 = vmatprep.subr.bf16.mxu0 %v303
      %342 = vmatpush1.bf16.msra.mxu0 %v302
      %343 = vmatprep.subr.bf16.mxu0 %v301
      %344 = vmatpush1.bf16.msra.mxu0 %v300
      %345 = vmatprep.subr.bf16.mxu0 0
      %346 = vmatpush2.bf16.msra.mxu0 0
      %347 = vmatprep.subr.bf16.mxu0 0
      %348 = vmatpush2.bf16.msra.mxu0 0
      %349 = vmatprep.subr.bf16.mxu0 0
      %350 = vmatpush2.bf16.msra.mxu0 0
      %351 = vmatprep.subr.bf16.mxu0 0
      %352 = vmatpush2.bf16.msra.mxu0 0
      %353 = vmatprep.subr.bf16.mxu0 0
      %354 = vmatpush2.bf16.msra.mxu0 0
      %355 = vmatprep.subr.bf16.mxu0 0
      %356 = vmatpush2.bf16.msra.mxu0 0
      %357 = vmatprep.subr.bf16.mxu0 0
      %358 = vmatpush2.bf16.msra.mxu0 0
      %359 = vmatprep.subr.bf16.mxu0 0
      %360 = vmatpush2.bf16.msra.mxu0 0
      %361 = vmatprep.mubr.bf16.mxu0 0
      %362 = vmatmul.mubr.bf16.gmra.mxu0 %v318
      %v363 = vpop.f32.mrf.mxu0
      %v364 = vadd.f32 %v309, %v363
      %v365 = vpop.f32.mrf.mxu0
      %v366 = vadd.f32 %v313, %v365
      %v367 = vpop.f32.mrf.mxu0
      %v368 = vadd.f32 %v309, %v367
      %v369 = vpop.f32.mrf.mxu0
      %v370 = vadd.f32 %v313, %v369
      %371 = vmatprep.mubr.bf16.mxu0 0
      %372 = vmatmul.mubr.bf16.gmra.mxu0 %v321
      %v373 = vpop.f32.mrf.mxu0
      %v374 = vadd.f32 %v309, %v373
      %v375 = vpop.f32.mrf.mxu0
      %v376 = vadd.f32 %v313, %v375
      %v377 = vpop.f32.mrf.mxu0
      %v378 = vadd.f32 %v309, %v377
      %v379 = vpop.f32.mrf.mxu0
      %v380 = vadd.f32 %v313, %v379
      %381 = vmatprep.mubr.bf16.mxu0 0
      %382 = vmatmul.mubr.bf16.gmra.mxu0 %v324
      %v383 = vpop.f32.mrf.mxu0
      %v384 = vadd.f32 %v309, %v383
      %v385 = vpop.f32.mrf.mxu0
      %v386 = vadd.f32 %v313, %v385
      %v387 = vpop.f32.mrf.mxu0
      %v388 = vadd.f32 %v309, %v387
      %v389 = vpop.f32.mrf.mxu0
      %v390 = vadd.f32 %v313, %v389
      %391 = vmatprep.mubr.bf16.mxu0 0
      %392 = vmatmul.mubr.bf16.gmra.mxu0 %v327
      %v393 = vpop.f32.mrf.mxu0
      %v394 = vadd.f32 %v309, %v393
      %v395 = vpop.f32.mrf.mxu0
      %v396 = vadd.f32 %v313, %v395
      %v397 = vpop.f32.mrf.mxu0
      %v398 = vadd.f32 %v309, %v397
      %v399 = vpop.f32.mrf.mxu0
      %v400 = vadd.f32 %v313, %v399
      %401 = vdwg.mxu0
      %v402 = vmax.f32 %v364, 0.0
      %v403 = vmax.f32 %v366, 0.0
      %v404 = vmax.f32 %v368, 0.0
      %v405 = vmax.f32 %v370, 0.0
      %v406 = vmax.f32 %v374, 0.0
      %v407 = vmax.f32 %v376, 0.0
      %v408 = vmax.f32 %v378, 0.0
      %v409 = vmax.f32 %v380, 0.0
      %v410 = vmax.f32 %v384, 0.0
      %v411 = vmax.f32 %v386, 0.0
      %v412 = vmax.f32 %v388, 0.0
      %v413 = vmax.f32 %v390, 0.0
      %v414 = vmax.f32 %v394, 0.0
      %v415 = vmax.f32 %v396, 0.0
      %v416 = vmax.f32 %v398, 0.0
      %v417 = vmax.f32 %v400, 0.0
      %v418 = vmin.f32 %v402, 6.0
      %v419 = vmin.f32 %v403, 6.0
      %v420 = vmin.f32 %v404, 6.0
      %v421 = vmin.f32 %v405, 6.0
      %v422 = vmin.f32 %v406, 6.0
      %v423 = vmin.f32 %v407, 6.0
      %v424 = vmin.f32 %v408, 6.0
      %v425 = vmin.f32 %v409, 6.0
      %v426 = vmin.f32 %v410, 6.0
      %v427 = vmin.f32 %v411, 6.0
      %v428 = vmin.f32 %v412, 6.0
      %v429 = vmin.f32 %v413, 6.0
      %v430 = vmin.f32 %v414, 6.0
      %v431 = vmin.f32 %v415, 6.0
      %v432 = vmin.f32 %v416, 6.0
      %v433 = vmin.f32 %v417, 6.0
      %434 = vst [vmem:[#allocation2] sm:$0xff] 0.0
      %vm435 = vcmask 523264
      %436 = vst.msk [vmem:[#allocation2 + $0x8] sm:$0xff] %vm435, 0.0
      %437 = vst [vmem:[#allocation2 + $0x10] sm:$0xff] 0.0
      %438 = vst.msk [vmem:[#allocation2 + $0x18] sm:$0xff] %vm435, 0.0
      %439 = vst [vmem:[#allocation2 + $0x20] sm:$0xff] 0.0
      %440 = vst.msk [vmem:[#allocation2 + $0x28] sm:$0xff] %vm435, 0.0
      %441 = vst [vmem:[#allocation2 + $0x30] sm:$0xff] 0.0
      %442 = vst.msk [vmem:[#allocation2 + $0x38] sm:$0xff] %vm435, 0.0
      %443 = vst [vmem:[#allocation2 + $0x40] sm:$0xff] 0.0
      %444 = vst.msk [vmem:[#allocation2 + $0x48] sm:$0xff] %vm435, 0.0
      %445 = vst [vmem:[#allocation2 + $0x50] sm:$0xff] 0.0
      %446 = vst.msk [vmem:[#allocation2 + $0x58] sm:$0xff] %vm435, 0.0
      %447 = vst [vmem:[#allocation2 + $0x60] sm:$0xff] 0.0
      %448 = vst.msk [vmem:[#allocation2 + $0x68] sm:$0xff] %vm435, 0.0
      %449 = vst [vmem:[#allocation2 + $0x70] sm:$0xff] 0.0
      %450 = vst.msk [vmem:[#allocation2 + $0x78] sm:$0xff] %vm435, 0.0
      %451 = vst [vmem:[#allocation2 + $0x80] sm:$0xff] 0.0
      %452 = vst.msk [vmem:[#allocation2 + $0x88] sm:$0xff] %vm435, 0.0
      %453 = vst [vmem:[#allocation2 + $0x90] sm:$0xff] 0.0
      %454 = vst.msk [vmem:[#allocation2 + $0x98] sm:$0xff] %vm435, 0.0
      %455 = vst [vmem:[#allocation2 + $0xa0] sm:$0xff] 0.0
      %456 = vst.msk [vmem:[#allocation2 + $0xa8] sm:$0xff] %vm435, 0.0
      %457 = vst [vmem:[#allocation2 + $0xb0] sm:$0xff] 0.0
      %458 = vst.msk [vmem:[#allocation2 + $0xb8] sm:$0xff] %vm435, 0.0
      %459 = vst [vmem:[#allocation2 + $0xc0] sm:$0xff] 0.0
      %460 = vst.msk [vmem:[#allocation2 + $0xc8] sm:$0xff] %vm435, 0.0
      %461 = vst [vmem:[#allocation2 + $0xd0] sm:$0xff] 0.0
      %462 = vst.msk [vmem:[#allocation2 + $0xd8] sm:$0xff] %vm435, 0.0
      %463 = vst [vmem:[#allocation2 + $0xe0] sm:$0xff] 0.0
      %464 = vst.msk [vmem:[#allocation2 + $0xe8] sm:$0xff] %vm435, 0.0
      %465 = vst [vmem:[#allocation2 + $0xf0] sm:$0xff] 0.0
      %466 = vst.msk [vmem:[#allocation2 + $0xf8] sm:$0xff] %vm435, 0.0
      %467 = vst [vmem:[#allocation2 + $0x100] sm:$0xff] 0.0
      %468 = vst.msk [vmem:[#allocation2 + $0x108] sm:$0xff] %vm435, 0.0
      %469 = vst [vmem:[#allocation2 + $0x110] sm:$0xff] 0.0
      %470 = vst.msk [vmem:[#allocation2 + $0x118] sm:$0xff] %vm435, 0.0
      %471 = vst [vmem:[#allocation2 + $0x120] sm:$0xff] 0.0
      %472 = vst.msk [vmem:[#allocation2 + $0x128] sm:$0xff] %vm435, 0.0
      %473 = vst [vmem:[#allocation2 + $0x130] sm:$0xff] 0.0
      %474 = vst.msk [vmem:[#allocation2 + $0x138] sm:$0xff] %vm435, 0.0
      %475 = vst [vmem:[#allocation2 + $0x140] sm:$0xff] 0.0
      %476 = vst.msk [vmem:[#allocation2 + $0x148] sm:$0xff] %vm435, 0.0
      %477 = vst [vmem:[#allocation2 + $0x150] sm:$0xff] 0.0
      %478 = vst.msk [vmem:[#allocation2 + $0x158] sm:$0xff] %vm435, 0.0
      %479 = vst [vmem:[#allocation2 + $0x160] sm:$0xff] 0.0
      %480 = vst.msk [vmem:[#allocation2 + $0x168] sm:$0xff] %vm435, 0.0
      %481 = vst [vmem:[#allocation2 + $0x170] sm:$0xff] 0.0
      %482 = vst.msk [vmem:[#allocation2 + $0x178] sm:$0xff] %vm435, 0.0
      %483 = vst [vmem:[#allocation2 + $0x180] sm:$0xff] 0.0
      %484 = vst.msk [vmem:[#allocation2 + $0x188] sm:$0xff] %vm435, 0.0
      %485 = vst [vmem:[#allocation2 + $0x190] sm:$0xff] 0.0
      %486 = vst.msk [vmem:[#allocation2 + $0x198] sm:$0xff] %vm435, 0.0
      %487 = vst [vmem:[#allocation2 + $0x1a0] sm:$0xff] 0.0
      %488 = vst.msk [vmem:[#allocation2 + $0x1a8] sm:$0xff] %vm435, 0.0
      %489 = vst [vmem:[#allocation2 + $0x1b0] sm:$0xff] 0.0
      %490 = vst.msk [vmem:[#allocation2 + $0x1b8] sm:$0xff] %vm435, 0.0
      %491 = vst [vmem:[#allocation2 + $0x1c0] sm:$0xff] 0.0
      %492 = vst.msk [vmem:[#allocation2 + $0x1c8] sm:$0xff] %vm435, 0.0
      %493 = vst [vmem:[#allocation2 + $0x1d0] sm:$0xff] 0.0
      %494 = vst.msk [vmem:[#allocation2 + $0x1d8] sm:$0xff] %vm435, 0.0
      %s495 = scalar_lea.vmem [#allocation2], 48
      %496 = vst [vmem:[%s495 + $0x10] sm:$0xff] %v418
      %497 = vst.msk [vmem:[%s495 + $0x18] sm:$0xff] %vm435, %v419
      %498 = vst [vmem:[%s495 + $0x40] sm:$0xff] %v420
      %499 = vst.msk [vmem:[%s495 + $0x48] sm:$0xff] %vm435, %v421
      %500 = vst [vmem:[%s495 + $0x70] sm:$0xff] %v422
      %501 = vst.msk [vmem:[%s495 + $0x78] sm:$0xff] %vm435, %v423
      %502 = vst [vmem:[%s495 + $0xa0] sm:$0xff] %v424
      %503 = vst.msk [vmem:[%s495 + $0xa8] sm:$0xff] %vm435, %v425
      %504 = vst [vmem:[%s495 + $0xd0] sm:$0xff] %v426
      %505 = vst.msk [vmem:[%s495 + $0xd8] sm:$0xff] %vm435, %v427
      %506 = vst [vmem:[%s495 + $0x100] sm:$0xff] %v428
      %507 = vst.msk [vmem:[%s495 + $0x108] sm:$0xff] %vm435, %v429
      %508 = vst [vmem:[%s495 + $0x130] sm:$0xff] %v430
      %509 = vst.msk [vmem:[%s495 + $0x138] sm:$0xff] %vm435, %v431
      %510 = vst [vmem:[%s495 + $0x160] sm:$0xff] %v432
      %511 = vst.msk [vmem:[%s495 + $0x168] sm:$0xff] %vm435, %v433
      %v512 = vld [vmem:[%s3] sm:$0xff]
      %v513 = vld [vmem:[%s3 + $0x8] sm:$0xff]
      %v514 = vld [vmem:[%s3 + $0x10] sm:$0x1]
      %v515 = vld [vmem:[%s3 + $0x18] sm:$0x1]
      %v516 = vld [vmem:[#allocation2] sm:$0x80]
      %v517 = vld [vmem:[#allocation2 + $0x8] sm:$0x80]
      %v518 = vld [vmem:[#allocation2 + $0x10] sm:$0x7f]
      %v519 = vld [vmem:[#allocation2 + $0x18] sm:$0x7f]
      %v520 = vld [vmem:[#allocation2 + $0x30] sm:$0x80]
      %v521 = vld [vmem:[#allocation2 + $0x38] sm:$0x80]
      %v522 = vld [vmem:[#allocation2 + $0x40] sm:$0x7f]
      %v523 = vld [vmem:[#allocation2 + $0x48] sm:$0x7f]
      %v524 = vld [vmem:[#allocation2 + $0x60] sm:$0x80]
      %v525 = vld [vmem:[#allocation2 + $0x68] sm:$0x80]
      %v526 = vld [vmem:[#allocation2 + $0x70] sm:$0x7f]
      %v527 = vld [vmem:[#allocation2 + $0x78] sm:$0x7f]
      %v528 = vld [vmem:[#allocation2 + $0x90] sm:$0x80]
      %v529 = vld [vmem:[#allocation2 + $0x98] sm:$0x80]
      %v530 = vld [vmem:[#allocation2 + $0xa0] sm:$0x7f]
      %v531 = vld [vmem:[#allocation2 + $0xa8] sm:$0x7f]
      %v532 = vld [vmem:[#allocation2 + $0xc0] sm:$0x80]
      %v533 = vld [vmem:[#allocation2 + $0xc8] sm:$0x80]
      %v534 = vld [vmem:[#allocation2 + $0xd0] sm:$0x7f]
      %v535 = vld [vmem:[#allocation2 + $0xd8] sm:$0x7f]
      %v536 = vld [vmem:[#allocation2 + $0xf0] sm:$0x80]
      %v537 = vld [vmem:[#allocation2 + $0xf8] sm:$0x80]
      %v538 = vld [vmem:[#allocation2 + $0x100] sm:$0x7f]
      %v539 = vld [vmem:[#allocation2 + $0x108] sm:$0x7f]
      %v540 = vld [vmem:[#allocation2 + $0x120] sm:$0x80]
      %v541 = vld [vmem:[#allocation2 + $0x128] sm:$0x80]
      %v542 = vld [vmem:[#allocation2 + $0x130] sm:$0x7f]
      %v543 = vld [vmem:[#allocation2 + $0x138] sm:$0x7f]
      %v544 = vld [vmem:[#allocation2 + $0x150] sm:$0x80]
      %v545 = vld [vmem:[#allocation2 + $0x158] sm:$0x80]
      %v546 = vld [vmem:[#allocation2 + $0x160] sm:$0x7f]
      %v547 = vld [vmem:[#allocation2 + $0x168] sm:$0x7f]
      %v548 = vlaneseq
      %v549 = vshrl.u32 %v548, 7
      %v550 = vsub.s32 0, %v549
      %v551 = vrot.slane %v512, %v550
      %v552 = vlaneseq
      %v553 = vshrl.u32 %v552, 7
      %v554 = vsub.s32 0, %v553
      %v555 = vrot.slane %v513, %v554
      %v556 = vmul.f32 %v516, %v551
      %v557 = vmul.f32 %v517, %v555
      %v558 = vmul.f32 %v518, %v551
      %v559 = vmul.f32 %v519, %v555
      %v560 = vmul.f32 %v520, %v551
      %v561 = vmul.f32 %v521, %v555
      %v562 = vmul.f32 %v522, %v551
      %v563 = vmul.f32 %v523, %v555
      %v564 = vmul.f32 %v524, %v551
      %v565 = vmul.f32 %v525, %v555
      %v566 = vmul.f32 %v526, %v551
      %v567 = vmul.f32 %v527, %v555
      %v568 = vmul.f32 %v528, %v551
      %v569 = vmul.f32 %v529, %v555
      %v570 = vmul.f32 %v530, %v551
      %v571 = vmul.f32 %v531, %v555
      %v572 = vmul.f32 %v532, %v551
      %v573 = vmul.f32 %v533, %v555
      %v574 = vmul.f32 %v534, %v551
      %v575 = vmul.f32 %v535, %v555
      %v576 = vmul.f32 %v536, %v551
      %v577 = vmul.f32 %v537, %v555
      %v578 = vmul.f32 %v538, %v551
      %v579 = vmul.f32 %v539, %v555
      %v580 = vmul.f32 %v540, %v551
      %v581 = vmul.f32 %v541, %v555
      %v582 = vmul.f32 %v542, %v551
      %v583 = vmul.f32 %v543, %v555
      %v584 = vmul.f32 %v544, %v551
      %v585 = vmul.f32 %v545, %v555
      %v586 = vmul.f32 %v546, %v551
      %v587 = vmul.f32 %v547, %v555
      %v588 = vld [vmem:[#allocation2 + $0x10] sm:$0xff]
      %v589 = vld [vmem:[#allocation2 + $0x18] sm:$0xff]
      %v590 = vld [vmem:[#allocation2 + $0x40] sm:$0xff]
      %v591 = vld [vmem:[#allocation2 + $0x48] sm:$0xff]
      %v592 = vld [vmem:[#allocation2 + $0x70] sm:$0xff]
      %v593 = vld [vmem:[#allocation2 + $0x78] sm:$0xff]
      %v594 = vld [vmem:[#allocation2 + $0xa0] sm:$0xff]
      %v595 = vld [vmem:[#allocation2 + $0xa8] sm:$0xff]
      %v596 = vld [vmem:[#allocation2 + $0xd0] sm:$0xff]
      %v597 = vld [vmem:[#allocation2 + $0xd8] sm:$0xff]
      %v598 = vld [vmem:[#allocation2 + $0x100] sm:$0xff]
      %v599 = vld [vmem:[#allocation2 + $0x108] sm:$0xff]
      %v600 = vld [vmem:[#allocation2 + $0x130] sm:$0xff]
      %v601 = vld [vmem:[#allocation2 + $0x138] sm:$0xff]
      %v602 = vld [vmem:[#allocation2 + $0x160] sm:$0xff]
      %v603 = vld [vmem:[#allocation2 + $0x168] sm:$0xff]
      %v604 = vlaneseq
      %v605 = vshrl.u32 %v604, 7
      %v606 = vsub.s32 1, %v605
      %v607 = vrot.slane %v512, %v606
      %v608 = vlaneseq
      %v609 = vshrl.u32 %v608, 7
      %v610 = vsub.s32 1, %v609
      %v611 = vrot.slane %v513, %v610
      %v612 = vmul.f32 %v588, %v607
      %v613 = vmul.f32 %v589, %v611
      %v614 = vmul.f32 %v590, %v607
      %v615 = vmul.f32 %v591, %v611
      %v616 = vmul.f32 %v592, %v607
      %v617 = vmul.f32 %v593, %v611
      %v618 = vmul.f32 %v594, %v607
      %v619 = vmul.f32 %v595, %v611
      %v620 = vmul.f32 %v596, %v607
      %v621 = vmul.f32 %v597, %v611
      %v622 = vmul.f32 %v598, %v607
      %v623 = vmul.f32 %v599, %v611
      %v624 = vmul.f32 %v600, %v607
      %v625 = vmul.f32 %v601, %v611
      %v626 = vmul.f32 %v602, %v607
      %v627 = vmul.f32 %v603, %v611
      %v644 = vrot.slane %v612, 1
      %v645 = vrot.slane %v613, 1
      %v646 = vrot.slane %v614, 1
      %v647 = vrot.slane %v615, 1
      %v648 = vrot.slane %v616, 1
      %v649 = vrot.slane %v617, 1
      %v650 = vrot.slane %v618, 1
      %v651 = vrot.slane %v619, 1
      %v652 = vrot.slane %v620, 1
      %v653 = vrot.slane %v621, 1
      %v654 = vrot.slane %v622, 1
      %v655 = vrot.slane %v623, 1
      %v656 = vrot.slane %v624, 1
      %v657 = vrot.slane %v625, 1
      %v658 = vrot.slane %v626, 1
      %v659 = vrot.slane %v627, 1
      %v676 = vadd.f32 %v556, %v644
      %v677 = vadd.f32 %v557, %v645
      %v678 = vadd.f32 %v558, %v644
      %v679 = vadd.f32 %v559, %v645
      %v680 = vadd.f32 %v560, %v646
      %v681 = vadd.f32 %v561, %v647
      %v682 = vadd.f32 %v562, %v646
      %v683 = vadd.f32 %v563, %v647
      %v684 = vadd.f32 %v564, %v648
      %v685 = vadd.f32 %v565, %v649
      %v686 = vadd.f32 %v566, %v648
      %v687 = vadd.f32 %v567, %v649
      %v688 = vadd.f32 %v568, %v650
      %v689 = vadd.f32 %v569, %v651
      %v690 = vadd.f32 %v570, %v650
      %v691 = vadd.f32 %v571, %v651
      %v692 = vadd.f32 %v572, %v652
      %v693 = vadd.f32 %v573, %v653
      %v694 = vadd.f32 %v574, %v652
      %v695 = vadd.f32 %v575, %v653
      %v696 = vadd.f32 %v576, %v654
      %v697 = vadd.f32 %v577, %v655
      %v698 = vadd.f32 %v578, %v654
      %v699 = vadd.f32 %v579, %v655
      %v700 = vadd.f32 %v580, %v656
      %v701 = vadd.f32 %v581, %v657
      %v702 = vadd.f32 %v582, %v656
      %v703 = vadd.f32 %v583, %v657
      %v704 = vadd.f32 %v584, %v658
      %v705 = vadd.f32 %v585, %v659
      %v706 = vadd.f32 %v586, %v658
      %v707 = vadd.f32 %v587, %v659
      %v708 = vld [vmem:[#allocation2 + $0x10] sm:$0xfe]
      %v709 = vld [vmem:[#allocation2 + $0x18] sm:$0xfe]
      %v710 = vld [vmem:[#allocation2 + $0x20] sm:$0x1]
      %v711 = vld [vmem:[#allocation2 + $0x28] sm:$0x1]
      %v712 = vld [vmem:[#allocation2 + $0x40] sm:$0xfe]
      %v713 = vld [vmem:[#allocation2 + $0x48] sm:$0xfe]
      %v714 = vld [vmem:[#allocation2 + $0x50] sm:$0x1]
      %v715 = vld [vmem:[#allocation2 + $0x58] sm:$0x1]
      %v716 = vld [vmem:[#allocation2 + $0x70] sm:$0xfe]
      %v717 = vld [vmem:[#allocation2 + $0x78] sm:$0xfe]
      %v718 = vld [vmem:[#allocation2 + $0x80] sm:$0x1]
      %v719 = vld [vmem:[#allocation2 + $0x88] sm:$0x1]
      %v720 = vld [vmem:[#allocation2 + $0xa0] sm:$0xfe]
      %v721 = vld [vmem:[#allocation2 + $0xa8] sm:$0xfe]
      %v722 = vld [vmem:[#allocation2 + $0xb0] sm:$0x1]
      %v723 = vld [vmem:[#allocation2 + $0xb8] sm:$0x1]
      %v724 = vld [vmem:[#allocation2 + $0xd0] sm:$0xfe]
      %v725 = vld [vmem:[#allocation2 + $0xd8] sm:$0xfe]
      %v726 = vld [vmem:[#allocation2 + $0xe0] sm:$0x1]
      %v727 = vld [vmem:[#allocation2 + $0xe8] sm:$0x1]
      %v728 = vld [vmem:[#allocation2 + $0x100] sm:$0xfe]
      %v729 = vld [vmem:[#allocation2 + $0x108] sm:$0xfe]
      %v730 = vld [vmem:[#allocation2 + $0x110] sm:$0x1]
      %v731 = vld [vmem:[#allocation2 + $0x118] sm:$0x1]
      %v732 = vld [vmem:[#allocation2 + $0x130] sm:$0xfe]
      %v733 = vld [vmem:[#allocation2 + $0x138] sm:$0xfe]
      %v734 = vld [vmem:[#allocation2 + $0x140] sm:$0x1]
      %v735 = vld [vmem:[#allocation2 + $0x148] sm:$0x1]
      %v736 = vld [vmem:[#allocation2 + $0x160] sm:$0xfe]
      %v737 = vld [vmem:[#allocation2 + $0x168] sm:$0xfe]
      %v738 = vld [vmem:[#allocation2 + $0x170] sm:$0x1]
      %v739 = vld [vmem:[#allocation2 + $0x178] sm:$0x1]
      %v740 = vlaneseq
      %v741 = vshrl.u32 %v740, 7
      %v742 = vsub.s32 2, %v741
      %v743 = vrot.slane %v512, %v742
      %v744 = vlaneseq
      %v745 = vshrl.u32 %v744, 7
      %v746 = vsub.s32 2, %v745
      %v747 = vrot.slane %v513, %v746
      %v748 = vmul.f32 %v708, %v743
      %v749 = vmul.f32 %v709, %v747
      %v750 = vmul.f32 %v710, %v743
      %v751 = vmul.f32 %v711, %v747
      %v752 = vmul.f32 %v712, %v743
      %v753 = vmul.f32 %v713, %v747
      %v754 = vmul.f32 %v714, %v743
      %v755 = vmul.f32 %v715, %v747
      %v756 = vmul.f32 %v716, %v743
      %v757 = vmul.f32 %v717, %v747
      %v758 = vmul.f32 %v718, %v743
      %v759 = vmul.f32 %v719, %v747
      %v760 = vmul.f32 %v720, %v743
      %v761 = vmul.f32 %v721, %v747
      %v762 = vmul.f32 %v722, %v743
      %v763 = vmul.f32 %v723, %v747
      %v764 = vmul.f32 %v724, %v743
      %v765 = vmul.f32 %v725, %v747
      %v766 = vmul.f32 %v726, %v743
      %v767 = vmul.f32 %v727, %v747
      %v768 = vmul.f32 %v728, %v743
      %v769 = vmul.f32 %v729, %v747
      %v770 = vmul.f32 %v730, %v743
      %v771 = vmul.f32 %v731, %v747
      %v772 = vmul.f32 %v732, %v743
      %v773 = vmul.f32 %v733, %v747
      %v774 = vmul.f32 %v734, %v743
      %v775 = vmul.f32 %v735, %v747
      %v776 = vmul.f32 %v736, %v743
      %v777 = vmul.f32 %v737, %v747
      %v778 = vmul.f32 %v738, %v743
      %v779 = vmul.f32 %v739, %v747
      %vm812 = vcmask 1045504
      %v813 = vrot.slane %v748, 2
      %v814 = vrot.slane %v749, 2
      %v815 = vrot.slane %v750, 2
      %v816 = vsel %vm812, %v813, %v815
      %v817 = vrot.slane %v751, 2
      %v818 = vsel %vm812, %v814, %v817
      %v819 = vrot.slane %v752, 2
      %v820 = vrot.slane %v753, 2
      %v821 = vrot.slane %v754, 2
      %v822 = vsel %vm812, %v819, %v821
      %v823 = vrot.slane %v755, 2
      %v824 = vsel %vm812, %v820, %v823
      %v825 = vrot.slane %v756, 2
      %v826 = vrot.slane %v757, 2
      %v827 = vrot.slane %v758, 2
      %v828 = vsel %vm812, %v825, %v827
      %v829 = vrot.slane %v759, 2
      %v830 = vsel %vm812, %v826, %v829
      %v831 = vrot.slane %v760, 2
      %v832 = vrot.slane %v761, 2
      %v833 = vrot.slane %v762, 2
      %v834 = vsel %vm812, %v831, %v833
      %v835 = vrot.slane %v763, 2
      %v836 = vsel %vm812, %v832, %v835
      %v837 = vrot.slane %v764, 2
      %v838 = vrot.slane %v765, 2
      %v839 = vrot.slane %v766, 2
      %v840 = vsel %vm812, %v837, %v839
      %v841 = vrot.slane %v767, 2
      %v842 = vsel %vm812, %v838, %v841
      %v843 = vrot.slane %v768, 2
      %v844 = vrot.slane %v769, 2
      %v845 = vrot.slane %v770, 2
      %v846 = vsel %vm812, %v843, %v845
      %v847 = vrot.slane %v771, 2
      %v848 = vsel %vm812, %v844, %v847
      %v849 = vrot.slane %v772, 2
      %v850 = vrot.slane %v773, 2
      %v851 = vrot.slane %v774, 2
      %v852 = vsel %vm812, %v849, %v851
      %v853 = vrot.slane %v775, 2
      %v854 = vsel %vm812, %v850, %v853
      %v855 = vrot.slane %v776, 2
      %v856 = vrot.slane %v777, 2
      %v857 = vrot.slane %v778, 2
      %v858 = vsel %vm812, %v855, %v857
      %v859 = vrot.slane %v779, 2
      %v860 = vsel %vm812, %v856, %v859
      %v893 = vadd.f32 %v676, %v813
      %v894 = vadd.f32 %v677, %v814
      %v895 = vadd.f32 %v678, %v816
      %v896 = vadd.f32 %v679, %v818
      %v897 = vadd.f32 %v680, %v819
      %v898 = vadd.f32 %v681, %v820
      %v899 = vadd.f32 %v682, %v822
      %v900 = vadd.f32 %v683, %v824
      %v901 = vadd.f32 %v684, %v825
      %v902 = vadd.f32 %v685, %v826
      %v903 = vadd.f32 %v686, %v828
      %v904 = vadd.f32 %v687, %v830
      %v905 = vadd.f32 %v688, %v831
      %v906 = vadd.f32 %v689, %v832
      %v907 = vadd.f32 %v690, %v834
      %v908 = vadd.f32 %v691, %v836
      %v909 = vadd.f32 %v692, %v837
      %v910 = vadd.f32 %v693, %v838
      %v911 = vadd.f32 %v694, %v840
      %v912 = vadd.f32 %v695, %v842
      %v913 = vadd.f32 %v696, %v843
      %v914 = vadd.f32 %v697, %v844
      %v915 = vadd.f32 %v698, %v846
      %v916 = vadd.f32 %v699, %v848
      %v917 = vadd.f32 %v700, %v849
      %v918 = vadd.f32 %v701, %v850
      %v919 = vadd.f32 %v702, %v852
      %v920 = vadd.f32 %v703, %v854
      %v921 = vadd.f32 %v704, %v855
      %v922 = vadd.f32 %v705, %v856
      %v923 = vadd.f32 %v706, %v858
      %v924 = vadd.f32 %v707, %v860
      %v925 = vld [vmem:[%s495] sm:$0x80]
      %v926 = vld [vmem:[%s495 + $0x8] sm:$0x80]
      %v927 = vld [vmem:[%s495 + $0x10] sm:$0x7f]
      %v928 = vld [vmem:[%s495 + $0x18] sm:$0x7f]
      %v929 = vld [vmem:[%s495 + $0x30] sm:$0x80]
      %v930 = vld [vmem:[%s495 + $0x38] sm:$0x80]
      %v931 = vld [vmem:[%s495 + $0x40] sm:$0x7f]
      %v932 = vld [vmem:[%s495 + $0x48] sm:$0x7f]
      %v933 = vld [vmem:[%s495 + $0x60] sm:$0x80]
      %v934 = vld [vmem:[%s495 + $0x68] sm:$0x80]
      %v935 = vld [vmem:[%s495 + $0x70] sm:$0x7f]
      %v936 = vld [vmem:[%s495 + $0x78] sm:$0x7f]
      %v937 = vld [vmem:[%s495 + $0x90] sm:$0x80]
      %v938 = vld [vmem:[%s495 + $0x98] sm:$0x80]
      %v939 = vld [vmem:[%s495 + $0xa0] sm:$0x7f]
      %v940 = vld [vmem:[%s495 + $0xa8] sm:$0x7f]
      %v941 = vld [vmem:[%s495 + $0xc0] sm:$0x80]
      %v942 = vld [vmem:[%s495 + $0xc8] sm:$0x80]
      %v943 = vld [vmem:[%s495 + $0xd0] sm:$0x7f]
      %v944 = vld [vmem:[%s495 + $0xd8] sm:$0x7f]
      %v945 = vld [vmem:[%s495 + $0xf0] sm:$0x80]
      %v946 = vld [vmem:[%s495 + $0xf8] sm:$0x80]
      %v947 = vld [vmem:[%s495 + $0x100] sm:$0x7f]
      %v948 = vld [vmem:[%s495 + $0x108] sm:$0x7f]
      %v949 = vld [vmem:[%s495 + $0x120] sm:$0x80]
      %v950 = vld [vmem:[%s495 + $0x128] sm:$0x80]
      %v951 = vld [vmem:[%s495 + $0x130] sm:$0x7f]
      %v952 = vld [vmem:[%s495 + $0x138] sm:$0x7f]
      %v953 = vld [vmem:[%s495 + $0x150] sm:$0x80]
      %v954 = vld [vmem:[%s495 + $0x158] sm:$0x80]
      %v955 = vld [vmem:[%s495 + $0x160] sm:$0x7f]
      %v956 = vld [vmem:[%s495 + $0x168] sm:$0x7f]
      %v957 = vlaneseq
      %v958 = vshrl.u32 %v957, 7
      %v959 = vsub.s32 3, %v958
      %v960 = vrot.slane %v512, %v959
      %v961 = vlaneseq
      %v962 = vshrl.u32 %v961, 7
      %v963 = vsub.s32 3, %v962
      %v964 = vrot.slane %v513, %v963
      %v965 = vmul.f32 %v925, %v960
      %v966 = vmul.f32 %v926, %v964
      %v967 = vmul.f32 %v927, %v960
      %v968 = vmul.f32 %v928, %v964
      %v969 = vmul.f32 %v929, %v960
      %v970 = vmul.f32 %v930, %v964
      %v971 = vmul.f32 %v931, %v960
      %v972 = vmul.f32 %v932, %v964
      %v973 = vmul.f32 %v933, %v960
      %v974 = vmul.f32 %v934, %v964
      %v975 = vmul.f32 %v935, %v960
      %v976 = vmul.f32 %v936, %v964
      %v977 = vmul.f32 %v937, %v960
      %v978 = vmul.f32 %v938, %v964
      %v979 = vmul.f32 %v939, %v960
      %v980 = vmul.f32 %v940, %v964
      %v981 = vmul.f32 %v941, %v960
      %v982 = vmul.f32 %v942, %v964
      %v983 = vmul.f32 %v943, %v960
      %v984 = vmul.f32 %v944, %v964
      %v985 = vmul.f32 %v945, %v960
      %v986 = vmul.f32 %v946, %v964
      %v987 = vmul.f32 %v947, %v960
      %v988 = vmul.f32 %v948, %v964
      %v989 = vmul.f32 %v949, %v960
      %v990 = vmul.f32 %v950, %v964
      %v991 = vmul.f32 %v951, %v960
      %v992 = vmul.f32 %v952, %v964
      %v993 = vmul.f32 %v953, %v960
      %v994 = vmul.f32 %v954, %v964
      %v995 = vmul.f32 %v955, %v960
      %v996 = vmul.f32 %v956, %v964
      %v997 = vadd.f32 %v893, %v965
      %v998 = vadd.f32 %v894, %v966
      %v999 = vadd.f32 %v895, %v967
      %v1000 = vadd.f32 %v896, %v968
      %v1001 = vadd.f32 %v897, %v969
      %v1002 = vadd.f32 %v898, %v970
      %v1003 = vadd.f32 %v899, %v971
      %v1004 = vadd.f32 %v900, %v972
      %v1005 = vadd.f32 %v901, %v973
      %v1006 = vadd.f32 %v902, %v974
      %v1007 = vadd.f32 %v903, %v975
      %v1008 = vadd.f32 %v904, %v976
      %v1009 = vadd.f32 %v905, %v977
      %v1010 = vadd.f32 %v906, %v978
      %v1011 = vadd.f32 %v907, %v979
      %v1012 = vadd.f32 %v908, %v980
      %v1013 = vadd.f32 %v909, %v981
      %v1014 = vadd.f32 %v910, %v982
      %v1015 = vadd.f32 %v911, %v983
      %v1016 = vadd.f32 %v912, %v984
      %v1017 = vadd.f32 %v913, %v985
      %v1018 = vadd.f32 %v914, %v986
      %v1019 = vadd.f32 %v915, %v987
      %v1020 = vadd.f32 %v916, %v988
      %v1021 = vadd.f32 %v917, %v989
      %v1022 = vadd.f32 %v918, %v990
      %v1023 = vadd.f32 %v919, %v991
      %v1024 = vadd.f32 %v920, %v992
      %v1025 = vadd.f32 %v921, %v993
      %v1026 = vadd.f32 %v922, %v994
      %v1027 = vadd.f32 %v923, %v995
      %v1028 = vadd.f32 %v924, %v996
      %v1029 = vld [vmem:[%s495 + $0x10] sm:$0xff]
      %v1030 = vld [vmem:[%s495 + $0x18] sm:$0xff]
      %v1031 = vld [vmem:[%s495 + $0x40] sm:$0xff]
      %v1032 = vld [vmem:[%s495 + $0x48] sm:$0xff]
      %v1033 = vld [vmem:[%s495 + $0x70] sm:$0xff]
      %v1034 = vld [vmem:[%s495 + $0x78] sm:$0xff]
      %v1035 = vld [vmem:[%s495 + $0xa0] sm:$0xff]
      %v1036 = vld [vmem:[%s495 + $0xa8] sm:$0xff]
      %v1037 = vld [vmem:[%s495 + $0xd0] sm:$0xff]
      %v1038 = vld [vmem:[%s495 + $0xd8] sm:$0xff]
      %v1039 = vld [vmem:[%s495 + $0x100] sm:$0xff]
      %v1040 = vld [vmem:[%s495 + $0x108] sm:$0xff]
      %v1041 = vld [vmem:[%s495 + $0x130] sm:$0xff]
      %v1042 = vld [vmem:[%s495 + $0x138] sm:$0xff]
      %v1043 = vld [vmem:[%s495 + $0x160] sm:$0xff]
      %v1044 = vld [vmem:[%s495 + $0x168] sm:$0xff]
      %v1045 = vlaneseq
      %v1046 = vshrl.u32 %v1045, 7
      %v1047 = vsub.s32 4, %v1046
      %v1048 = vrot.slane %v512, %v1047
      %v1049 = vlaneseq
      %v1050 = vshrl.u32 %v1049, 7
      %v1051 = vsub.s32 4, %v1050
      %v1052 = vrot.slane %v513, %v1051
      %v1053 = vmul.f32 %v1029, %v1048
      %v1054 = vmul.f32 %v1030, %v1052
      %v1055 = vmul.f32 %v1031, %v1048
      %v1056 = vmul.f32 %v1032, %v1052
      %v1057 = vmul.f32 %v1033, %v1048
      %v1058 = vmul.f32 %v1034, %v1052
      %v1059 = vmul.f32 %v1035, %v1048
      %v1060 = vmul.f32 %v1036, %v1052
      %v1061 = vmul.f32 %v1037, %v1048
      %v1062 = vmul.f32 %v1038, %v1052
      %v1063 = vmul.f32 %v1039, %v1048
      %v1064 = vmul.f32 %v1040, %v1052
      %v1065 = vmul.f32 %v1041, %v1048
      %v1066 = vmul.f32 %v1042, %v1052
      %v1067 = vmul.f32 %v1043, %v1048
      %v1068 = vmul.f32 %v1044, %v1052
      %v1085 = vrot.slane %v1053, 1
      %v1086 = vrot.slane %v1054, 1
      %v1087 = vrot.slane %v1055, 1
      %v1088 = vrot.slane %v1056, 1
      %v1089 = vrot.slane %v1057, 1
      %v1090 = vrot.slane %v1058, 1
      %v1091 = vrot.slane %v1059, 1
      %v1092 = vrot.slane %v1060, 1
      %v1093 = vrot.slane %v1061, 1
      %v1094 = vrot.slane %v1062, 1
      %v1095 = vrot.slane %v1063, 1
      %v1096 = vrot.slane %v1064, 1
      %v1097 = vrot.slane %v1065, 1
      %v1098 = vrot.slane %v1066, 1
      %v1099 = vrot.slane %v1067, 1
      %v1100 = vrot.slane %v1068, 1
      %v1117 = vadd.f32 %v997, %v1085
      %v1118 = vadd.f32 %v998, %v1086
      %v1119 = vadd.f32 %v999, %v1085
      %v1120 = vadd.f32 %v1000, %v1086
      %v1121 = vadd.f32 %v1001, %v1087
      %v1122 = vadd.f32 %v1002, %v1088
      %v1123 = vadd.f32 %v1003, %v1087
      %v1124 = vadd.f32 %v1004, %v1088
      %v1125 = vadd.f32 %v1005, %v1089
      %v1126 = vadd.f32 %v1006, %v1090
      %v1127 = vadd.f32 %v1007, %v1089
      %v1128 = vadd.f32 %v1008, %v1090
      %v1129 = vadd.f32 %v1009, %v1091
      %v1130 = vadd.f32 %v1010, %v1092
      %v1131 = vadd.f32 %v1011, %v1091
      %v1132 = vadd.f32 %v1012, %v1092
      %v1133 = vadd.f32 %v1013, %v1093
      %v1134 = vadd.f32 %v1014, %v1094
      %v1135 = vadd.f32 %v1015, %v1093
      %v1136 = vadd.f32 %v1016, %v1094
      %v1137 = vadd.f32 %v1017, %v1095
      %v1138 = vadd.f32 %v1018, %v1096
      %v1139 = vadd.f32 %v1019, %v1095
      %v1140 = vadd.f32 %v1020, %v1096
      %v1141 = vadd.f32 %v1021, %v1097
      %v1142 = vadd.f32 %v1022, %v1098
      %v1143 = vadd.f32 %v1023, %v1097
      %v1144 = vadd.f32 %v1024, %v1098
      %v1145 = vadd.f32 %v1025, %v1099
      %v1146 = vadd.f32 %v1026, %v1100
      %v1147 = vadd.f32 %v1027, %v1099
      %v1148 = vadd.f32 %v1028, %v1100
      %v1149 = vld [vmem:[%s495 + $0x10] sm:$0xfe]
      %v1150 = vld [vmem:[%s495 + $0x18] sm:$0xfe]
      %v1151 = vld [vmem:[%s495 + $0x20] sm:$0x1]
      %v1152 = vld [vmem:[%s495 + $0x28] sm:$0x1]
      %v1153 = vld [vmem:[%s495 + $0x40] sm:$0xfe]
      %v1154 = vld [vmem:[%s495 + $0x48] sm:$0xfe]
      %v1155 = vld [vmem:[%s495 + $0x50] sm:$0x1]
      %v1156 = vld [vmem:[%s495 + $0x58] sm:$0x1]
      %v1157 = vld [vmem:[%s495 + $0x70] sm:$0xfe]
      %v1158 = vld [vmem:[%s495 + $0x78] sm:$0xfe]
      %v1159 = vld [vmem:[%s495 + $0x80] sm:$0x1]
      %v1160 = vld [vmem:[%s495 + $0x88] sm:$0x1]
      %v1161 = vld [vmem:[%s495 + $0xa0] sm:$0xfe]
      %v1162 = vld [vmem:[%s495 + $0xa8] sm:$0xfe]
      %v1163 = vld [vmem:[%s495 + $0xb0] sm:$0x1]
      %v1164 = vld [vmem:[%s495 + $0xb8] sm:$0x1]
      %v1165 = vld [vmem:[%s495 + $0xd0] sm:$0xfe]
      %v1166 = vld [vmem:[%s495 + $0xd8] sm:$0xfe]
      %v1167 = vld [vmem:[%s495 + $0xe0] sm:$0x1]
      %v1168 = vld [vmem:[%s495 + $0xe8] sm:$0x1]
      %v1169 = vld [vmem:[%s495 + $0x100] sm:$0xfe]
      %v1170 = vld [vmem:[%s495 + $0x108] sm:$0xfe]
      %v1171 = vld [vmem:[%s495 + $0x110] sm:$0x1]
      %v1172 = vld [vmem:[%s495 + $0x118] sm:$0x1]
      %v1173 = vld [vmem:[%s495 + $0x130] sm:$0xfe]
      %v1174 = vld [vmem:[%s495 + $0x138] sm:$0xfe]
      %v1175 = vld [vmem:[%s495 + $0x140] sm:$0x1]
      %v1176 = vld [vmem:[%s495 + $0x148] sm:$0x1]
      %v1177 = vld [vmem:[%s495 + $0x160] sm:$0xfe]
      %v1178 = vld [vmem:[%s495 + $0x168] sm:$0xfe]
      %v1179 = vld [vmem:[%s495 + $0x170] sm:$0x1]
      %v1180 = vld [vmem:[%s495 + $0x178] sm:$0x1]
      %v1181 = vlaneseq
      %v1182 = vshrl.u32 %v1181, 7
      %v1183 = vsub.s32 5, %v1182
      %v1184 = vrot.slane %v512, %v1183
      %v1185 = vlaneseq
      %v1186 = vshrl.u32 %v1185, 7
      %v1187 = vsub.s32 5, %v1186
      %v1188 = vrot.slane %v513, %v1187
      %v1189 = vmul.f32 %v1149, %v1184
      %v1190 = vmul.f32 %v1150, %v1188
      %v1191 = vmul.f32 %v1151, %v1184
      %v1192 = vmul.f32 %v1152, %v1188
      %v1193 = vmul.f32 %v1153, %v1184
      %v1194 = vmul.f32 %v1154, %v1188
      %v1195 = vmul.f32 %v1155, %v1184
      %v1196 = vmul.f32 %v1156, %v1188
      %v1197 = vmul.f32 %v1157, %v1184
      %v1198 = vmul.f32 %v1158, %v1188
      %v1199 = vmul.f32 %v1159, %v1184
      %v1200 = vmul.f32 %v1160, %v1188
      %v1201 = vmul.f32 %v1161, %v1184
      %v1202 = vmul.f32 %v1162, %v1188
      %v1203 = vmul.f32 %v1163, %v1184
      %v1204 = vmul.f32 %v1164, %v1188
      %v1205 = vmul.f32 %v1165, %v1184
      %v1206 = vmul.f32 %v1166, %v1188
      %v1207 = vmul.f32 %v1167, %v1184
      %v1208 = vmul.f32 %v1168, %v1188
      %v1209 = vmul.f32 %v1169, %v1184
      %v1210 = vmul.f32 %v1170, %v1188
      %v1211 = vmul.f32 %v1171, %v1184
      %v1212 = vmul.f32 %v1172, %v1188
      %v1213 = vmul.f32 %v1173, %v1184
      %v1214 = vmul.f32 %v1174, %v1188
      %v1215 = vmul.f32 %v1175, %v1184
      %v1216 = vmul.f32 %v1176, %v1188
      %v1217 = vmul.f32 %v1177, %v1184
      %v1218 = vmul.f32 %v1178, %v1188
      %v1219 = vmul.f32 %v1179, %v1184
      %v1220 = vmul.f32 %v1180, %v1188
      %v1253 = vrot.slane %v1189, 2
      %v1254 = vrot.slane %v1190, 2
      %v1255 = vrot.slane %v1191, 2
      %v1256 = vsel %vm812, %v1253, %v1255
      %v1257 = vrot.slane %v1192, 2
      %v1258 = vsel %vm812, %v1254, %v1257
      %v1259 = vrot.slane %v1193, 2
      %v1260 = vrot.slane %v1194, 2
      %v1261 = vrot.slane %v1195, 2
      %v1262 = vsel %vm812, %v1259, %v1261
      %v1263 = vrot.slane %v1196, 2
      %v1264 = vsel %vm812, %v1260, %v1263
      %v1265 = vrot.slane %v1197, 2
      %v1266 = vrot.slane %v1198, 2
      %v1267 = vrot.slane %v1199, 2
      %v1268 = vsel %vm812, %v1265, %v1267
      %v1269 = vrot.slane %v1200, 2
      %v1270 = vsel %vm812, %v1266, %v1269
      %v1271 = vrot.slane %v1201, 2
      %v1272 = vrot.slane %v1202, 2
      %v1273 = vrot.slane %v1203, 2
      %v1274 = vsel %vm812, %v1271, %v1273
      %v1275 = vrot.slane %v1204, 2
      %v1276 = vsel %vm812, %v1272, %v1275
      %v1277 = vrot.slane %v1205, 2
      %v1278 = vrot.slane %v1206, 2
      %v1279 = vrot.slane %v1207, 2
      %v1280 = vsel %vm812, %v1277, %v1279
      %v1281 = vrot.slane %v1208, 2
      %v1282 = vsel %vm812, %v1278, %v1281
      %v1283 = vrot.slane %v1209, 2
      %v1284 = vrot.slane %v1210, 2
      %v1285 = vrot.slane %v1211, 2
      %v1286 = vsel %vm812, %v1283, %v1285
      %v1287 = vrot.slane %v1212, 2
      %v1288 = vsel %vm812, %v1284, %v1287
      %v1289 = vrot.slane %v1213, 2
      %v1290 = vrot.slane %v1214, 2
      %v1291 = vrot.slane %v1215, 2
      %v1292 = vsel %vm812, %v1289, %v1291
      %v1293 = vrot.slane %v1216, 2
      %v1294 = vsel %vm812, %v1290, %v1293
      %v1295 = vrot.slane %v1217, 2
      %v1296 = vrot.slane %v1218, 2
      %v1297 = vrot.slane %v1219, 2
      %v1298 = vsel %vm812, %v1295, %v1297
      %v1299 = vrot.slane %v1220, 2
      %v1300 = vsel %vm812, %v1296, %v1299
      %v1333 = vadd.f32 %v1117, %v1253
      %v1334 = vadd.f32 %v1118, %v1254
      %v1335 = vadd.f32 %v1119, %v1256
      %v1336 = vadd.f32 %v1120, %v1258
      %v1337 = vadd.f32 %v1121, %v1259
      %v1338 = vadd.f32 %v1122, %v1260
      %v1339 = vadd.f32 %v1123, %v1262
      %v1340 = vadd.f32 %v1124, %v1264
      %v1341 = vadd.f32 %v1125, %v1265
      %v1342 = vadd.f32 %v1126, %v1266
      %v1343 = vadd.f32 %v1127, %v1268
      %v1344 = vadd.f32 %v1128, %v1270
      %v1345 = vadd.f32 %v1129, %v1271
      %v1346 = vadd.f32 %v1130, %v1272
      %v1347 = vadd.f32 %v1131, %v1274
      %v1348 = vadd.f32 %v1132, %v1276
      %v1349 = vadd.f32 %v1133, %v1277
      %v1350 = vadd.f32 %v1134, %v1278
      %v1351 = vadd.f32 %v1135, %v1280
      %v1352 = vadd.f32 %v1136, %v1282
      %v1353 = vadd.f32 %v1137, %v1283
      %v1354 = vadd.f32 %v1138, %v1284
      %v1355 = vadd.f32 %v1139, %v1286
      %v1356 = vadd.f32 %v1140, %v1288
      %v1357 = vadd.f32 %v1141, %v1289
      %v1358 = vadd.f32 %v1142, %v1290
      %v1359 = vadd.f32 %v1143, %v1292
      %v1360 = vadd.f32 %v1144, %v1294
      %v1361 = vadd.f32 %v1145, %v1295
      %v1362 = vadd.f32 %v1146, %v1296
      %v1363 = vadd.f32 %v1147, %v1298
      %v1364 = vadd.f32 %v1148, %v1300
      %s1365 = scalar_lea.vmem [#allocation2], 96
      %v1366 = vld [vmem:[%s1365] sm:$0x80]
      %v1367 = vld [vmem:[%s1365 + $0x8] sm:$0x80]
      %v1368 = vld [vmem:[%s1365 + $0x10] sm:$0x7f]
      %v1369 = vld [vmem:[%s1365 + $0x18] sm:$0x7f]
      %v1370 = vld [vmem:[%s1365 + $0x30] sm:$0x80]
      %v1371 = vld [vmem:[%s1365 + $0x38] sm:$0x80]
      %v1372 = vld [vmem:[%s1365 + $0x40] sm:$0x7f]
      %v1373 = vld [vmem:[%s1365 + $0x48] sm:$0x7f]
      %v1374 = vld [vmem:[%s1365 + $0x60] sm:$0x80]
      %v1375 = vld [vmem:[%s1365 + $0x68] sm:$0x80]
      %v1376 = vld [vmem:[%s1365 + $0x70] sm:$0x7f]
      %v1377 = vld [vmem:[%s1365 + $0x78] sm:$0x7f]
      %v1378 = vld [vmem:[%s1365 + $0x90] sm:$0x80]
      %v1379 = vld [vmem:[%s1365 + $0x98] sm:$0x80]
      %v1380 = vld [vmem:[%s1365 + $0xa0] sm:$0x7f]
      %v1381 = vld [vmem:[%s1365 + $0xa8] sm:$0x7f]
      %v1382 = vld [vmem:[%s1365 + $0xc0] sm:$0x80]
      %v1383 = vld [vmem:[%s1365 + $0xc8] sm:$0x80]
      %v1384 = vld [vmem:[%s1365 + $0xd0] sm:$0x7f]
      %v1385 = vld [vmem:[%s1365 + $0xd8] sm:$0x7f]
      %v1386 = vld [vmem:[%s1365 + $0xf0] sm:$0x80]
      %v1387 = vld [vmem:[%s1365 + $0xf8] sm:$0x80]
      %v1388 = vld [vmem:[%s1365 + $0x100] sm:$0x7f]
      %v1389 = vld [vmem:[%s1365 + $0x108] sm:$0x7f]
      %v1390 = vld [vmem:[%s1365 + $0x120] sm:$0x80]
      %v1391 = vld [vmem:[%s1365 + $0x128] sm:$0x80]
      %v1392 = vld [vmem:[%s1365 + $0x130] sm:$0x7f]
      %v1393 = vld [vmem:[%s1365 + $0x138] sm:$0x7f]
      %v1394 = vld [vmem:[%s1365 + $0x150] sm:$0x80]
      %v1395 = vld [vmem:[%s1365 + $0x158] sm:$0x80]
      %v1396 = vld [vmem:[%s1365 + $0x160] sm:$0x7f]
      %v1397 = vld [vmem:[%s1365 + $0x168] sm:$0x7f]
      %v1398 = vlaneseq
      %v1399 = vshrl.u32 %v1398, 7
      %v1400 = vsub.s32 6, %v1399
      %v1401 = vrot.slane %v512, %v1400
      %v1402 = vlaneseq
      %v1403 = vshrl.u32 %v1402, 7
      %v1404 = vsub.s32 6, %v1403
      %v1405 = vrot.slane %v513, %v1404
      %v1406 = vmul.f32 %v1366, %v1401
      %v1407 = vmul.f32 %v1367, %v1405
      %v1408 = vmul.f32 %v1368, %v1401
      %v1409 = vmul.f32 %v1369, %v1405
      %v1410 = vmul.f32 %v1370, %v1401
      %v1411 = vmul.f32 %v1371, %v1405
      %v1412 = vmul.f32 %v1372, %v1401
      %v1413 = vmul.f32 %v1373, %v1405
      %v1414 = vmul.f32 %v1374, %v1401
      %v1415 = vmul.f32 %v1375, %v1405
      %v1416 = vmul.f32 %v1376, %v1401
      %v1417 = vmul.f32 %v1377, %v1405
      %v1418 = vmul.f32 %v1378, %v1401
      %v1419 = vmul.f32 %v1379, %v1405
      %v1420 = vmul.f32 %v1380, %v1401
      %v1421 = vmul.f32 %v1381, %v1405
      %v1422 = vmul.f32 %v1382, %v1401
      %v1423 = vmul.f32 %v1383, %v1405
      %v1424 = vmul.f32 %v1384, %v1401
      %v1425 = vmul.f32 %v1385, %v1405
      %v1426 = vmul.f32 %v1386, %v1401
      %v1427 = vmul.f32 %v1387, %v1405
      %v1428 = vmul.f32 %v1388, %v1401
      %v1429 = vmul.f32 %v1389, %v1405
      %v1430 = vmul.f32 %v1390, %v1401
      %v1431 = vmul.f32 %v1391, %v1405
      %v1432 = vmul.f32 %v1392, %v1401
      %v1433 = vmul.f32 %v1393, %v1405
      %v1434 = vmul.f32 %v1394, %v1401
      %v1435 = vmul.f32 %v1395, %v1405
      %v1436 = vmul.f32 %v1396, %v1401
      %v1437 = vmul.f32 %v1397, %v1405
      %v1438 = vadd.f32 %v1333, %v1406
      %v1439 = vadd.f32 %v1334, %v1407
      %v1440 = vadd.f32 %v1335, %v1408
      %v1441 = vadd.f32 %v1336, %v1409
      %v1442 = vadd.f32 %v1337, %v1410
      %v1443 = vadd.f32 %v1338, %v1411
      %v1444 = vadd.f32 %v1339, %v1412
      %v1445 = vadd.f32 %v1340, %v1413
      %v1446 = vadd.f32 %v1341, %v1414
      %v1447 = vadd.f32 %v1342, %v1415
      %v1448 = vadd.f32 %v1343, %v1416
      %v1449 = vadd.f32 %v1344, %v1417
      %v1450 = vadd.f32 %v1345, %v1418
      %v1451 = vadd.f32 %v1346, %v1419
      %v1452 = vadd.f32 %v1347, %v1420
      %v1453 = vadd.f32 %v1348, %v1421
      %v1454 = vadd.f32 %v1349, %v1422
      %v1455 = vadd.f32 %v1350, %v1423
      %v1456 = vadd.f32 %v1351, %v1424
      %v1457 = vadd.f32 %v1352, %v1425
      %v1458 = vadd.f32 %v1353, %v1426
      %v1459 = vadd.f32 %v1354, %v1427
      %v1460 = vadd.f32 %v1355, %v1428
      %v1461 = vadd.f32 %v1356, %v1429
      %v1462 = vadd.f32 %v1357, %v1430
      %v1463 = vadd.f32 %v1358, %v1431
      %v1464 = vadd.f32 %v1359, %v1432
      %v1465 = vadd.f32 %v1360, %v1433
      %v1466 = vadd.f32 %v1361, %v1434
      %v1467 = vadd.f32 %v1362, %v1435
      %v1468 = vadd.f32 %v1363, %v1436
      %v1469 = vadd.f32 %v1364, %v1437
      %v1470 = vld [vmem:[%s1365 + $0x10] sm:$0xff]
      %v1471 = vld [vmem:[%s1365 + $0x18] sm:$0xff]
      %v1472 = vld [vmem:[%s1365 + $0x40] sm:$0xff]
      %v1473 = vld [vmem:[%s1365 + $0x48] sm:$0xff]
      %v1474 = vld [vmem:[%s1365 + $0x70] sm:$0xff]
      %v1475 = vld [vmem:[%s1365 + $0x78] sm:$0xff]
      %v1476 = vld [vmem:[%s1365 + $0xa0] sm:$0xff]
      %v1477 = vld [vmem:[%s1365 + $0xa8] sm:$0xff]
      %v1478 = vld [vmem:[%s1365 + $0xd0] sm:$0xff]
      %v1479 = vld [vmem:[%s1365 + $0xd8] sm:$0xff]
      %v1480 = vld [vmem:[%s1365 + $0x100] sm:$0xff]
      %v1481 = vld [vmem:[%s1365 + $0x108] sm:$0xff]
      %v1482 = vld [vmem:[%s1365 + $0x130] sm:$0xff]
      %v1483 = vld [vmem:[%s1365 + $0x138] sm:$0xff]
      %v1484 = vld [vmem:[%s1365 + $0x160] sm:$0xff]
      %v1485 = vld [vmem:[%s1365 + $0x168] sm:$0xff]
      %v1486 = vlaneseq
      %v1487 = vshrl.u32 %v1486, 7
      %v1488 = vsub.s32 7, %v1487
      %v1489 = vrot.slane %v512, %v1488
      %v1490 = vlaneseq
      %v1491 = vshrl.u32 %v1490, 7
      %v1492 = vsub.s32 7, %v1491
      %v1493 = vrot.slane %v513, %v1492
      %v1494 = vmul.f32 %v1470, %v1489
      %v1495 = vmul.f32 %v1471, %v1493
      %v1496 = vmul.f32 %v1472, %v1489
      %v1497 = vmul.f32 %v1473, %v1493
      %v1498 = vmul.f32 %v1474, %v1489
      %v1499 = vmul.f32 %v1475, %v1493
      %v1500 = vmul.f32 %v1476, %v1489
      %v1501 = vmul.f32 %v1477, %v1493
      %v1502 = vmul.f32 %v1478, %v1489
      %v1503 = vmul.f32 %v1479, %v1493
      %v1504 = vmul.f32 %v1480, %v1489
      %v1505 = vmul.f32 %v1481, %v1493
      %v1506 = vmul.f32 %v1482, %v1489
      %v1507 = vmul.f32 %v1483, %v1493
      %v1508 = vmul.f32 %v1484, %v1489
      %v1509 = vmul.f32 %v1485, %v1493
      %v1526 = vrot.slane %v1494, 1
      %v1527 = vrot.slane %v1495, 1
      %v1528 = vrot.slane %v1496, 1
      %v1529 = vrot.slane %v1497, 1
      %v1530 = vrot.slane %v1498, 1
      %v1531 = vrot.slane %v1499, 1
      %v1532 = vrot.slane %v1500, 1
      %v1533 = vrot.slane %v1501, 1
      %v1534 = vrot.slane %v1502, 1
      %v1535 = vrot.slane %v1503, 1
      %v1536 = vrot.slane %v1504, 1
      %v1537 = vrot.slane %v1505, 1
      %v1538 = vrot.slane %v1506, 1
      %v1539 = vrot.slane %v1507, 1
      %v1540 = vrot.slane %v1508, 1
      %v1541 = vrot.slane %v1509, 1
      %v1558 = vadd.f32 %v1438, %v1526
      %v1559 = vadd.f32 %v1439, %v1527
      %v1560 = vadd.f32 %v1440, %v1526
      %v1561 = vadd.f32 %v1441, %v1527
      %v1562 = vadd.f32 %v1442, %v1528
      %v1563 = vadd.f32 %v1443, %v1529
      %v1564 = vadd.f32 %v1444, %v1528
      %v1565 = vadd.f32 %v1445, %v1529
      %v1566 = vadd.f32 %v1446, %v1530
      %v1567 = vadd.f32 %v1447, %v1531
      %v1568 = vadd.f32 %v1448, %v1530
      %v1569 = vadd.f32 %v1449, %v1531
      %v1570 = vadd.f32 %v1450, %v1532
      %v1571 = vadd.f32 %v1451, %v1533
      %v1572 = vadd.f32 %v1452, %v1532
      %v1573 = vadd.f32 %v1453, %v1533
      %v1574 = vadd.f32 %v1454, %v1534
      %v1575 = vadd.f32 %v1455, %v1535
      %v1576 = vadd.f32 %v1456, %v1534
      %v1577 = vadd.f32 %v1457, %v1535
      %v1578 = vadd.f32 %v1458, %v1536
      %v1579 = vadd.f32 %v1459, %v1537
      %v1580 = vadd.f32 %v1460, %v1536
      %v1581 = vadd.f32 %v1461, %v1537
      %v1582 = vadd.f32 %v1462, %v1538
      %v1583 = vadd.f32 %v1463, %v1539
      %v1584 = vadd.f32 %v1464, %v1538
      %v1585 = vadd.f32 %v1465, %v1539
      %v1586 = vadd.f32 %v1466, %v1540
      %v1587 = vadd.f32 %v1467, %v1541
      %v1588 = vadd.f32 %v1468, %v1540
      %v1589 = vadd.f32 %v1469, %v1541
      %v1590 = vld [vmem:[%s1365 + $0x10] sm:$0xfe]
      %v1591 = vld [vmem:[%s1365 + $0x18] sm:$0xfe]
      %v1592 = vld [vmem:[%s1365 + $0x20] sm:$0x1]
      %v1593 = vld [vmem:[%s1365 + $0x28] sm:$0x1]
      %v1594 = vld [vmem:[%s1365 + $0x40] sm:$0xfe]
      %v1595 = vld [vmem:[%s1365 + $0x48] sm:$0xfe]
      %v1596 = vld [vmem:[%s1365 + $0x50] sm:$0x1]
      %v1597 = vld [vmem:[%s1365 + $0x58] sm:$0x1]
      %v1598 = vld [vmem:[%s1365 + $0x70] sm:$0xfe]
      %v1599 = vld [vmem:[%s1365 + $0x78] sm:$0xfe]
      %v1600 = vld [vmem:[%s1365 + $0x80] sm:$0x1]
      %v1601 = vld [vmem:[%s1365 + $0x88] sm:$0x1]
      %v1602 = vld [vmem:[%s1365 + $0xa0] sm:$0xfe]
      %v1603 = vld [vmem:[%s1365 + $0xa8] sm:$0xfe]
      %v1604 = vld [vmem:[%s1365 + $0xb0] sm:$0x1]
      %v1605 = vld [vmem:[%s1365 + $0xb8] sm:$0x1]
      %v1606 = vld [vmem:[%s1365 + $0xd0] sm:$0xfe]
      %v1607 = vld [vmem:[%s1365 + $0xd8] sm:$0xfe]
      %v1608 = vld [vmem:[%s1365 + $0xe0] sm:$0x1]
      %v1609 = vld [vmem:[%s1365 + $0xe8] sm:$0x1]
      %v1610 = vld [vmem:[%s1365 + $0x100] sm:$0xfe]
      %v1611 = vld [vmem:[%s1365 + $0x108] sm:$0xfe]
      %v1612 = vld [vmem:[%s1365 + $0x110] sm:$0x1]
      %v1613 = vld [vmem:[%s1365 + $0x118] sm:$0x1]
      %v1614 = vld [vmem:[%s1365 + $0x130] sm:$0xfe]
      %v1615 = vld [vmem:[%s1365 + $0x138] sm:$0xfe]
      %v1616 = vld [vmem:[%s1365 + $0x140] sm:$0x1]
      %v1617 = vld [vmem:[%s1365 + $0x148] sm:$0x1]
      %v1618 = vld [vmem:[%s1365 + $0x160] sm:$0xfe]
      %v1619 = vld [vmem:[%s1365 + $0x168] sm:$0xfe]
      %v1620 = vld [vmem:[%s1365 + $0x170] sm:$0x1]
      %v1621 = vld [vmem:[%s1365 + $0x178] sm:$0x1]
      %v1622 = vlaneseq
      %v1623 = vshrl.u32 %v1622, 7
      %v1624 = vsub.s32 0, %v1623
      %v1625 = vrot.slane %v514, %v1624
      %v1626 = vlaneseq
      %v1627 = vshrl.u32 %v1626, 7
      %v1628 = vsub.s32 0, %v1627
      %v1629 = vrot.slane %v515, %v1628
      %v1630 = vmul.f32 %v1590, %v1625
      %v1631 = vmul.f32 %v1591, %v1629
      %v1632 = vmul.f32 %v1592, %v1625
      %v1633 = vmul.f32 %v1593, %v1629
      %v1634 = vmul.f32 %v1594, %v1625
      %v1635 = vmul.f32 %v1595, %v1629
      %v1636 = vmul.f32 %v1596, %v1625
      %v1637 = vmul.f32 %v1597, %v1629
      %v1638 = vmul.f32 %v1598, %v1625
      %v1639 = vmul.f32 %v1599, %v1629
      %v1640 = vmul.f32 %v1600, %v1625
      %v1641 = vmul.f32 %v1601, %v1629
      %v1642 = vmul.f32 %v1602, %v1625
      %v1643 = vmul.f32 %v1603, %v1629
      %v1644 = vmul.f32 %v1604, %v1625
      %v1645 = vmul.f32 %v1605, %v1629
      %v1646 = vmul.f32 %v1606, %v1625
      %v1647 = vmul.f32 %v1607, %v1629
      %v1648 = vmul.f32 %v1608, %v1625
      %v1649 = vmul.f32 %v1609, %v1629
      %v1650 = vmul.f32 %v1610, %v1625
      %v1651 = vmul.f32 %v1611, %v1629
      %v1652 = vmul.f32 %v1612, %v1625
      %v1653 = vmul.f32 %v1613, %v1629
      %v1654 = vmul.f32 %v1614, %v1625
      %v1655 = vmul.f32 %v1615, %v1629
      %v1656 = vmul.f32 %v1616, %v1625
      %v1657 = vmul.f32 %v1617, %v1629
      %v1658 = vmul.f32 %v1618, %v1625
      %v1659 = vmul.f32 %v1619, %v1629
      %v1660 = vmul.f32 %v1620, %v1625
      %v1661 = vmul.f32 %v1621, %v1629
      %v1694 = vrot.slane %v1630, 2
      %v1695 = vrot.slane %v1631, 2
      %v1696 = vrot.slane %v1632, 2
      %v1697 = vsel %vm812, %v1694, %v1696
      %v1698 = vrot.slane %v1633, 2
      %v1699 = vsel %vm812, %v1695, %v1698
      %v1700 = vrot.slane %v1634, 2
      %v1701 = vrot.slane %v1635, 2
      %v1702 = vrot.slane %v1636, 2
      %v1703 = vsel %vm812, %v1700, %v1702
      %v1704 = vrot.slane %v1637, 2
      %v1705 = vsel %vm812, %v1701, %v1704
      %v1706 = vrot.slane %v1638, 2
      %v1707 = vrot.slane %v1639, 2
      %v1708 = vrot.slane %v1640, 2
      %v1709 = vsel %vm812, %v1706, %v1708
      %v1710 = vrot.slane %v1641, 2
      %v1711 = vsel %vm812, %v1707, %v1710
      %v1712 = vrot.slane %v1642, 2
      %v1713 = vrot.slane %v1643, 2
      %v1714 = vrot.slane %v1644, 2
      %v1715 = vsel %vm812, %v1712, %v1714
      %v1716 = vrot.slane %v1645, 2
      %v1717 = vsel %vm812, %v1713, %v1716
      %v1718 = vrot.slane %v1646, 2
      %v1719 = vrot.slane %v1647, 2
      %v1720 = vrot.slane %v1648, 2
      %v1721 = vsel %vm812, %v1718, %v1720
      %v1722 = vrot.slane %v1649, 2
      %v1723 = vsel %vm812, %v1719, %v1722
      %v1724 = vrot.slane %v1650, 2
      %v1725 = vrot.slane %v1651, 2
      %v1726 = vrot.slane %v1652, 2
      %v1727 = vsel %vm812, %v1724, %v1726
      %v1728 = vrot.slane %v1653, 2
      %v1729 = vsel %vm812, %v1725, %v1728
      %v1730 = vrot.slane %v1654, 2
      %v1731 = vrot.slane %v1655, 2
      %v1732 = vrot.slane %v1656, 2
      %v1733 = vsel %vm812, %v1730, %v1732
      %v1734 = vrot.slane %v1657, 2
      %v1735 = vsel %vm812, %v1731, %v1734
      %v1736 = vrot.slane %v1658, 2
      %v1737 = vrot.slane %v1659, 2
      %v1738 = vrot.slane %v1660, 2
      %v1739 = vsel %vm812, %v1736, %v1738
      %v1740 = vrot.slane %v1661, 2
      %v1741 = vsel %vm812, %v1737, %v1740
      %v1774 = vadd.f32 %v1558, %v1694
      %v1775 = vadd.f32 %v1559, %v1695
      %v1776 = vadd.f32 %v1560, %v1697
      %v1777 = vadd.f32 %v1561, %v1699
      %v1778 = vadd.f32 %v1562, %v1700
      %v1779 = vadd.f32 %v1563, %v1701
      %v1780 = vadd.f32 %v1564, %v1703
      %v1781 = vadd.f32 %v1565, %v1705
      %v1782 = vadd.f32 %v1566, %v1706
      %v1783 = vadd.f32 %v1567, %v1707
      %v1784 = vadd.f32 %v1568, %v1709
      %v1785 = vadd.f32 %v1569, %v1711
      %v1786 = vadd.f32 %v1570, %v1712
      %v1787 = vadd.f32 %v1571, %v1713
      %v1788 = vadd.f32 %v1572, %v1715
      %v1789 = vadd.f32 %v1573, %v1717
      %v1790 = vadd.f32 %v1574, %v1718
      %v1791 = vadd.f32 %v1575, %v1719
      %v1792 = vadd.f32 %v1576, %v1721
      %v1793 = vadd.f32 %v1577, %v1723
      %v1794 = vadd.f32 %v1578, %v1724
      %v1795 = vadd.f32 %v1579, %v1725
      %v1796 = vadd.f32 %v1580, %v1727
      %v1797 = vadd.f32 %v1581, %v1729
      %v1798 = vadd.f32 %v1582, %v1730
      %v1799 = vadd.f32 %v1583, %v1731
      %v1800 = vadd.f32 %v1584, %v1733
      %v1801 = vadd.f32 %v1585, %v1735
      %v1802 = vadd.f32 %v1586, %v1736
      %v1803 = vadd.f32 %v1587, %v1737
      %v1804 = vadd.f32 %v1588, %v1739
      %v1805 = vadd.f32 %v1589, %v1741
      %v1806 = vld [vmem:[%s4] sm:$0x3]
      %v1808 = vlaneseq
      %v1809 = vshrl.u32 %v1808, 7
      %v1810 = vsub.s32 0, %v1809
      %v1811 = vrot.slane %v1806, %v1810
      %v1812 = vlaneseq
      %v1813 = vshrl.u32 %v1812, 7
      %v1814 = vsub.s32 1, %v1813
      %v1815 = vrot.slane %v1806, %v1814
      %v1818 = vadd.f32 %v1774, %v1811
      %v1819 = vadd.f32 %v1775, %v1815
      %v1820 = vadd.f32 %v1776, %v1811
      %v1821 = vadd.f32 %v1777, %v1815
      %v1822 = vadd.f32 %v1778, %v1811
      %v1823 = vadd.f32 %v1779, %v1815
      %v1824 = vadd.f32 %v1780, %v1811
      %v1825 = vadd.f32 %v1781, %v1815
      %v1826 = vadd.f32 %v1782, %v1811
      %v1827 = vadd.f32 %v1783, %v1815
      %v1828 = vadd.f32 %v1784, %v1811
      %v1829 = vadd.f32 %v1785, %v1815
      %v1830 = vadd.f32 %v1786, %v1811
      %v1831 = vadd.f32 %v1787, %v1815
      %v1832 = vadd.f32 %v1788, %v1811
      %v1833 = vadd.f32 %v1789, %v1815
      %v1834 = vadd.f32 %v1790, %v1811
      %v1835 = vadd.f32 %v1791, %v1815
      %v1836 = vadd.f32 %v1792, %v1811
      %v1837 = vadd.f32 %v1793, %v1815
      %v1838 = vadd.f32 %v1794, %v1811
      %v1839 = vadd.f32 %v1795, %v1815
      %v1840 = vadd.f32 %v1796, %v1811
      %v1841 = vadd.f32 %v1797, %v1815
      %v1842 = vadd.f32 %v1798, %v1811
      %v1843 = vadd.f32 %v1799, %v1815
      %v1844 = vadd.f32 %v1800, %v1811
      %v1845 = vadd.f32 %v1801, %v1815
      %v1846 = vadd.f32 %v1802, %v1811
      %v1847 = vadd.f32 %v1803, %v1815
      %v1848 = vadd.f32 %v1804, %v1811
      %v1849 = vadd.f32 %v1805, %v1815
      %v1850 = vmax.f32 %v1818, 0.0
      %v1851 = vmax.f32 %v1819, 0.0
      %v1852 = vmax.f32 %v1820, 0.0
      %v1853 = vmax.f32 %v1821, 0.0
      %v1854 = vmax.f32 %v1822, 0.0
      %v1855 = vmax.f32 %v1823, 0.0
      %v1856 = vmax.f32 %v1824, 0.0
      %v1857 = vmax.f32 %v1825, 0.0
      %v1858 = vmax.f32 %v1826, 0.0
      %v1859 = vmax.f32 %v1827, 0.0
      %v1860 = vmax.f32 %v1828, 0.0
      %v1861 = vmax.f32 %v1829, 0.0
      %v1862 = vmax.f32 %v1830, 0.0
      %v1863 = vmax.f32 %v1831, 0.0
      %v1864 = vmax.f32 %v1832, 0.0
      %v1865 = vmax.f32 %v1833, 0.0
      %v1866 = vmax.f32 %v1834, 0.0
      %v1867 = vmax.f32 %v1835, 0.0
      %v1868 = vmax.f32 %v1836, 0.0
      %v1869 = vmax.f32 %v1837, 0.0
      %v1870 = vmax.f32 %v1838, 0.0
      %v1871 = vmax.f32 %v1839, 0.0
      %v1872 = vmax.f32 %v1840, 0.0
      %v1873 = vmax.f32 %v1841, 0.0
      %v1874 = vmax.f32 %v1842, 0.0
      %v1875 = vmax.f32 %v1843, 0.0
      %v1876 = vmax.f32 %v1844, 0.0
      %v1877 = vmax.f32 %v1845, 0.0
      %v1878 = vmax.f32 %v1846, 0.0
      %v1879 = vmax.f32 %v1847, 0.0
      %v1880 = vmax.f32 %v1848, 0.0
      %v1881 = vmax.f32 %v1849, 0.0
      %v1882 = vmin.f32 %v1850, 6.0
      %v1883 = vmin.f32 %v1851, 6.0
      %v1884 = vmin.f32 %v1852, 6.0
      %v1885 = vmin.f32 %v1853, 6.0
      %v1886 = vmin.f32 %v1854, 6.0
      %v1887 = vmin.f32 %v1855, 6.0
      %v1888 = vmin.f32 %v1856, 6.0
      %v1889 = vmin.f32 %v1857, 6.0
      %v1890 = vmin.f32 %v1858, 6.0
      %v1891 = vmin.f32 %v1859, 6.0
      %v1892 = vmin.f32 %v1860, 6.0
      %v1893 = vmin.f32 %v1861, 6.0
      %v1894 = vmin.f32 %v1862, 6.0
      %v1895 = vmin.f32 %v1863, 6.0
      %v1896 = vmin.f32 %v1864, 6.0
      %v1897 = vmin.f32 %v1865, 6.0
      %v1898 = vmin.f32 %v1866, 6.0
      %v1899 = vmin.f32 %v1867, 6.0
      %v1900 = vmin.f32 %v1868, 6.0
      %v1901 = vmin.f32 %v1869, 6.0
      %v1902 = vmin.f32 %v1870, 6.0
      %v1903 = vmin.f32 %v1871, 6.0
      %v1904 = vmin.f32 %v1872, 6.0
      %v1905 = vmin.f32 %v1873, 6.0
      %v1906 = vmin.f32 %v1874, 6.0
      %v1907 = vmin.f32 %v1875, 6.0
      %v1908 = vmin.f32 %v1876, 6.0
      %v1909 = vmin.f32 %v1877, 6.0
      %v1910 = vmin.f32 %v1878, 6.0
      %v1911 = vmin.f32 %v1879, 6.0
      %v1912 = vmin.f32 %v1880, 6.0
      %v1913 = vmin.f32 %v1881, 6.0
      %vm1946 = vcmask 1040384
      %v1947 = vrot.slane %v1882, 7
      %v1948 = vrot.slane %v1884, 7
      %v1949 = vsel %vm1946, %v1947, %v1948
      %v1950 = vrot.slane %v1883, 7
      %v1951 = vrot.slane %v1885, 7
      %v1952 = vsel %vm1946, %v1950, %v1951
      %v1953 = vrot.slane %v1886, 7
      %v1954 = vrot.slane %v1888, 7
      %v1955 = vsel %vm1946, %v1953, %v1954
      %v1956 = vrot.slane %v1887, 7
      %v1957 = vrot.slane %v1889, 7
      %v1958 = vsel %vm1946, %v1956, %v1957
      %v1959 = vrot.slane %v1890, 7
      %v1960 = vrot.slane %v1892, 7
      %v1961 = vsel %vm1946, %v1959, %v1960
      %v1962 = vrot.slane %v1891, 7
      %v1963 = vrot.slane %v1893, 7
      %v1964 = vsel %vm1946, %v1962, %v1963
      %v1965 = vrot.slane %v1894, 7
      %v1966 = vrot.slane %v1896, 7
      %v1967 = vsel %vm1946, %v1965, %v1966
      %v1968 = vrot.slane %v1895, 7
      %v1969 = vrot.slane %v1897, 7
      %v1970 = vsel %vm1946, %v1968, %v1969
      %v1971 = vrot.slane %v1898, 7
      %v1972 = vrot.slane %v1900, 7
      %v1973 = vsel %vm1946, %v1971, %v1972
      %v1974 = vrot.slane %v1899, 7
      %v1975 = vrot.slane %v1901, 7
      %v1976 = vsel %vm1946, %v1974, %v1975
      %v1977 = vrot.slane %v1902, 7
      %v1978 = vrot.slane %v1904, 7
      %v1979 = vsel %vm1946, %v1977, %v1978
      %v1980 = vrot.slane %v1903, 7
      %v1981 = vrot.slane %v1905, 7
      %v1982 = vsel %vm1946, %v1980, %v1981
      %v1983 = vrot.slane %v1906, 7
      %v1984 = vrot.slane %v1908, 7
      %v1985 = vsel %vm1946, %v1983, %v1984
      %v1986 = vrot.slane %v1907, 7
      %v1987 = vrot.slane %v1909, 7
      %v1988 = vsel %vm1946, %v1986, %v1987
      %v1989 = vrot.slane %v1910, 7
      %v1990 = vrot.slane %v1912, 7
      %v1991 = vsel %vm1946, %v1989, %v1990
      %v1992 = vrot.slane %v1911, 7
      %v1993 = vrot.slane %v1913, 7
      %v1994 = vsel %vm1946, %v1992, %v1993
      %v2011 = vpack.c.bf16 %v1955, %v1949
      %v2012 = vpack.c.bf16 %v1958, %v1952
      %v2013 = vpack.c.bf16 %v1967, %v1961
      %v2014 = vpack.c.bf16 %v1970, %v1964
      %v2015 = vpack.c.bf16 %v1979, %v1973
      %v2016 = vpack.c.bf16 %v1982, %v1976
      %v2017 = vpack.c.bf16 %v1991, %v1985
      %v2018 = vpack.c.bf16 %v1994, %v1988
      %v2019 = vld [vmem:[%s5] sm:$0xff]
      %v2020 = vld [vmem:[%s5 + $0x8] sm:$0xff]
      %v2021 = vld [vmem:[%s5 + $0x10] sm:$0xff]
      %v2022 = vld [vmem:[%s5 + $0x18] sm:$0xff]
      %v2023 = vld [vmem:[%s5 + $0x20] sm:$0xff]
      %v2024 = vld [vmem:[%s5 + $0x28] sm:$0xff]
      %v2025 = vld [vmem:[%s5 + $0x30] sm:$0xff]
      %v2026 = vld [vmem:[%s5 + $0x38] sm:$0xff]
      %v2027 = vld [vmem:[%s5 + $0x40] sm:$0xff]
      %v2028 = vld [vmem:[%s5 + $0x48] sm:$0xff]
      %v2029 = vld [vmem:[%s5 + $0x50] sm:$0xff]
      %v2030 = vld [vmem:[%s5 + $0x58] sm:$0xff]
      %v2031 = vld [vmem:[%s5 + $0x60] sm:$0xff]
      %v2032 = vld [vmem:[%s5 + $0x68] sm:$0xff]
      %v2033 = vld [vmem:[%s5 + $0x70] sm:$0xff]
      %v2034 = vld [vmem:[%s5 + $0x78] sm:$0xff]
      %v2035 = vld [vmem:[%s5 + $0x80] sm:$0xff]
      %v2036 = vld [vmem:[%s5 + $0x88] sm:$0xff]
      %v2037 = vld [vmem:[%s5 + $0x90] sm:$0xff]
      %v2038 = vld [vmem:[%s5 + $0x98] sm:$0xff]
      %v2039 = vld [vmem:[%s5 + $0xa0] sm:$0xff]
      %v2040 = vld [vmem:[%s5 + $0xa8] sm:$0xff]
      %v2041 = vld [vmem:[%s5 + $0xb0] sm:$0xff]
      %v2042 = vld [vmem:[%s5 + $0xb8] sm:$0xff]
      %v2043 = vpack.c.bf16 %v2020, %v2019
      %v2044 = vpack.c.bf16 %v2022, %v2021
      %v2045 = vpack.c.bf16 %v2024, %v2023
      %v2046 = vpack.c.bf16 %v2026, %v2025
      %v2047 = vpack.c.bf16 %v2028, %v2027
      %v2048 = vpack.c.bf16 %v2030, %v2029
      %v2049 = vpack.c.bf16 %v2032, %v2031
      %v2050 = vpack.c.bf16 %v2034, %v2033
      %v2051 = vpack.c.bf16 %v2036, %v2035
      %v2052 = vpack.c.bf16 %v2038, %v2037
      %v2053 = vpack.c.bf16 %v2040, %v2039
      %v2054 = vpack.c.bf16 %v2042, %v2041
      %v2055 = vld [vmem:[%s6] sm:$0x1]
      %v2057 = vlaneseq
      %v2058 = vshrl.u32 %v2057, 7
      %v2059 = vsub.s32 0, %v2058
      %v2060 = vrot.slane %v2055, %v2059
      %v2063 = vsel %vm435, %v2012, 0
      %v2066 = vsel %vm435, %v2014, 0
      %v2069 = vsel %vm435, %v2016, 0
      %v2072 = vsel %vm435, %v2018, 0
      %2074 = vmatprep.subr.bf16.mxu0 0
      %2075 = vmatpush1.bf16.msra.mxu0 %v2050
      %2076 = vmatprep.subr.bf16.mxu0 0
      %2077 = vmatpush1.bf16.msra.mxu0 %v2049
      %2078 = vmatprep.subr.bf16.mxu0 0
      %2079 = vmatpush1.bf16.msra.mxu0 %v2048
      %2080 = vmatprep.subr.bf16.mxu0 0
      %2081 = vmatpush1.bf16.msra.mxu0 %v2047
      %2082 = vmatprep.subr.bf16.mxu0 0
      %2083 = vmatpush1.bf16.msra.mxu0 %v2046
      %2084 = vmatprep.subr.bf16.mxu0 0
      %2085 = vmatpush1.bf16.msra.mxu0 %v2045
      %2086 = vmatprep.subr.bf16.mxu0 0
      %2087 = vmatpush1.bf16.msra.mxu0 %v2044
      %2088 = vmatprep.subr.bf16.mxu0 0
      %2089 = vmatpush1.bf16.msra.mxu0 %v2043
      %2090 = vmatprep.subr.bf16.mxu0 0
      %2091 = vmatpush2.bf16.msra.mxu0 0
      %2092 = vmatprep.subr.bf16.mxu0 0
      %2093 = vmatpush2.bf16.msra.mxu0 0
      %2094 = vmatprep.subr.bf16.mxu0 0
      %2095 = vmatpush2.bf16.msra.mxu0 0
      %2096 = vmatprep.subr.bf16.mxu0 0
      %2097 = vmatpush2.bf16.msra.mxu0 0
      %2098 = vmatprep.subr.bf16.mxu0 0
      %2099 = vmatpush2.bf16.msra.mxu0 %v2054
      %2100 = vmatprep.subr.bf16.mxu0 0
      %2101 = vmatpush2.bf16.msra.mxu0 %v2053
      %2102 = vmatprep.subr.bf16.mxu0 0
      %2103 = vmatpush2.bf16.msra.mxu0 %v2052
      %2104 = vmatprep.subr.bf16.mxu0 0
      %2105 = vmatpush2.bf16.msra.mxu0 %v2051
      %2106 = vmatprep.mubr.bf16.mxu0 %v2063
      %2107 = vmatmul.mubr.bf16.gmra.mxu0 %v2011
      %v2108 = vpop.f32.mrf.mxu0
      %v2109 = vadd.f32 %v2060, %v2108
      %v2110 = vpop.f32.mrf.mxu0
      %v2111 = vpop.f32.mrf.mxu0
      %v2112 = vadd.f32 %v2060, %v2111
      %v2113 = vpop.f32.mrf.mxu0
      %2114 = vmatprep.mubr.bf16.mxu0 %v2066
      %2115 = vmatmul.mubr.bf16.gmra.mxu0 %v2013
      %v2116 = vpop.f32.mrf.mxu0
      %v2117 = vadd.f32 %v2060, %v2116
      %v2118 = vpop.f32.mrf.mxu0
      %v2119 = vpop.f32.mrf.mxu0
      %v2120 = vadd.f32 %v2060, %v2119
      %v2121 = vpop.f32.mrf.mxu0
      %2122 = vmatprep.mubr.bf16.mxu0 %v2069
      %2123 = vmatmul.mubr.bf16.gmra.mxu0 %v2015
      %v2124 = vpop.f32.mrf.mxu0
      %v2125 = vadd.f32 %v2060, %v2124
      %v2126 = vpop.f32.mrf.mxu0
      %v2127 = vpop.f32.mrf.mxu0
      %v2128 = vadd.f32 %v2060, %v2127
      %v2129 = vpop.f32.mrf.mxu0
      %2130 = vmatprep.mubr.bf16.mxu0 %v2072
      %2131 = vmatmul.mubr.bf16.gmra.mxu0 %v2017
      %v2132 = vpop.f32.mrf.mxu0
      %v2133 = vadd.f32 %v2060, %v2132
      %v2134 = vpop.f32.mrf.mxu0
      %v2135 = vpop.f32.mrf.mxu0
      %v2136 = vadd.f32 %v2060, %v2135
      %v2137 = vpop.f32.mrf.mxu0
      %2138 = vdwg.mxu0
      %v2139 = vadd.f32 %v2109, %v280
      %v2140 = vadd.f32 %v2112, %v281
      %v2141 = vadd.f32 %v2117, %v282
      %v2142 = vadd.f32 %v2120, %v283
      %v2143 = vadd.f32 %v2125, %v284
      %v2144 = vadd.f32 %v2128, %v285
      %v2145 = vadd.f32 %v2133, %v286
      %v2146 = vadd.f32 %v2136, %v287
      %2147 = vst.msk [vmem:[%s278] sm:$0xff] %vm316, %v2139
      %2148 = vst.msk [vmem:[%s278 + $0x8] sm:$0xff] %vm316, %v2140
      %2149 = vst.msk [vmem:[%s278 + $0x10] sm:$0xff] %vm316, %v2141
      %2150 = vst.msk [vmem:[%s278 + $0x18] sm:$0xff] %vm316, %v2142
      %2151 = vst.msk [vmem:[%s278 + $0x20] sm:$0xff] %vm316, %v2143
      %2152 = vst.msk [vmem:[%s278 + $0x28] sm:$0xff] %vm316, %v2144
      %2153 = vst.msk [vmem:[%s278 + $0x30] sm:$0xff] %vm316, %v2145
      %2154 = vst.msk [vmem:[%s278 + $0x38] sm:$0xff] %vm316, %v2146
      %p2155 = scmp.lt.s32.totalorder %s18, 1
      %s2156 = scalar_select %p2155, %s18, 1
      %s2157 = smul.addr %s2156, 8
      %s2158 = smul.addr %s2157, 8
      %s2159 = scalar_lea.vmem %s7, %s2158
      // Predicated region
      $region49: #{mobilenet_v2_forward.8} parent=47 // pred_check
        %p2160 = pneg %p188
      $region50: #{mobilenet_v2_forward.8} parent=47 // pred_check_branch
        %2162 = sbr.rel (%p2160) target = $region52
      $region51: #{mobilenet_v2_forward.8} parent=47 // pred_region
        _
      $region52: #{mobilenet_v2_forward.8} parent=47 // pred_fallthru
        _
    $region48: #{mobilenet_v2_forward.8} parent=5 // pred_fallthru
      _
    %p2163 = scmp.le.s32.totalorder 2, %s13
    // Predicated region
    $region53: #{mobilenet_v2_forward.8} parent=5 // pred_check
      %p2164 = pneg %p2163
    $region54: #{mobilenet_v2_forward.8} parent=5 // pred_check_branch
      %2166 = sbr.rel (%p2164) target = $region56
    $region55: #{mobilenet_v2_forward.8} parent=5 // pred_region
      %s2167 = ssub.s32 %s13, 2
      // Predicated region
      $region57: #{mobilenet_v2_forward.8} parent=55 // pred_check
        %p2168 = pneg %p194
      $region58: #{mobilenet_v2_forward.8} parent=55 // pred_check_branch
        %2170 = sbr.rel (%p2168) target = $region60
      $region59: #{mobilenet_v2_forward.8} parent=55 // pred_region
        %p2171 = scmp.lt.s32.totalorder %s19, 1
        %s2172 = scalar_select %p2171, %s19, 1
        %s2173 = smul.addr %s2172, 8
        %s2174 = smul.addr %s2173, 8
        %s2175 = scalar_lea.vmem %s7, %s2174
      $region60: #{mobilenet_v2_forward.8} parent=55 // pred_fallthru
        _
    $region56: #{mobilenet_v2_forward.8} parent=5 // pred_fallthru
      _
  $region6: #{mobilenet_v2_forward.8} parent=0 // loop_footer
    %s17 = sadd.s32 1, %s13
  $region7: #{mobilenet_v2_forward.8} parent=0 // loop_footer_branch
    %12 = sbr.rel target = $region3
  $region8: #{mobilenet_v2_forward.8} parent=0 // loop_exit
    _

</llo_original>
